<compile_context>
chip_gen: v7x
topology: tpu7x:2x2x1
jax: 0.10.0
libtpu: 0.0.40
codegen_flags: <defaults>
</compile_context>

<pallas_src>
import functools

import jax
import jax.numpy as jnp
import numpy as np
from jax.experimental import pallas as pl
from jax.experimental.pallas import tpu as pltpu

NEG_SLOPE = 0.01   # PyTorch nn.LeakyReLU default


def _leaky_relu(x):
    return jnp.where(x > 0, x, NEG_SLOPE * x)


def _round_up(n, m):
    return ((n + m - 1) // m) * m


def _choose_batch_tile(batch, tb_max=1024):
    """Pick the batch tile.

    * multiple of 8 (sublane constraint for every (tb, width) BlockSpec),
    * as large as possible (<= tb_max) to amortize per-grid-step overhead,
    * but keeping >= 2 grid steps when the batch allows it, so the "parallel"
      batch axis can be sharded across both TensorCores on v7x.
    """
    b8 = _round_up(batch, 8)
    if b8 <= 8:
        tb = b8
    else:
        tb = min(tb_max, _round_up(-(-b8 // 2), 8))   # ceil(b8/2), rounded to 8
    tb = max(8, _round_up(tb, 8))
    bp = _round_up(batch, tb)
    return tb, bp


# --------------------------------------------------------------------------
# Kernel: one batch tile per grid step; tiny fused weights resident in VMEM.
# All feature dims are true-width (no lane padding).
# --------------------------------------------------------------------------
def vae_kernel(
    x_ref, eps_ref,
    w_enc, b_enc,       # [D_in, H], [1, H]
    w_mv, b_mv,         # [H, 2L],  [1, 2L]   (fused fc_mu | fc_var)
    w_dd, b_dd,         # [L, L],   [1, L]    (fused decoder_input @ decoder)
    w_fin, b_fin,       # [L, D_in],[1, D_in]
    recons_ref, mv_ref,
):
    x = x_ref[...]                                                        # [TB, D_in]

    # ----- encode -----
    h = jnp.dot(x, w_enc[...], preferred_element_type=jnp.float32) + b_enc[...]
    h = _leaky_relu(h)                                                    # [TB, H]

    # fused mu / log_var projection -> [TB, 2L]
    mv = jnp.dot(h, w_mv[...], preferred_element_type=jnp.float32) + b_mv[...]
    lat = mv.shape[-1] // 2
    mu = mv[:, :lat]                                                      # [TB, L]
    logvar = mv[:, lat:]                                                  # [TB, L]

    # ----- reparameterize -----
    z = eps_ref[...] * jnp.exp(0.5 * logvar) + mu                         # [TB, L]

    # ----- decode (decoder_input+decoder fused; LeakyReLU after) -----
    d = jnp.dot(z, w_dd[...], preferred_element_type=jnp.float32) + b_dd[...]
    d = _leaky_relu(d)                                                    # [TB, L]
    recons = jnp.dot(d, w_fin[...], preferred_element_type=jnp.float32) + b_fin[...]

    # true-width stores: recons [TB, D_in], mv [TB, 2L]  (single mu|logvar stream)
    recons_ref[...] = recons
    mv_ref[...] = mv


# --------------------------------------------------------------------------
# Wrapper-side parameter preparation: fuse (no padding needed).
# --------------------------------------------------------------------------
def prepare_fused_params(p):
    hi = jax.lax.Precision.HIGHEST

    # fc_mu | fc_var side-by-side -> one projection
    w_mv = jnp.concatenate([p["w_mu"], p["w_var"]], axis=1)               # [H, 2L]
    b_mv = jnp.concatenate([p["b_mu"], p["b_var"]], axis=1)               # [1, 2L]

    # decoder_input (L->H) immediately followed by the decoder Linear (H->L):
    # no nonlinearity in between, so collapse to a single [L, L] matmul.
    w_dd = jnp.dot(p["w_di"], p["w_dec"], precision=hi)                   # [L, L]
    b_dd = jnp.dot(p["b_di"], p["w_dec"], precision=hi) + p["b_dec"]      # [1, L]

    return dict(w_enc=p["w_enc"], b_enc=p["b_enc"],
                w_mv=w_mv, b_mv=b_mv,
                w_dd=w_dd, b_dd=b_dd,
                w_fin=p["w_fin"], b_fin=p["b_fin"])


# --------------------------------------------------------------------------
# Forward: batch-tiled 1-D grid, weights resident, parallel batch axis.
# --------------------------------------------------------------------------
@functools.partial(jax.jit, static_argnames=("tb_max",))
def vae_forward(x, eps, fp, *, tb_max=1024):
    B, D_in = x.shape
    L = eps.shape[1]
    twoL = fp["w_mv"].shape[1]

    tb, Bp = _choose_batch_tile(B, tb_max)

    # batch-only padding (feature dims stay true width); skipped when Bp == B
    x_p = x if Bp == B else jnp.pad(x, ((0, Bp - B), (0, 0)))
    eps_p = eps if Bp == B else jnp.pad(eps, ((0, Bp - B), (0, 0)))

    def row_spec(width):
        return pl.BlockSpec((tb, width), lambda i: (i, 0))

    def resident(arr):
        return pl.BlockSpec(arr.shape, lambda i: (0, 0))

    args = (
        x_p, eps_p,
        fp["w_enc"], fp["b_enc"],
        fp["w_mv"], fp["b_mv"],
        fp["w_dd"], fp["b_dd"],
        fp["w_fin"], fp["b_fin"],
    )
    in_specs = [row_spec(D_in), row_spec(L)] + [resident(a) for a in args[2:]]

    # Per-step VMEM footprint at tb=1024, D_in=16, L=8, H=32 is well under
    # 1 MiB (double-buffered tiles + resident weights + intermediates), so a
    # 32 MiB cap is safe on all generations incl. v7x (64 MiB physical VMEM).
    # Re-derive if input_dim / hidden / latent grow to real model sizes.
    recons_p, mv_p = pl.pallas_call(
        vae_kernel,
        grid=(Bp // tb,),
        in_specs=in_specs,
        out_specs=(row_spec(D_in), row_spec(twoL)),
        out_shape=(
            jax.ShapeDtypeStruct((Bp, D_in), jnp.float32),   # recons (true width)
            jax.ShapeDtypeStruct((Bp, twoL), jnp.float32),   # mu | log_var fused
        ),
        compiler_params=pltpu.CompilerParams(
            dimension_semantics=("parallel",),               # shard batch across TCs (v7x)
            vmem_limit_bytes=32 * 1024 * 1024,
        ),
    )(*args)

    if Bp != B:
        recons_p = recons_p[:B]
        mv_p = mv_p[:B]

    mu = mv_p[:, :L]
    logvar = mv_p[:, L:]
    # PyTorch forward returns [decode(z), input, mu, log_var]
    return [recons_p, x, mu, logvar]


# --------------------------------------------------------------------------
# Synthetic init + pure-JAX reference (unfused, mirrors PyTorch exactly)
# --------------------------------------------------------------------------
def init_params(key, input_dim, latent_dim, hidden_dim):
    ks = jax.random.split(key, 12)

    def lin(kw, kb, fan_in, fan_out):
        bound = 1.0 / np.sqrt(fan_in)
        w = jax.random.uniform(kw, (fan_in, fan_out), jnp.float32, -bound, bound)
        b = jax.random.uniform(kb, (1, fan_out), jnp.float32, -bound, bound)
        return w, b

    w_enc, b_enc = lin(ks[0], ks[1], input_dim, hidden_dim)
    w_mu, b_mu = lin(ks[2], ks[3], hidden_dim, latent_dim)
    w_var, b_var = lin(ks[4], ks[5], hidden_dim, latent_dim)
    w_di, b_di = lin(ks[6], ks[7], latent_dim, hidden_dim)
    w_dec, b_dec = lin(ks[8], ks[9], hidden_dim, latent_dim)
    w_fin, b_fin = lin(ks[10], ks[11], latent_dim, input_dim)
    return dict(
        w_enc=w_enc, b_enc=b_enc, w_mu=w_mu, b_mu=b_mu, w_var=w_var, b_var=b_var,
        w_di=w_di, b_di=b_di, w_dec=w_dec, b_dec=b_dec, w_fin=w_fin, b_fin=b_fin,
    )


def vae_forward_ref(x, eps, p):
    h = _leaky_relu(x @ p["w_enc"] + p["b_enc"])
    mu = h @ p["w_mu"] + p["b_mu"]
    logvar = h @ p["w_var"] + p["b_var"]
    z = eps * jnp.exp(0.5 * logvar) + mu
    d = z @ p["w_di"] + p["b_di"]
    d = _leaky_relu(d @ p["w_dec"] + p["b_dec"])
    recons = d @ p["w_fin"] + p["b_fin"]
    return [recons, x, mu, logvar]


if __name__ == "__main__":
    # Module-consistent small feature dims; batch large enough that the
    # adaptive tiler picks TB=1024 with a 2-step "parallel" grid (one step
    # per TensorCore on v7x). Total data is still tiny (< 200 KiB).
    B, INPUT_DIM, LATENT_DIM, HIDDEN_DIM = 2048, 16, 8, 32

    key = jax.random.PRNGKey(0)
    k_x, k_eps, k_params = jax.random.split(key, 3)

    x = jax.random.normal(k_x, (B, INPUT_DIM), jnp.float32)
    # eps generated in plain JAX (mirrors torch.randn_like, deterministic here)
    eps = jax.random.normal(k_eps, (B, LATENT_DIM), jnp.float32)
    params = init_params(k_params, INPUT_DIM, LATENT_DIM, HIDDEN_DIM)
    fused = prepare_fused_params(params)

    recons, inp, mu, logvar = vae_forward(x, eps, fused)
    jax.block_until_ready((recons, inp, mu, logvar))

    r_ref, _, mu_ref, lv_ref = vae_forward_ref(x, eps, params)
    np.testing.assert_allclose(np.asarray(recons), np.asarray(r_ref), rtol=5e-5, atol=5e-5)
    np.testing.assert_allclose(np.asarray(mu), np.asarray(mu_ref), rtol=5e-5, atol=5e-5)
    np.testing.assert_allclose(np.asarray(logvar), np.asarray(lv_ref), rtol=5e-5, atol=5e-5)
    np.testing.assert_allclose(np.asarray(inp), np.asarray(x), rtol=0, atol=0)

    print("KERNEL_OK")
</pallas_src>

<mosaic_0001>
module attributes {stable_mosaic.version = 11 : i64} {
  func.func @vae_kernel(%arg0: i32, %arg1: memref<1024x16xf32, #tpu.memory_space<vmem>>, %arg2: memref<1024x8xf32, #tpu.memory_space<vmem>>, %arg3: memref<16x32xf32, #tpu.memory_space<vmem>>, %arg4: memref<1x32xf32, #tpu.memory_space<vmem>>, %arg5: memref<32x16xf32, #tpu.memory_space<vmem>>, %arg6: memref<1x16xf32, #tpu.memory_space<vmem>>, %arg7: memref<8x8xf32, #tpu.memory_space<vmem>>, %arg8: memref<1x8xf32, #tpu.memory_space<vmem>>, %arg9: memref<8x16xf32, #tpu.memory_space<vmem>>, %arg10: memref<1x16xf32, #tpu.memory_space<vmem>>, %arg11: memref<1024x16xf32, #tpu.memory_space<vmem>>, %arg12: memref<1024x16xf32, #tpu.memory_space<vmem>>) attributes {dimension_semantics = [#tpu.dimension_semantics<parallel>], iteration_bounds = array<i64: 2>, scalar_prefetch = 0 : i64, scratch_operands = 0 : i64, tpu.core_type = #tpu.core_type<tc>, window_params = [{transform_indices = @transform_0, window_bounds = array<i64: 1024, 16>}, {transform_indices = @transform_1, window_bounds = array<i64: 1024, 8>}, {pipeline_mode = #tpu.pipeline_mode<synchronous>, transform_indices = @transform_2, window_bounds = array<i64: 16, 32>}, {pipeline_mode = #tpu.pipeline_mode<synchronous>, transform_indices = @transform_3, window_bounds = array<i64: 1, 32>}, {pipeline_mode = #tpu.pipeline_mode<synchronous>, transform_indices = @transform_4, window_bounds = array<i64: 32, 16>}, {pipeline_mode = #tpu.pipeline_mode<synchronous>, transform_indices = @transform_5, window_bounds = array<i64: 1, 16>}, {pipeline_mode = #tpu.pipeline_mode<synchronous>, transform_indices = @transform_6, window_bounds = array<i64: 8, 8>}, {pipeline_mode = #tpu.pipeline_mode<synchronous>, transform_indices = @transform_7, window_bounds = array<i64: 1, 8>}, {pipeline_mode = #tpu.pipeline_mode<synchronous>, transform_indices = @transform_8, window_bounds = array<i64: 8, 16>}, {pipeline_mode = #tpu.pipeline_mode<synchronous>, transform_indices = @transform_9, window_bounds = array<i64: 1, 16>}, {transform_indices = @transform_10, window_bounds = array<i64: 1024, 16>}, {transform_indices = @transform_11, window_bounds = array<i64: 1024, 16>}]} {
    %c0 = arith.constant 0 : index
    %c0_0 = arith.constant 0 : index
    %0 = vector.load %arg1[%c0, %c0_0] : memref<1024x16xf32, #tpu.memory_space<vmem>>, vector<1024x16xf32>
    %c0_1 = arith.constant 0 : index
    %c0_2 = arith.constant 0 : index
    %1 = vector.load %arg3[%c0_1, %c0_2] : memref<16x32xf32, #tpu.memory_space<vmem>>, vector<16x32xf32>
    %cst = arith.constant dense<0.000000e+00> : vector<1024x32xf32>
    %2 = tpu.matmul %0, %1, %cst {dimension_numbers = #tpu.dot_dimension_numbers<[1], [0], [0], [1], [0, 0, 1, 1], [], []>} : vector<1024x16xf32>, vector<16x32xf32>, vector<1024x32xf32> -> vector<1024x32xf32>
    %c0_3 = arith.constant 0 : index
    %c0_4 = arith.constant 0 : index
    %3 = vector.load %arg4[%c0_3, %c0_4] : memref<1x32xf32, #tpu.memory_space<vmem>>, vector<1x32xf32>
    %4 = vector.broadcast %3 : vector<1x32xf32> to vector<1024x32xf32>
    %5 = arith.addf %2, %4 : vector<1024x32xf32>
    %cst_5 = arith.constant 0.000000e+00 : f32
    %6 = vector.broadcast %cst_5 : f32 to vector<1024x32xf32>
    %7 = arith.cmpf ogt, %5, %6 : vector<1024x32xf32>
    %cst_6 = arith.constant 0.00999999977 : f32
    %8 = vector.broadcast %cst_6 : f32 to vector<1024x32xf32>
    %9 = arith.mulf %8, %5 : vector<1024x32xf32>
    %10 = arith.select %7, %5, %9 : vector<1024x32xi1>, vector<1024x32xf32>
    %c0_7 = arith.constant 0 : index
    %c0_8 = arith.constant 0 : index
    %11 = vector.load %arg5[%c0_7, %c0_8] : memref<32x16xf32, #tpu.memory_space<vmem>>, vector<32x16xf32>
    %cst_9 = arith.constant dense<0.000000e+00> : vector<1024x16xf32>
    %12 = tpu.matmul %10, %11, %cst_9 {dimension_numbers = #tpu.dot_dimension_numbers<[1], [0], [0], [1], [0, 0, 1, 1], [], []>} : vector<1024x32xf32>, vector<32x16xf32>, vector<1024x16xf32> -> vector<1024x16xf32>
    %c0_10 = arith.constant 0 : index
    %c0_11 = arith.constant 0 : index
    %13 = vector.load %arg6[%c0_10, %c0_11] : memref<1x16xf32, #tpu.memory_space<vmem>>, vector<1x16xf32>
    %14 = vector.broadcast %13 : vector<1x16xf32> to vector<1024x16xf32>
    %15 = arith.addf %12, %14 : vector<1024x16xf32>
    %16 = vector.extract_strided_slice %15 {offsets = [0, 0], sizes = [1024, 8], strides = [1, 1]} : vector<1024x16xf32> to vector<1024x8xf32>
    %17 = vector.extract_strided_slice %15 {offsets = [0, 8], sizes = [1024, 8], strides = [1, 1]} : vector<1024x16xf32> to vector<1024x8xf32>
    %c0_12 = arith.constant 0 : index
    %c0_13 = arith.constant 0 : index
    %18 = vector.load %arg2[%c0_12, %c0_13] : memref<1024x8xf32, #tpu.memory_space<vmem>>, vector<1024x8xf32>
    %cst_14 = arith.constant 5.000000e-01 : f32
    %19 = vector.broadcast %cst_14 : f32 to vector<1024x8xf32>
    %20 = arith.mulf %19, %17 : vector<1024x8xf32>
    %21 = math.exp %20 : vector<1024x8xf32>
    %22 = arith.mulf %18, %21 : vector<1024x8xf32>
    %23 = arith.addf %22, %16 : vector<1024x8xf32>
    %c0_15 = arith.constant 0 : index
    %c0_16 = arith.constant 0 : index
    %24 = vector.load %arg7[%c0_15, %c0_16] : memref<8x8xf32, #tpu.memory_space<vmem>>, vector<8x8xf32>
    %cst_17 = arith.constant dense<0.000000e+00> : vector<1024x8xf32>
    %25 = tpu.matmul %23, %24, %cst_17 {dimension_numbers = #tpu.dot_dimension_numbers<[1], [0], [0], [1], [0, 0, 1, 1], [], []>} : vector<1024x8xf32>, vector<8x8xf32>, vector<1024x8xf32> -> vector<1024x8xf32>
    %c0_18 = arith.constant 0 : index
    %c0_19 = arith.constant 0 : index
    %26 = vector.load %arg8[%c0_18, %c0_19] : memref<1x8xf32, #tpu.memory_space<vmem>>, vector<1x8xf32>
    %27 = vector.broadcast %26 : vector<1x8xf32> to vector<1024x8xf32>
    %28 = arith.addf %25, %27 : vector<1024x8xf32>
    %cst_20 = arith.constant 0.000000e+00 : f32
    %29 = vector.broadcast %cst_20 : f32 to vector<1024x8xf32>
    %30 = arith.cmpf ogt, %28, %29 : vector<1024x8xf32>
    %cst_21 = arith.constant 0.00999999977 : f32
    %31 = vector.broadcast %cst_21 : f32 to vector<1024x8xf32>
    %32 = arith.mulf %31, %28 : vector<1024x8xf32>
    %33 = arith.select %30, %28, %32 : vector<1024x8xi1>, vector<1024x8xf32>
    %c0_22 = arith.constant 0 : index
    %c0_23 = arith.constant 0 : index
    %34 = vector.load %arg9[%c0_22, %c0_23] : memref<8x16xf32, #tpu.memory_space<vmem>>, vector<8x16xf32>
    %cst_24 = arith.constant dense<0.000000e+00> : vector<1024x16xf32>
    %35 = tpu.matmul %33, %34, %cst_24 {dimension_numbers = #tpu.dot_dimension_numbers<[1], [0], [0], [1], [0, 0, 1, 1], [], []>} : vector<1024x8xf32>, vector<8x16xf32>, vector<1024x16xf32> -> vector<1024x16xf32>
    %c0_25 = arith.constant 0 : index
    %c0_26 = arith.constant 0 : index
    %36 = vector.load %arg10[%c0_25, %c0_26] : memref<1x16xf32, #tpu.memory_space<vmem>>, vector<1x16xf32>
    %37 = vector.broadcast %36 : vector<1x16xf32> to vector<1024x16xf32>
    %38 = arith.addf %35, %37 : vector<1024x16xf32>
    %c0_27 = arith.constant 0 : index
    %c0_28 = arith.constant 0 : index
    %39 = vector.load %arg11[%c0_27, %c0_28] : memref<1024x16xf32, #tpu.memory_space<vmem>>, vector<1024x16xf32>
    tpu.vector_store %arg11[%c0_27, %c0_28], %38 {strides = array<i32>} : memref<1024x16xf32, #tpu.memory_space<vmem>>, vector<1024x16xf32>,
    %c0_29 = arith.constant 0 : index
    %c0_30 = arith.constant 0 : index
    %40 = vector.load %arg12[%c0_29, %c0_30] : memref<1024x16xf32, #tpu.memory_space<vmem>>, vector<1024x16xf32>
    tpu.vector_store %arg12[%c0_29, %c0_30], %15 {strides = array<i32>} : memref<1024x16xf32, #tpu.memory_space<vmem>>, vector<1024x16xf32>,
    return
  }
  func.func @transform_0(%arg0: i32) -> (i32, i32) {
    %c0_i32 = arith.constant 0 : i32
    %c0_i32_0 = arith.constant 0 : i32
    return %arg0, %c0_i32 : i32, i32
  }
  func.func @transform_1(%arg0: i32) -> (i32, i32) {
    %c0_i32 = arith.constant 0 : i32
    %c0_i32_0 = arith.constant 0 : i32
    return %arg0, %c0_i32 : i32, i32
  }
  func.func @transform_2(%arg0: i32) -> (i32, i32) {
    %c0_i32 = arith.constant 0 : i32
    %c0_i32_0 = arith.constant 0 : i32
    %c0_i32_1 = arith.constant 0 : i32
    return %c0_i32, %c0_i32_0 : i32, i32
  }
  func.func @transform_3(%arg0: i32) -> (i32, i32) {
    %c0_i32 = arith.constant 0 : i32
    %c0_i32_0 = arith.constant 0 : i32
    %c0_i32_1 = arith.constant 0 : i32
    return %c0_i32, %c0_i32_0 : i32, i32
  }
  func.func @transform_4(%arg0: i32) -> (i32, i32) {
    %c0_i32 = arith.constant 0 : i32
    %c0_i32_0 = arith.constant 0 : i32
    %c0_i32_1 = arith.constant 0 : i32
    return %c0_i32, %c0_i32_0 : i32, i32
  }
  func.func @transform_5(%arg0: i32) -> (i32, i32) {
    %c0_i32 = arith.constant 0 : i32
    %c0_i32_0 = arith.constant 0 : i32
    %c0_i32_1 = arith.constant 0 : i32
    return %c0_i32, %c0_i32_0 : i32, i32
  }
  func.func @transform_6(%arg0: i32) -> (i32, i32) {
    %c0_i32 = arith.constant 0 : i32
    %c0_i32_0 = arith.constant 0 : i32
    %c0_i32_1 = arith.constant 0 : i32
    return %c0_i32, %c0_i32_0 : i32, i32
  }
  func.func @transform_7(%arg0: i32) -> (i32, i32) {
    %c0_i32 = arith.constant 0 : i32
    %c0_i32_0 = arith.constant 0 : i32
    %c0_i32_1 = arith.constant 0 : i32
    return %c0_i32, %c0_i32_0 : i32, i32
  }
  func.func @transform_8(%arg0: i32) -> (i32, i32) {
    %c0_i32 = arith.constant 0 : i32
    %c0_i32_0 = arith.constant 0 : i32
    %c0_i32_1 = arith.constant 0 : i32
    return %c0_i32, %c0_i32_0 : i32, i32
  }
  func.func @transform_9(%arg0: i32) -> (i32, i32) {
    %c0_i32 = arith.constant 0 : i32
    %c0_i32_0 = arith.constant 0 : i32
    %c0_i32_1 = arith.constant 0 : i32
    return %c0_i32, %c0_i32_0 : i32, i32
  }
  func.func @transform_10(%arg0: i32) -> (i32, i32) {
    %c0_i32 = arith.constant 0 : i32
    %c0_i32_0 = arith.constant 0 : i32
    return %arg0, %c0_i32 : i32, i32
  }
  func.func @transform_11(%arg0: i32) -> (i32, i32) {
    %c0_i32 = arith.constant 0 : i32
    %c0_i32_0 = arith.constant 0 : i32
    return %arg0, %c0_i32 : i32, i32
  }
}

</mosaic_0001>

<llo_original>
// kernel: vae_forward.1
$region0: #{vae_forward.1}
  #allocation0 [shape = 'u32[]', space=smem, size = 0x4, offset = 0x4, fixed_abs, tag = 'smem constant byte address 0x4 - core index']
  #allocation1 [shape = 'u32[144,128]{1,0:T(1,128)}', space=vmem, size = 0x12000, scoped, tag = 'internal scratch']
  %s0 = inlined_call_operand.vmem [shape: f32[2048,16], index: 0, kind: input, shape index: {}]
  %s1 = inlined_call_operand.vmem [shape: f32[2048,8], index: 1, kind: input, shape index: {}]
  %s2 = inlined_call_operand.vmem [shape: f32[16,32], index: 2, kind: input, shape index: {}]
  %s3 = inlined_call_operand.vmem [shape: f32[1,32], index: 3, kind: input, shape index: {}]
  %s4 = inlined_call_operand.vmem [shape: f32[32,16], index: 4, kind: input, shape index: {}]
  %s5 = inlined_call_operand.vmem [shape: f32[1,16], index: 5, kind: input, shape index: {}]
  %s6 = inlined_call_operand.vmem [shape: f32[8,8], index: 6, kind: input, shape index: {}]
  %s7 = inlined_call_operand.vmem [shape: f32[1,8], index: 7, kind: input, shape index: {}]
  %s8 = inlined_call_operand.vmem [shape: f32[8,16], index: 8, kind: input, shape index: {}]
  %s9 = inlined_call_operand.vmem [shape: f32[1,16], index: 9, kind: input, shape index: {}]
  %s10 = inlined_call_operand.vmem [shape: f32[2048,16], index: 10, kind: output, shape index: {0}]
  %s11 = inlined_call_operand.vmem [shape: f32[2048,16], index: 11, kind: output, shape index: {1}]
  %12 = xla_tuple %s10, %s11
  %s13 = sld [smem:[#allocation0]]
  $region81: #{vae_forward.1} parent=0
    _
  %s15 = ssub.s32 1, %s13
  %s16 = scalar_select 0, %s15, %s13
  loop: start=0, step=1, limit=4
  $region2: #{vae_forward.1} parent=0 // loop_pre_header
    _
  $region3: #{vae_forward.1} parent=0 // loop_header
    %s18 = sphi 0, %s22
    %p19 = scmp.ge.s32.totalorder %s18, 4
    %s28 = sphi 0, %s30
    %s31 = sphi 0, %s28
    %s32 = sphi 0, %s31
    %s48 = sphi 0, %s32
    %s54 = sphi 0, %s56
    %s57 = sphi 0, %s54
    %s58 = sphi 0, %s57
    %s74 = sphi 0, %s58
    %s78 = sphi 0, %s78
    %s80 = sphi 0, %s78
    %s81 = sphi 0, %s80
    %s95 = sphi 0, %s81
    %s99 = sphi 0, %s99
    %s101 = sphi 0, %s99
    %s102 = sphi 0, %s101
    %s116 = sphi 0, %s102
    %s120 = sphi 0, %s120
    %s122 = sphi 0, %s120
    %s123 = sphi 0, %s122
    %s137 = sphi 0, %s123
    %s141 = sphi 0, %s141
    %s143 = sphi 0, %s141
    %s144 = sphi 0, %s143
    %s158 = sphi 0, %s144
    %s162 = sphi 0, %s162
    %s164 = sphi 0, %s162
    %s165 = sphi 0, %s164
    %s179 = sphi 0, %s165
    %s183 = sphi 0, %s183
    %s185 = sphi 0, %s183
    %s186 = sphi 0, %s185
    %s200 = sphi 0, %s186
    %s204 = sphi 0, %s204
    %s206 = sphi 0, %s204
    %s207 = sphi 0, %s206
    %s221 = sphi 0, %s207
    %s225 = sphi 0, %s225
    %s227 = sphi 0, %s225
    %s228 = sphi 0, %s227
    %s242 = sphi 0, %s228
    %s248 = sphi 0, %s250
    %s251 = sphi 0, %s248
    %s252 = sphi 0, %s251
    %s268 = sphi 0, %s252
    %s274 = sphi 0, %s276
    %s277 = sphi 0, %s274
    %s278 = sphi 0, %s277
    %s294 = sphi 0, %s278
  $region4: #{vae_forward.1} parent=0 // loop_header_branch
    %21 = sbr.rel (%p19) target = $region8
  $region5: #{vae_forward.1} parent=0 // loop_body
    %s23 = ssub.s32 %s18, 1
    %s24 = ssub.s32 %s18, 2
    %s25 = sadd.s32 %s18, 1
    %s26 = ssub.s32 %s18, %s25
    %p27 = scmp.eq.s32.totalorder %s26, 0
    %s29 = sadd.s32 %s28, 1
    %s30 = scalar_select %p27, %s28, %s29
    %p33 = pneg %p27
    %p34 = scmp.eq.s32.totalorder %s18, 1
    %p35 = por %p33, %p34
    %p36 = scmp.ne.s32.totalorder %s28, %s31
    %p37 = scmp.eq.s32.totalorder %s18, 0
    %p38 = por %p36, %p37
    %p39 = scmp.ne.s32.totalorder %s28, %s31
    %p40 = scmp.eq.s32.totalorder %s23, 1
    %p41 = por %p39, %p40
    %p42 = scmp.ne.s32.totalorder %s31, %s32
    %p43 = scmp.eq.s32.totalorder %s23, 0
    %p44 = por %p42, %p43
    %p45 = scmp.ne.s32.totalorder %s31, %s32
    %p46 = scmp.eq.s32.totalorder %s24, 1
    %p47 = por %p45, %p46
    %p49 = scmp.ne.s32.totalorder %s32, %s48
    %p50 = scmp.eq.s32.totalorder %s24, 0
    %p51 = por %p49, %p50
    %s52 = ssub.s32 %s18, %s25
    %p53 = scmp.eq.s32.totalorder %s52, 0
    %s55 = sadd.s32 %s54, 1
    %s56 = scalar_select %p53, %s54, %s55
    %p59 = pneg %p53
    %p60 = scmp.eq.s32.totalorder %s18, 1
    %p61 = por %p59, %p60
    %p62 = scmp.ne.s32.totalorder %s54, %s57
    %p63 = scmp.eq.s32.totalorder %s18, 0
    %p64 = por %p62, %p63
    %p65 = scmp.ne.s32.totalorder %s54, %s57
    %p66 = scmp.eq.s32.totalorder %s23, 1
    %p67 = por %p65, %p66
    %p68 = scmp.ne.s32.totalorder %s57, %s58
    %p69 = scmp.eq.s32.totalorder %s23, 0
    %p70 = por %p68, %p69
    %p71 = scmp.ne.s32.totalorder %s57, %s58
    %p72 = scmp.eq.s32.totalorder %s24, 1
    %p73 = por %p71, %p72
    %p75 = scmp.ne.s32.totalorder %s58, %s74
    %p76 = scmp.eq.s32.totalorder %s24, 0
    %p77 = por %p75, %p76
    %s79 = sadd.s32 %s78, 1
    %p82 = scmp.eq.s32.totalorder %s18, 1
    %p83 = scmp.ne.s32.totalorder %s78, %s80
    %p84 = scmp.eq.s32.totalorder %s18, 0
    %p85 = por %p83, %p84
    %p86 = scmp.ne.s32.totalorder %s78, %s80
    %p87 = scmp.eq.s32.totalorder %s23, 1
    %p88 = por %p86, %p87
    %p89 = scmp.ne.s32.totalorder %s80, %s81
    %p90 = scmp.eq.s32.totalorder %s23, 0
    %p91 = por %p89, %p90
    %p92 = scmp.ne.s32.totalorder %s80, %s81
    %p93 = scmp.eq.s32.totalorder %s24, 1
    %p94 = por %p92, %p93
    %p96 = scmp.ne.s32.totalorder %s81, %s95
    %p97 = scmp.eq.s32.totalorder %s24, 0
    %p98 = por %p96, %p97
    %s100 = sadd.s32 %s99, 1
    %p103 = scmp.eq.s32.totalorder %s18, 1
    %p104 = scmp.ne.s32.totalorder %s99, %s101
    %p105 = scmp.eq.s32.totalorder %s18, 0
    %p106 = por %p104, %p105
    %p107 = scmp.ne.s32.totalorder %s99, %s101
    %p108 = scmp.eq.s32.totalorder %s23, 1
    %p109 = por %p107, %p108
    %p110 = scmp.ne.s32.totalorder %s101, %s102
    %p111 = scmp.eq.s32.totalorder %s23, 0
    %p112 = por %p110, %p111
    %p113 = scmp.ne.s32.totalorder %s101, %s102
    %p114 = scmp.eq.s32.totalorder %s24, 1
    %p115 = por %p113, %p114
    %p117 = scmp.ne.s32.totalorder %s102, %s116
    %p118 = scmp.eq.s32.totalorder %s24, 0
    %p119 = por %p117, %p118
    %s121 = sadd.s32 %s120, 1
    %p124 = scmp.eq.s32.totalorder %s18, 1
    %p125 = scmp.ne.s32.totalorder %s120, %s122
    %p126 = scmp.eq.s32.totalorder %s18, 0
    %p127 = por %p125, %p126
    %p128 = scmp.ne.s32.totalorder %s120, %s122
    %p129 = scmp.eq.s32.totalorder %s23, 1
    %p130 = por %p128, %p129
    %p131 = scmp.ne.s32.totalorder %s122, %s123
    %p132 = scmp.eq.s32.totalorder %s23, 0
    %p133 = por %p131, %p132
    %p134 = scmp.ne.s32.totalorder %s122, %s123
    %p135 = scmp.eq.s32.totalorder %s24, 1
    %p136 = por %p134, %p135
    %p138 = scmp.ne.s32.totalorder %s123, %s137
    %p139 = scmp.eq.s32.totalorder %s24, 0
    %p140 = por %p138, %p139
    %s142 = sadd.s32 %s141, 1
    %p145 = scmp.eq.s32.totalorder %s18, 1
    %p146 = scmp.ne.s32.totalorder %s141, %s143
    %p147 = scmp.eq.s32.totalorder %s18, 0
    %p148 = por %p146, %p147
    %p149 = scmp.ne.s32.totalorder %s141, %s143
    %p150 = scmp.eq.s32.totalorder %s23, 1
    %p151 = por %p149, %p150
    %p152 = scmp.ne.s32.totalorder %s143, %s144
    %p153 = scmp.eq.s32.totalorder %s23, 0
    %p154 = por %p152, %p153
    %p155 = scmp.ne.s32.totalorder %s143, %s144
    %p156 = scmp.eq.s32.totalorder %s24, 1
    %p157 = por %p155, %p156
    %p159 = scmp.ne.s32.totalorder %s144, %s158
    %p160 = scmp.eq.s32.totalorder %s24, 0
    %p161 = por %p159, %p160
    %s163 = sadd.s32 %s162, 1
    %p166 = scmp.eq.s32.totalorder %s18, 1
    %p167 = scmp.ne.s32.totalorder %s162, %s164
    %p168 = scmp.eq.s32.totalorder %s18, 0
    %p169 = por %p167, %p168
    %p170 = scmp.ne.s32.totalorder %s162, %s164
    %p171 = scmp.eq.s32.totalorder %s23, 1
    %p172 = por %p170, %p171
    %p173 = scmp.ne.s32.totalorder %s164, %s165
    %p174 = scmp.eq.s32.totalorder %s23, 0
    %p175 = por %p173, %p174
    %p176 = scmp.ne.s32.totalorder %s164, %s165
    %p177 = scmp.eq.s32.totalorder %s24, 1
    %p178 = por %p176, %p177
    %p180 = scmp.ne.s32.totalorder %s165, %s179
    %p181 = scmp.eq.s32.totalorder %s24, 0
    %p182 = por %p180, %p181
    %s184 = sadd.s32 %s183, 1
    %p187 = scmp.eq.s32.totalorder %s18, 1
    %p188 = scmp.ne.s32.totalorder %s183, %s185
    %p189 = scmp.eq.s32.totalorder %s18, 0
    %p190 = por %p188, %p189
    %p191 = scmp.ne.s32.totalorder %s183, %s185
    %p192 = scmp.eq.s32.totalorder %s23, 1
    %p193 = por %p191, %p192
    %p194 = scmp.ne.s32.totalorder %s185, %s186
    %p195 = scmp.eq.s32.totalorder %s23, 0
    %p196 = por %p194, %p195
    %p197 = scmp.ne.s32.totalorder %s185, %s186
    %p198 = scmp.eq.s32.totalorder %s24, 1
    %p199 = por %p197, %p198
    %p201 = scmp.ne.s32.totalorder %s186, %s200
    %p202 = scmp.eq.s32.totalorder %s24, 0
    %p203 = por %p201, %p202
    %s205 = sadd.s32 %s204, 1
    %p208 = scmp.eq.s32.totalorder %s18, 1
    %p209 = scmp.ne.s32.totalorder %s204, %s206
    %p210 = scmp.eq.s32.totalorder %s18, 0
    %p211 = por %p209, %p210
    %p212 = scmp.ne.s32.totalorder %s204, %s206
    %p213 = scmp.eq.s32.totalorder %s23, 1
    %p214 = por %p212, %p213
    %p215 = scmp.ne.s32.totalorder %s206, %s207
    %p216 = scmp.eq.s32.totalorder %s23, 0
    %p217 = por %p215, %p216
    %p218 = scmp.ne.s32.totalorder %s206, %s207
    %p219 = scmp.eq.s32.totalorder %s24, 1
    %p220 = por %p218, %p219
    %p222 = scmp.ne.s32.totalorder %s207, %s221
    %p223 = scmp.eq.s32.totalorder %s24, 0
    %p224 = por %p222, %p223
    %s226 = sadd.s32 %s225, 1
    %p229 = scmp.eq.s32.totalorder %s18, 1
    %p230 = scmp.ne.s32.totalorder %s225, %s227
    %p231 = scmp.eq.s32.totalorder %s18, 0
    %p232 = por %p230, %p231
    %p233 = scmp.ne.s32.totalorder %s225, %s227
    %p234 = scmp.eq.s32.totalorder %s23, 1
    %p235 = por %p233, %p234
    %p236 = scmp.ne.s32.totalorder %s227, %s228
    %p237 = scmp.eq.s32.totalorder %s23, 0
    %p238 = por %p236, %p237
    %p239 = scmp.ne.s32.totalorder %s227, %s228
    %p240 = scmp.eq.s32.totalorder %s24, 1
    %p241 = por %p239, %p240
    %p243 = scmp.ne.s32.totalorder %s228, %s242
    %p244 = scmp.eq.s32.totalorder %s24, 0
    %p245 = por %p243, %p244
    %s246 = ssub.s32 %s18, %s25
    %p247 = scmp.eq.s32.totalorder %s246, 0
    %s249 = sadd.s32 %s248, 1
    %s250 = scalar_select %p247, %s248, %s249
    %p253 = pneg %p247
    %p254 = scmp.eq.s32.totalorder %s18, 1
    %p255 = por %p253, %p254
    %p256 = scmp.ne.s32.totalorder %s248, %s251
    %p257 = scmp.eq.s32.totalorder %s18, 0
    %p258 = por %p256, %p257
    %p259 = scmp.ne.s32.totalorder %s248, %s251
    %p260 = scmp.eq.s32.totalorder %s23, 1
    %p261 = por %p259, %p260
    %p262 = scmp.ne.s32.totalorder %s251, %s252
    %p263 = scmp.eq.s32.totalorder %s23, 0
    %p264 = por %p262, %p263
    %p265 = scmp.ne.s32.totalorder %s251, %s252
    %p266 = scmp.eq.s32.totalorder %s24, 1
    %p267 = por %p265, %p266
    %p269 = scmp.ne.s32.totalorder %s252, %s268
    %p270 = scmp.eq.s32.totalorder %s24, 0
    %p271 = por %p269, %p270
    %s272 = ssub.s32 %s18, %s25
    %p273 = scmp.eq.s32.totalorder %s272, 0
    %s275 = sadd.s32 %s274, 1
    %s276 = scalar_select %p273, %s274, %s275
    %p279 = pneg %p273
    %p280 = scmp.eq.s32.totalorder %s18, 1
    %p281 = por %p279, %p280
    %p282 = scmp.ne.s32.totalorder %s274, %s277
    %p283 = scmp.eq.s32.totalorder %s18, 0
    %p284 = por %p282, %p283
    %p285 = scmp.ne.s32.totalorder %s274, %s277
    %p286 = scmp.eq.s32.totalorder %s23, 1
    %p287 = por %p285, %p286
    %p288 = scmp.ne.s32.totalorder %s277, %s278
    %p289 = scmp.eq.s32.totalorder %s23, 0
    %p290 = por %p288, %p289
    %p291 = scmp.ne.s32.totalorder %s277, %s278
    %p292 = scmp.eq.s32.totalorder %s24, 1
    %p293 = por %p291, %p292
    %p295 = scmp.ne.s32.totalorder %s278, %s294
    %p296 = scmp.eq.s32.totalorder %s24, 0
    %p297 = por %p295, %p296
    %p298 = scmp.le.s32.totalorder 1, %s18
    %p299 = scmp.lt.s32.totalorder %s18, 3
    %p300 = pnand %p298, %p299
    %p301 = pneg %p300
    // Predicated region
    $region9: #{vae_forward.1} parent=5 // pred_check
      _
    $region10: #{vae_forward.1} parent=5 // pred_check_branch
      %303 = sbr.rel (%p300) target = $region12
    $region11: #{vae_forward.1} parent=5 // pred_region
      %s304 = ssub.s32 %s18, 1
      // Predicated region
      $region13: #{vae_forward.1} parent=11 // pred_check
        %p305 = pneg %p91
      $region14: #{vae_forward.1} parent=11 // pred_check_branch
        %307 = sbr.rel (%p305) target = $region16
      $region15: #{vae_forward.1} parent=11 // pred_region
        _
      $region16: #{vae_forward.1} parent=11 // pred_fallthru
        _
      // Predicated region
      $region17: #{vae_forward.1} parent=11 // pred_check
        %p308 = pneg %p112
      $region18: #{vae_forward.1} parent=11 // pred_check_branch
        %310 = sbr.rel (%p308) target = $region20
      $region19: #{vae_forward.1} parent=11 // pred_region
        _
      $region20: #{vae_forward.1} parent=11 // pred_fallthru
        _
      // Predicated region
      $region21: #{vae_forward.1} parent=11 // pred_check
        %p311 = pneg %p133
      $region22: #{vae_forward.1} parent=11 // pred_check_branch
        %313 = sbr.rel (%p311) target = $region24
      $region23: #{vae_forward.1} parent=11 // pred_region
        _
      $region24: #{vae_forward.1} parent=11 // pred_fallthru
        _
      // Predicated region
      $region25: #{vae_forward.1} parent=11 // pred_check
        %p314 = pneg %p154
      $region26: #{vae_forward.1} parent=11 // pred_check_branch
        %316 = sbr.rel (%p314) target = $region28
      $region27: #{vae_forward.1} parent=11 // pred_region
        _
      $region28: #{vae_forward.1} parent=11 // pred_fallthru
        _
      // Predicated region
      $region29: #{vae_forward.1} parent=11 // pred_check
        %p317 = pneg %p175
      $region30: #{vae_forward.1} parent=11 // pred_check_branch
        %319 = sbr.rel (%p317) target = $region32
      $region31: #{vae_forward.1} parent=11 // pred_region
        _
      $region32: #{vae_forward.1} parent=11 // pred_fallthru
        _
      // Predicated region
      $region33: #{vae_forward.1} parent=11 // pred_check
        %p320 = pneg %p196
      $region34: #{vae_forward.1} parent=11 // pred_check_branch
        %322 = sbr.rel (%p320) target = $region36
      $region35: #{vae_forward.1} parent=11 // pred_region
        _
      $region36: #{vae_forward.1} parent=11 // pred_fallthru
        _
      // Predicated region
      $region37: #{vae_forward.1} parent=11 // pred_check
        %p323 = pneg %p217
      $region38: #{vae_forward.1} parent=11 // pred_check_branch
        %325 = sbr.rel (%p323) target = $region40
      $region39: #{vae_forward.1} parent=11 // pred_region
        _
      $region40: #{vae_forward.1} parent=11 // pred_fallthru
        _
      // Predicated region
      $region41: #{vae_forward.1} parent=11 // pred_check
        %p326 = pneg %p238
      $region42: #{vae_forward.1} parent=11 // pred_check_branch
        %328 = sbr.rel (%p326) target = $region44
      $region43: #{vae_forward.1} parent=11 // pred_region
        _
      $region44: #{vae_forward.1} parent=11 // pred_fallthru
        _
    $region12: #{vae_forward.1} parent=5 // pred_fallthru
      _
    %p329 = scmp.lt.s32.totalorder %s18, 2
    // Predicated region
    $region45: #{vae_forward.1} parent=5 // pred_check
      %p330 = pneg %p329
    $region46: #{vae_forward.1} parent=5 // pred_check_branch
      %332 = sbr.rel (%p330) target = $region48
    $region47: #{vae_forward.1} parent=5 // pred_region
      // Predicated region
      $region49: #{vae_forward.1} parent=47 // pred_check
        %p333 = pneg %p38
      $region50: #{vae_forward.1} parent=47 // pred_check_branch
        %335 = sbr.rel (%p333) target = $region52
      $region51: #{vae_forward.1} parent=47 // pred_region
        %s336 = smul.u32 128, %s18
        %p337 = scmp.lt.s32.totalorder %s336, 255
        %s338 = scalar_select %p337, %s336, 255
        %s339 = smul.addr %s338, 8
        %s340 = scalar_lea.vmem %s0, %s339
        %s341 = smul.u32 128, %s18
      $region52: #{vae_forward.1} parent=47 // pred_fallthru
        _
      // Predicated region
      $region53: #{vae_forward.1} parent=47 // pred_check
        %p342 = pneg %p64
      $region54: #{vae_forward.1} parent=47 // pred_check_branch
        %344 = sbr.rel (%p342) target = $region56
      $region55: #{vae_forward.1} parent=47 // pred_region
        %s345 = smul.u32 128, %s18
        %p346 = scmp.lt.s32.totalorder %s345, 255
        %s347 = scalar_select %p346, %s345, 255
        %s348 = smul.addr %s347, 8
        %s349 = scalar_lea.vmem %s1, %s348
        %s350 = smul.u32 128, %s18
      $region56: #{vae_forward.1} parent=47 // pred_fallthru
        _
    $region48: #{vae_forward.1} parent=5 // pred_fallthru
      _
    %p351 = scmp.le.s32.totalorder 1, %s18
    %p352 = scmp.lt.s32.totalorder %s18, 3
    %p353 = pnand %p351, %p352
    %p354 = pneg %p353
    // Predicated region
    $region57: #{vae_forward.1} parent=5 // pred_check
      _
    $region58: #{vae_forward.1} parent=5 // pred_check_branch
      %356 = sbr.rel (%p353) target = $region60
    $region59: #{vae_forward.1} parent=5 // pred_region
      %s357 = ssub.s32 %s18, 1
      %s358 = smul.u32 128, %s23
      %p359 = scmp.lt.s32.totalorder %s358, 255
      %s360 = scalar_select %p359, %s358, 255
      %s361 = smul.addr %s360, 8
      %s362 = scalar_lea.vmem %s0, %s361
      %p363 = pneg %p44
      %p364 = pneg %p41
      %s365 = smul.u32 128, %s23
      %p366 = scmp.lt.s32.totalorder %s365, 255
      %s367 = scalar_select %p366, %s365, 255
      %s368 = smul.addr %s367, 8
      %s369 = scalar_lea.vmem %s1, %s368
      %p370 = pneg %p70
      %p371 = pneg %p67
      %p372 = pneg %p91
      %p373 = pneg %p88
      %p374 = pneg %p112
      %p375 = pneg %p109
      %p376 = pneg %p133
      %p377 = pneg %p130
      %p378 = pneg %p154
      %p379 = pneg %p151
      %p380 = pneg %p175
      %p381 = pneg %p172
      %p382 = pneg %p196
      %p383 = pneg %p193
      %p384 = pneg %p217
      %p385 = pneg %p214
      %p386 = pneg %p238
      %p387 = pneg %p235
      %p388 = pneg %p264
      %p389 = pneg %p261
      %s390 = smul.u32 128, %s23
      %p391 = scmp.lt.s32.totalorder %s390, 255
      %s392 = scalar_select %p391, %s390, 255
      %s393 = smul.addr %s392, 8
      %s394 = scalar_lea.vmem %s10, %s393
      %p395 = pneg %p290
      %p396 = pneg %p287
      %s397 = smul.u32 128, %s23
      %p398 = scmp.lt.s32.totalorder %s397, 255
      %s399 = scalar_select %p398, %s397, 255
      %s400 = smul.addr %s399, 8
      %s401 = scalar_lea.vmem %s11, %s400
      %s402 = smul.u32 128, %s23
      %p403 = scmp.lt.s32.totalorder %s402, 255
      %s404 = scalar_select %p403, %s402, 255
      %s405 = smul.addr %s404, 8
      %s406 = scalar_lea.vmem %s0, %s405
      %s407 = smul.u32 128, %s23
      %s408 = smul.u32 128, %s23
      %p409 = scmp.lt.s32.totalorder %s408, 255
      %s410 = scalar_select %p409, %s408, 255
      %s411 = smul.addr %s410, 8
      %s412 = scalar_lea.vmem %s1, %s411
      %s413 = smul.u32 128, %s23
      %s414 = smul.u32 128, %s23
      %p415 = scmp.lt.s32.totalorder %s414, 255
      %s416 = scalar_select %p415, %s414, 255
      %s417 = smul.addr %s416, 8
      %s418 = scalar_lea.vmem %s10, %s417
      %s419 = smul.u32 128, %s23
      %s420 = smul.u32 128, %s23
      %p421 = scmp.lt.s32.totalorder %s420, 255
      %s422 = scalar_select %p421, %s420, 255
      %s423 = smul.addr %s422, 8
      %s424 = scalar_lea.vmem %s11, %s423
      %s425 = smul.u32 128, %s23
      %v426 = vld [vmem:[%s406] sm:$0xff]
      %v427 = vld [vmem:[%s406 + $0x8] sm:$0xff]
      %v428 = vld [vmem:[%s406 + $0x10] sm:$0xff]
      %v429 = vld [vmem:[%s406 + $0x18] sm:$0xff]
      %v430 = vld [vmem:[%s406 + $0x20] sm:$0xff]
      %v431 = vld [vmem:[%s406 + $0x28] sm:$0xff]
      %v432 = vld [vmem:[%s406 + $0x30] sm:$0xff]
      %v433 = vld [vmem:[%s406 + $0x38] sm:$0xff]
      %v434 = vld [vmem:[%s406 + $0x40] sm:$0xff]
      %v435 = vld [vmem:[%s406 + $0x48] sm:$0xff]
      %v436 = vld [vmem:[%s406 + $0x50] sm:$0xff]
      %v437 = vld [vmem:[%s406 + $0x58] sm:$0xff]
      %v438 = vld [vmem:[%s406 + $0x60] sm:$0xff]
      %v439 = vld [vmem:[%s406 + $0x68] sm:$0xff]
      %v440 = vld [vmem:[%s406 + $0x70] sm:$0xff]
      %v441 = vld [vmem:[%s406 + $0x78] sm:$0xff]
      %v442 = vld [vmem:[%s406 + $0x80] sm:$0xff]
      %v443 = vld [vmem:[%s406 + $0x88] sm:$0xff]
      %v444 = vld [vmem:[%s406 + $0x90] sm:$0xff]
      %v445 = vld [vmem:[%s406 + $0x98] sm:$0xff]
      %v446 = vld [vmem:[%s406 + $0xa0] sm:$0xff]
      %v447 = vld [vmem:[%s406 + $0xa8] sm:$0xff]
      %v448 = vld [vmem:[%s406 + $0xb0] sm:$0xff]
      %v449 = vld [vmem:[%s406 + $0xb8] sm:$0xff]
      %v450 = vld [vmem:[%s406 + $0xc0] sm:$0xff]
      %v451 = vld [vmem:[%s406 + $0xc8] sm:$0xff]
      %v452 = vld [vmem:[%s406 + $0xd0] sm:$0xff]
      %v453 = vld [vmem:[%s406 + $0xd8] sm:$0xff]
      %v454 = vld [vmem:[%s406 + $0xe0] sm:$0xff]
      %v455 = vld [vmem:[%s406 + $0xe8] sm:$0xff]
      %v456 = vld [vmem:[%s406 + $0xf0] sm:$0xff]
      %v457 = vld [vmem:[%s406 + $0xf8] sm:$0xff]
      %v458 = vld [vmem:[%s406 + $0x100] sm:$0xff]
      %v459 = vld [vmem:[%s406 + $0x108] sm:$0xff]
      %v460 = vld [vmem:[%s406 + $0x110] sm:$0xff]
      %v461 = vld [vmem:[%s406 + $0x118] sm:$0xff]
      %v462 = vld [vmem:[%s406 + $0x120] sm:$0xff]
      %v463 = vld [vmem:[%s406 + $0x128] sm:$0xff]
      %v464 = vld [vmem:[%s406 + $0x130] sm:$0xff]
      %v465 = vld [vmem:[%s406 + $0x138] sm:$0xff]
      %v466 = vld [vmem:[%s406 + $0x140] sm:$0xff]
      %v467 = vld [vmem:[%s406 + $0x148] sm:$0xff]
      %v468 = vld [vmem:[%s406 + $0x150] sm:$0xff]
      %v469 = vld [vmem:[%s406 + $0x158] sm:$0xff]
      %v470 = vld [vmem:[%s406 + $0x160] sm:$0xff]
      %v471 = vld [vmem:[%s406 + $0x168] sm:$0xff]
      %v472 = vld [vmem:[%s406 + $0x170] sm:$0xff]
      %v473 = vld [vmem:[%s406 + $0x178] sm:$0xff]
      %v474 = vld [vmem:[%s406 + $0x180] sm:$0xff]
      %v475 = vld [vmem:[%s406 + $0x188] sm:$0xff]
      %v476 = vld [vmem:[%s406 + $0x190] sm:$0xff]
      %v477 = vld [vmem:[%s406 + $0x198] sm:$0xff]
      %v478 = vld [vmem:[%s406 + $0x1a0] sm:$0xff]
      %v479 = vld [vmem:[%s406 + $0x1a8] sm:$0xff]
      %v480 = vld [vmem:[%s406 + $0x1b0] sm:$0xff]
      %v481 = vld [vmem:[%s406 + $0x1b8] sm:$0xff]
      %v482 = vld [vmem:[%s406 + $0x1c0] sm:$0xff]
      %v483 = vld [vmem:[%s406 + $0x1c8] sm:$0xff]
      %v484 = vld [vmem:[%s406 + $0x1d0] sm:$0xff]
      %v485 = vld [vmem:[%s406 + $0x1d8] sm:$0xff]
      %v486 = vld [vmem:[%s406 + $0x1e0] sm:$0xff]
      %v487 = vld [vmem:[%s406 + $0x1e8] sm:$0xff]
      %v488 = vld [vmem:[%s406 + $0x1f0] sm:$0xff]
      %v489 = vld [vmem:[%s406 + $0x1f8] sm:$0xff]
      %v490 = vld [vmem:[%s406 + $0x200] sm:$0xff]
      %v491 = vld [vmem:[%s406 + $0x208] sm:$0xff]
      %v492 = vld [vmem:[%s406 + $0x210] sm:$0xff]
      %v493 = vld [vmem:[%s406 + $0x218] sm:$0xff]
      %v494 = vld [vmem:[%s406 + $0x220] sm:$0xff]
      %v495 = vld [vmem:[%s406 + $0x228] sm:$0xff]
      %v496 = vld [vmem:[%s406 + $0x230] sm:$0xff]
      %v497 = vld [vmem:[%s406 + $0x238] sm:$0xff]
      %v498 = vld [vmem:[%s406 + $0x240] sm:$0xff]
      %v499 = vld [vmem:[%s406 + $0x248] sm:$0xff]
      %v500 = vld [vmem:[%s406 + $0x250] sm:$0xff]
      %v501 = vld [vmem:[%s406 + $0x258] sm:$0xff]
      %v502 = vld [vmem:[%s406 + $0x260] sm:$0xff]
      %v503 = vld [vmem:[%s406 + $0x268] sm:$0xff]
      %v504 = vld [vmem:[%s406 + $0x270] sm:$0xff]
      %v505 = vld [vmem:[%s406 + $0x278] sm:$0xff]
      %v506 = vld [vmem:[%s406 + $0x280] sm:$0xff]
      %v507 = vld [vmem:[%s406 + $0x288] sm:$0xff]
      %v508 = vld [vmem:[%s406 + $0x290] sm:$0xff]
      %v509 = vld [vmem:[%s406 + $0x298] sm:$0xff]
      %v510 = vld [vmem:[%s406 + $0x2a0] sm:$0xff]
      %v511 = vld [vmem:[%s406 + $0x2a8] sm:$0xff]
      %v512 = vld [vmem:[%s406 + $0x2b0] sm:$0xff]
      %v513 = vld [vmem:[%s406 + $0x2b8] sm:$0xff]
      %v514 = vld [vmem:[%s406 + $0x2c0] sm:$0xff]
      %v515 = vld [vmem:[%s406 + $0x2c8] sm:$0xff]
      %v516 = vld [vmem:[%s406 + $0x2d0] sm:$0xff]
      %v517 = vld [vmem:[%s406 + $0x2d8] sm:$0xff]
      %v518 = vld [vmem:[%s406 + $0x2e0] sm:$0xff]
      %v519 = vld [vmem:[%s406 + $0x2e8] sm:$0xff]
      %v520 = vld [vmem:[%s406 + $0x2f0] sm:$0xff]
      %v521 = vld [vmem:[%s406 + $0x2f8] sm:$0xff]
      %v522 = vld [vmem:[%s406 + $0x300] sm:$0xff]
      %v523 = vld [vmem:[%s406 + $0x308] sm:$0xff]
      %v524 = vld [vmem:[%s406 + $0x310] sm:$0xff]
      %v525 = vld [vmem:[%s406 + $0x318] sm:$0xff]
      %v526 = vld [vmem:[%s406 + $0x320] sm:$0xff]
      %v527 = vld [vmem:[%s406 + $0x328] sm:$0xff]
      %v528 = vld [vmem:[%s406 + $0x330] sm:$0xff]
      %v529 = vld [vmem:[%s406 + $0x338] sm:$0xff]
      %v530 = vld [vmem:[%s406 + $0x340] sm:$0xff]
      %v531 = vld [vmem:[%s406 + $0x348] sm:$0xff]
      %v532 = vld [vmem:[%s406 + $0x350] sm:$0xff]
      %v533 = vld [vmem:[%s406 + $0x358] sm:$0xff]
      %v534 = vld [vmem:[%s406 + $0x360] sm:$0xff]
      %v535 = vld [vmem:[%s406 + $0x368] sm:$0xff]
      %v536 = vld [vmem:[%s406 + $0x370] sm:$0xff]
      %v537 = vld [vmem:[%s406 + $0x378] sm:$0xff]
      %v538 = vld [vmem:[%s406 + $0x380] sm:$0xff]
      %v539 = vld [vmem:[%s406 + $0x388] sm:$0xff]
      %v540 = vld [vmem:[%s406 + $0x390] sm:$0xff]
      %v541 = vld [vmem:[%s406 + $0x398] sm:$0xff]
      %v542 = vld [vmem:[%s406 + $0x3a0] sm:$0xff]
      %v543 = vld [vmem:[%s406 + $0x3a8] sm:$0xff]
      %v544 = vld [vmem:[%s406 + $0x3b0] sm:$0xff]
      %v545 = vld [vmem:[%s406 + $0x3b8] sm:$0xff]
      %v546 = vld [vmem:[%s406 + $0x3c0] sm:$0xff]
      %v547 = vld [vmem:[%s406 + $0x3c8] sm:$0xff]
      %v548 = vld [vmem:[%s406 + $0x3d0] sm:$0xff]
      %v549 = vld [vmem:[%s406 + $0x3d8] sm:$0xff]
      %v550 = vld [vmem:[%s406 + $0x3e0] sm:$0xff]
      %v551 = vld [vmem:[%s406 + $0x3e8] sm:$0xff]
      %v552 = vld [vmem:[%s406 + $0x3f0] sm:$0xff]
      %v553 = vld [vmem:[%s406 + $0x3f8] sm:$0xff]
      %v554 = vld [vmem:[%s2] sm:$0xff]
      %v555 = vld [vmem:[%s2 + $0x8] sm:$0xff]
      %v556 = vld [vmem:[%s3] sm:$0x1]
      %v558 = vlaneseq
      %v559 = vshrl.u32 %v558, 7
      %v560 = vsub.s32 0, %v559
      %v561 = vrot.slane %v556, %v560
      %vm563 = vcmask 130048
      %v565 = vsel %vm563, %v426, 0
      %v568 = vsel %vm563, %v427, 0
      %v571 = vsel %vm563, %v428, 0
      %v574 = vsel %vm563, %v429, 0
      %v577 = vsel %vm563, %v430, 0
      %v580 = vsel %vm563, %v431, 0
      %v583 = vsel %vm563, %v432, 0
      %v586 = vsel %vm563, %v433, 0
      %v589 = vsel %vm563, %v434, 0
      %v592 = vsel %vm563, %v435, 0
      %v595 = vsel %vm563, %v436, 0
      %v598 = vsel %vm563, %v437, 0
      %v601 = vsel %vm563, %v438, 0
      %v604 = vsel %vm563, %v439, 0
      %v607 = vsel %vm563, %v440, 0
      %v610 = vsel %vm563, %v441, 0
      %v613 = vsel %vm563, %v442, 0
      %v616 = vsel %vm563, %v443, 0
      %v619 = vsel %vm563, %v444, 0
      %v622 = vsel %vm563, %v445, 0
      %v625 = vsel %vm563, %v446, 0
      %v628 = vsel %vm563, %v447, 0
      %v631 = vsel %vm563, %v448, 0
      %v634 = vsel %vm563, %v449, 0
      %v637 = vsel %vm563, %v450, 0
      %v640 = vsel %vm563, %v451, 0
      %v643 = vsel %vm563, %v452, 0
      %v646 = vsel %vm563, %v453, 0
      %v649 = vsel %vm563, %v454, 0
      %v652 = vsel %vm563, %v455, 0
      %v655 = vsel %vm563, %v456, 0
      %v658 = vsel %vm563, %v457, 0
      %v661 = vsel %vm563, %v458, 0
      %v664 = vsel %vm563, %v459, 0
      %v667 = vsel %vm563, %v460, 0
      %v670 = vsel %vm563, %v461, 0
      %v673 = vsel %vm563, %v462, 0
      %v676 = vsel %vm563, %v463, 0
      %v679 = vsel %vm563, %v464, 0
      %v682 = vsel %vm563, %v465, 0
      %v685 = vsel %vm563, %v466, 0
      %v688 = vsel %vm563, %v467, 0
      %v691 = vsel %vm563, %v468, 0
      %v694 = vsel %vm563, %v469, 0
      %v697 = vsel %vm563, %v470, 0
      %v700 = vsel %vm563, %v471, 0
      %v703 = vsel %vm563, %v472, 0
      %v706 = vsel %vm563, %v473, 0
      %v709 = vsel %vm563, %v474, 0
      %v712 = vsel %vm563, %v475, 0
      %v715 = vsel %vm563, %v476, 0
      %v718 = vsel %vm563, %v477, 0
      %v721 = vsel %vm563, %v478, 0
      %v724 = vsel %vm563, %v479, 0
      %v727 = vsel %vm563, %v480, 0
      %v730 = vsel %vm563, %v481, 0
      %v733 = vsel %vm563, %v482, 0
      %v736 = vsel %vm563, %v483, 0
      %v739 = vsel %vm563, %v484, 0
      %v742 = vsel %vm563, %v485, 0
      %v745 = vsel %vm563, %v486, 0
      %v748 = vsel %vm563, %v487, 0
      %v751 = vsel %vm563, %v488, 0
      %v754 = vsel %vm563, %v489, 0
      %v757 = vsel %vm563, %v490, 0
      %v760 = vsel %vm563, %v491, 0
      %v763 = vsel %vm563, %v492, 0
      %v766 = vsel %vm563, %v493, 0
      %v769 = vsel %vm563, %v494, 0
      %v772 = vsel %vm563, %v495, 0
      %v775 = vsel %vm563, %v496, 0
      %v778 = vsel %vm563, %v497, 0
      %v781 = vsel %vm563, %v498, 0
      %v784 = vsel %vm563, %v499, 0
      %v787 = vsel %vm563, %v500, 0
      %v790 = vsel %vm563, %v501, 0
      %v793 = vsel %vm563, %v502, 0
      %v796 = vsel %vm563, %v503, 0
      %v799 = vsel %vm563, %v504, 0
      %v802 = vsel %vm563, %v505, 0
      %v805 = vsel %vm563, %v506, 0
      %v808 = vsel %vm563, %v507, 0
      %v811 = vsel %vm563, %v508, 0
      %v814 = vsel %vm563, %v509, 0
      %v817 = vsel %vm563, %v510, 0
      %v820 = vsel %vm563, %v511, 0
      %v823 = vsel %vm563, %v512, 0
      %v826 = vsel %vm563, %v513, 0
      %v829 = vsel %vm563, %v514, 0
      %v832 = vsel %vm563, %v515, 0
      %v835 = vsel %vm563, %v516, 0
      %v838 = vsel %vm563, %v517, 0
      %v841 = vsel %vm563, %v518, 0
      %v844 = vsel %vm563, %v519, 0
      %v847 = vsel %vm563, %v520, 0
      %v850 = vsel %vm563, %v521, 0
      %v853 = vsel %vm563, %v522, 0
      %v856 = vsel %vm563, %v523, 0
      %v859 = vsel %vm563, %v524, 0
      %v862 = vsel %vm563, %v525, 0
      %v865 = vsel %vm563, %v526, 0
      %v868 = vsel %vm563, %v527, 0
      %v871 = vsel %vm563, %v528, 0
      %v874 = vsel %vm563, %v529, 0
      %v877 = vsel %vm563, %v530, 0
      %v880 = vsel %vm563, %v531, 0
      %v883 = vsel %vm563, %v532, 0
      %v886 = vsel %vm563, %v533, 0
      %v889 = vsel %vm563, %v534, 0
      %v892 = vsel %vm563, %v535, 0
      %v895 = vsel %vm563, %v536, 0
      %v898 = vsel %vm563, %v537, 0
      %v901 = vsel %vm563, %v538, 0
      %v904 = vsel %vm563, %v539, 0
      %v907 = vsel %vm563, %v540, 0
      %v910 = vsel %vm563, %v541, 0
      %v913 = vsel %vm563, %v542, 0
      %v916 = vsel %vm563, %v543, 0
      %v919 = vsel %vm563, %v544, 0
      %v922 = vsel %vm563, %v545, 0
      %v925 = vsel %vm563, %v546, 0
      %v928 = vsel %vm563, %v547, 0
      %v931 = vsel %vm563, %v548, 0
      %v934 = vsel %vm563, %v549, 0
      %v937 = vsel %vm563, %v550, 0
      %v940 = vsel %vm563, %v551, 0
      %v943 = vsel %vm563, %v552, 0
      %v946 = vsel %vm563, %v553, 0
      %948 = vmatprep.subr.mxu0 0.0
      %949 = vmatpush1.msra.mxu0 %v554
      %950 = vmatprep.subr.mxu0 0.0
      %951 = vmatpush1.msra.mxu0 %v555
      %952 = vmatprep.subr.mxu0 0.0
      %953 = vmatpush1.msra.mxu0 0.0
      %954 = vmatprep.subr.mxu0 0.0
      %955 = vmatpush1.msra.mxu0 0.0
      %956 = vmatprep.subr.mxu0 0.0
      %957 = vmatpush1.msra.mxu0 0.0
      %958 = vmatprep.subr.mxu0 0.0
      %959 = vmatpush1.msra.mxu0 0.0
      %960 = vmatprep.subr.mxu0 0.0
      %961 = vmatpush1.msra.mxu0 0.0
      %962 = vmatprep.subr.mxu0 0.0
      %963 = vmatpush1.msra.mxu0 0.0
      %964 = vmatprep.subr.mxu0 0.0
      %965 = vmatpush1.msra.mxu0 0.0
      %966 = vmatprep.subr.mxu0 0.0
      %967 = vmatpush1.msra.mxu0 0.0
      %968 = vmatprep.subr.mxu0 0.0
      %969 = vmatpush1.msra.mxu0 0.0
      %970 = vmatprep.subr.mxu0 0.0
      %971 = vmatpush1.msra.mxu0 0.0
      %972 = vmatprep.subr.mxu0 0.0
      %973 = vmatpush1.msra.mxu0 0.0
      %974 = vmatprep.subr.mxu0 0.0
      %975 = vmatpush1.msra.mxu0 0.0
      %976 = vmatprep.subr.mxu0 0.0
      %977 = vmatpush1.msra.mxu0 0.0
      %978 = vmatprep.subr.mxu0 0.0
      %979 = vmatpush1.msra.mxu0 0.0
      %980 = vmatprep.subr.mxu0 0.0
      %981 = vmatpush1.msra.mxu0 0.0
      %982 = vmatprep.subr.mxu0 0.0
      %983 = vmatpush1.msra.mxu0 0.0
      %984 = vmatprep.subr.mxu0 0.0
      %985 = vmatpush1.msra.mxu0 0.0
      %986 = vmatprep.subr.mxu0 0.0
      %987 = vmatpush1.msra.mxu0 0.0
      %988 = vmatprep.subr.mxu0 0.0
      %989 = vmatpush1.msra.mxu0 0.0
      %990 = vmatprep.subr.mxu0 0.0
      %991 = vmatpush1.msra.mxu0 0.0
      %992 = vmatprep.subr.mxu0 0.0
      %993 = vmatpush1.msra.mxu0 0.0
      %994 = vmatprep.subr.mxu0 0.0
      %995 = vmatpush1.msra.mxu0 0.0
      %996 = vmatprep.subr.mxu0 0.0
      %997 = vmatpush1.msra.mxu0 0.0
      %998 = vmatprep.subr.mxu0 0.0
      %999 = vmatpush1.msra.mxu0 0.0
      %1000 = vmatprep.subr.mxu0 0.0
      %1001 = vmatpush1.msra.mxu0 0.0
      %1002 = vmatprep.subr.mxu0 0.0
      %1003 = vmatpush1.msra.mxu0 0.0
      %1004 = vmatprep.subr.mxu0 0.0
      %1005 = vmatpush1.msra.mxu0 0.0
      %1006 = vmatprep.subr.mxu0 0.0
      %1007 = vmatpush1.msra.mxu0 0.0
      %1008 = vmatprep.subr.mxu0 0.0
      %1009 = vmatpush1.msra.mxu0 0.0
      %1010 = vmatprep.subr.mxu0 0.0
      %1011 = vmatpush1.msra.mxu0 0.0
      %1012 = vmatprep.mubr.f32.mxu0 0.0
      %1013 = vmatmul.mubr.f32.gmra.mrb[0].mxu0 %v565
      %v1014 = vpop.f32.mrb[0].mxu0
      %v1015 = vadd.f32 %v561, %v1014
      %v1016 = vpop.f32.mrb[0].mxu0
      %1017 = vmatprep.mubr.f32.mxu0 0.0
      %1018 = vmatmul.mubr.f32.gmra.mrb[0].mxu0 %v568
      %v1019 = vpop.f32.mrb[0].mxu0
      %v1020 = vadd.f32 %v561, %v1019
      %v1021 = vpop.f32.mrb[0].mxu0
      %1022 = vmatprep.mubr.f32.mxu0 0.0
      %1023 = vmatmul.mubr.f32.gmra.mrb[0].mxu0 %v571
      %v1024 = vpop.f32.mrb[0].mxu0
      %v1025 = vadd.f32 %v561, %v1024
      %v1026 = vpop.f32.mrb[0].mxu0
      %1027 = vmatprep.mubr.f32.mxu0 0.0
      %1028 = vmatmul.mubr.f32.gmra.mrb[0].mxu0 %v574
      %v1029 = vpop.f32.mrb[0].mxu0
      %v1030 = vadd.f32 %v561, %v1029
      %v1031 = vpop.f32.mrb[0].mxu0
      %1032 = vmatprep.mubr.f32.mxu0 0.0
      %1033 = vmatmul.mubr.f32.gmra.mrb[0].mxu0 %v577
      %v1034 = vpop.f32.mrb[0].mxu0
      %v1035 = vadd.f32 %v561, %v1034
      %v1036 = vpop.f32.mrb[0].mxu0
      %1037 = vmatprep.mubr.f32.mxu0 0.0
      %1038 = vmatmul.mubr.f32.gmra.mrb[0].mxu0 %v580
      %v1039 = vpop.f32.mrb[0].mxu0
      %v1040 = vadd.f32 %v561, %v1039
      %v1041 = vpop.f32.mrb[0].mxu0
      %1042 = vmatprep.mubr.f32.mxu0 0.0
      %1043 = vmatmul.mubr.f32.gmra.mrb[0].mxu0 %v583
      %v1044 = vpop.f32.mrb[0].mxu0
      %v1045 = vadd.f32 %v561, %v1044
      %v1046 = vpop.f32.mrb[0].mxu0
      %1047 = vmatprep.mubr.f32.mxu0 0.0
      %1048 = vmatmul.mubr.f32.gmra.mrb[0].mxu0 %v586
      %v1049 = vpop.f32.mrb[0].mxu0
      %v1050 = vadd.f32 %v561, %v1049
      %v1051 = vpop.f32.mrb[0].mxu0
      %1052 = vmatprep.mubr.f32.mxu0 0.0
      %1053 = vmatmul.mubr.f32.gmra.mrb[0].mxu0 %v589
      %v1054 = vpop.f32.mrb[0].mxu0
      %v1055 = vadd.f32 %v561, %v1054
      %v1056 = vpop.f32.mrb[0].mxu0
      %1057 = vmatprep.mubr.f32.mxu0 0.0
      %1058 = vmatmul.mubr.f32.gmra.mrb[0].mxu0 %v592
      %v1059 = vpop.f32.mrb[0].mxu0
      %v1060 = vadd.f32 %v561, %v1059
      %v1061 = vpop.f32.mrb[0].mxu0
      %1062 = vmatprep.mubr.f32.mxu0 0.0
      %1063 = vmatmul.mubr.f32.gmra.mrb[0].mxu0 %v595
      %v1064 = vpop.f32.mrb[0].mxu0
      %v1065 = vadd.f32 %v561, %v1064
      %v1066 = vpop.f32.mrb[0].mxu0
      %1067 = vmatprep.mubr.f32.mxu0 0.0
      %1068 = vmatmul.mubr.f32.gmra.mrb[0].mxu0 %v598
      %v1069 = vpop.f32.mrb[0].mxu0
      %v1070 = vadd.f32 %v561, %v1069
      %v1071 = vpop.f32.mrb[0].mxu0
      %1072 = vmatprep.mubr.f32.mxu0 0.0
      %1073 = vmatmul.mubr.f32.gmra.mrb[0].mxu0 %v601
      %v1074 = vpop.f32.mrb[0].mxu0
      %v1075 = vadd.f32 %v561, %v1074
      %v1076 = vpop.f32.mrb[0].mxu0
      %1077 = vmatprep.mubr.f32.mxu0 0.0
      %1078 = vmatmul.mubr.f32.gmra.mrb[0].mxu0 %v604
      %v1079 = vpop.f32.mrb[0].mxu0
      %v1080 = vadd.f32 %v561, %v1079
      %v1081 = vpop.f32.mrb[0].mxu0
      %1082 = vmatprep.mubr.f32.mxu0 0.0
      %1083 = vmatmul.mubr.f32.gmra.mrb[0].mxu0 %v607
      %v1084 = vpop.f32.mrb[0].mxu0
      %v1085 = vadd.f32 %v561, %v1084
      %v1086 = vpop.f32.mrb[0].mxu0
      %1087 = vmatprep.mubr.f32.mxu0 0.0
      %1088 = vmatmul.mubr.f32.gmra.mrb[0].mxu0 %v610
      %v1089 = vpop.f32.mrb[0].mxu0
      %v1090 = vadd.f32 %v561, %v1089
      %v1091 = vpop.f32.mrb[0].mxu0
      %1092 = vmatprep.mubr.f32.mxu0 0.0
      %1093 = vmatmul.mubr.f32.gmra.mrb[0].mxu0 %v613
      %v1094 = vpop.f32.mrb[0].mxu0
      %v1095 = vadd.f32 %v561, %v1094
      %v1096 = vpop.f32.mrb[0].mxu0
      %1097 = vmatprep.mubr.f32.mxu0 0.0
      %1098 = vmatmul.mubr.f32.gmra.mrb[0].mxu0 %v616
      %v1099 = vpop.f32.mrb[0].mxu0
      %v1100 = vadd.f32 %v561, %v1099
      %v1101 = vpop.f32.mrb[0].mxu0
      %1102 = vmatprep.mubr.f32.mxu0 0.0
      %1103 = vmatmul.mubr.f32.gmra.mrb[0].mxu0 %v619
      %v1104 = vpop.f32.mrb[0].mxu0
      %v1105 = vadd.f32 %v561, %v1104
      %v1106 = vpop.f32.mrb[0].mxu0
      %1107 = vmatprep.mubr.f32.mxu0 0.0
      %1108 = vmatmul.mubr.f32.gmra.mrb[0].mxu0 %v622
      %v1109 = vpop.f32.mrb[0].mxu0
      %v1110 = vadd.f32 %v561, %v1109
      %v1111 = vpop.f32.mrb[0].mxu0
      %1112 = vmatprep.mubr.f32.mxu0 0.0
      %1113 = vmatmul.mubr.f32.gmra.mrb[0].mxu0 %v625
      %v1114 = vpop.f32.mrb[0].mxu0
      %v1115 = vadd.f32 %v561, %v1114
      %v1116 = vpop.f32.mrb[0].mxu0
      %1117 = vmatprep.mubr.f32.mxu0 0.0
      %1118 = vmatmul.mubr.f32.gmra.mrb[0].mxu0 %v628
      %v1119 = vpop.f32.mrb[0].mxu0
      %v1120 = vadd.f32 %v561, %v1119
      %v1121 = vpop.f32.mrb[0].mxu0
      %1122 = vmatprep.mubr.f32.mxu0 0.0
      %1123 = vmatmul.mubr.f32.gmra.mrb[0].mxu0 %v631
      %v1124 = vpop.f32.mrb[0].mxu0
      %v1125 = vadd.f32 %v561, %v1124
      %v1126 = vpop.f32.mrb[0].mxu0
      %1127 = vmatprep.mubr.f32.mxu0 0.0
      %1128 = vmatmul.mubr.f32.gmra.mrb[0].mxu0 %v634
      %v1129 = vpop.f32.mrb[0].mxu0
      %v1130 = vadd.f32 %v561, %v1129
      %v1131 = vpop.f32.mrb[0].mxu0
      %1132 = vmatprep.mubr.f32.mxu0 0.0
      %1133 = vmatmul.mubr.f32.gmra.mrb[0].mxu0 %v637
      %v1134 = vpop.f32.mrb[0].mxu0
      %v1135 = vadd.f32 %v561, %v1134
      %v1136 = vpop.f32.mrb[0].mxu0
      %1137 = vmatprep.mubr.f32.mxu0 0.0
      %1138 = vmatmul.mubr.f32.gmra.mrb[0].mxu0 %v640
      %v1139 = vpop.f32.mrb[0].mxu0
      %v1140 = vadd.f32 %v561, %v1139
      %v1141 = vpop.f32.mrb[0].mxu0
      %1142 = vmatprep.mubr.f32.mxu0 0.0
      %1143 = vmatmul.mubr.f32.gmra.mrb[0].mxu0 %v643
      %v1144 = vpop.f32.mrb[0].mxu0
      %v1145 = vadd.f32 %v561, %v1144
      %v1146 = vpop.f32.mrb[0].mxu0
      %1147 = vmatprep.mubr.f32.mxu0 0.0
      %1148 = vmatmul.mubr.f32.gmra.mrb[0].mxu0 %v646
      %v1149 = vpop.f32.mrb[0].mxu0
      %v1150 = vadd.f32 %v561, %v1149
      %v1151 = vpop.f32.mrb[0].mxu0
      %1152 = vmatprep.mubr.f32.mxu0 0.0
      %1153 = vmatmul.mubr.f32.gmra.mrb[0].mxu0 %v649
      %v1154 = vpop.f32.mrb[0].mxu0
      %v1155 = vadd.f32 %v561, %v1154
      %v1156 = vpop.f32.mrb[0].mxu0
      %1157 = vmatprep.mubr.f32.mxu0 0.0
      %1158 = vmatmul.mubr.f32.gmra.mrb[0].mxu0 %v652
      %v1159 = vpop.f32.mrb[0].mxu0
      %v1160 = vadd.f32 %v561, %v1159
      %v1161 = vpop.f32.mrb[0].mxu0
      %1162 = vmatprep.mubr.f32.mxu0 0.0
      %1163 = vmatmul.mubr.f32.gmra.mrb[0].mxu0 %v655
      %v1164 = vpop.f32.mrb[0].mxu0
      %v1165 = vadd.f32 %v561, %v1164
      %v1166 = vpop.f32.mrb[0].mxu0
      %1167 = vmatprep.mubr.f32.mxu0 0.0
      %1168 = vmatmul.mubr.f32.gmra.mrb[0].mxu0 %v658
      %v1169 = vpop.f32.mrb[0].mxu0
      %v1170 = vadd.f32 %v561, %v1169
      %v1171 = vpop.f32.mrb[0].mxu0
      %1172 = vmatprep.mubr.f32.mxu0 0.0
      %1173 = vmatmul.mubr.f32.gmra.mrb[0].mxu0 %v661
      %v1174 = vpop.f32.mrb[0].mxu0
      %v1175 = vadd.f32 %v561, %v1174
      %v1176 = vpop.f32.mrb[0].mxu0
      %1177 = vmatprep.mubr.f32.mxu0 0.0
      %1178 = vmatmul.mubr.f32.gmra.mrb[0].mxu0 %v664
      %v1179 = vpop.f32.mrb[0].mxu0
      %v1180 = vadd.f32 %v561, %v1179
      %v1181 = vpop.f32.mrb[0].mxu0
      %1182 = vmatprep.mubr.f32.mxu0 0.0
      %1183 = vmatmul.mubr.f32.gmra.mrb[0].mxu0 %v667
      %v1184 = vpop.f32.mrb[0].mxu0
      %v1185 = vadd.f32 %v561, %v1184
      %v1186 = vpop.f32.mrb[0].mxu0
      %1187 = vmatprep.mubr.f32.mxu0 0.0
      %1188 = vmatmul.mubr.f32.gmra.mrb[0].mxu0 %v670
      %v1189 = vpop.f32.mrb[0].mxu0
      %v1190 = vadd.f32 %v561, %v1189
      %v1191 = vpop.f32.mrb[0].mxu0
      %1192 = vmatprep.mubr.f32.mxu0 0.0
      %1193 = vmatmul.mubr.f32.gmra.mrb[0].mxu0 %v673
      %v1194 = vpop.f32.mrb[0].mxu0
      %v1195 = vadd.f32 %v561, %v1194
      %v1196 = vpop.f32.mrb[0].mxu0
      %1197 = vmatprep.mubr.f32.mxu0 0.0
      %1198 = vmatmul.mubr.f32.gmra.mrb[0].mxu0 %v676
      %v1199 = vpop.f32.mrb[0].mxu0
      %v1200 = vadd.f32 %v561, %v1199
      %v1201 = vpop.f32.mrb[0].mxu0
      %1202 = vmatprep.mubr.f32.mxu0 0.0
      %1203 = vmatmul.mubr.f32.gmra.mrb[0].mxu0 %v679
      %v1204 = vpop.f32.mrb[0].mxu0
      %v1205 = vadd.f32 %v561, %v1204
      %v1206 = vpop.f32.mrb[0].mxu0
      %1207 = vmatprep.mubr.f32.mxu0 0.0
      %1208 = vmatmul.mubr.f32.gmra.mrb[0].mxu0 %v682
      %v1209 = vpop.f32.mrb[0].mxu0
      %v1210 = vadd.f32 %v561, %v1209
      %v1211 = vpop.f32.mrb[0].mxu0
      %1212 = vmatprep.mubr.f32.mxu0 0.0
      %1213 = vmatmul.mubr.f32.gmra.mrb[0].mxu0 %v685
      %v1214 = vpop.f32.mrb[0].mxu0
      %v1215 = vadd.f32 %v561, %v1214
      %v1216 = vpop.f32.mrb[0].mxu0
      %1217 = vmatprep.mubr.f32.mxu0 0.0
      %1218 = vmatmul.mubr.f32.gmra.mrb[0].mxu0 %v688
      %v1219 = vpop.f32.mrb[0].mxu0
      %v1220 = vadd.f32 %v561, %v1219
      %v1221 = vpop.f32.mrb[0].mxu0
      %1222 = vmatprep.mubr.f32.mxu0 0.0
      %1223 = vmatmul.mubr.f32.gmra.mrb[0].mxu0 %v691
      %v1224 = vpop.f32.mrb[0].mxu0
      %v1225 = vadd.f32 %v561, %v1224
      %v1226 = vpop.f32.mrb[0].mxu0
      %1227 = vmatprep.mubr.f32.mxu0 0.0
      %1228 = vmatmul.mubr.f32.gmra.mrb[0].mxu0 %v694
      %v1229 = vpop.f32.mrb[0].mxu0
      %v1230 = vadd.f32 %v561, %v1229
      %v1231 = vpop.f32.mrb[0].mxu0
      %1232 = vmatprep.mubr.f32.mxu0 0.0
      %1233 = vmatmul.mubr.f32.gmra.mrb[0].mxu0 %v697
      %v1234 = vpop.f32.mrb[0].mxu0
      %v1235 = vadd.f32 %v561, %v1234
      %v1236 = vpop.f32.mrb[0].mxu0
      %1237 = vmatprep.mubr.f32.mxu0 0.0
      %1238 = vmatmul.mubr.f32.gmra.mrb[0].mxu0 %v700
      %v1239 = vpop.f32.mrb[0].mxu0
      %v1240 = vadd.f32 %v561, %v1239
      %v1241 = vpop.f32.mrb[0].mxu0
      %1242 = vmatprep.mubr.f32.mxu0 0.0
      %1243 = vmatmul.mubr.f32.gmra.mrb[0].mxu0 %v703
      %v1244 = vpop.f32.mrb[0].mxu0
      %v1245 = vadd.f32 %v561, %v1244
      %v1246 = vpop.f32.mrb[0].mxu0
      %1247 = vmatprep.mubr.f32.mxu0 0.0
      %1248 = vmatmul.mubr.f32.gmra.mrb[0].mxu0 %v706
      %v1249 = vpop.f32.mrb[0].mxu0
      %v1250 = vadd.f32 %v561, %v1249
      %v1251 = vpop.f32.mrb[0].mxu0
      %1252 = vmatprep.mubr.f32.mxu0 0.0
      %1253 = vmatmul.mubr.f32.gmra.mrb[0].mxu0 %v709
      %v1254 = vpop.f32.mrb[0].mxu0
      %v1255 = vadd.f32 %v561, %v1254
      %v1256 = vpop.f32.mrb[0].mxu0
      %1257 = vmatprep.mubr.f32.mxu0 0.0
      %1258 = vmatmul.mubr.f32.gmra.mrb[0].mxu0 %v712
      %v1259 = vpop.f32.mrb[0].mxu0
      %v1260 = vadd.f32 %v561, %v1259
      %v1261 = vpop.f32.mrb[0].mxu0
      %1262 = vmatprep.mubr.f32.mxu0 0.0
      %1263 = vmatmul.mubr.f32.gmra.mrb[0].mxu0 %v715
      %v1264 = vpop.f32.mrb[0].mxu0
      %v1265 = vadd.f32 %v561, %v1264
      %v1266 = vpop.f32.mrb[0].mxu0
      %1267 = vmatprep.mubr.f32.mxu0 0.0
      %1268 = vmatmul.mubr.f32.gmra.mrb[0].mxu0 %v718
      %v1269 = vpop.f32.mrb[0].mxu0
      %v1270 = vadd.f32 %v561, %v1269
      %v1271 = vpop.f32.mrb[0].mxu0
      %1272 = vmatprep.mubr.f32.mxu0 0.0
      %1273 = vmatmul.mubr.f32.gmra.mrb[0].mxu0 %v721
      %v1274 = vpop.f32.mrb[0].mxu0
      %v1275 = vadd.f32 %v561, %v1274
      %v1276 = vpop.f32.mrb[0].mxu0
      %1277 = vmatprep.mubr.f32.mxu0 0.0
      %1278 = vmatmul.mubr.f32.gmra.mrb[0].mxu0 %v724
      %v1279 = vpop.f32.mrb[0].mxu0
      %v1280 = vadd.f32 %v561, %v1279
      %v1281 = vpop.f32.mrb[0].mxu0
      %1282 = vmatprep.mubr.f32.mxu0 0.0
      %1283 = vmatmul.mubr.f32.gmra.mrb[0].mxu0 %v727
      %v1284 = vpop.f32.mrb[0].mxu0
      %v1285 = vadd.f32 %v561, %v1284
      %v1286 = vpop.f32.mrb[0].mxu0
      %1287 = vmatprep.mubr.f32.mxu0 0.0
      %1288 = vmatmul.mubr.f32.gmra.mrb[0].mxu0 %v730
      %v1289 = vpop.f32.mrb[0].mxu0
      %v1290 = vadd.f32 %v561, %v1289
      %v1291 = vpop.f32.mrb[0].mxu0
      %1292 = vmatprep.mubr.f32.mxu0 0.0
      %1293 = vmatmul.mubr.f32.gmra.mrb[0].mxu0 %v733
      %v1294 = vpop.f32.mrb[0].mxu0
      %v1295 = vadd.f32 %v561, %v1294
      %v1296 = vpop.f32.mrb[0].mxu0
      %1297 = vmatprep.mubr.f32.mxu0 0.0
      %1298 = vmatmul.mubr.f32.gmra.mrb[0].mxu0 %v736
      %v1299 = vpop.f32.mrb[0].mxu0
      %v1300 = vadd.f32 %v561, %v1299
      %v1301 = vpop.f32.mrb[0].mxu0
      %1302 = vmatprep.mubr.f32.mxu0 0.0
      %1303 = vmatmul.mubr.f32.gmra.mrb[0].mxu0 %v739
      %v1304 = vpop.f32.mrb[0].mxu0
      %v1305 = vadd.f32 %v561, %v1304
      %v1306 = vpop.f32.mrb[0].mxu0
      %1307 = vmatprep.mubr.f32.mxu0 0.0
      %1308 = vmatmul.mubr.f32.gmra.mrb[0].mxu0 %v742
      %v1309 = vpop.f32.mrb[0].mxu0
      %v1310 = vadd.f32 %v561, %v1309
      %v1311 = vpop.f32.mrb[0].mxu0
      %1312 = vmatprep.mubr.f32.mxu0 0.0
      %1313 = vmatmul.mubr.f32.gmra.mrb[0].mxu0 %v745
      %v1314 = vpop.f32.mrb[0].mxu0
      %v1315 = vadd.f32 %v561, %v1314
      %v1316 = vpop.f32.mrb[0].mxu0
      %1317 = vmatprep.mubr.f32.mxu0 0.0
      %1318 = vmatmul.mubr.f32.gmra.mrb[0].mxu0 %v748
      %v1319 = vpop.f32.mrb[0].mxu0
      %v1320 = vadd.f32 %v561, %v1319
      %v1321 = vpop.f32.mrb[0].mxu0
      %1322 = vmatprep.mubr.f32.mxu0 0.0
      %1323 = vmatmul.mubr.f32.gmra.mrb[0].mxu0 %v751
      %v1324 = vpop.f32.mrb[0].mxu0
      %v1325 = vadd.f32 %v561, %v1324
      %v1326 = vpop.f32.mrb[0].mxu0
      %1327 = vmatprep.mubr.f32.mxu0 0.0
      %1328 = vmatmul.mubr.f32.gmra.mrb[0].mxu0 %v754
      %v1329 = vpop.f32.mrb[0].mxu0
      %v1330 = vadd.f32 %v561, %v1329
      %v1331 = vpop.f32.mrb[0].mxu0
      %1332 = vmatprep.mubr.f32.mxu0 0.0
      %1333 = vmatmul.mubr.f32.gmra.mrb[0].mxu0 %v757
      %v1334 = vpop.f32.mrb[0].mxu0
      %v1335 = vadd.f32 %v561, %v1334
      %v1336 = vpop.f32.mrb[0].mxu0
      %1337 = vmatprep.mubr.f32.mxu0 0.0
      %1338 = vmatmul.mubr.f32.gmra.mrb[0].mxu0 %v760
      %v1339 = vpop.f32.mrb[0].mxu0
      %v1340 = vadd.f32 %v561, %v1339
      %v1341 = vpop.f32.mrb[0].mxu0
      %1342 = vmatprep.mubr.f32.mxu0 0.0
      %1343 = vmatmul.mubr.f32.gmra.mrb[0].mxu0 %v763
      %v1344 = vpop.f32.mrb[0].mxu0
      %v1345 = vadd.f32 %v561, %v1344
      %v1346 = vpop.f32.mrb[0].mxu0
      %1347 = vmatprep.mubr.f32.mxu0 0.0
      %1348 = vmatmul.mubr.f32.gmra.mrb[0].mxu0 %v766
      %v1349 = vpop.f32.mrb[0].mxu0
      %v1350 = vadd.f32 %v561, %v1349
      %v1351 = vpop.f32.mrb[0].mxu0
      %1352 = vmatprep.mubr.f32.mxu0 0.0
      %1353 = vmatmul.mubr.f32.gmra.mrb[0].mxu0 %v769
      %v1354 = vpop.f32.mrb[0].mxu0
      %v1355 = vadd.f32 %v561, %v1354
      %v1356 = vpop.f32.mrb[0].mxu0
      %1357 = vmatprep.mubr.f32.mxu0 0.0
      %1358 = vmatmul.mubr.f32.gmra.mrb[0].mxu0 %v772
      %v1359 = vpop.f32.mrb[0].mxu0
      %v1360 = vadd.f32 %v561, %v1359
      %v1361 = vpop.f32.mrb[0].mxu0
      %1362 = vmatprep.mubr.f32.mxu0 0.0
      %1363 = vmatmul.mubr.f32.gmra.mrb[0].mxu0 %v775
      %v1364 = vpop.f32.mrb[0].mxu0
      %v1365 = vadd.f32 %v561, %v1364
      %v1366 = vpop.f32.mrb[0].mxu0
      %1367 = vmatprep.mubr.f32.mxu0 0.0
      %1368 = vmatmul.mubr.f32.gmra.mrb[0].mxu0 %v778
      %v1369 = vpop.f32.mrb[0].mxu0
      %v1370 = vadd.f32 %v561, %v1369
      %v1371 = vpop.f32.mrb[0].mxu0
      %1372 = vmatprep.mubr.f32.mxu0 0.0
      %1373 = vmatmul.mubr.f32.gmra.mrb[0].mxu0 %v781
      %v1374 = vpop.f32.mrb[0].mxu0
      %v1375 = vadd.f32 %v561, %v1374
      %v1376 = vpop.f32.mrb[0].mxu0
      %1377 = vmatprep.mubr.f32.mxu0 0.0
      %1378 = vmatmul.mubr.f32.gmra.mrb[0].mxu0 %v784
      %v1379 = vpop.f32.mrb[0].mxu0
      %v1380 = vadd.f32 %v561, %v1379
      %v1381 = vpop.f32.mrb[0].mxu0
      %1382 = vmatprep.mubr.f32.mxu0 0.0
      %1383 = vmatmul.mubr.f32.gmra.mrb[0].mxu0 %v787
      %v1384 = vpop.f32.mrb[0].mxu0
      %v1385 = vadd.f32 %v561, %v1384
      %v1386 = vpop.f32.mrb[0].mxu0
      %1387 = vmatprep.mubr.f32.mxu0 0.0
      %1388 = vmatmul.mubr.f32.gmra.mrb[0].mxu0 %v790
      %v1389 = vpop.f32.mrb[0].mxu0
      %v1390 = vadd.f32 %v561, %v1389
      %v1391 = vpop.f32.mrb[0].mxu0
      %1392 = vmatprep.mubr.f32.mxu0 0.0
      %1393 = vmatmul.mubr.f32.gmra.mrb[0].mxu0 %v793
      %v1394 = vpop.f32.mrb[0].mxu0
      %v1395 = vadd.f32 %v561, %v1394
      %v1396 = vpop.f32.mrb[0].mxu0
      %1397 = vmatprep.mubr.f32.mxu0 0.0
      %1398 = vmatmul.mubr.f32.gmra.mrb[0].mxu0 %v796
      %v1399 = vpop.f32.mrb[0].mxu0
      %v1400 = vadd.f32 %v561, %v1399
      %v1401 = vpop.f32.mrb[0].mxu0
      %1402 = vmatprep.mubr.f32.mxu0 0.0
      %1403 = vmatmul.mubr.f32.gmra.mrb[0].mxu0 %v799
      %v1404 = vpop.f32.mrb[0].mxu0
      %v1405 = vadd.f32 %v561, %v1404
      %v1406 = vpop.f32.mrb[0].mxu0
      %1407 = vmatprep.mubr.f32.mxu0 0.0
      %1408 = vmatmul.mubr.f32.gmra.mrb[0].mxu0 %v802
      %v1409 = vpop.f32.mrb[0].mxu0
      %v1410 = vadd.f32 %v561, %v1409
      %v1411 = vpop.f32.mrb[0].mxu0
      %1412 = vmatprep.mubr.f32.mxu0 0.0
      %1413 = vmatmul.mubr.f32.gmra.mrb[0].mxu0 %v805
      %v1414 = vpop.f32.mrb[0].mxu0
      %v1415 = vadd.f32 %v561, %v1414
      %v1416 = vpop.f32.mrb[0].mxu0
      %1417 = vmatprep.mubr.f32.mxu0 0.0
      %1418 = vmatmul.mubr.f32.gmra.mrb[0].mxu0 %v808
      %v1419 = vpop.f32.mrb[0].mxu0
      %v1420 = vadd.f32 %v561, %v1419
      %v1421 = vpop.f32.mrb[0].mxu0
      %1422 = vmatprep.mubr.f32.mxu0 0.0
      %1423 = vmatmul.mubr.f32.gmra.mrb[0].mxu0 %v811
      %v1424 = vpop.f32.mrb[0].mxu0
      %v1425 = vadd.f32 %v561, %v1424
      %v1426 = vpop.f32.mrb[0].mxu0
      %1427 = vmatprep.mubr.f32.mxu0 0.0
      %1428 = vmatmul.mubr.f32.gmra.mrb[0].mxu0 %v814
      %v1429 = vpop.f32.mrb[0].mxu0
      %v1430 = vadd.f32 %v561, %v1429
      %v1431 = vpop.f32.mrb[0].mxu0
      %1432 = vmatprep.mubr.f32.mxu0 0.0
      %1433 = vmatmul.mubr.f32.gmra.mrb[0].mxu0 %v817
      %v1434 = vpop.f32.mrb[0].mxu0
      %v1435 = vadd.f32 %v561, %v1434
      %v1436 = vpop.f32.mrb[0].mxu0
      %1437 = vmatprep.mubr.f32.mxu0 0.0
      %1438 = vmatmul.mubr.f32.gmra.mrb[0].mxu0 %v820
      %v1439 = vpop.f32.mrb[0].mxu0
      %v1440 = vadd.f32 %v561, %v1439
      %v1441 = vpop.f32.mrb[0].mxu0
      %1442 = vmatprep.mubr.f32.mxu0 0.0
      %1443 = vmatmul.mubr.f32.gmra.mrb[0].mxu0 %v823
      %v1444 = vpop.f32.mrb[0].mxu0
      %v1445 = vadd.f32 %v561, %v1444
      %v1446 = vpop.f32.mrb[0].mxu0
      %1447 = vmatprep.mubr.f32.mxu0 0.0
      %1448 = vmatmul.mubr.f32.gmra.mrb[0].mxu0 %v826
      %v1449 = vpop.f32.mrb[0].mxu0
      %v1450 = vadd.f32 %v561, %v1449
      %v1451 = vpop.f32.mrb[0].mxu0
      %1452 = vmatprep.mubr.f32.mxu0 0.0
      %1453 = vmatmul.mubr.f32.gmra.mrb[0].mxu0 %v829
      %v1454 = vpop.f32.mrb[0].mxu0
      %v1455 = vadd.f32 %v561, %v1454
      %v1456 = vpop.f32.mrb[0].mxu0
      %1457 = vmatprep.mubr.f32.mxu0 0.0
      %1458 = vmatmul.mubr.f32.gmra.mrb[0].mxu0 %v832
      %v1459 = vpop.f32.mrb[0].mxu0
      %v1460 = vadd.f32 %v561, %v1459
      %v1461 = vpop.f32.mrb[0].mxu0
      %1462 = vmatprep.mubr.f32.mxu0 0.0
      %1463 = vmatmul.mubr.f32.gmra.mrb[0].mxu0 %v835
      %v1464 = vpop.f32.mrb[0].mxu0
      %v1465 = vadd.f32 %v561, %v1464
      %v1466 = vpop.f32.mrb[0].mxu0
      %1467 = vmatprep.mubr.f32.mxu0 0.0
      %1468 = vmatmul.mubr.f32.gmra.mrb[0].mxu0 %v838
      %v1469 = vpop.f32.mrb[0].mxu0
      %v1470 = vadd.f32 %v561, %v1469
      %v1471 = vpop.f32.mrb[0].mxu0
      %1472 = vmatprep.mubr.f32.mxu0 0.0
      %1473 = vmatmul.mubr.f32.gmra.mrb[0].mxu0 %v841
      %v1474 = vpop.f32.mrb[0].mxu0
      %v1475 = vadd.f32 %v561, %v1474
      %v1476 = vpop.f32.mrb[0].mxu0
      %1477 = vmatprep.mubr.f32.mxu0 0.0
      %1478 = vmatmul.mubr.f32.gmra.mrb[0].mxu0 %v844
      %v1479 = vpop.f32.mrb[0].mxu0
      %v1480 = vadd.f32 %v561, %v1479
      %v1481 = vpop.f32.mrb[0].mxu0
      %1482 = vmatprep.mubr.f32.mxu0 0.0
      %1483 = vmatmul.mubr.f32.gmra.mrb[0].mxu0 %v847
      %v1484 = vpop.f32.mrb[0].mxu0
      %v1485 = vadd.f32 %v561, %v1484
      %v1486 = vpop.f32.mrb[0].mxu0
      %1487 = vmatprep.mubr.f32.mxu0 0.0
      %1488 = vmatmul.mubr.f32.gmra.mrb[0].mxu0 %v850
      %v1489 = vpop.f32.mrb[0].mxu0
      %v1490 = vadd.f32 %v561, %v1489
      %v1491 = vpop.f32.mrb[0].mxu0
      %1492 = vmatprep.mubr.f32.mxu0 0.0
      %1493 = vmatmul.mubr.f32.gmra.mrb[0].mxu0 %v853
      %v1494 = vpop.f32.mrb[0].mxu0
      %v1495 = vadd.f32 %v561, %v1494
      %v1496 = vpop.f32.mrb[0].mxu0
      %1497 = vmatprep.mubr.f32.mxu0 0.0
      %1498 = vmatmul.mubr.f32.gmra.mrb[0].mxu0 %v856
      %v1499 = vpop.f32.mrb[0].mxu0
      %v1500 = vadd.f32 %v561, %v1499
      %v1501 = vpop.f32.mrb[0].mxu0
      %1502 = vmatprep.mubr.f32.mxu0 0.0
      %1503 = vmatmul.mubr.f32.gmra.mrb[0].mxu0 %v859
      %v1504 = vpop.f32.mrb[0].mxu0
      %v1505 = vadd.f32 %v561, %v1504
      %v1506 = vpop.f32.mrb[0].mxu0
      %1507 = vmatprep.mubr.f32.mxu0 0.0
      %1508 = vmatmul.mubr.f32.gmra.mrb[0].mxu0 %v862
      %v1509 = vpop.f32.mrb[0].mxu0
      %v1510 = vadd.f32 %v561, %v1509
      %v1511 = vpop.f32.mrb[0].mxu0
      %1512 = vmatprep.mubr.f32.mxu0 0.0
      %1513 = vmatmul.mubr.f32.gmra.mrb[0].mxu0 %v865
      %v1514 = vpop.f32.mrb[0].mxu0
      %v1515 = vadd.f32 %v561, %v1514
      %v1516 = vpop.f32.mrb[0].mxu0
      %1517 = vmatprep.mubr.f32.mxu0 0.0
      %1518 = vmatmul.mubr.f32.gmra.mrb[0].mxu0 %v868
      %v1519 = vpop.f32.mrb[0].mxu0
      %v1520 = vadd.f32 %v561, %v1519
      %v1521 = vpop.f32.mrb[0].mxu0
      %1522 = vmatprep.mubr.f32.mxu0 0.0
      %1523 = vmatmul.mubr.f32.gmra.mrb[0].mxu0 %v871
      %v1524 = vpop.f32.mrb[0].mxu0
      %v1525 = vadd.f32 %v561, %v1524
      %v1526 = vpop.f32.mrb[0].mxu0
      %1527 = vmatprep.mubr.f32.mxu0 0.0
      %1528 = vmatmul.mubr.f32.gmra.mrb[0].mxu0 %v874
      %v1529 = vpop.f32.mrb[0].mxu0
      %v1530 = vadd.f32 %v561, %v1529
      %v1531 = vpop.f32.mrb[0].mxu0
      %1532 = vmatprep.mubr.f32.mxu0 0.0
      %1533 = vmatmul.mubr.f32.gmra.mrb[0].mxu0 %v877
      %v1534 = vpop.f32.mrb[0].mxu0
      %v1535 = vadd.f32 %v561, %v1534
      %v1536 = vpop.f32.mrb[0].mxu0
      %1537 = vmatprep.mubr.f32.mxu0 0.0
      %1538 = vmatmul.mubr.f32.gmra.mrb[0].mxu0 %v880
      %v1539 = vpop.f32.mrb[0].mxu0
      %v1540 = vadd.f32 %v561, %v1539
      %v1541 = vpop.f32.mrb[0].mxu0
      %1542 = vmatprep.mubr.f32.mxu0 0.0
      %1543 = vmatmul.mubr.f32.gmra.mrb[0].mxu0 %v883
      %v1544 = vpop.f32.mrb[0].mxu0
      %v1545 = vadd.f32 %v561, %v1544
      %v1546 = vpop.f32.mrb[0].mxu0
      %1547 = vmatprep.mubr.f32.mxu0 0.0
      %1548 = vmatmul.mubr.f32.gmra.mrb[0].mxu0 %v886
      %v1549 = vpop.f32.mrb[0].mxu0
      %v1550 = vadd.f32 %v561, %v1549
      %v1551 = vpop.f32.mrb[0].mxu0
      %1552 = vmatprep.mubr.f32.mxu0 0.0
      %1553 = vmatmul.mubr.f32.gmra.mrb[0].mxu0 %v889
      %v1554 = vpop.f32.mrb[0].mxu0
      %v1555 = vadd.f32 %v561, %v1554
      %v1556 = vpop.f32.mrb[0].mxu0
      %1557 = vmatprep.mubr.f32.mxu0 0.0
      %1558 = vmatmul.mubr.f32.gmra.mrb[0].mxu0 %v892
      %v1559 = vpop.f32.mrb[0].mxu0
      %v1560 = vadd.f32 %v561, %v1559
      %v1561 = vpop.f32.mrb[0].mxu0
      %1562 = vmatprep.mubr.f32.mxu0 0.0
      %1563 = vmatmul.mubr.f32.gmra.mrb[0].mxu0 %v895
      %v1564 = vpop.f32.mrb[0].mxu0
      %v1565 = vadd.f32 %v561, %v1564
      %v1566 = vpop.f32.mrb[0].mxu0
      %1567 = vmatprep.mubr.f32.mxu0 0.0
      %1568 = vmatmul.mubr.f32.gmra.mrb[0].mxu0 %v898
      %v1569 = vpop.f32.mrb[0].mxu0
      %v1570 = vadd.f32 %v561, %v1569
      %v1571 = vpop.f32.mrb[0].mxu0
      %1572 = vmatprep.mubr.f32.mxu0 0.0
      %1573 = vmatmul.mubr.f32.gmra.mrb[0].mxu0 %v901
      %v1574 = vpop.f32.mrb[0].mxu0
      %v1575 = vadd.f32 %v561, %v1574
      %v1576 = vpop.f32.mrb[0].mxu0
      %1577 = vmatprep.mubr.f32.mxu0 0.0
      %1578 = vmatmul.mubr.f32.gmra.mrb[0].mxu0 %v904
      %v1579 = vpop.f32.mrb[0].mxu0
      %v1580 = vadd.f32 %v561, %v1579
      %v1581 = vpop.f32.mrb[0].mxu0
      %1582 = vmatprep.mubr.f32.mxu0 0.0
      %1583 = vmatmul.mubr.f32.gmra.mrb[0].mxu0 %v907
      %v1584 = vpop.f32.mrb[0].mxu0
      %v1585 = vadd.f32 %v561, %v1584
      %v1586 = vpop.f32.mrb[0].mxu0
      %1587 = vmatprep.mubr.f32.mxu0 0.0
      %1588 = vmatmul.mubr.f32.gmra.mrb[0].mxu0 %v910
      %v1589 = vpop.f32.mrb[0].mxu0
      %v1590 = vadd.f32 %v561, %v1589
      %v1591 = vpop.f32.mrb[0].mxu0
      %1592 = vmatprep.mubr.f32.mxu0 0.0
      %1593 = vmatmul.mubr.f32.gmra.mrb[0].mxu0 %v913
      %v1594 = vpop.f32.mrb[0].mxu0
      %v1595 = vadd.f32 %v561, %v1594
      %v1596 = vpop.f32.mrb[0].mxu0
      %1597 = vmatprep.mubr.f32.mxu0 0.0
      %1598 = vmatmul.mubr.f32.gmra.mrb[0].mxu0 %v916
      %v1599 = vpop.f32.mrb[0].mxu0
      %v1600 = vadd.f32 %v561, %v1599
      %v1601 = vpop.f32.mrb[0].mxu0
      %1602 = vmatprep.mubr.f32.mxu0 0.0
      %1603 = vmatmul.mubr.f32.gmra.mrb[0].mxu0 %v919
      %v1604 = vpop.f32.mrb[0].mxu0
      %v1605 = vadd.f32 %v561, %v1604
      %v1606 = vpop.f32.mrb[0].mxu0
      %1607 = vmatprep.mubr.f32.mxu0 0.0
      %1608 = vmatmul.mubr.f32.gmra.mrb[0].mxu0 %v922
      %v1609 = vpop.f32.mrb[0].mxu0
      %v1610 = vadd.f32 %v561, %v1609
      %v1611 = vpop.f32.mrb[0].mxu0
      %1612 = vmatprep.mubr.f32.mxu0 0.0
      %1613 = vmatmul.mubr.f32.gmra.mrb[0].mxu0 %v925
      %v1614 = vpop.f32.mrb[0].mxu0
      %v1615 = vadd.f32 %v561, %v1614
      %v1616 = vpop.f32.mrb[0].mxu0
      %1617 = vmatprep.mubr.f32.mxu0 0.0
      %1618 = vmatmul.mubr.f32.gmra.mrb[0].mxu0 %v928
      %v1619 = vpop.f32.mrb[0].mxu0
      %v1620 = vadd.f32 %v561, %v1619
      %v1621 = vpop.f32.mrb[0].mxu0
      %1622 = vmatprep.mubr.f32.mxu0 0.0
      %1623 = vmatmul.mubr.f32.gmra.mrb[0].mxu0 %v931
      %v1624 = vpop.f32.mrb[0].mxu0
      %v1625 = vadd.f32 %v561, %v1624
      %v1626 = vpop.f32.mrb[0].mxu0
      %1627 = vmatprep.mubr.f32.mxu0 0.0
      %1628 = vmatmul.mubr.f32.gmra.mrb[0].mxu0 %v934
      %v1629 = vpop.f32.mrb[0].mxu0
      %v1630 = vadd.f32 %v561, %v1629
      %v1631 = vpop.f32.mrb[0].mxu0
      %1632 = vmatprep.mubr.f32.mxu0 0.0
      %1633 = vmatmul.mubr.f32.gmra.mrb[0].mxu0 %v937
      %v1634 = vpop.f32.mrb[0].mxu0
      %v1635 = vadd.f32 %v561, %v1634
      %v1636 = vpop.f32.mrb[0].mxu0
      %1637 = vmatprep.mubr.f32.mxu0 0.0
      %1638 = vmatmul.mubr.f32.gmra.mrb[0].mxu0 %v940
      %v1639 = vpop.f32.mrb[0].mxu0
      %v1640 = vadd.f32 %v561, %v1639
      %v1641 = vpop.f32.mrb[0].mxu0
      %1642 = vmatprep.mubr.f32.mxu0 0.0
      %1643 = vmatmul.mubr.f32.gmra.mrb[0].mxu0 %v943
      %v1644 = vpop.f32.mrb[0].mxu0
      %v1645 = vadd.f32 %v561, %v1644
      %v1646 = vpop.f32.mrb[0].mxu0
      %1647 = vmatprep.mubr.f32.mxu0 0.0
      %1648 = vmatmul.mubr.f32.gmra.mrb[0].mxu0 %v946
      %v1649 = vpop.f32.mrb[0].mxu0
      %v1650 = vadd.f32 %v561, %v1649
      %v1651 = vpop.f32.mrb[0].mxu0
      %1652 = vdwg.mxu0
      %vm1653 = vcmp.gt.f32.partialorder %v1015, 0.0
      %vm1654 = vcmp.gt.f32.partialorder %v1020, 0.0
      %vm1655 = vcmp.gt.f32.partialorder %v1025, 0.0
      %vm1656 = vcmp.gt.f32.partialorder %v1030, 0.0
      %vm1657 = vcmp.gt.f32.partialorder %v1035, 0.0
      %vm1658 = vcmp.gt.f32.partialorder %v1040, 0.0
      %vm1659 = vcmp.gt.f32.partialorder %v1045, 0.0
      %vm1660 = vcmp.gt.f32.partialorder %v1050, 0.0
      %vm1661 = vcmp.gt.f32.partialorder %v1055, 0.0
      %vm1662 = vcmp.gt.f32.partialorder %v1060, 0.0
      %vm1663 = vcmp.gt.f32.partialorder %v1065, 0.0
      %vm1664 = vcmp.gt.f32.partialorder %v1070, 0.0
      %vm1665 = vcmp.gt.f32.partialorder %v1075, 0.0
      %vm1666 = vcmp.gt.f32.partialorder %v1080, 0.0
      %vm1667 = vcmp.gt.f32.partialorder %v1085, 0.0
      %vm1668 = vcmp.gt.f32.partialorder %v1090, 0.0
      %vm1669 = vcmp.gt.f32.partialorder %v1095, 0.0
      %vm1670 = vcmp.gt.f32.partialorder %v1100, 0.0
      %vm1671 = vcmp.gt.f32.partialorder %v1105, 0.0
      %vm1672 = vcmp.gt.f32.partialorder %v1110, 0.0
      %vm1673 = vcmp.gt.f32.partialorder %v1115, 0.0
      %vm1674 = vcmp.gt.f32.partialorder %v1120, 0.0
      %vm1675 = vcmp.gt.f32.partialorder %v1125, 0.0
      %vm1676 = vcmp.gt.f32.partialorder %v1130, 0.0
      %vm1677 = vcmp.gt.f32.partialorder %v1135, 0.0
      %vm1678 = vcmp.gt.f32.partialorder %v1140, 0.0
      %vm1679 = vcmp.gt.f32.partialorder %v1145, 0.0
      %vm1680 = vcmp.gt.f32.partialorder %v1150, 0.0
      %vm1681 = vcmp.gt.f32.partialorder %v1155, 0.0
      %vm1682 = vcmp.gt.f32.partialorder %v1160, 0.0
      %vm1683 = vcmp.gt.f32.partialorder %v1165, 0.0
      %vm1684 = vcmp.gt.f32.partialorder %v1170, 0.0
      %vm1685 = vcmp.gt.f32.partialorder %v1175, 0.0
      %vm1686 = vcmp.gt.f32.partialorder %v1180, 0.0
      %vm1687 = vcmp.gt.f32.partialorder %v1185, 0.0
      %vm1688 = vcmp.gt.f32.partialorder %v1190, 0.0
      %vm1689 = vcmp.gt.f32.partialorder %v1195, 0.0
      %vm1690 = vcmp.gt.f32.partialorder %v1200, 0.0
      %vm1691 = vcmp.gt.f32.partialorder %v1205, 0.0
      %vm1692 = vcmp.gt.f32.partialorder %v1210, 0.0
      %vm1693 = vcmp.gt.f32.partialorder %v1215, 0.0
      %vm1694 = vcmp.gt.f32.partialorder %v1220, 0.0
      %vm1695 = vcmp.gt.f32.partialorder %v1225, 0.0
      %vm1696 = vcmp.gt.f32.partialorder %v1230, 0.0
      %vm1697 = vcmp.gt.f32.partialorder %v1235, 0.0
      %vm1698 = vcmp.gt.f32.partialorder %v1240, 0.0
      %vm1699 = vcmp.gt.f32.partialorder %v1245, 0.0
      %vm1700 = vcmp.gt.f32.partialorder %v1250, 0.0
      %vm1701 = vcmp.gt.f32.partialorder %v1255, 0.0
      %vm1702 = vcmp.gt.f32.partialorder %v1260, 0.0
      %vm1703 = vcmp.gt.f32.partialorder %v1265, 0.0
      %vm1704 = vcmp.gt.f32.partialorder %v1270, 0.0
      %vm1705 = vcmp.gt.f32.partialorder %v1275, 0.0
      %vm1706 = vcmp.gt.f32.partialorder %v1280, 0.0
      %vm1707 = vcmp.gt.f32.partialorder %v1285, 0.0
      %vm1708 = vcmp.gt.f32.partialorder %v1290, 0.0
      %vm1709 = vcmp.gt.f32.partialorder %v1295, 0.0
      %vm1710 = vcmp.gt.f32.partialorder %v1300, 0.0
      %vm1711 = vcmp.gt.f32.partialorder %v1305, 0.0
      %vm1712 = vcmp.gt.f32.partialorder %v1310, 0.0
      %vm1713 = vcmp.gt.f32.partialorder %v1315, 0.0
      %vm1714 = vcmp.gt.f32.partialorder %v1320, 0.0
      %vm1715 = vcmp.gt.f32.partialorder %v1325, 0.0
      %vm1716 = vcmp.gt.f32.partialorder %v1330, 0.0
      %vm1717 = vcmp.gt.f32.partialorder %v1335, 0.0
      %vm1718 = vcmp.gt.f32.partialorder %v1340, 0.0
      %vm1719 = vcmp.gt.f32.partialorder %v1345, 0.0
      %vm1720 = vcmp.gt.f32.partialorder %v1350, 0.0
      %vm1721 = vcmp.gt.f32.partialorder %v1355, 0.0
      %vm1722 = vcmp.gt.f32.partialorder %v1360, 0.0
      %vm1723 = vcmp.gt.f32.partialorder %v1365, 0.0
      %vm1724 = vcmp.gt.f32.partialorder %v1370, 0.0
      %vm1725 = vcmp.gt.f32.partialorder %v1375, 0.0
      %vm1726 = vcmp.gt.f32.partialorder %v1380, 0.0
      %vm1727 = vcmp.gt.f32.partialorder %v1385, 0.0
      %vm1728 = vcmp.gt.f32.partialorder %v1390, 0.0
      %vm1729 = vcmp.gt.f32.partialorder %v1395, 0.0
      %vm1730 = vcmp.gt.f32.partialorder %v1400, 0.0
      %vm1731 = vcmp.gt.f32.partialorder %v1405, 0.0
      %vm1732 = vcmp.gt.f32.partialorder %v1410, 0.0
      %vm1733 = vcmp.gt.f32.partialorder %v1415, 0.0
      %vm1734 = vcmp.gt.f32.partialorder %v1420, 0.0
      %vm1735 = vcmp.gt.f32.partialorder %v1425, 0.0
      %vm1736 = vcmp.gt.f32.partialorder %v1430, 0.0
      %vm1737 = vcmp.gt.f32.partialorder %v1435, 0.0
      %vm1738 = vcmp.gt.f32.partialorder %v1440, 0.0
      %vm1739 = vcmp.gt.f32.partialorder %v1445, 0.0
      %vm1740 = vcmp.gt.f32.partialorder %v1450, 0.0
      %vm1741 = vcmp.gt.f32.partialorder %v1455, 0.0
      %vm1742 = vcmp.gt.f32.partialorder %v1460, 0.0
      %vm1743 = vcmp.gt.f32.partialorder %v1465, 0.0
      %vm1744 = vcmp.gt.f32.partialorder %v1470, 0.0
      %vm1745 = vcmp.gt.f32.partialorder %v1475, 0.0
      %vm1746 = vcmp.gt.f32.partialorder %v1480, 0.0
      %vm1747 = vcmp.gt.f32.partialorder %v1485, 0.0
      %vm1748 = vcmp.gt.f32.partialorder %v1490, 0.0
      %vm1749 = vcmp.gt.f32.partialorder %v1495, 0.0
      %vm1750 = vcmp.gt.f32.partialorder %v1500, 0.0
      %vm1751 = vcmp.gt.f32.partialorder %v1505, 0.0
      %vm1752 = vcmp.gt.f32.partialorder %v1510, 0.0
      %vm1753 = vcmp.gt.f32.partialorder %v1515, 0.0
      %vm1754 = vcmp.gt.f32.partialorder %v1520, 0.0
      %vm1755 = vcmp.gt.f32.partialorder %v1525, 0.0
      %vm1756 = vcmp.gt.f32.partialorder %v1530, 0.0
      %vm1757 = vcmp.gt.f32.partialorder %v1535, 0.0
      %vm1758 = vcmp.gt.f32.partialorder %v1540, 0.0
      %vm1759 = vcmp.gt.f32.partialorder %v1545, 0.0
      %vm1760 = vcmp.gt.f32.partialorder %v1550, 0.0
      %vm1761 = vcmp.gt.f32.partialorder %v1555, 0.0
      %vm1762 = vcmp.gt.f32.partialorder %v1560, 0.0
      %vm1763 = vcmp.gt.f32.partialorder %v1565, 0.0
      %vm1764 = vcmp.gt.f32.partialorder %v1570, 0.0
      %vm1765 = vcmp.gt.f32.partialorder %v1575, 0.0
      %vm1766 = vcmp.gt.f32.partialorder %v1580, 0.0
      %vm1767 = vcmp.gt.f32.partialorder %v1585, 0.0
      %vm1768 = vcmp.gt.f32.partialorder %v1590, 0.0
      %vm1769 = vcmp.gt.f32.partialorder %v1595, 0.0
      %vm1770 = vcmp.gt.f32.partialorder %v1600, 0.0
      %vm1771 = vcmp.gt.f32.partialorder %v1605, 0.0
      %vm1772 = vcmp.gt.f32.partialorder %v1610, 0.0
      %vm1773 = vcmp.gt.f32.partialorder %v1615, 0.0
      %vm1774 = vcmp.gt.f32.partialorder %v1620, 0.0
      %vm1775 = vcmp.gt.f32.partialorder %v1625, 0.0
      %vm1776 = vcmp.gt.f32.partialorder %v1630, 0.0
      %vm1777 = vcmp.gt.f32.partialorder %v1635, 0.0
      %vm1778 = vcmp.gt.f32.partialorder %v1640, 0.0
      %vm1779 = vcmp.gt.f32.partialorder %v1645, 0.0
      %vm1780 = vcmp.gt.f32.partialorder %v1650, 0.0
      %v1781 = vmul.f32 %v1015, 0.01
      %v1782 = vmul.f32 %v1020, 0.01
      %v1783 = vmul.f32 %v1025, 0.01
      %v1784 = vmul.f32 %v1030, 0.01
      %v1785 = vmul.f32 %v1035, 0.01
      %v1786 = vmul.f32 %v1040, 0.01
      %v1787 = vmul.f32 %v1045, 0.01
      %v1788 = vmul.f32 %v1050, 0.01
      %v1789 = vmul.f32 %v1055, 0.01
      %v1790 = vmul.f32 %v1060, 0.01
      %v1791 = vmul.f32 %v1065, 0.01
      %v1792 = vmul.f32 %v1070, 0.01
      %v1793 = vmul.f32 %v1075, 0.01
      %v1794 = vmul.f32 %v1080, 0.01
      %v1795 = vmul.f32 %v1085, 0.01
      %v1796 = vmul.f32 %v1090, 0.01
      %v1797 = vmul.f32 %v1095, 0.01
      %v1798 = vmul.f32 %v1100, 0.01
      %v1799 = vmul.f32 %v1105, 0.01
      %v1800 = vmul.f32 %v1110, 0.01
      %v1801 = vmul.f32 %v1115, 0.01
      %v1802 = vmul.f32 %v1120, 0.01
      %v1803 = vmul.f32 %v1125, 0.01
      %v1804 = vmul.f32 %v1130, 0.01
      %v1805 = vmul.f32 %v1135, 0.01
      %v1806 = vmul.f32 %v1140, 0.01
      %v1807 = vmul.f32 %v1145, 0.01
      %v1808 = vmul.f32 %v1150, 0.01
      %v1809 = vmul.f32 %v1155, 0.01
      %v1810 = vmul.f32 %v1160, 0.01
      %v1811 = vmul.f32 %v1165, 0.01
      %v1812 = vmul.f32 %v1170, 0.01
      %v1813 = vmul.f32 %v1175, 0.01
      %v1814 = vmul.f32 %v1180, 0.01
      %v1815 = vmul.f32 %v1185, 0.01
      %v1816 = vmul.f32 %v1190, 0.01
      %v1817 = vmul.f32 %v1195, 0.01
      %v1818 = vmul.f32 %v1200, 0.01
      %v1819 = vmul.f32 %v1205, 0.01
      %v1820 = vmul.f32 %v1210, 0.01
      %v1821 = vmul.f32 %v1215, 0.01
      %v1822 = vmul.f32 %v1220, 0.01
      %v1823 = vmul.f32 %v1225, 0.01
      %v1824 = vmul.f32 %v1230, 0.01
      %v1825 = vmul.f32 %v1235, 0.01
      %v1826 = vmul.f32 %v1240, 0.01
      %v1827 = vmul.f32 %v1245, 0.01
      %v1828 = vmul.f32 %v1250, 0.01
      %v1829 = vmul.f32 %v1255, 0.01
      %v1830 = vmul.f32 %v1260, 0.01
      %v1831 = vmul.f32 %v1265, 0.01
      %v1832 = vmul.f32 %v1270, 0.01
      %v1833 = vmul.f32 %v1275, 0.01
      %v1834 = vmul.f32 %v1280, 0.01
      %v1835 = vmul.f32 %v1285, 0.01
      %v1836 = vmul.f32 %v1290, 0.01
      %v1837 = vmul.f32 %v1295, 0.01
      %v1838 = vmul.f32 %v1300, 0.01
      %v1839 = vmul.f32 %v1305, 0.01
      %v1840 = vmul.f32 %v1310, 0.01
      %v1841 = vmul.f32 %v1315, 0.01
      %v1842 = vmul.f32 %v1320, 0.01
      %v1843 = vmul.f32 %v1325, 0.01
      %v1844 = vmul.f32 %v1330, 0.01
      %v1845 = vmul.f32 %v1335, 0.01
      %v1846 = vmul.f32 %v1340, 0.01
      %v1847 = vmul.f32 %v1345, 0.01
      %v1848 = vmul.f32 %v1350, 0.01
      %v1849 = vmul.f32 %v1355, 0.01
      %v1850 = vmul.f32 %v1360, 0.01
      %v1851 = vmul.f32 %v1365, 0.01
      %v1852 = vmul.f32 %v1370, 0.01
      %v1853 = vmul.f32 %v1375, 0.01
      %v1854 = vmul.f32 %v1380, 0.01
      %v1855 = vmul.f32 %v1385, 0.01
      %v1856 = vmul.f32 %v1390, 0.01
      %v1857 = vmul.f32 %v1395, 0.01
      %v1858 = vmul.f32 %v1400, 0.01
      %v1859 = vmul.f32 %v1405, 0.01
      %v1860 = vmul.f32 %v1410, 0.01
      %v1861 = vmul.f32 %v1415, 0.01
      %v1862 = vmul.f32 %v1420, 0.01
      %v1863 = vmul.f32 %v1425, 0.01
      %v1864 = vmul.f32 %v1430, 0.01
      %v1865 = vmul.f32 %v1435, 0.01
      %v1866 = vmul.f32 %v1440, 0.01
      %v1867 = vmul.f32 %v1445, 0.01
      %v1868 = vmul.f32 %v1450, 0.01
      %v1869 = vmul.f32 %v1455, 0.01
      %v1870 = vmul.f32 %v1460, 0.01
      %v1871 = vmul.f32 %v1465, 0.01
      %v1872 = vmul.f32 %v1470, 0.01
      %v1873 = vmul.f32 %v1475, 0.01
      %v1874 = vmul.f32 %v1480, 0.01
      %v1875 = vmul.f32 %v1485, 0.01
      %v1876 = vmul.f32 %v1490, 0.01
      %v1877 = vmul.f32 %v1495, 0.01
      %v1878 = vmul.f32 %v1500, 0.01
      %v1879 = vmul.f32 %v1505, 0.01
      %v1880 = vmul.f32 %v1510, 0.01
      %v1881 = vmul.f32 %v1515, 0.01
      %v1882 = vmul.f32 %v1520, 0.01
      %v1883 = vmul.f32 %v1525, 0.01
      %v1884 = vmul.f32 %v1530, 0.01
      %v1885 = vmul.f32 %v1535, 0.01
      %v1886 = vmul.f32 %v1540, 0.01
      %v1887 = vmul.f32 %v1545, 0.01
      %v1888 = vmul.f32 %v1550, 0.01
      %v1889 = vmul.f32 %v1555, 0.01
      %v1890 = vmul.f32 %v1560, 0.01
      %v1891 = vmul.f32 %v1565, 0.01
      %v1892 = vmul.f32 %v1570, 0.01
      %v1893 = vmul.f32 %v1575, 0.01
      %v1894 = vmul.f32 %v1580, 0.01
      %v1895 = vmul.f32 %v1585, 0.01
      %v1896 = vmul.f32 %v1590, 0.01
      %v1897 = vmul.f32 %v1595, 0.01
      %v1898 = vmul.f32 %v1600, 0.01
      %v1899 = vmul.f32 %v1605, 0.01
      %v1900 = vmul.f32 %v1610, 0.01
      %v1901 = vmul.f32 %v1615, 0.01
      %v1902 = vmul.f32 %v1620, 0.01
      %v1903 = vmul.f32 %v1625, 0.01
      %v1904 = vmul.f32 %v1630, 0.01
      %v1905 = vmul.f32 %v1635, 0.01
      %v1906 = vmul.f32 %v1640, 0.01
      %v1907 = vmul.f32 %v1645, 0.01
      %v1908 = vmul.f32 %v1650, 0.01
      %v1909 = vsel %vm1653, %v1015, %v1781
      %v1910 = vsel %vm1654, %v1020, %v1782
      %v1911 = vsel %vm1655, %v1025, %v1783
      %v1912 = vsel %vm1656, %v1030, %v1784
      %v1913 = vsel %vm1657, %v1035, %v1785
      %v1914 = vsel %vm1658, %v1040, %v1786
      %v1915 = vsel %vm1659, %v1045, %v1787
      %v1916 = vsel %vm1660, %v1050, %v1788
      %v1917 = vsel %vm1661, %v1055, %v1789
      %v1918 = vsel %vm1662, %v1060, %v1790
      %v1919 = vsel %vm1663, %v1065, %v1791
      %v1920 = vsel %vm1664, %v1070, %v1792
      %v1921 = vsel %vm1665, %v1075, %v1793
      %v1922 = vsel %vm1666, %v1080, %v1794
      %v1923 = vsel %vm1667, %v1085, %v1795
      %v1924 = vsel %vm1668, %v1090, %v1796
      %v1925 = vsel %vm1669, %v1095, %v1797
      %v1926 = vsel %vm1670, %v1100, %v1798
      %v1927 = vsel %vm1671, %v1105, %v1799
      %v1928 = vsel %vm1672, %v1110, %v1800
      %v1929 = vsel %vm1673, %v1115, %v1801
      %v1930 = vsel %vm1674, %v1120, %v1802
      %v1931 = vsel %vm1675, %v1125, %v1803
      %v1932 = vsel %vm1676, %v1130, %v1804
      %v1933 = vsel %vm1677, %v1135, %v1805
      %v1934 = vsel %vm1678, %v1140, %v1806
      %v1935 = vsel %vm1679, %v1145, %v1807
      %v1936 = vsel %vm1680, %v1150, %v1808
      %v1937 = vsel %vm1681, %v1155, %v1809
      %v1938 = vsel %vm1682, %v1160, %v1810
      %v1939 = vsel %vm1683, %v1165, %v1811
      %v1940 = vsel %vm1684, %v1170, %v1812
      %v1941 = vsel %vm1685, %v1175, %v1813
      %v1942 = vsel %vm1686, %v1180, %v1814
      %v1943 = vsel %vm1687, %v1185, %v1815
      %v1944 = vsel %vm1688, %v1190, %v1816
      %v1945 = vsel %vm1689, %v1195, %v1817
      %v1946 = vsel %vm1690, %v1200, %v1818
      %v1947 = vsel %vm1691, %v1205, %v1819
      %v1948 = vsel %vm1692, %v1210, %v1820
      %v1949 = vsel %vm1693, %v1215, %v1821
      %v1950 = vsel %vm1694, %v1220, %v1822
      %v1951 = vsel %vm1695, %v1225, %v1823
      %v1952 = vsel %vm1696, %v1230, %v1824
      %v1953 = vsel %vm1697, %v1235, %v1825
      %v1954 = vsel %vm1698, %v1240, %v1826
      %v1955 = vsel %vm1699, %v1245, %v1827
      %v1956 = vsel %vm1700, %v1250, %v1828
      %v1957 = vsel %vm1701, %v1255, %v1829
      %v1958 = vsel %vm1702, %v1260, %v1830
      %v1959 = vsel %vm1703, %v1265, %v1831
      %v1960 = vsel %vm1704, %v1270, %v1832
      %v1961 = vsel %vm1705, %v1275, %v1833
      %v1962 = vsel %vm1706, %v1280, %v1834
      %v1963 = vsel %vm1707, %v1285, %v1835
      %v1964 = vsel %vm1708, %v1290, %v1836
      %v1965 = vsel %vm1709, %v1295, %v1837
      %v1966 = vsel %vm1710, %v1300, %v1838
      %v1967 = vsel %vm1711, %v1305, %v1839
      %v1968 = vsel %vm1712, %v1310, %v1840
      %v1969 = vsel %vm1713, %v1315, %v1841
      %v1970 = vsel %vm1714, %v1320, %v1842
      %v1971 = vsel %vm1715, %v1325, %v1843
      %v1972 = vsel %vm1716, %v1330, %v1844
      %v1973 = vsel %vm1717, %v1335, %v1845
      %v1974 = vsel %vm1718, %v1340, %v1846
      %v1975 = vsel %vm1719, %v1345, %v1847
      %v1976 = vsel %vm1720, %v1350, %v1848
      %v1977 = vsel %vm1721, %v1355, %v1849
      %v1978 = vsel %vm1722, %v1360, %v1850
      %v1979 = vsel %vm1723, %v1365, %v1851
      %v1980 = vsel %vm1724, %v1370, %v1852
      %v1981 = vsel %vm1725, %v1375, %v1853
      %v1982 = vsel %vm1726, %v1380, %v1854
      %v1983 = vsel %vm1727, %v1385, %v1855
      %v1984 = vsel %vm1728, %v1390, %v1856
      %v1985 = vsel %vm1729, %v1395, %v1857
      %v1986 = vsel %vm1730, %v1400, %v1858
      %v1987 = vsel %vm1731, %v1405, %v1859
      %v1988 = vsel %vm1732, %v1410, %v1860
      %v1989 = vsel %vm1733, %v1415, %v1861
      %v1990 = vsel %vm1734, %v1420, %v1862
      %v1991 = vsel %vm1735, %v1425, %v1863
      %v1992 = vsel %vm1736, %v1430, %v1864
      %v1993 = vsel %vm1737, %v1435, %v1865
      %v1994 = vsel %vm1738, %v1440, %v1866
      %v1995 = vsel %vm1739, %v1445, %v1867
      %v1996 = vsel %vm1740, %v1450, %v1868
      %v1997 = vsel %vm1741, %v1455, %v1869
      %v1998 = vsel %vm1742, %v1460, %v1870
      %v1999 = vsel %vm1743, %v1465, %v1871
      %v2000 = vsel %vm1744, %v1470, %v1872
      %v2001 = vsel %vm1745, %v1475, %v1873
      %v2002 = vsel %vm1746, %v1480, %v1874
      %v2003 = vsel %vm1747, %v1485, %v1875
      %v2004 = vsel %vm1748, %v1490, %v1876
      %v2005 = vsel %vm1749, %v1495, %v1877
      %v2006 = vsel %vm1750, %v1500, %v1878
      %v2007 = vsel %vm1751, %v1505, %v1879
      %v2008 = vsel %vm1752, %v1510, %v1880
      %v2009 = vsel %vm1753, %v1515, %v1881
      %v2010 = vsel %vm1754, %v1520, %v1882
      %v2011 = vsel %vm1755, %v1525, %v1883
      %v2012 = vsel %vm1756, %v1530, %v1884
      %v2013 = vsel %vm1757, %v1535, %v1885
      %v2014 = vsel %vm1758, %v1540, %v1886
      %v2015 = vsel %vm1759, %v1545, %v1887
      %v2016 = vsel %vm1760, %v1550, %v1888
      %v2017 = vsel %vm1761, %v1555, %v1889
      %v2018 = vsel %vm1762, %v1560, %v1890
      %v2019 = vsel %vm1763, %v1565, %v1891
      %v2020 = vsel %vm1764, %v1570, %v1892
      %v2021 = vsel %vm1765, %v1575, %v1893
      %v2022 = vsel %vm1766, %v1580, %v1894
      %v2023 = vsel %vm1767, %v1585, %v1895
      %v2024 = vsel %vm1768, %v1590, %v1896
      %v2025 = vsel %vm1769, %v1595, %v1897
      %v2026 = vsel %vm1770, %v1600, %v1898
      %v2027 = vsel %vm1771, %v1605, %v1899
      %v2028 = vsel %vm1772, %v1610, %v1900
      %v2029 = vsel %vm1773, %v1615, %v1901
      %v2030 = vsel %vm1774, %v1620, %v1902
      %v2031 = vsel %vm1775, %v1625, %v1903
      %v2032 = vsel %vm1776, %v1630, %v1904
      %v2033 = vsel %vm1777, %v1635, %v1905
      %v2034 = vsel %vm1778, %v1640, %v1906
      %v2035 = vsel %vm1779, %v1645, %v1907
      %v2036 = vsel %vm1780, %v1650, %v1908
      %v2037 = vld [vmem:[%s4] sm:$0xff]
      %v2038 = vld [vmem:[%s4 + $0x8] sm:$0xff]
      %v2039 = vld [vmem:[%s4 + $0x10] sm:$0xff]
      %v2040 = vld [vmem:[%s4 + $0x18] sm:$0xff]
      %v2041 = vld [vmem:[%s5] sm:$0x1]
      %v2043 = vlaneseq
      %v2044 = vshrl.u32 %v2043, 7
      %v2045 = vsub.s32 0, %v2044
      %v2046 = vrot.slane %v2041, %v2045
      %vm2048 = vcmask 261120
      %v2050 = vsel %vm2048, %v1909, 0
      %v2053 = vsel %vm2048, %v1910, 0
      %v2056 = vsel %vm2048, %v1911, 0
      %v2059 = vsel %vm2048, %v1912, 0
      %v2062 = vsel %vm2048, %v1913, 0
      %v2065 = vsel %vm2048, %v1914, 0
      %v2068 = vsel %vm2048, %v1915, 0
      %v2071 = vsel %vm2048, %v1916, 0
      %v2074 = vsel %vm2048, %v1917, 0
      %v2077 = vsel %vm2048, %v1918, 0
      %v2080 = vsel %vm2048, %v1919, 0
      %v2083 = vsel %vm2048, %v1920, 0
      %v2086 = vsel %vm2048, %v1921, 0
      %v2089 = vsel %vm2048, %v1922, 0
      %v2092 = vsel %vm2048, %v1923, 0
      %v2095 = vsel %vm2048, %v1924, 0
      %v2098 = vsel %vm2048, %v1925, 0
      %v2101 = vsel %vm2048, %v1926, 0
      %v2104 = vsel %vm2048, %v1927, 0
      %v2107 = vsel %vm2048, %v1928, 0
      %v2110 = vsel %vm2048, %v1929, 0
      %v2113 = vsel %vm2048, %v1930, 0
      %v2116 = vsel %vm2048, %v1931, 0
      %v2119 = vsel %vm2048, %v1932, 0
      %v2122 = vsel %vm2048, %v1933, 0
      %v2125 = vsel %vm2048, %v1934, 0
      %v2128 = vsel %vm2048, %v1935, 0
      %v2131 = vsel %vm2048, %v1936, 0
      %v2134 = vsel %vm2048, %v1937, 0
      %v2137 = vsel %vm2048, %v1938, 0
      %v2140 = vsel %vm2048, %v1939, 0
      %v2143 = vsel %vm2048, %v1940, 0
      %v2146 = vsel %vm2048, %v1941, 0
      %v2149 = vsel %vm2048, %v1942, 0
      %v2152 = vsel %vm2048, %v1943, 0
      %v2155 = vsel %vm2048, %v1944, 0
      %v2158 = vsel %vm2048, %v1945, 0
      %v2161 = vsel %vm2048, %v1946, 0
      %v2164 = vsel %vm2048, %v1947, 0
      %v2167 = vsel %vm2048, %v1948, 0
      %v2170 = vsel %vm2048, %v1949, 0
      %v2173 = vsel %vm2048, %v1950, 0
      %v2176 = vsel %vm2048, %v1951, 0
      %v2179 = vsel %vm2048, %v1952, 0
      %v2182 = vsel %vm2048, %v1953, 0
      %v2185 = vsel %vm2048, %v1954, 0
      %v2188 = vsel %vm2048, %v1955, 0
      %v2191 = vsel %vm2048, %v1956, 0
      %v2194 = vsel %vm2048, %v1957, 0
      %v2197 = vsel %vm2048, %v1958, 0
      %v2200 = vsel %vm2048, %v1959, 0
      %v2203 = vsel %vm2048, %v1960, 0
      %v2206 = vsel %vm2048, %v1961, 0
      %v2209 = vsel %vm2048, %v1962, 0
      %v2212 = vsel %vm2048, %v1963, 0
      %v2215 = vsel %vm2048, %v1964, 0
      %v2218 = vsel %vm2048, %v1965, 0
      %v2221 = vsel %vm2048, %v1966, 0
      %v2224 = vsel %vm2048, %v1967, 0
      %v2227 = vsel %vm2048, %v1968, 0
      %v2230 = vsel %vm2048, %v1969, 0
      %v2233 = vsel %vm2048, %v1970, 0
      %v2236 = vsel %vm2048, %v1971, 0
      %v2239 = vsel %vm2048, %v1972, 0
      %v2242 = vsel %vm2048, %v1973, 0
      %v2245 = vsel %vm2048, %v1974, 0
      %v2248 = vsel %vm2048, %v1975, 0
      %v2251 = vsel %vm2048, %v1976, 0
      %v2254 = vsel %vm2048, %v1977, 0
      %v2257 = vsel %vm2048, %v1978, 0
      %v2260 = vsel %vm2048, %v1979, 0
      %v2263 = vsel %vm2048, %v1980, 0
      %v2266 = vsel %vm2048, %v1981, 0
      %v2269 = vsel %vm2048, %v1982, 0
      %v2272 = vsel %vm2048, %v1983, 0
      %v2275 = vsel %vm2048, %v1984, 0
      %v2278 = vsel %vm2048, %v1985, 0
      %v2281 = vsel %vm2048, %v1986, 0
      %v2284 = vsel %vm2048, %v1987, 0
      %v2287 = vsel %vm2048, %v1988, 0
      %v2290 = vsel %vm2048, %v1989, 0
      %v2293 = vsel %vm2048, %v1990, 0
      %v2296 = vsel %vm2048, %v1991, 0
      %v2299 = vsel %vm2048, %v1992, 0
      %v2302 = vsel %vm2048, %v1993, 0
      %v2305 = vsel %vm2048, %v1994, 0
      %v2308 = vsel %vm2048, %v1995, 0
      %v2311 = vsel %vm2048, %v1996, 0
      %v2314 = vsel %vm2048, %v1997, 0
      %v2317 = vsel %vm2048, %v1998, 0
      %v2320 = vsel %vm2048, %v1999, 0
      %v2323 = vsel %vm2048, %v2000, 0
      %v2326 = vsel %vm2048, %v2001, 0
      %v2329 = vsel %vm2048, %v2002, 0
      %v2332 = vsel %vm2048, %v2003, 0
      %v2335 = vsel %vm2048, %v2004, 0
      %v2338 = vsel %vm2048, %v2005, 0
      %v2341 = vsel %vm2048, %v2006, 0
      %v2344 = vsel %vm2048, %v2007, 0
      %v2347 = vsel %vm2048, %v2008, 0
      %v2350 = vsel %vm2048, %v2009, 0
      %v2353 = vsel %vm2048, %v2010, 0
      %v2356 = vsel %vm2048, %v2011, 0
      %v2359 = vsel %vm2048, %v2012, 0
      %v2362 = vsel %vm2048, %v2013, 0
      %v2365 = vsel %vm2048, %v2014, 0
      %v2368 = vsel %vm2048, %v2015, 0
      %v2371 = vsel %vm2048, %v2016, 0
      %v2374 = vsel %vm2048, %v2017, 0
      %v2377 = vsel %vm2048, %v2018, 0
      %v2380 = vsel %vm2048, %v2019, 0
      %v2383 = vsel %vm2048, %v2020, 0
      %v2386 = vsel %vm2048, %v2021, 0
      %v2389 = vsel %vm2048, %v2022, 0
      %v2392 = vsel %vm2048, %v2023, 0
      %v2395 = vsel %vm2048, %v2024, 0
      %v2398 = vsel %vm2048, %v2025, 0
      %v2401 = vsel %vm2048, %v2026, 0
      %v2404 = vsel %vm2048, %v2027, 0
      %v2407 = vsel %vm2048, %v2028, 0
      %v2410 = vsel %vm2048, %v2029, 0
      %v2413 = vsel %vm2048, %v2030, 0
      %v2416 = vsel %vm2048, %v2031, 0
      %v2419 = vsel %vm2048, %v2032, 0
      %v2422 = vsel %vm2048, %v2033, 0
      %v2425 = vsel %vm2048, %v2034, 0
      %v2428 = vsel %vm2048, %v2035, 0
      %v2431 = vsel %vm2048, %v2036, 0
      %2433 = vmatprep.subr.mxu0 0.0
      %2434 = vmatpush1.msra.mxu0 %v2037
      %2435 = vmatprep.subr.mxu0 0.0
      %2436 = vmatpush1.msra.mxu0 %v2038
      %2437 = vmatprep.subr.mxu0 0.0
      %2438 = vmatpush1.msra.mxu0 %v2039
      %2439 = vmatprep.subr.mxu0 0.0
      %2440 = vmatpush1.msra.mxu0 %v2040
      %2441 = vmatprep.subr.mxu0 0.0
      %2442 = vmatpush1.msra.mxu0 0.0
      %2443 = vmatprep.subr.mxu0 0.0
      %2444 = vmatpush1.msra.mxu0 0.0
      %2445 = vmatprep.subr.mxu0 0.0
      %2446 = vmatpush1.msra.mxu0 0.0
      %2447 = vmatprep.subr.mxu0 0.0
      %2448 = vmatpush1.msra.mxu0 0.0
      %2449 = vmatprep.subr.mxu0 0.0
      %2450 = vmatpush1.msra.mxu0 0.0
      %2451 = vmatprep.subr.mxu0 0.0
      %2452 = vmatpush1.msra.mxu0 0.0
      %2453 = vmatprep.subr.mxu0 0.0
      %2454 = vmatpush1.msra.mxu0 0.0
      %2455 = vmatprep.subr.mxu0 0.0
      %2456 = vmatpush1.msra.mxu0 0.0
      %2457 = vmatprep.subr.mxu0 0.0
      %2458 = vmatpush1.msra.mxu0 0.0
      %2459 = vmatprep.subr.mxu0 0.0
      %2460 = vmatpush1.msra.mxu0 0.0
      %2461 = vmatprep.subr.mxu0 0.0
      %2462 = vmatpush1.msra.mxu0 0.0
      %2463 = vmatprep.subr.mxu0 0.0
      %2464 = vmatpush1.msra.mxu0 0.0
      %2465 = vmatprep.subr.mxu0 0.0
      %2466 = vmatpush1.msra.mxu0 0.0
      %2467 = vmatprep.subr.mxu0 0.0
      %2468 = vmatpush1.msra.mxu0 0.0
      %2469 = vmatprep.subr.mxu0 0.0
      %2470 = vmatpush1.msra.mxu0 0.0
      %2471 = vmatprep.subr.mxu0 0.0
      %2472 = vmatpush1.msra.mxu0 0.0
      %2473 = vmatprep.subr.mxu0 0.0
      %2474 = vmatpush1.msra.mxu0 0.0
      %2475 = vmatprep.subr.mxu0 0.0
      %2476 = vmatpush1.msra.mxu0 0.0
      %2477 = vmatprep.subr.mxu0 0.0
      %2478 = vmatpush1.msra.mxu0 0.0
      %2479 = vmatprep.subr.mxu0 0.0
      %2480 = vmatpush1.msra.mxu0 0.0
      %2481 = vmatprep.subr.mxu0 0.0
      %2482 = vmatpush1.msra.mxu0 0.0
      %2483 = vmatprep.subr.mxu0 0.0
      %2484 = vmatpush1.msra.mxu0 0.0
      %2485 = vmatprep.subr.mxu0 0.0
      %2486 = vmatpush1.msra.mxu0 0.0
      %2487 = vmatprep.subr.mxu0 0.0
      %2488 = vmatpush1.msra.mxu0 0.0
      %2489 = vmatprep.subr.mxu0 0.0
      %2490 = vmatpush1.msra.mxu0 0.0
      %2491 = vmatprep.subr.mxu0 0.0
      %2492 = vmatpush1.msra.mxu0 0.0
      %2493 = vmatprep.subr.mxu0 0.0
      %2494 = vmatpush1.msra.mxu0 0.0
      %2495 = vmatprep.subr.mxu0 0.0
      %2496 = vmatpush1.msra.mxu0 0.0
      %2497 = vmatprep.mubr.f32.mxu0 0.0
      %2498 = vmatmul.mubr.f32.gmra.mrb[0].mxu0 %v2050
      %v2499 = vpop.f32.mrb[0].mxu0
      %v2500 = vadd.f32 %v2046, %v2499
      %v2501 = vpop.f32.mrb[0].mxu0
      %2502 = vmatprep.mubr.f32.mxu0 0.0
      %2503 = vmatmul.mubr.f32.gmra.mrb[0].mxu0 %v2053
      %v2504 = vpop.f32.mrb[0].mxu0
      %v2505 = vadd.f32 %v2046, %v2504
      %v2506 = vpop.f32.mrb[0].mxu0
      %2507 = vmatprep.mubr.f32.mxu0 0.0
      %2508 = vmatmul.mubr.f32.gmra.mrb[0].mxu0 %v2056
      %v2509 = vpop.f32.mrb[0].mxu0
      %v2510 = vadd.f32 %v2046, %v2509
      %v2511 = vpop.f32.mrb[0].mxu0
      %2512 = vmatprep.mubr.f32.mxu0 0.0
      %2513 = vmatmul.mubr.f32.gmra.mrb[0].mxu0 %v2059
      %v2514 = vpop.f32.mrb[0].mxu0
      %v2515 = vadd.f32 %v2046, %v2514
      %v2516 = vpop.f32.mrb[0].mxu0
      %2517 = vmatprep.mubr.f32.mxu0 0.0
      %2518 = vmatmul.mubr.f32.gmra.mrb[0].mxu0 %v2062
      %v2519 = vpop.f32.mrb[0].mxu0
      %v2520 = vadd.f32 %v2046, %v2519
      %v2521 = vpop.f32.mrb[0].mxu0
      %2522 = vmatprep.mubr.f32.mxu0 0.0
      %2523 = vmatmul.mubr.f32.gmra.mrb[0].mxu0 %v2065
      %v2524 = vpop.f32.mrb[0].mxu0
      %v2525 = vadd.f32 %v2046, %v2524
      %v2526 = vpop.f32.mrb[0].mxu0
      %2527 = vmatprep.mubr.f32.mxu0 0.0
      %2528 = vmatmul.mubr.f32.gmra.mrb[0].mxu0 %v2068
      %v2529 = vpop.f32.mrb[0].mxu0
      %v2530 = vadd.f32 %v2046, %v2529
      %v2531 = vpop.f32.mrb[0].mxu0
      %2532 = vmatprep.mubr.f32.mxu0 0.0
      %2533 = vmatmul.mubr.f32.gmra.mrb[0].mxu0 %v2071
      %v2534 = vpop.f32.mrb[0].mxu0
      %v2535 = vadd.f32 %v2046, %v2534
      %v2536 = vpop.f32.mrb[0].mxu0
      %2537 = vmatprep.mubr.f32.mxu0 0.0
      %2538 = vmatmul.mubr.f32.gmra.mrb[0].mxu0 %v2074
      %v2539 = vpop.f32.mrb[0].mxu0
      %v2540 = vadd.f32 %v2046, %v2539
      %v2541 = vpop.f32.mrb[0].mxu0
      %2542 = vmatprep.mubr.f32.mxu0 0.0
      %2543 = vmatmul.mubr.f32.gmra.mrb[0].mxu0 %v2077
      %v2544 = vpop.f32.mrb[0].mxu0
      %v2545 = vadd.f32 %v2046, %v2544
      %v2546 = vpop.f32.mrb[0].mxu0
      %2547 = vmatprep.mubr.f32.mxu0 0.0
      %2548 = vmatmul.mubr.f32.gmra.mrb[0].mxu0 %v2080
      %v2549 = vpop.f32.mrb[0].mxu0
      %v2550 = vadd.f32 %v2046, %v2549
      %v2551 = vpop.f32.mrb[0].mxu0
      %2552 = vmatprep.mubr.f32.mxu0 0.0
      %2553 = vmatmul.mubr.f32.gmra.mrb[0].mxu0 %v2083
      %v2554 = vpop.f32.mrb[0].mxu0
      %v2555 = vadd.f32 %v2046, %v2554
      %v2556 = vpop.f32.mrb[0].mxu0
      %2557 = vmatprep.mubr.f32.mxu0 0.0
      %2558 = vmatmul.mubr.f32.gmra.mrb[0].mxu0 %v2086
      %v2559 = vpop.f32.mrb[0].mxu0
      %v2560 = vadd.f32 %v2046, %v2559
      %v2561 = vpop.f32.mrb[0].mxu0
      %2562 = vmatprep.mubr.f32.mxu0 0.0
      %2563 = vmatmul.mubr.f32.gmra.mrb[0].mxu0 %v2089
      %v2564 = vpop.f32.mrb[0].mxu0
      %v2565 = vadd.f32 %v2046, %v2564
      %v2566 = vpop.f32.mrb[0].mxu0
      %2567 = vmatprep.mubr.f32.mxu0 0.0
      %2568 = vmatmul.mubr.f32.gmra.mrb[0].mxu0 %v2092
      %v2569 = vpop.f32.mrb[0].mxu0
      %v2570 = vadd.f32 %v2046, %v2569
      %v2571 = vpop.f32.mrb[0].mxu0
      %2572 = vmatprep.mubr.f32.mxu0 0.0
      %2573 = vmatmul.mubr.f32.gmra.mrb[0].mxu0 %v2095
      %v2574 = vpop.f32.mrb[0].mxu0
      %v2575 = vadd.f32 %v2046, %v2574
      %v2576 = vpop.f32.mrb[0].mxu0
      %2577 = vmatprep.mubr.f32.mxu0 0.0
      %2578 = vmatmul.mubr.f32.gmra.mrb[0].mxu0 %v2098
      %v2579 = vpop.f32.mrb[0].mxu0
      %v2580 = vadd.f32 %v2046, %v2579
      %v2581 = vpop.f32.mrb[0].mxu0
      %2582 = vmatprep.mubr.f32.mxu0 0.0
      %2583 = vmatmul.mubr.f32.gmra.mrb[0].mxu0 %v2101
      %v2584 = vpop.f32.mrb[0].mxu0
      %v2585 = vadd.f32 %v2046, %v2584
      %v2586 = vpop.f32.mrb[0].mxu0
      %2587 = vmatprep.mubr.f32.mxu0 0.0
      %2588 = vmatmul.mubr.f32.gmra.mrb[0].mxu0 %v2104
      %v2589 = vpop.f32.mrb[0].mxu0
      %v2590 = vadd.f32 %v2046, %v2589
      %v2591 = vpop.f32.mrb[0].mxu0
      %2592 = vmatprep.mubr.f32.mxu0 0.0
      %2593 = vmatmul.mubr.f32.gmra.mrb[0].mxu0 %v2107
      %v2594 = vpop.f32.mrb[0].mxu0
      %v2595 = vadd.f32 %v2046, %v2594
      %v2596 = vpop.f32.mrb[0].mxu0
      %2597 = vmatprep.mubr.f32.mxu0 0.0
      %2598 = vmatmul.mubr.f32.gmra.mrb[0].mxu0 %v2110
      %v2599 = vpop.f32.mrb[0].mxu0
      %v2600 = vadd.f32 %v2046, %v2599
      %v2601 = vpop.f32.mrb[0].mxu0
      %2602 = vmatprep.mubr.f32.mxu0 0.0
      %2603 = vmatmul.mubr.f32.gmra.mrb[0].mxu0 %v2113
      %v2604 = vpop.f32.mrb[0].mxu0
      %v2605 = vadd.f32 %v2046, %v2604
      %v2606 = vpop.f32.mrb[0].mxu0
      %2607 = vmatprep.mubr.f32.mxu0 0.0
      %2608 = vmatmul.mubr.f32.gmra.mrb[0].mxu0 %v2116
      %v2609 = vpop.f32.mrb[0].mxu0
      %v2610 = vadd.f32 %v2046, %v2609
      %v2611 = vpop.f32.mrb[0].mxu0
      %2612 = vmatprep.mubr.f32.mxu0 0.0
      %2613 = vmatmul.mubr.f32.gmra.mrb[0].mxu0 %v2119
      %v2614 = vpop.f32.mrb[0].mxu0
      %v2615 = vadd.f32 %v2046, %v2614
      %v2616 = vpop.f32.mrb[0].mxu0
      %2617 = vmatprep.mubr.f32.mxu0 0.0
      %2618 = vmatmul.mubr.f32.gmra.mrb[0].mxu0 %v2122
      %v2619 = vpop.f32.mrb[0].mxu0
      %v2620 = vadd.f32 %v2046, %v2619
      %v2621 = vpop.f32.mrb[0].mxu0
      %2622 = vmatprep.mubr.f32.mxu0 0.0
      %2623 = vmatmul.mubr.f32.gmra.mrb[0].mxu0 %v2125
      %v2624 = vpop.f32.mrb[0].mxu0
      %v2625 = vadd.f32 %v2046, %v2624
      %v2626 = vpop.f32.mrb[0].mxu0
      %2627 = vmatprep.mubr.f32.mxu0 0.0
      %2628 = vmatmul.mubr.f32.gmra.mrb[0].mxu0 %v2128
      %v2629 = vpop.f32.mrb[0].mxu0
      %v2630 = vadd.f32 %v2046, %v2629
      %v2631 = vpop.f32.mrb[0].mxu0
      %2632 = vmatprep.mubr.f32.mxu0 0.0
      %2633 = vmatmul.mubr.f32.gmra.mrb[0].mxu0 %v2131
      %v2634 = vpop.f32.mrb[0].mxu0
      %v2635 = vadd.f32 %v2046, %v2634
      %v2636 = vpop.f32.mrb[0].mxu0
      %2637 = vmatprep.mubr.f32.mxu0 0.0
      %2638 = vmatmul.mubr.f32.gmra.mrb[0].mxu0 %v2134
      %v2639 = vpop.f32.mrb[0].mxu0
      %v2640 = vadd.f32 %v2046, %v2639
      %v2641 = vpop.f32.mrb[0].mxu0
      %2642 = vmatprep.mubr.f32.mxu0 0.0
      %2643 = vmatmul.mubr.f32.gmra.mrb[0].mxu0 %v2137
      %v2644 = vpop.f32.mrb[0].mxu0
      %v2645 = vadd.f32 %v2046, %v2644
      %v2646 = vpop.f32.mrb[0].mxu0
      %2647 = vmatprep.mubr.f32.mxu0 0.0
      %2648 = vmatmul.mubr.f32.gmra.mrb[0].mxu0 %v2140
      %v2649 = vpop.f32.mrb[0].mxu0
      %v2650 = vadd.f32 %v2046, %v2649
      %v2651 = vpop.f32.mrb[0].mxu0
      %2652 = vmatprep.mubr.f32.mxu0 0.0
      %2653 = vmatmul.mubr.f32.gmra.mrb[0].mxu0 %v2143
      %v2654 = vpop.f32.mrb[0].mxu0
      %v2655 = vadd.f32 %v2046, %v2654
      %v2656 = vpop.f32.mrb[0].mxu0
      %2657 = vmatprep.mubr.f32.mxu0 0.0
      %2658 = vmatmul.mubr.f32.gmra.mrb[0].mxu0 %v2146
      %v2659 = vpop.f32.mrb[0].mxu0
      %v2660 = vadd.f32 %v2046, %v2659
      %v2661 = vpop.f32.mrb[0].mxu0
      %2662 = vmatprep.mubr.f32.mxu0 0.0
      %2663 = vmatmul.mubr.f32.gmra.mrb[0].mxu0 %v2149
      %v2664 = vpop.f32.mrb[0].mxu0
      %v2665 = vadd.f32 %v2046, %v2664
      %v2666 = vpop.f32.mrb[0].mxu0
      %2667 = vmatprep.mubr.f32.mxu0 0.0
      %2668 = vmatmul.mubr.f32.gmra.mrb[0].mxu0 %v2152
      %v2669 = vpop.f32.mrb[0].mxu0
      %v2670 = vadd.f32 %v2046, %v2669
      %v2671 = vpop.f32.mrb[0].mxu0
      %2672 = vmatprep.mubr.f32.mxu0 0.0
      %2673 = vmatmul.mubr.f32.gmra.mrb[0].mxu0 %v2155
      %v2674 = vpop.f32.mrb[0].mxu0
      %v2675 = vadd.f32 %v2046, %v2674
      %v2676 = vpop.f32.mrb[0].mxu0
      %2677 = vmatprep.mubr.f32.mxu0 0.0
      %2678 = vmatmul.mubr.f32.gmra.mrb[0].mxu0 %v2158
      %v2679 = vpop.f32.mrb[0].mxu0
      %v2680 = vadd.f32 %v2046, %v2679
      %v2681 = vpop.f32.mrb[0].mxu0
      %2682 = vmatprep.mubr.f32.mxu0 0.0
      %2683 = vmatmul.mubr.f32.gmra.mrb[0].mxu0 %v2161
      %v2684 = vpop.f32.mrb[0].mxu0
      %v2685 = vadd.f32 %v2046, %v2684
      %v2686 = vpop.f32.mrb[0].mxu0
      %2687 = vmatprep.mubr.f32.mxu0 0.0
      %2688 = vmatmul.mubr.f32.gmra.mrb[0].mxu0 %v2164
      %v2689 = vpop.f32.mrb[0].mxu0
      %v2690 = vadd.f32 %v2046, %v2689
      %v2691 = vpop.f32.mrb[0].mxu0
      %2692 = vmatprep.mubr.f32.mxu0 0.0
      %2693 = vmatmul.mubr.f32.gmra.mrb[0].mxu0 %v2167
      %v2694 = vpop.f32.mrb[0].mxu0
      %v2695 = vadd.f32 %v2046, %v2694
      %v2696 = vpop.f32.mrb[0].mxu0
      %2697 = vmatprep.mubr.f32.mxu0 0.0
      %2698 = vmatmul.mubr.f32.gmra.mrb[0].mxu0 %v2170
      %v2699 = vpop.f32.mrb[0].mxu0
      %v2700 = vadd.f32 %v2046, %v2699
      %v2701 = vpop.f32.mrb[0].mxu0
      %2702 = vmatprep.mubr.f32.mxu0 0.0
      %2703 = vmatmul.mubr.f32.gmra.mrb[0].mxu0 %v2173
      %v2704 = vpop.f32.mrb[0].mxu0
      %v2705 = vadd.f32 %v2046, %v2704
      %v2706 = vpop.f32.mrb[0].mxu0
      %2707 = vmatprep.mubr.f32.mxu0 0.0
      %2708 = vmatmul.mubr.f32.gmra.mrb[0].mxu0 %v2176
      %v2709 = vpop.f32.mrb[0].mxu0
      %v2710 = vadd.f32 %v2046, %v2709
      %v2711 = vpop.f32.mrb[0].mxu0
      %2712 = vmatprep.mubr.f32.mxu0 0.0
      %2713 = vmatmul.mubr.f32.gmra.mrb[0].mxu0 %v2179
      %v2714 = vpop.f32.mrb[0].mxu0
      %v2715 = vadd.f32 %v2046, %v2714
      %v2716 = vpop.f32.mrb[0].mxu0
      %2717 = vmatprep.mubr.f32.mxu0 0.0
      %2718 = vmatmul.mubr.f32.gmra.mrb[0].mxu0 %v2182
      %v2719 = vpop.f32.mrb[0].mxu0
      %v2720 = vadd.f32 %v2046, %v2719
      %v2721 = vpop.f32.mrb[0].mxu0
      %2722 = vmatprep.mubr.f32.mxu0 0.0
      %2723 = vmatmul.mubr.f32.gmra.mrb[0].mxu0 %v2185
      %v2724 = vpop.f32.mrb[0].mxu0
      %v2725 = vadd.f32 %v2046, %v2724
      %v2726 = vpop.f32.mrb[0].mxu0
      %2727 = vmatprep.mubr.f32.mxu0 0.0
      %2728 = vmatmul.mubr.f32.gmra.mrb[0].mxu0 %v2188
      %v2729 = vpop.f32.mrb[0].mxu0
      %v2730 = vadd.f32 %v2046, %v2729
      %v2731 = vpop.f32.mrb[0].mxu0
      %2732 = vmatprep.mubr.f32.mxu0 0.0
      %2733 = vmatmul.mubr.f32.gmra.mrb[0].mxu0 %v2191
      %v2734 = vpop.f32.mrb[0].mxu0
      %v2735 = vadd.f32 %v2046, %v2734
      %v2736 = vpop.f32.mrb[0].mxu0
      %2737 = vmatprep.mubr.f32.mxu0 0.0
      %2738 = vmatmul.mubr.f32.gmra.mrb[0].mxu0 %v2194
      %v2739 = vpop.f32.mrb[0].mxu0
      %v2740 = vadd.f32 %v2046, %v2739
      %v2741 = vpop.f32.mrb[0].mxu0
      %2742 = vmatprep.mubr.f32.mxu0 0.0
      %2743 = vmatmul.mubr.f32.gmra.mrb[0].mxu0 %v2197
      %v2744 = vpop.f32.mrb[0].mxu0
      %v2745 = vadd.f32 %v2046, %v2744
      %v2746 = vpop.f32.mrb[0].mxu0
      %2747 = vmatprep.mubr.f32.mxu0 0.0
      %2748 = vmatmul.mubr.f32.gmra.mrb[0].mxu0 %v2200
      %v2749 = vpop.f32.mrb[0].mxu0
      %v2750 = vadd.f32 %v2046, %v2749
      %v2751 = vpop.f32.mrb[0].mxu0
      %2752 = vmatprep.mubr.f32.mxu0 0.0
      %2753 = vmatmul.mubr.f32.gmra.mrb[0].mxu0 %v2203
      %v2754 = vpop.f32.mrb[0].mxu0
      %v2755 = vadd.f32 %v2046, %v2754
      %v2756 = vpop.f32.mrb[0].mxu0
      %2757 = vmatprep.mubr.f32.mxu0 0.0
      %2758 = vmatmul.mubr.f32.gmra.mrb[0].mxu0 %v2206
      %v2759 = vpop.f32.mrb[0].mxu0
      %v2760 = vadd.f32 %v2046, %v2759
      %v2761 = vpop.f32.mrb[0].mxu0
      %2762 = vmatprep.mubr.f32.mxu0 0.0
      %2763 = vmatmul.mubr.f32.gmra.mrb[0].mxu0 %v2209
      %v2764 = vpop.f32.mrb[0].mxu0
      %v2765 = vadd.f32 %v2046, %v2764
      %v2766 = vpop.f32.mrb[0].mxu0
      %2767 = vmatprep.mubr.f32.mxu0 0.0
      %2768 = vmatmul.mubr.f32.gmra.mrb[0].mxu0 %v2212
      %v2769 = vpop.f32.mrb[0].mxu0
      %v2770 = vadd.f32 %v2046, %v2769
      %v2771 = vpop.f32.mrb[0].mxu0
      %2772 = vmatprep.mubr.f32.mxu0 0.0
      %2773 = vmatmul.mubr.f32.gmra.mrb[0].mxu0 %v2215
      %v2774 = vpop.f32.mrb[0].mxu0
      %v2775 = vadd.f32 %v2046, %v2774
      %v2776 = vpop.f32.mrb[0].mxu0
      %2777 = vmatprep.mubr.f32.mxu0 0.0
      %2778 = vmatmul.mubr.f32.gmra.mrb[0].mxu0 %v2218
      %v2779 = vpop.f32.mrb[0].mxu0
      %v2780 = vadd.f32 %v2046, %v2779
      %v2781 = vpop.f32.mrb[0].mxu0
      %2782 = vmatprep.mubr.f32.mxu0 0.0
      %2783 = vmatmul.mubr.f32.gmra.mrb[0].mxu0 %v2221
      %v2784 = vpop.f32.mrb[0].mxu0
      %v2785 = vadd.f32 %v2046, %v2784
      %v2786 = vpop.f32.mrb[0].mxu0
      %2787 = vmatprep.mubr.f32.mxu0 0.0
      %2788 = vmatmul.mubr.f32.gmra.mrb[0].mxu0 %v2224
      %v2789 = vpop.f32.mrb[0].mxu0
      %v2790 = vadd.f32 %v2046, %v2789
      %v2791 = vpop.f32.mrb[0].mxu0
      %2792 = vmatprep.mubr.f32.mxu0 0.0
      %2793 = vmatmul.mubr.f32.gmra.mrb[0].mxu0 %v2227
      %v2794 = vpop.f32.mrb[0].mxu0
      %v2795 = vadd.f32 %v2046, %v2794
      %v2796 = vpop.f32.mrb[0].mxu0
      %2797 = vmatprep.mubr.f32.mxu0 0.0
      %2798 = vmatmul.mubr.f32.gmra.mrb[0].mxu0 %v2230
      %v2799 = vpop.f32.mrb[0].mxu0
      %v2800 = vadd.f32 %v2046, %v2799
      %v2801 = vpop.f32.mrb[0].mxu0
      %2802 = vmatprep.mubr.f32.mxu0 0.0
      %2803 = vmatmul.mubr.f32.gmra.mrb[0].mxu0 %v2233
      %v2804 = vpop.f32.mrb[0].mxu0
      %v2805 = vadd.f32 %v2046, %v2804
      %v2806 = vpop.f32.mrb[0].mxu0
      %2807 = vmatprep.mubr.f32.mxu0 0.0
      %2808 = vmatmul.mubr.f32.gmra.mrb[0].mxu0 %v2236
      %v2809 = vpop.f32.mrb[0].mxu0
      %v2810 = vadd.f32 %v2046, %v2809
      %v2811 = vpop.f32.mrb[0].mxu0
      %2812 = vmatprep.mubr.f32.mxu0 0.0
      %2813 = vmatmul.mubr.f32.gmra.mrb[0].mxu0 %v2239
      %v2814 = vpop.f32.mrb[0].mxu0
      %v2815 = vadd.f32 %v2046, %v2814
      %v2816 = vpop.f32.mrb[0].mxu0
      %2817 = vmatprep.mubr.f32.mxu0 0.0
      %2818 = vmatmul.mubr.f32.gmra.mrb[0].mxu0 %v2242
      %v2819 = vpop.f32.mrb[0].mxu0
      %v2820 = vadd.f32 %v2046, %v2819
      %v2821 = vpop.f32.mrb[0].mxu0
      %2822 = vmatprep.mubr.f32.mxu0 0.0
      %2823 = vmatmul.mubr.f32.gmra.mrb[0].mxu0 %v2245
      %v2824 = vpop.f32.mrb[0].mxu0
      %v2825 = vadd.f32 %v2046, %v2824
      %v2826 = vpop.f32.mrb[0].mxu0
      %2827 = vmatprep.mubr.f32.mxu0 0.0
      %2828 = vmatmul.mubr.f32.gmra.mrb[0].mxu0 %v2248
      %v2829 = vpop.f32.mrb[0].mxu0
      %v2830 = vadd.f32 %v2046, %v2829
      %v2831 = vpop.f32.mrb[0].mxu0
      %2832 = vmatprep.mubr.f32.mxu0 0.0
      %2833 = vmatmul.mubr.f32.gmra.mrb[0].mxu0 %v2251
      %v2834 = vpop.f32.mrb[0].mxu0
      %v2835 = vadd.f32 %v2046, %v2834
      %v2836 = vpop.f32.mrb[0].mxu0
      %2837 = vmatprep.mubr.f32.mxu0 0.0
      %2838 = vmatmul.mubr.f32.gmra.mrb[0].mxu0 %v2254
      %v2839 = vpop.f32.mrb[0].mxu0
      %v2840 = vadd.f32 %v2046, %v2839
      %v2841 = vpop.f32.mrb[0].mxu0
      %2842 = vmatprep.mubr.f32.mxu0 0.0
      %2843 = vmatmul.mubr.f32.gmra.mrb[0].mxu0 %v2257
      %v2844 = vpop.f32.mrb[0].mxu0
      %v2845 = vadd.f32 %v2046, %v2844
      %v2846 = vpop.f32.mrb[0].mxu0
      %2847 = vmatprep.mubr.f32.mxu0 0.0
      %2848 = vmatmul.mubr.f32.gmra.mrb[0].mxu0 %v2260
      %v2849 = vpop.f32.mrb[0].mxu0
      %v2850 = vadd.f32 %v2046, %v2849
      %v2851 = vpop.f32.mrb[0].mxu0
      %2852 = vmatprep.mubr.f32.mxu0 0.0
      %2853 = vmatmul.mubr.f32.gmra.mrb[0].mxu0 %v2263
      %v2854 = vpop.f32.mrb[0].mxu0
      %v2855 = vadd.f32 %v2046, %v2854
      %v2856 = vpop.f32.mrb[0].mxu0
      %2857 = vmatprep.mubr.f32.mxu0 0.0
      %2858 = vmatmul.mubr.f32.gmra.mrb[0].mxu0 %v2266
      %v2859 = vpop.f32.mrb[0].mxu0
      %v2860 = vadd.f32 %v2046, %v2859
      %v2861 = vpop.f32.mrb[0].mxu0
      %2862 = vmatprep.mubr.f32.mxu0 0.0
      %2863 = vmatmul.mubr.f32.gmra.mrb[0].mxu0 %v2269
      %v2864 = vpop.f32.mrb[0].mxu0
      %v2865 = vadd.f32 %v2046, %v2864
      %v2866 = vpop.f32.mrb[0].mxu0
      %2867 = vmatprep.mubr.f32.mxu0 0.0
      %2868 = vmatmul.mubr.f32.gmra.mrb[0].mxu0 %v2272
      %v2869 = vpop.f32.mrb[0].mxu0
      %v2870 = vadd.f32 %v2046, %v2869
      %v2871 = vpop.f32.mrb[0].mxu0
      %2872 = vmatprep.mubr.f32.mxu0 0.0
      %2873 = vmatmul.mubr.f32.gmra.mrb[0].mxu0 %v2275
      %v2874 = vpop.f32.mrb[0].mxu0
      %v2875 = vadd.f32 %v2046, %v2874
      %v2876 = vpop.f32.mrb[0].mxu0
      %2877 = vmatprep.mubr.f32.mxu0 0.0
      %2878 = vmatmul.mubr.f32.gmra.mrb[0].mxu0 %v2278
      %v2879 = vpop.f32.mrb[0].mxu0
      %v2880 = vadd.f32 %v2046, %v2879
      %v2881 = vpop.f32.mrb[0].mxu0
      %2882 = vmatprep.mubr.f32.mxu0 0.0
      %2883 = vmatmul.mubr.f32.gmra.mrb[0].mxu0 %v2281
      %v2884 = vpop.f32.mrb[0].mxu0
      %v2885 = vadd.f32 %v2046, %v2884
      %v2886 = vpop.f32.mrb[0].mxu0
      %2887 = vmatprep.mubr.f32.mxu0 0.0
      %2888 = vmatmul.mubr.f32.gmra.mrb[0].mxu0 %v2284
      %v2889 = vpop.f32.mrb[0].mxu0
      %v2890 = vadd.f32 %v2046, %v2889
      %v2891 = vpop.f32.mrb[0].mxu0
      %2892 = vmatprep.mubr.f32.mxu0 0.0
      %2893 = vmatmul.mubr.f32.gmra.mrb[0].mxu0 %v2287
      %v2894 = vpop.f32.mrb[0].mxu0
      %v2895 = vadd.f32 %v2046, %v2894
      %v2896 = vpop.f32.mrb[0].mxu0
      %2897 = vmatprep.mubr.f32.mxu0 0.0
      %2898 = vmatmul.mubr.f32.gmra.mrb[0].mxu0 %v2290
      %v2899 = vpop.f32.mrb[0].mxu0
      %v2900 = vadd.f32 %v2046, %v2899
      %v2901 = vpop.f32.mrb[0].mxu0
      %2902 = vmatprep.mubr.f32.mxu0 0.0
      %2903 = vmatmul.mubr.f32.gmra.mrb[0].mxu0 %v2293
      %v2904 = vpop.f32.mrb[0].mxu0
      %v2905 = vadd.f32 %v2046, %v2904
      %v2906 = vpop.f32.mrb[0].mxu0
      %2907 = vmatprep.mubr.f32.mxu0 0.0
      %2908 = vmatmul.mubr.f32.gmra.mrb[0].mxu0 %v2296
      %v2909 = vpop.f32.mrb[0].mxu0
      %v2910 = vadd.f32 %v2046, %v2909
      %v2911 = vpop.f32.mrb[0].mxu0
      %2912 = vmatprep.mubr.f32.mxu0 0.0
      %2913 = vmatmul.mubr.f32.gmra.mrb[0].mxu0 %v2299
      %v2914 = vpop.f32.mrb[0].mxu0
      %v2915 = vadd.f32 %v2046, %v2914
      %v2916 = vpop.f32.mrb[0].mxu0
      %2917 = vmatprep.mubr.f32.mxu0 0.0
      %2918 = vmatmul.mubr.f32.gmra.mrb[0].mxu0 %v2302
      %v2919 = vpop.f32.mrb[0].mxu0
      %v2920 = vadd.f32 %v2046, %v2919
      %v2921 = vpop.f32.mrb[0].mxu0
      %2922 = vmatprep.mubr.f32.mxu0 0.0
      %2923 = vmatmul.mubr.f32.gmra.mrb[0].mxu0 %v2305
      %v2924 = vpop.f32.mrb[0].mxu0
      %v2925 = vadd.f32 %v2046, %v2924
      %v2926 = vpop.f32.mrb[0].mxu0
      %2927 = vmatprep.mubr.f32.mxu0 0.0
      %2928 = vmatmul.mubr.f32.gmra.mrb[0].mxu0 %v2308
      %v2929 = vpop.f32.mrb[0].mxu0
      %v2930 = vadd.f32 %v2046, %v2929
      %v2931 = vpop.f32.mrb[0].mxu0
      %2932 = vmatprep.mubr.f32.mxu0 0.0
      %2933 = vmatmul.mubr.f32.gmra.mrb[0].mxu0 %v2311
      %v2934 = vpop.f32.mrb[0].mxu0
      %v2935 = vadd.f32 %v2046, %v2934
      %v2936 = vpop.f32.mrb[0].mxu0
      %2937 = vmatprep.mubr.f32.mxu0 0.0
      %2938 = vmatmul.mubr.f32.gmra.mrb[0].mxu0 %v2314
      %v2939 = vpop.f32.mrb[0].mxu0
      %v2940 = vadd.f32 %v2046, %v2939
      %v2941 = vpop.f32.mrb[0].mxu0
      %2942 = vmatprep.mubr.f32.mxu0 0.0
      %2943 = vmatmul.mubr.f32.gmra.mrb[0].mxu0 %v2317
      %v2944 = vpop.f32.mrb[0].mxu0
      %v2945 = vadd.f32 %v2046, %v2944
      %v2946 = vpop.f32.mrb[0].mxu0
      %2947 = vmatprep.mubr.f32.mxu0 0.0
      %2948 = vmatmul.mubr.f32.gmra.mrb[0].mxu0 %v2320
      %v2949 = vpop.f32.mrb[0].mxu0
      %v2950 = vadd.f32 %v2046, %v2949
      %v2951 = vpop.f32.mrb[0].mxu0
      %2952 = vmatprep.mubr.f32.mxu0 0.0
      %2953 = vmatmul.mubr.f32.gmra.mrb[0].mxu0 %v2323
      %v2954 = vpop.f32.mrb[0].mxu0
      %v2955 = vadd.f32 %v2046, %v2954
      %v2956 = vpop.f32.mrb[0].mxu0
      %2957 = vmatprep.mubr.f32.mxu0 0.0
      %2958 = vmatmul.mubr.f32.gmra.mrb[0].mxu0 %v2326
      %v2959 = vpop.f32.mrb[0].mxu0
      %v2960 = vadd.f32 %v2046, %v2959
      %v2961 = vpop.f32.mrb[0].mxu0
      %2962 = vmatprep.mubr.f32.mxu0 0.0
      %2963 = vmatmul.mubr.f32.gmra.mrb[0].mxu0 %v2329
      %v2964 = vpop.f32.mrb[0].mxu0
      %v2965 = vadd.f32 %v2046, %v2964
      %v2966 = vpop.f32.mrb[0].mxu0
      %2967 = vmatprep.mubr.f32.mxu0 0.0
      %2968 = vmatmul.mubr.f32.gmra.mrb[0].mxu0 %v2332
      %v2969 = vpop.f32.mrb[0].mxu0
      %v2970 = vadd.f32 %v2046, %v2969
      %v2971 = vpop.f32.mrb[0].mxu0
      %2972 = vmatprep.mubr.f32.mxu0 0.0
      %2973 = vmatmul.mubr.f32.gmra.mrb[0].mxu0 %v2335
      %v2974 = vpop.f32.mrb[0].mxu0
      %v2975 = vadd.f32 %v2046, %v2974
      %v2976 = vpop.f32.mrb[0].mxu0
      %2977 = vmatprep.mubr.f32.mxu0 0.0
      %2978 = vmatmul.mubr.f32.gmra.mrb[0].mxu0 %v2338
      %v2979 = vpop.f32.mrb[0].mxu0
      %v2980 = vadd.f32 %v2046, %v2979
      %v2981 = vpop.f32.mrb[0].mxu0
      %2982 = vmatprep.mubr.f32.mxu0 0.0
      %2983 = vmatmul.mubr.f32.gmra.mrb[0].mxu0 %v2341
      %v2984 = vpop.f32.mrb[0].mxu0
      %v2985 = vadd.f32 %v2046, %v2984
      %v2986 = vpop.f32.mrb[0].mxu0
      %2987 = vmatprep.mubr.f32.mxu0 0.0
      %2988 = vmatmul.mubr.f32.gmra.mrb[0].mxu0 %v2344
      %v2989 = vpop.f32.mrb[0].mxu0
      %v2990 = vadd.f32 %v2046, %v2989
      %v2991 = vpop.f32.mrb[0].mxu0
      %2992 = vmatprep.mubr.f32.mxu0 0.0
      %2993 = vmatmul.mubr.f32.gmra.mrb[0].mxu0 %v2347
      %v2994 = vpop.f32.mrb[0].mxu0
      %v2995 = vadd.f32 %v2046, %v2994
      %v2996 = vpop.f32.mrb[0].mxu0
      %2997 = vmatprep.mubr.f32.mxu0 0.0
      %2998 = vmatmul.mubr.f32.gmra.mrb[0].mxu0 %v2350
      %v2999 = vpop.f32.mrb[0].mxu0
      %v3000 = vadd.f32 %v2046, %v2999
      %v3001 = vpop.f32.mrb[0].mxu0
      %3002 = vmatprep.mubr.f32.mxu0 0.0
      %3003 = vmatmul.mubr.f32.gmra.mrb[0].mxu0 %v2353
      %v3004 = vpop.f32.mrb[0].mxu0
      %v3005 = vadd.f32 %v2046, %v3004
      %v3006 = vpop.f32.mrb[0].mxu0
      %3007 = vmatprep.mubr.f32.mxu0 0.0
      %3008 = vmatmul.mubr.f32.gmra.mrb[0].mxu0 %v2356
      %v3009 = vpop.f32.mrb[0].mxu0
      %v3010 = vadd.f32 %v2046, %v3009
      %v3011 = vpop.f32.mrb[0].mxu0
      %3012 = vmatprep.mubr.f32.mxu0 0.0
      %3013 = vmatmul.mubr.f32.gmra.mrb[0].mxu0 %v2359
      %v3014 = vpop.f32.mrb[0].mxu0
      %v3015 = vadd.f32 %v2046, %v3014
      %v3016 = vpop.f32.mrb[0].mxu0
      %3017 = vmatprep.mubr.f32.mxu0 0.0
      %3018 = vmatmul.mubr.f32.gmra.mrb[0].mxu0 %v2362
      %v3019 = vpop.f32.mrb[0].mxu0
      %v3020 = vadd.f32 %v2046, %v3019
      %v3021 = vpop.f32.mrb[0].mxu0
      %3022 = vmatprep.mubr.f32.mxu0 0.0
      %3023 = vmatmul.mubr.f32.gmra.mrb[0].mxu0 %v2365
      %v3024 = vpop.f32.mrb[0].mxu0
      %v3025 = vadd.f32 %v2046, %v3024
      %v3026 = vpop.f32.mrb[0].mxu0
      %3027 = vmatprep.mubr.f32.mxu0 0.0
      %3028 = vmatmul.mubr.f32.gmra.mrb[0].mxu0 %v2368
      %v3029 = vpop.f32.mrb[0].mxu0
      %v3030 = vadd.f32 %v2046, %v3029
      %v3031 = vpop.f32.mrb[0].mxu0
      %3032 = vmatprep.mubr.f32.mxu0 0.0
      %3033 = vmatmul.mubr.f32.gmra.mrb[0].mxu0 %v2371
      %v3034 = vpop.f32.mrb[0].mxu0
      %v3035 = vadd.f32 %v2046, %v3034
      %v3036 = vpop.f32.mrb[0].mxu0
      %3037 = vmatprep.mubr.f32.mxu0 0.0
      %3038 = vmatmul.mubr.f32.gmra.mrb[0].mxu0 %v2374
      %v3039 = vpop.f32.mrb[0].mxu0
      %v3040 = vadd.f32 %v2046, %v3039
      %v3041 = vpop.f32.mrb[0].mxu0
      %3042 = vmatprep.mubr.f32.mxu0 0.0
      %3043 = vmatmul.mubr.f32.gmra.mrb[0].mxu0 %v2377
      %v3044 = vpop.f32.mrb[0].mxu0
      %v3045 = vadd.f32 %v2046, %v3044
      %v3046 = vpop.f32.mrb[0].mxu0
      %3047 = vmatprep.mubr.f32.mxu0 0.0
      %3048 = vmatmul.mubr.f32.gmra.mrb[0].mxu0 %v2380
      %v3049 = vpop.f32.mrb[0].mxu0
      %v3050 = vadd.f32 %v2046, %v3049
      %v3051 = vpop.f32.mrb[0].mxu0
      %3052 = vmatprep.mubr.f32.mxu0 0.0
      %3053 = vmatmul.mubr.f32.gmra.mrb[0].mxu0 %v2383
      %v3054 = vpop.f32.mrb[0].mxu0
      %v3055 = vadd.f32 %v2046, %v3054
      %v3056 = vpop.f32.mrb[0].mxu0
      %3057 = vmatprep.mubr.f32.mxu0 0.0
      %3058 = vmatmul.mubr.f32.gmra.mrb[0].mxu0 %v2386
      %v3059 = vpop.f32.mrb[0].mxu0
      %v3060 = vadd.f32 %v2046, %v3059
      %v3061 = vpop.f32.mrb[0].mxu0
      %3062 = vmatprep.mubr.f32.mxu0 0.0
      %3063 = vmatmul.mubr.f32.gmra.mrb[0].mxu0 %v2389
      %v3064 = vpop.f32.mrb[0].mxu0
      %v3065 = vadd.f32 %v2046, %v3064
      %v3066 = vpop.f32.mrb[0].mxu0
      %3067 = vmatprep.mubr.f32.mxu0 0.0
      %3068 = vmatmul.mubr.f32.gmra.mrb[0].mxu0 %v2392
      %v3069 = vpop.f32.mrb[0].mxu0
      %v3070 = vadd.f32 %v2046, %v3069
      %v3071 = vpop.f32.mrb[0].mxu0
      %3072 = vmatprep.mubr.f32.mxu0 0.0
      %3073 = vmatmul.mubr.f32.gmra.mrb[0].mxu0 %v2395
      %v3074 = vpop.f32.mrb[0].mxu0
      %v3075 = vadd.f32 %v2046, %v3074
      %v3076 = vpop.f32.mrb[0].mxu0
      %3077 = vmatprep.mubr.f32.mxu0 0.0
      %3078 = vmatmul.mubr.f32.gmra.mrb[0].mxu0 %v2398
      %v3079 = vpop.f32.mrb[0].mxu0
      %v3080 = vadd.f32 %v2046, %v3079
      %v3081 = vpop.f32.mrb[0].mxu0
      %3082 = vmatprep.mubr.f32.mxu0 0.0
      %3083 = vmatmul.mubr.f32.gmra.mrb[0].mxu0 %v2401
      %v3084 = vpop.f32.mrb[0].mxu0
      %v3085 = vadd.f32 %v2046, %v3084
      %v3086 = vpop.f32.mrb[0].mxu0
      %3087 = vmatprep.mubr.f32.mxu0 0.0
      %3088 = vmatmul.mubr.f32.gmra.mrb[0].mxu0 %v2404
      %v3089 = vpop.f32.mrb[0].mxu0
      %v3090 = vadd.f32 %v2046, %v3089
      %v3091 = vpop.f32.mrb[0].mxu0
      %3092 = vmatprep.mubr.f32.mxu0 0.0
      %3093 = vmatmul.mubr.f32.gmra.mrb[0].mxu0 %v2407
      %v3094 = vpop.f32.mrb[0].mxu0
      %v3095 = vadd.f32 %v2046, %v3094
      %v3096 = vpop.f32.mrb[0].mxu0
      %3097 = vmatprep.mubr.f32.mxu0 0.0
      %3098 = vmatmul.mubr.f32.gmra.mrb[0].mxu0 %v2410
      %v3099 = vpop.f32.mrb[0].mxu0
      %v3100 = vadd.f32 %v2046, %v3099
      %v3101 = vpop.f32.mrb[0].mxu0
      %3102 = vmatprep.mubr.f32.mxu0 0.0
      %3103 = vmatmul.mubr.f32.gmra.mrb[0].mxu0 %v2413
      %v3104 = vpop.f32.mrb[0].mxu0
      %v3105 = vadd.f32 %v2046, %v3104
      %v3106 = vpop.f32.mrb[0].mxu0
      %3107 = vmatprep.mubr.f32.mxu0 0.0
      %3108 = vmatmul.mubr.f32.gmra.mrb[0].mxu0 %v2416
      %v3109 = vpop.f32.mrb[0].mxu0
      %v3110 = vadd.f32 %v2046, %v3109
      %v3111 = vpop.f32.mrb[0].mxu0
      %3112 = vmatprep.mubr.f32.mxu0 0.0
      %3113 = vmatmul.mubr.f32.gmra.mrb[0].mxu0 %v2419
      %v3114 = vpop.f32.mrb[0].mxu0
      %v3115 = vadd.f32 %v2046, %v3114
      %v3116 = vpop.f32.mrb[0].mxu0
      %3117 = vmatprep.mubr.f32.mxu0 0.0
      %3118 = vmatmul.mubr.f32.gmra.mrb[0].mxu0 %v2422
      %v3119 = vpop.f32.mrb[0].mxu0
      %v3120 = vadd.f32 %v2046, %v3119
      %v3121 = vpop.f32.mrb[0].mxu0
      %3122 = vmatprep.mubr.f32.mxu0 0.0
      %3123 = vmatmul.mubr.f32.gmra.mrb[0].mxu0 %v2425
      %v3124 = vpop.f32.mrb[0].mxu0
      %v3125 = vadd.f32 %v2046, %v3124
      %v3126 = vpop.f32.mrb[0].mxu0
      %3127 = vmatprep.mubr.f32.mxu0 0.0
      %3128 = vmatmul.mubr.f32.gmra.mrb[0].mxu0 %v2428
      %v3129 = vpop.f32.mrb[0].mxu0
      %v3130 = vadd.f32 %v2046, %v3129
      %v3131 = vpop.f32.mrb[0].mxu0
      %3132 = vmatprep.mubr.f32.mxu0 0.0
      %3133 = vmatmul.mubr.f32.gmra.mrb[0].mxu0 %v2431
      %v3134 = vpop.f32.mrb[0].mxu0
      %v3135 = vadd.f32 %v2046, %v3134
      %v3136 = vpop.f32.mrb[0].mxu0
      %3137 = vdwg.mxu0
      %v3138 = vld [vmem:[%s412] sm:$0xff]
      %v3139 = vld [vmem:[%s412 + $0x8] sm:$0xff]
      %v3140 = vld [vmem:[%s412 + $0x10] sm:$0xff]
      %v3141 = vld [vmem:[%s412 + $0x18] sm:$0xff]
      %v3142 = vld [vmem:[%s412 + $0x20] sm:$0xff]
      %v3143 = vld [vmem:[%s412 + $0x28] sm:$0xff]
      %v3144 = vld [vmem:[%s412 + $0x30] sm:$0xff]
      %v3145 = vld [vmem:[%s412 + $0x38] sm:$0xff]
      %v3146 = vld [vmem:[%s412 + $0x40] sm:$0xff]
      %v3147 = vld [vmem:[%s412 + $0x48] sm:$0xff]
      %v3148 = vld [vmem:[%s412 + $0x50] sm:$0xff]
      %v3149 = vld [vmem:[%s412 + $0x58] sm:$0xff]
      %v3150 = vld [vmem:[%s412 + $0x60] sm:$0xff]
      %v3151 = vld [vmem:[%s412 + $0x68] sm:$0xff]
      %v3152 = vld [vmem:[%s412 + $0x70] sm:$0xff]
      %v3153 = vld [vmem:[%s412 + $0x78] sm:$0xff]
      %v3154 = vld [vmem:[%s412 + $0x80] sm:$0xff]
      %v3155 = vld [vmem:[%s412 + $0x88] sm:$0xff]
      %v3156 = vld [vmem:[%s412 + $0x90] sm:$0xff]
      %v3157 = vld [vmem:[%s412 + $0x98] sm:$0xff]
      %v3158 = vld [vmem:[%s412 + $0xa0] sm:$0xff]
      %v3159 = vld [vmem:[%s412 + $0xa8] sm:$0xff]
      %v3160 = vld [vmem:[%s412 + $0xb0] sm:$0xff]
      %v3161 = vld [vmem:[%s412 + $0xb8] sm:$0xff]
      %v3162 = vld [vmem:[%s412 + $0xc0] sm:$0xff]
      %v3163 = vld [vmem:[%s412 + $0xc8] sm:$0xff]
      %v3164 = vld [vmem:[%s412 + $0xd0] sm:$0xff]
      %v3165 = vld [vmem:[%s412 + $0xd8] sm:$0xff]
      %v3166 = vld [vmem:[%s412 + $0xe0] sm:$0xff]
      %v3167 = vld [vmem:[%s412 + $0xe8] sm:$0xff]
      %v3168 = vld [vmem:[%s412 + $0xf0] sm:$0xff]
      %v3169 = vld [vmem:[%s412 + $0xf8] sm:$0xff]
      %v3170 = vld [vmem:[%s412 + $0x100] sm:$0xff]
      %v3171 = vld [vmem:[%s412 + $0x108] sm:$0xff]
      %v3172 = vld [vmem:[%s412 + $0x110] sm:$0xff]
      %v3173 = vld [vmem:[%s412 + $0x118] sm:$0xff]
      %v3174 = vld [vmem:[%s412 + $0x120] sm:$0xff]
      %v3175 = vld [vmem:[%s412 + $0x128] sm:$0xff]
      %v3176 = vld [vmem:[%s412 + $0x130] sm:$0xff]
      %v3177 = vld [vmem:[%s412 + $0x138] sm:$0xff]
      %v3178 = vld [vmem:[%s412 + $0x140] sm:$0xff]
      %v3179 = vld [vmem:[%s412 + $0x148] sm:$0xff]
      %v3180 = vld [vmem:[%s412 + $0x150] sm:$0xff]
      %v3181 = vld [vmem:[%s412 + $0x158] sm:$0xff]
      %v3182 = vld [vmem:[%s412 + $0x160] sm:$0xff]
      %v3183 = vld [vmem:[%s412 + $0x168] sm:$0xff]
      %v3184 = vld [vmem:[%s412 + $0x170] sm:$0xff]
      %v3185 = vld [vmem:[%s412 + $0x178] sm:$0xff]
      %v3186 = vld [vmem:[%s412 + $0x180] sm:$0xff]
      %v3187 = vld [vmem:[%s412 + $0x188] sm:$0xff]
      %v3188 = vld [vmem:[%s412 + $0x190] sm:$0xff]
      %v3189 = vld [vmem:[%s412 + $0x198] sm:$0xff]
      %v3190 = vld [vmem:[%s412 + $0x1a0] sm:$0xff]
      %v3191 = vld [vmem:[%s412 + $0x1a8] sm:$0xff]
      %v3192 = vld [vmem:[%s412 + $0x1b0] sm:$0xff]
      %v3193 = vld [vmem:[%s412 + $0x1b8] sm:$0xff]
      %v3194 = vld [vmem:[%s412 + $0x1c0] sm:$0xff]
      %v3195 = vld [vmem:[%s412 + $0x1c8] sm:$0xff]
      %v3196 = vld [vmem:[%s412 + $0x1d0] sm:$0xff]
      %v3197 = vld [vmem:[%s412 + $0x1d8] sm:$0xff]
      %v3198 = vld [vmem:[%s412 + $0x1e0] sm:$0xff]
      %v3199 = vld [vmem:[%s412 + $0x1e8] sm:$0xff]
      %v3200 = vld [vmem:[%s412 + $0x1f0] sm:$0xff]
      %v3201 = vld [vmem:[%s412 + $0x1f8] sm:$0xff]
      %v3202 = vld [vmem:[%s412 + $0x200] sm:$0xff]
      %v3203 = vld [vmem:[%s412 + $0x208] sm:$0xff]
      %v3204 = vld [vmem:[%s412 + $0x210] sm:$0xff]
      %v3205 = vld [vmem:[%s412 + $0x218] sm:$0xff]
      %v3206 = vld [vmem:[%s412 + $0x220] sm:$0xff]
      %v3207 = vld [vmem:[%s412 + $0x228] sm:$0xff]
      %v3208 = vld [vmem:[%s412 + $0x230] sm:$0xff]
      %v3209 = vld [vmem:[%s412 + $0x238] sm:$0xff]
      %v3210 = vld [vmem:[%s412 + $0x240] sm:$0xff]
      %v3211 = vld [vmem:[%s412 + $0x248] sm:$0xff]
      %v3212 = vld [vmem:[%s412 + $0x250] sm:$0xff]
      %v3213 = vld [vmem:[%s412 + $0x258] sm:$0xff]
      %v3214 = vld [vmem:[%s412 + $0x260] sm:$0xff]
      %v3215 = vld [vmem:[%s412 + $0x268] sm:$0xff]
      %v3216 = vld [vmem:[%s412 + $0x270] sm:$0xff]
      %v3217 = vld [vmem:[%s412 + $0x278] sm:$0xff]
      %v3218 = vld [vmem:[%s412 + $0x280] sm:$0xff]
      %v3219 = vld [vmem:[%s412 + $0x288] sm:$0xff]
      %v3220 = vld [vmem:[%s412 + $0x290] sm:$0xff]
      %v3221 = vld [vmem:[%s412 + $0x298] sm:$0xff]
      %v3222 = vld [vmem:[%s412 + $0x2a0] sm:$0xff]
      %v3223 = vld [vmem:[%s412 + $0x2a8] sm:$0xff]
      %v3224 = vld [vmem:[%s412 + $0x2b0] sm:$0xff]
      %v3225 = vld [vmem:[%s412 + $0x2b8] sm:$0xff]
      %v3226 = vld [vmem:[%s412 + $0x2c0] sm:$0xff]
      %v3227 = vld [vmem:[%s412 + $0x2c8] sm:$0xff]
      %v3228 = vld [vmem:[%s412 + $0x2d0] sm:$0xff]
      %v3229 = vld [vmem:[%s412 + $0x2d8] sm:$0xff]
      %v3230 = vld [vmem:[%s412 + $0x2e0] sm:$0xff]
      %v3231 = vld [vmem:[%s412 + $0x2e8] sm:$0xff]
      %v3232 = vld [vmem:[%s412 + $0x2f0] sm:$0xff]
      %v3233 = vld [vmem:[%s412 + $0x2f8] sm:$0xff]
      %v3234 = vld [vmem:[%s412 + $0x300] sm:$0xff]
      %v3235 = vld [vmem:[%s412 + $0x308] sm:$0xff]
      %v3236 = vld [vmem:[%s412 + $0x310] sm:$0xff]
      %v3237 = vld [vmem:[%s412 + $0x318] sm:$0xff]
      %v3238 = vld [vmem:[%s412 + $0x320] sm:$0xff]
      %v3239 = vld [vmem:[%s412 + $0x328] sm:$0xff]
      %v3240 = vld [vmem:[%s412 + $0x330] sm:$0xff]
      %v3241 = vld [vmem:[%s412 + $0x338] sm:$0xff]
      %v3242 = vld [vmem:[%s412 + $0x340] sm:$0xff]
      %v3243 = vld [vmem:[%s412 + $0x348] sm:$0xff]
      %v3244 = vld [vmem:[%s412 + $0x350] sm:$0xff]
      %v3245 = vld [vmem:[%s412 + $0x358] sm:$0xff]
      %v3246 = vld [vmem:[%s412 + $0x360] sm:$0xff]
      %v3247 = vld [vmem:[%s412 + $0x368] sm:$0xff]
      %v3248 = vld [vmem:[%s412 + $0x370] sm:$0xff]
      %v3249 = vld [vmem:[%s412 + $0x378] sm:$0xff]
      %v3250 = vld [vmem:[%s412 + $0x380] sm:$0xff]
      %v3251 = vld [vmem:[%s412 + $0x388] sm:$0xff]
      %v3252 = vld [vmem:[%s412 + $0x390] sm:$0xff]
      %v3253 = vld [vmem:[%s412 + $0x398] sm:$0xff]
      %v3254 = vld [vmem:[%s412 + $0x3a0] sm:$0xff]
      %v3255 = vld [vmem:[%s412 + $0x3a8] sm:$0xff]
      %v3256 = vld [vmem:[%s412 + $0x3b0] sm:$0xff]
      %v3257 = vld [vmem:[%s412 + $0x3b8] sm:$0xff]
      %v3258 = vld [vmem:[%s412 + $0x3c0] sm:$0xff]
      %v3259 = vld [vmem:[%s412 + $0x3c8] sm:$0xff]
      %v3260 = vld [vmem:[%s412 + $0x3d0] sm:$0xff]
      %v3261 = vld [vmem:[%s412 + $0x3d8] sm:$0xff]
      %v3262 = vld [vmem:[%s412 + $0x3e0] sm:$0xff]
      %v3263 = vld [vmem:[%s412 + $0x3e8] sm:$0xff]
      %v3264 = vld [vmem:[%s412 + $0x3f0] sm:$0xff]
      %v3265 = vld [vmem:[%s412 + $0x3f8] sm:$0xff]
      %v3266 = vmul.f32 %v2500, 0.5
      %v3267 = vmul.f32 %v2505, 0.5
      %v3268 = vmul.f32 %v2510, 0.5
      %v3269 = vmul.f32 %v2515, 0.5
      %v3270 = vmul.f32 %v2520, 0.5
      %v3271 = vmul.f32 %v2525, 0.5
      %v3272 = vmul.f32 %v2530, 0.5
      %v3273 = vmul.f32 %v2535, 0.5
      %v3274 = vmul.f32 %v2540, 0.5
      %v3275 = vmul.f32 %v2545, 0.5
      %v3276 = vmul.f32 %v2550, 0.5
      %v3277 = vmul.f32 %v2555, 0.5
      %v3278 = vmul.f32 %v2560, 0.5
      %v3279 = vmul.f32 %v2565, 0.5
      %v3280 = vmul.f32 %v2570, 0.5
      %v3281 = vmul.f32 %v2575, 0.5
      %v3282 = vmul.f32 %v2580, 0.5
      %v3283 = vmul.f32 %v2585, 0.5
      %v3284 = vmul.f32 %v2590, 0.5
      %v3285 = vmul.f32 %v2595, 0.5
      %v3286 = vmul.f32 %v2600, 0.5
      %v3287 = vmul.f32 %v2605, 0.5
      %v3288 = vmul.f32 %v2610, 0.5
      %v3289 = vmul.f32 %v2615, 0.5
      %v3290 = vmul.f32 %v2620, 0.5
      %v3291 = vmul.f32 %v2625, 0.5
      %v3292 = vmul.f32 %v2630, 0.5
      %v3293 = vmul.f32 %v2635, 0.5
      %v3294 = vmul.f32 %v2640, 0.5
      %v3295 = vmul.f32 %v2645, 0.5
      %v3296 = vmul.f32 %v2650, 0.5
      %v3297 = vmul.f32 %v2655, 0.5
      %v3298 = vmul.f32 %v2660, 0.5
      %v3299 = vmul.f32 %v2665, 0.5
      %v3300 = vmul.f32 %v2670, 0.5
      %v3301 = vmul.f32 %v2675, 0.5
      %v3302 = vmul.f32 %v2680, 0.5
      %v3303 = vmul.f32 %v2685, 0.5
      %v3304 = vmul.f32 %v2690, 0.5
      %v3305 = vmul.f32 %v2695, 0.5
      %v3306 = vmul.f32 %v2700, 0.5
      %v3307 = vmul.f32 %v2705, 0.5
      %v3308 = vmul.f32 %v2710, 0.5
      %v3309 = vmul.f32 %v2715, 0.5
      %v3310 = vmul.f32 %v2720, 0.5
      %v3311 = vmul.f32 %v2725, 0.5
      %v3312 = vmul.f32 %v2730, 0.5
      %v3313 = vmul.f32 %v2735, 0.5
      %v3314 = vmul.f32 %v2740, 0.5
      %v3315 = vmul.f32 %v2745, 0.5
      %v3316 = vmul.f32 %v2750, 0.5
      %v3317 = vmul.f32 %v2755, 0.5
      %v3318 = vmul.f32 %v2760, 0.5
      %v3319 = vmul.f32 %v2765, 0.5
      %v3320 = vmul.f32 %v2770, 0.5
      %v3321 = vmul.f32 %v2775, 0.5
      %v3322 = vmul.f32 %v2780, 0.5
      %v3323 = vmul.f32 %v2785, 0.5
      %v3324 = vmul.f32 %v2790, 0.5
      %v3325 = vmul.f32 %v2795, 0.5
      %v3326 = vmul.f32 %v2800, 0.5
      %v3327 = vmul.f32 %v2805, 0.5
      %v3328 = vmul.f32 %v2810, 0.5
      %v3329 = vmul.f32 %v2815, 0.5
      %v3330 = vmul.f32 %v2820, 0.5
      %v3331 = vmul.f32 %v2825, 0.5
      %v3332 = vmul.f32 %v2830, 0.5
      %v3333 = vmul.f32 %v2835, 0.5
      %v3334 = vmul.f32 %v2840, 0.5
      %v3335 = vmul.f32 %v2845, 0.5
      %v3336 = vmul.f32 %v2850, 0.5
      %v3337 = vmul.f32 %v2855, 0.5
      %v3338 = vmul.f32 %v2860, 0.5
      %v3339 = vmul.f32 %v2865, 0.5
      %v3340 = vmul.f32 %v2870, 0.5
      %v3341 = vmul.f32 %v2875, 0.5
      %v3342 = vmul.f32 %v2880, 0.5
      %v3343 = vmul.f32 %v2885, 0.5
      %v3344 = vmul.f32 %v2890, 0.5
      %v3345 = vmul.f32 %v2895, 0.5
      %v3346 = vmul.f32 %v2900, 0.5
      %v3347 = vmul.f32 %v2905, 0.5
      %v3348 = vmul.f32 %v2910, 0.5
      %v3349 = vmul.f32 %v2915, 0.5
      %v3350 = vmul.f32 %v2920, 0.5
      %v3351 = vmul.f32 %v2925, 0.5
      %v3352 = vmul.f32 %v2930, 0.5
      %v3353 = vmul.f32 %v2935, 0.5
      %v3354 = vmul.f32 %v2940, 0.5
      %v3355 = vmul.f32 %v2945, 0.5
      %v3356 = vmul.f32 %v2950, 0.5
      %v3357 = vmul.f32 %v2955, 0.5
      %v3358 = vmul.f32 %v2960, 0.5
      %v3359 = vmul.f32 %v2965, 0.5
      %v3360 = vmul.f32 %v2970, 0.5
      %v3361 = vmul.f32 %v2975, 0.5
      %v3362 = vmul.f32 %v2980, 0.5
      %v3363 = vmul.f32 %v2985, 0.5
      %v3364 = vmul.f32 %v2990, 0.5
      %v3365 = vmul.f32 %v2995, 0.5
      %v3366 = vmul.f32 %v3000, 0.5
      %v3367 = vmul.f32 %v3005, 0.5
      %v3368 = vmul.f32 %v3010, 0.5
      %v3369 = vmul.f32 %v3015, 0.5
      %v3370 = vmul.f32 %v3020, 0.5
      %v3371 = vmul.f32 %v3025, 0.5
      %v3372 = vmul.f32 %v3030, 0.5
      %v3373 = vmul.f32 %v3035, 0.5
      %v3374 = vmul.f32 %v3040, 0.5
      %v3375 = vmul.f32 %v3045, 0.5
      %v3376 = vmul.f32 %v3050, 0.5
      %v3377 = vmul.f32 %v3055, 0.5
      %v3378 = vmul.f32 %v3060, 0.5
      %v3379 = vmul.f32 %v3065, 0.5
      %v3380 = vmul.f32 %v3070, 0.5
      %v3381 = vmul.f32 %v3075, 0.5
      %v3382 = vmul.f32 %v3080, 0.5
      %v3383 = vmul.f32 %v3085, 0.5
      %v3384 = vmul.f32 %v3090, 0.5
      %v3385 = vmul.f32 %v3095, 0.5
      %v3386 = vmul.f32 %v3100, 0.5
      %v3387 = vmul.f32 %v3105, 0.5
      %v3388 = vmul.f32 %v3110, 0.5
      %v3389 = vmul.f32 %v3115, 0.5
      %v3390 = vmul.f32 %v3120, 0.5
      %v3391 = vmul.f32 %v3125, 0.5
      %v3392 = vmul.f32 %v3130, 0.5
      %v3393 = vmul.f32 %v3135, 0.5
      %v3394 = vmul.f32 %v3266, 1.442695
      %v3395 = vpow.pop %v3394
      %v3396 = vmul.f32 %v3267, 1.442695
      %v3397 = vpow.pop %v3396
      %v3398 = vmul.f32 %v3268, 1.442695
      %v3399 = vpow.pop %v3398
      %v3400 = vmul.f32 %v3269, 1.442695
      %v3401 = vpow.pop %v3400
      %v3402 = vmul.f32 %v3270, 1.442695
      %v3403 = vpow.pop %v3402
      %v3404 = vmul.f32 %v3271, 1.442695
      %v3405 = vpow.pop %v3404
      %v3406 = vmul.f32 %v3272, 1.442695
      %v3407 = vpow.pop %v3406
      %v3408 = vmul.f32 %v3273, 1.442695
      %v3409 = vpow.pop %v3408
      %v3410 = vmul.f32 %v3274, 1.442695
      %v3411 = vpow.pop %v3410
      %v3412 = vmul.f32 %v3275, 1.442695
      %v3413 = vpow.pop %v3412
      %v3414 = vmul.f32 %v3276, 1.442695
      %v3415 = vpow.pop %v3414
      %v3416 = vmul.f32 %v3277, 1.442695
      %v3417 = vpow.pop %v3416
      %v3418 = vmul.f32 %v3278, 1.442695
      %v3419 = vpow.pop %v3418
      %v3420 = vmul.f32 %v3279, 1.442695
      %v3421 = vpow.pop %v3420
      %v3422 = vmul.f32 %v3280, 1.442695
      %v3423 = vpow.pop %v3422
      %v3424 = vmul.f32 %v3281, 1.442695
      %v3425 = vpow.pop %v3424
      %v3426 = vmul.f32 %v3282, 1.442695
      %v3427 = vpow.pop %v3426
      %v3428 = vmul.f32 %v3283, 1.442695
      %v3429 = vpow.pop %v3428
      %v3430 = vmul.f32 %v3284, 1.442695
      %v3431 = vpow.pop %v3430
      %v3432 = vmul.f32 %v3285, 1.442695
      %v3433 = vpow.pop %v3432
      %v3434 = vmul.f32 %v3286, 1.442695
      %v3435 = vpow.pop %v3434
      %v3436 = vmul.f32 %v3287, 1.442695
      %v3437 = vpow.pop %v3436
      %v3438 = vmul.f32 %v3288, 1.442695
      %v3439 = vpow.pop %v3438
      %v3440 = vmul.f32 %v3289, 1.442695
      %v3441 = vpow.pop %v3440
      %v3442 = vmul.f32 %v3290, 1.442695
      %v3443 = vpow.pop %v3442
      %v3444 = vmul.f32 %v3291, 1.442695
      %v3445 = vpow.pop %v3444
      %v3446 = vmul.f32 %v3292, 1.442695
      %v3447 = vpow.pop %v3446
      %v3448 = vmul.f32 %v3293, 1.442695
      %v3449 = vpow.pop %v3448
      %v3450 = vmul.f32 %v3294, 1.442695
      %v3451 = vpow.pop %v3450
      %v3452 = vmul.f32 %v3295, 1.442695
      %v3453 = vpow.pop %v3452
      %v3454 = vmul.f32 %v3296, 1.442695
      %v3455 = vpow.pop %v3454
      %v3456 = vmul.f32 %v3297, 1.442695
      %v3457 = vpow.pop %v3456
      %v3458 = vmul.f32 %v3298, 1.442695
      %v3459 = vpow.pop %v3458
      %v3460 = vmul.f32 %v3299, 1.442695
      %v3461 = vpow.pop %v3460
      %v3462 = vmul.f32 %v3300, 1.442695
      %v3463 = vpow.pop %v3462
      %v3464 = vmul.f32 %v3301, 1.442695
      %v3465 = vpow.pop %v3464
      %v3466 = vmul.f32 %v3302, 1.442695
      %v3467 = vpow.pop %v3466
      %v3468 = vmul.f32 %v3303, 1.442695
      %v3469 = vpow.pop %v3468
      %v3470 = vmul.f32 %v3304, 1.442695
      %v3471 = vpow.pop %v3470
      %v3472 = vmul.f32 %v3305, 1.442695
      %v3473 = vpow.pop %v3472
      %v3474 = vmul.f32 %v3306, 1.442695
      %v3475 = vpow.pop %v3474
      %v3476 = vmul.f32 %v3307, 1.442695
      %v3477 = vpow.pop %v3476
      %v3478 = vmul.f32 %v3308, 1.442695
      %v3479 = vpow.pop %v3478
      %v3480 = vmul.f32 %v3309, 1.442695
      %v3481 = vpow.pop %v3480
      %v3482 = vmul.f32 %v3310, 1.442695
      %v3483 = vpow.pop %v3482
      %v3484 = vmul.f32 %v3311, 1.442695
      %v3485 = vpow.pop %v3484
      %v3486 = vmul.f32 %v3312, 1.442695
      %v3487 = vpow.pop %v3486
      %v3488 = vmul.f32 %v3313, 1.442695
      %v3489 = vpow.pop %v3488
      %v3490 = vmul.f32 %v3314, 1.442695
      %v3491 = vpow.pop %v3490
      %v3492 = vmul.f32 %v3315, 1.442695
      %v3493 = vpow.pop %v3492
      %v3494 = vmul.f32 %v3316, 1.442695
      %v3495 = vpow.pop %v3494
      %v3496 = vmul.f32 %v3317, 1.442695
      %v3497 = vpow.pop %v3496
      %v3498 = vmul.f32 %v3318, 1.442695
      %v3499 = vpow.pop %v3498
      %v3500 = vmul.f32 %v3319, 1.442695
      %v3501 = vpow.pop %v3500
      %v3502 = vmul.f32 %v3320, 1.442695
      %v3503 = vpow.pop %v3502
      %v3504 = vmul.f32 %v3321, 1.442695
      %v3505 = vpow.pop %v3504
      %v3506 = vmul.f32 %v3322, 1.442695
      %v3507 = vpow.pop %v3506
      %v3508 = vmul.f32 %v3323, 1.442695
      %v3509 = vpow.pop %v3508
      %v3510 = vmul.f32 %v3324, 1.442695
      %v3511 = vpow.pop %v3510
      %v3512 = vmul.f32 %v3325, 1.442695
      %v3513 = vpow.pop %v3512
      %v3514 = vmul.f32 %v3326, 1.442695
      %v3515 = vpow.pop %v3514
      %v3516 = vmul.f32 %v3327, 1.442695
      %v3517 = vpow.pop %v3516
      %v3518 = vmul.f32 %v3328, 1.442695
      %v3519 = vpow.pop %v3518
      %v3520 = vmul.f32 %v3329, 1.442695
      %v3521 = vpow.pop %v3520
      %v3522 = vmul.f32 %v3330, 1.442695
      %v3523 = vpow.pop %v3522
      %v3524 = vmul.f32 %v3331, 1.442695
      %v3525 = vpow.pop %v3524
      %v3526 = vmul.f32 %v3332, 1.442695
      %v3527 = vpow.pop %v3526
      %v3528 = vmul.f32 %v3333, 1.442695
      %v3529 = vpow.pop %v3528
      %v3530 = vmul.f32 %v3334, 1.442695
      %v3531 = vpow.pop %v3530
      %v3532 = vmul.f32 %v3335, 1.442695
      %v3533 = vpow.pop %v3532
      %v3534 = vmul.f32 %v3336, 1.442695
      %v3535 = vpow.pop %v3534
      %v3536 = vmul.f32 %v3337, 1.442695
      %v3537 = vpow.pop %v3536
      %v3538 = vmul.f32 %v3338, 1.442695
      %v3539 = vpow.pop %v3538
      %v3540 = vmul.f32 %v3339, 1.442695
      %v3541 = vpow.pop %v3540
      %v3542 = vmul.f32 %v3340, 1.442695
      %v3543 = vpow.pop %v3542
      %v3544 = vmul.f32 %v3341, 1.442695
      %v3545 = vpow.pop %v3544
      %v3546 = vmul.f32 %v3342, 1.442695
      %v3547 = vpow.pop %v3546
      %v3548 = vmul.f32 %v3343, 1.442695
      %v3549 = vpow.pop %v3548
      %v3550 = vmul.f32 %v3344, 1.442695
      %v3551 = vpow.pop %v3550
      %v3552 = vmul.f32 %v3345, 1.442695
      %v3553 = vpow.pop %v3552
      %v3554 = vmul.f32 %v3346, 1.442695
      %v3555 = vpow.pop %v3554
      %v3556 = vmul.f32 %v3347, 1.442695
      %v3557 = vpow.pop %v3556
      %v3558 = vmul.f32 %v3348, 1.442695
      %v3559 = vpow.pop %v3558
      %v3560 = vmul.f32 %v3349, 1.442695
      %v3561 = vpow.pop %v3560
      %v3562 = vmul.f32 %v3350, 1.442695
      %v3563 = vpow.pop %v3562
      %v3564 = vmul.f32 %v3351, 1.442695
      %v3565 = vpow.pop %v3564
      %v3566 = vmul.f32 %v3352, 1.442695
      %v3567 = vpow.pop %v3566
      %v3568 = vmul.f32 %v3353, 1.442695
      %v3569 = vpow.pop %v3568
      %v3570 = vmul.f32 %v3354, 1.442695
      %v3571 = vpow.pop %v3570
      %v3572 = vmul.f32 %v3355, 1.442695
      %v3573 = vpow.pop %v3572
      %v3574 = vmul.f32 %v3356, 1.442695
      %v3575 = vpow.pop %v3574
      %v3576 = vmul.f32 %v3357, 1.442695
      %v3577 = vpow.pop %v3576
      %v3578 = vmul.f32 %v3358, 1.442695
      %v3579 = vpow.pop %v3578
      %v3580 = vmul.f32 %v3359, 1.442695
      %v3581 = vpow.pop %v3580
      %v3582 = vmul.f32 %v3360, 1.442695
      %v3583 = vpow.pop %v3582
      %v3584 = vmul.f32 %v3361, 1.442695
      %v3585 = vpow.pop %v3584
      %v3586 = vmul.f32 %v3362, 1.442695
      %v3587 = vpow.pop %v3586
      %v3588 = vmul.f32 %v3363, 1.442695
      %v3589 = vpow.pop %v3588
      %v3590 = vmul.f32 %v3364, 1.442695
      %v3591 = vpow.pop %v3590
      %v3592 = vmul.f32 %v3365, 1.442695
      %v3593 = vpow.pop %v3592
      %v3594 = vmul.f32 %v3366, 1.442695
      %v3595 = vpow.pop %v3594
      %v3596 = vmul.f32 %v3367, 1.442695
      %v3597 = vpow.pop %v3596
      %v3598 = vmul.f32 %v3368, 1.442695
      %v3599 = vpow.pop %v3598
      %v3600 = vmul.f32 %v3369, 1.442695
      %v3601 = vpow.pop %v3600
      %v3602 = vmul.f32 %v3370, 1.442695
      %v3603 = vpow.pop %v3602
      %v3604 = vmul.f32 %v3371, 1.442695
      %v3605 = vpow.pop %v3604
      %v3606 = vmul.f32 %v3372, 1.442695
      %v3607 = vpow.pop %v3606
      %v3608 = vmul.f32 %v3373, 1.442695
      %v3609 = vpow.pop %v3608
      %v3610 = vmul.f32 %v3374, 1.442695
      %v3611 = vpow.pop %v3610
      %v3612 = vmul.f32 %v3375, 1.442695
      %v3613 = vpow.pop %v3612
      %v3614 = vmul.f32 %v3376, 1.442695
      %v3615 = vpow.pop %v3614
      %v3616 = vmul.f32 %v3377, 1.442695
      %v3617 = vpow.pop %v3616
      %v3618 = vmul.f32 %v3378, 1.442695
      %v3619 = vpow.pop %v3618
      %v3620 = vmul.f32 %v3379, 1.442695
      %v3621 = vpow.pop %v3620
      %v3622 = vmul.f32 %v3380, 1.442695
      %v3623 = vpow.pop %v3622
      %v3624 = vmul.f32 %v3381, 1.442695
      %v3625 = vpow.pop %v3624
      %v3626 = vmul.f32 %v3382, 1.442695
      %v3627 = vpow.pop %v3626
      %v3628 = vmul.f32 %v3383, 1.442695
      %v3629 = vpow.pop %v3628
      %v3630 = vmul.f32 %v3384, 1.442695
      %v3631 = vpow.pop %v3630
      %v3632 = vmul.f32 %v3385, 1.442695
      %v3633 = vpow.pop %v3632
      %v3634 = vmul.f32 %v3386, 1.442695
      %v3635 = vpow.pop %v3634
      %v3636 = vmul.f32 %v3387, 1.442695
      %v3637 = vpow.pop %v3636
      %v3638 = vmul.f32 %v3388, 1.442695
      %v3639 = vpow.pop %v3638
      %v3640 = vmul.f32 %v3389, 1.442695
      %v3641 = vpow.pop %v3640
      %v3642 = vmul.f32 %v3390, 1.442695
      %v3643 = vpow.pop %v3642
      %v3644 = vmul.f32 %v3391, 1.442695
      %v3645 = vpow.pop %v3644
      %v3646 = vmul.f32 %v3392, 1.442695
      %v3647 = vpow.pop %v3646
      %v3648 = vmul.f32 %v3393, 1.442695
      %v3649 = vpow.pop %v3648
      %3778 = vrot.lane.b32.xlu0 %v3395, 120
      %v3779 = vpop.permute.xlu0 %3778
      %3780 = vrot.lane.b32.xlu0 %v3397, 120
      %v3781 = vpop.permute.xlu0 %3780
      %3782 = vrot.lane.b32.xlu0 %v3399, 120
      %v3783 = vpop.permute.xlu0 %3782
      %3784 = vrot.lane.b32.xlu0 %v3401, 120
      %v3785 = vpop.permute.xlu0 %3784
      %3786 = vrot.lane.b32.xlu0 %v3403, 120
      %v3787 = vpop.permute.xlu0 %3786
      %3788 = vrot.lane.b32.xlu0 %v3405, 120
      %v3789 = vpop.permute.xlu0 %3788
      %3790 = vrot.lane.b32.xlu0 %v3407, 120
      %v3791 = vpop.permute.xlu0 %3790
      %3792 = vrot.lane.b32.xlu0 %v3409, 120
      %v3793 = vpop.permute.xlu0 %3792
      %3794 = vrot.lane.b32.xlu0 %v3411, 120
      %v3795 = vpop.permute.xlu0 %3794
      %3796 = vrot.lane.b32.xlu0 %v3413, 120
      %v3797 = vpop.permute.xlu0 %3796
      %3798 = vrot.lane.b32.xlu0 %v3415, 120
      %v3799 = vpop.permute.xlu0 %3798
      %3800 = vrot.lane.b32.xlu0 %v3417, 120
      %v3801 = vpop.permute.xlu0 %3800
      %3802 = vrot.lane.b32.xlu0 %v3419, 120
      %v3803 = vpop.permute.xlu0 %3802
      %3804 = vrot.lane.b32.xlu0 %v3421, 120
      %v3805 = vpop.permute.xlu0 %3804
      %3806 = vrot.lane.b32.xlu0 %v3423, 120
      %v3807 = vpop.permute.xlu0 %3806
      %3808 = vrot.lane.b32.xlu0 %v3425, 120
      %v3809 = vpop.permute.xlu0 %3808
      %3810 = vrot.lane.b32.xlu0 %v3427, 120
      %v3811 = vpop.permute.xlu0 %3810
      %3812 = vrot.lane.b32.xlu0 %v3429, 120
      %v3813 = vpop.permute.xlu0 %3812
      %3814 = vrot.lane.b32.xlu0 %v3431, 120
      %v3815 = vpop.permute.xlu0 %3814
      %3816 = vrot.lane.b32.xlu0 %v3433, 120
      %v3817 = vpop.permute.xlu0 %3816
      %3818 = vrot.lane.b32.xlu0 %v3435, 120
      %v3819 = vpop.permute.xlu0 %3818
      %3820 = vrot.lane.b32.xlu0 %v3437, 120
      %v3821 = vpop.permute.xlu0 %3820
      %3822 = vrot.lane.b32.xlu0 %v3439, 120
      %v3823 = vpop.permute.xlu0 %3822
      %3824 = vrot.lane.b32.xlu0 %v3441, 120
      %v3825 = vpop.permute.xlu0 %3824
      %3826 = vrot.lane.b32.xlu0 %v3443, 120
      %v3827 = vpop.permute.xlu0 %3826
      %3828 = vrot.lane.b32.xlu0 %v3445, 120
      %v3829 = vpop.permute.xlu0 %3828
      %3830 = vrot.lane.b32.xlu0 %v3447, 120
      %v3831 = vpop.permute.xlu0 %3830
      %3832 = vrot.lane.b32.xlu0 %v3449, 120
      %v3833 = vpop.permute.xlu0 %3832
      %3834 = vrot.lane.b32.xlu0 %v3451, 120
      %v3835 = vpop.permute.xlu0 %3834
      %3836 = vrot.lane.b32.xlu0 %v3453, 120
      %v3837 = vpop.permute.xlu0 %3836
      %3838 = vrot.lane.b32.xlu0 %v3455, 120
      %v3839 = vpop.permute.xlu0 %3838
      %3840 = vrot.lane.b32.xlu0 %v3457, 120
      %v3841 = vpop.permute.xlu0 %3840
      %3842 = vrot.lane.b32.xlu0 %v3459, 120
      %v3843 = vpop.permute.xlu0 %3842
      %3844 = vrot.lane.b32.xlu0 %v3461, 120
      %v3845 = vpop.permute.xlu0 %3844
      %3846 = vrot.lane.b32.xlu0 %v3463, 120
      %v3847 = vpop.permute.xlu0 %3846
      %3848 = vrot.lane.b32.xlu0 %v3465, 120
      %v3849 = vpop.permute.xlu0 %3848
      %3850 = vrot.lane.b32.xlu0 %v3467, 120
      %v3851 = vpop.permute.xlu0 %3850
      %3852 = vrot.lane.b32.xlu0 %v3469, 120
      %v3853 = vpop.permute.xlu0 %3852
      %3854 = vrot.lane.b32.xlu0 %v3471, 120
      %v3855 = vpop.permute.xlu0 %3854
      %3856 = vrot.lane.b32.xlu0 %v3473, 120
      %v3857 = vpop.permute.xlu0 %3856
      %3858 = vrot.lane.b32.xlu0 %v3475, 120
      %v3859 = vpop.permute.xlu0 %3858
      %3860 = vrot.lane.b32.xlu0 %v3477, 120
      %v3861 = vpop.permute.xlu0 %3860
      %3862 = vrot.lane.b32.xlu0 %v3479, 120
      %v3863 = vpop.permute.xlu0 %3862
      %3864 = vrot.lane.b32.xlu0 %v3481, 120
      %v3865 = vpop.permute.xlu0 %3864
      %3866 = vrot.lane.b32.xlu0 %v3483, 120
      %v3867 = vpop.permute.xlu0 %3866
      %3868 = vrot.lane.b32.xlu0 %v3485, 120
      %v3869 = vpop.permute.xlu0 %3868
      %3870 = vrot.lane.b32.xlu0 %v3487, 120
      %v3871 = vpop.permute.xlu0 %3870
      %3872 = vrot.lane.b32.xlu0 %v3489, 120
      %v3873 = vpop.permute.xlu0 %3872
      %3874 = vrot.lane.b32.xlu0 %v3491, 120
      %v3875 = vpop.permute.xlu0 %3874
      %3876 = vrot.lane.b32.xlu0 %v3493, 120
      %v3877 = vpop.permute.xlu0 %3876
      %3878 = vrot.lane.b32.xlu0 %v3495, 120
      %v3879 = vpop.permute.xlu0 %3878
      %3880 = vrot.lane.b32.xlu0 %v3497, 120
      %v3881 = vpop.permute.xlu0 %3880
      %3882 = vrot.lane.b32.xlu0 %v3499, 120
      %v3883 = vpop.permute.xlu0 %3882
      %3884 = vrot.lane.b32.xlu0 %v3501, 120
      %v3885 = vpop.permute.xlu0 %3884
      %3886 = vrot.lane.b32.xlu0 %v3503, 120
      %v3887 = vpop.permute.xlu0 %3886
      %3888 = vrot.lane.b32.xlu0 %v3505, 120
      %v3889 = vpop.permute.xlu0 %3888
      %3890 = vrot.lane.b32.xlu0 %v3507, 120
      %v3891 = vpop.permute.xlu0 %3890
      %3892 = vrot.lane.b32.xlu0 %v3509, 120
      %v3893 = vpop.permute.xlu0 %3892
      %3894 = vrot.lane.b32.xlu0 %v3511, 120
      %v3895 = vpop.permute.xlu0 %3894
      %3896 = vrot.lane.b32.xlu0 %v3513, 120
      %v3897 = vpop.permute.xlu0 %3896
      %3898 = vrot.lane.b32.xlu0 %v3515, 120
      %v3899 = vpop.permute.xlu0 %3898
      %3900 = vrot.lane.b32.xlu0 %v3517, 120
      %v3901 = vpop.permute.xlu0 %3900
      %3902 = vrot.lane.b32.xlu0 %v3519, 120
      %v3903 = vpop.permute.xlu0 %3902
      %3904 = vrot.lane.b32.xlu0 %v3521, 120
      %v3905 = vpop.permute.xlu0 %3904
      %3906 = vrot.lane.b32.xlu0 %v3523, 120
      %v3907 = vpop.permute.xlu0 %3906
      %3908 = vrot.lane.b32.xlu0 %v3525, 120
      %v3909 = vpop.permute.xlu0 %3908
      %3910 = vrot.lane.b32.xlu0 %v3527, 120
      %v3911 = vpop.permute.xlu0 %3910
      %3912 = vrot.lane.b32.xlu0 %v3529, 120
      %v3913 = vpop.permute.xlu0 %3912
      %3914 = vrot.lane.b32.xlu0 %v3531, 120
      %v3915 = vpop.permute.xlu0 %3914
      %3916 = vrot.lane.b32.xlu0 %v3533, 120
      %v3917 = vpop.permute.xlu0 %3916
      %3918 = vrot.lane.b32.xlu0 %v3535, 120
      %v3919 = vpop.permute.xlu0 %3918
      %3920 = vrot.lane.b32.xlu0 %v3537, 120
      %v3921 = vpop.permute.xlu0 %3920
      %3922 = vrot.lane.b32.xlu0 %v3539, 120
      %v3923 = vpop.permute.xlu0 %3922
      %3924 = vrot.lane.b32.xlu0 %v3541, 120
      %v3925 = vpop.permute.xlu0 %3924
      %3926 = vrot.lane.b32.xlu0 %v3543, 120
      %v3927 = vpop.permute.xlu0 %3926
      %3928 = vrot.lane.b32.xlu0 %v3545, 120
      %v3929 = vpop.permute.xlu0 %3928
      %3930 = vrot.lane.b32.xlu0 %v3547, 120
      %v3931 = vpop.permute.xlu0 %3930
      %3932 = vrot.lane.b32.xlu0 %v3549, 120
      %v3933 = vpop.permute.xlu0 %3932
      %3934 = vrot.lane.b32.xlu0 %v3551, 120
      %v3935 = vpop.permute.xlu0 %3934
      %3936 = vrot.lane.b32.xlu0 %v3553, 120
      %v3937 = vpop.permute.xlu0 %3936
      %3938 = vrot.lane.b32.xlu0 %v3555, 120
      %v3939 = vpop.permute.xlu0 %3938
      %3940 = vrot.lane.b32.xlu0 %v3557, 120
      %v3941 = vpop.permute.xlu0 %3940
      %3942 = vrot.lane.b32.xlu0 %v3559, 120
      %v3943 = vpop.permute.xlu0 %3942
      %3944 = vrot.lane.b32.xlu0 %v3561, 120
      %v3945 = vpop.permute.xlu0 %3944
      %3946 = vrot.lane.b32.xlu0 %v3563, 120
      %v3947 = vpop.permute.xlu0 %3946
      %3948 = vrot.lane.b32.xlu0 %v3565, 120
      %v3949 = vpop.permute.xlu0 %3948
      %3950 = vrot.lane.b32.xlu0 %v3567, 120
      %v3951 = vpop.permute.xlu0 %3950
      %3952 = vrot.lane.b32.xlu0 %v3569, 120
      %v3953 = vpop.permute.xlu0 %3952
      %3954 = vrot.lane.b32.xlu0 %v3571, 120
      %v3955 = vpop.permute.xlu0 %3954
      %3956 = vrot.lane.b32.xlu0 %v3573, 120
      %v3957 = vpop.permute.xlu0 %3956
      %3958 = vrot.lane.b32.xlu0 %v3575, 120
      %v3959 = vpop.permute.xlu0 %3958
      %3960 = vrot.lane.b32.xlu0 %v3577, 120
      %v3961 = vpop.permute.xlu0 %3960
      %3962 = vrot.lane.b32.xlu0 %v3579, 120
      %v3963 = vpop.permute.xlu0 %3962
      %3964 = vrot.lane.b32.xlu0 %v3581, 120
      %v3965 = vpop.permute.xlu0 %3964
      %3966 = vrot.lane.b32.xlu0 %v3583, 120
      %v3967 = vpop.permute.xlu0 %3966
      %3968 = vrot.lane.b32.xlu0 %v3585, 120
      %v3969 = vpop.permute.xlu0 %3968
      %3970 = vrot.lane.b32.xlu0 %v3587, 120
      %v3971 = vpop.permute.xlu0 %3970
      %3972 = vrot.lane.b32.xlu0 %v3589, 120
      %v3973 = vpop.permute.xlu0 %3972
      %3974 = vrot.lane.b32.xlu0 %v3591, 120
      %v3975 = vpop.permute.xlu0 %3974
      %3976 = vrot.lane.b32.xlu0 %v3593, 120
      %v3977 = vpop.permute.xlu0 %3976
      %3978 = vrot.lane.b32.xlu0 %v3595, 120
      %v3979 = vpop.permute.xlu0 %3978
      %3980 = vrot.lane.b32.xlu0 %v3597, 120
      %v3981 = vpop.permute.xlu0 %3980
      %3982 = vrot.lane.b32.xlu0 %v3599, 120
      %v3983 = vpop.permute.xlu0 %3982
      %3984 = vrot.lane.b32.xlu0 %v3601, 120
      %v3985 = vpop.permute.xlu0 %3984
      %3986 = vrot.lane.b32.xlu0 %v3603, 120
      %v3987 = vpop.permute.xlu0 %3986
      %3988 = vrot.lane.b32.xlu0 %v3605, 120
      %v3989 = vpop.permute.xlu0 %3988
      %3990 = vrot.lane.b32.xlu0 %v3607, 120
      %v3991 = vpop.permute.xlu0 %3990
      %3992 = vrot.lane.b32.xlu0 %v3609, 120
      %v3993 = vpop.permute.xlu0 %3992
      %3994 = vrot.lane.b32.xlu0 %v3611, 120
      %v3995 = vpop.permute.xlu0 %3994
      %3996 = vrot.lane.b32.xlu0 %v3613, 120
      %v3997 = vpop.permute.xlu0 %3996
      %3998 = vrot.lane.b32.xlu0 %v3615, 120
      %v3999 = vpop.permute.xlu0 %3998
      %4000 = vrot.lane.b32.xlu0 %v3617, 120
      %v4001 = vpop.permute.xlu0 %4000
      %4002 = vrot.lane.b32.xlu0 %v3619, 120
      %v4003 = vpop.permute.xlu0 %4002
      %4004 = vrot.lane.b32.xlu0 %v3621, 120
      %v4005 = vpop.permute.xlu0 %4004
      %4006 = vrot.lane.b32.xlu0 %v3623, 120
      %v4007 = vpop.permute.xlu0 %4006
      %4008 = vrot.lane.b32.xlu0 %v3625, 120
      %v4009 = vpop.permute.xlu0 %4008
      %4010 = vrot.lane.b32.xlu0 %v3627, 120
      %v4011 = vpop.permute.xlu0 %4010
      %4012 = vrot.lane.b32.xlu0 %v3629, 120
      %v4013 = vpop.permute.xlu0 %4012
      %4014 = vrot.lane.b32.xlu0 %v3631, 120
      %v4015 = vpop.permute.xlu0 %4014
      %4016 = vrot.lane.b32.xlu0 %v3633, 120
      %v4017 = vpop.permute.xlu0 %4016
      %4018 = vrot.lane.b32.xlu0 %v3635, 120
      %v4019 = vpop.permute.xlu0 %4018
      %4020 = vrot.lane.b32.xlu0 %v3637, 120
      %v4021 = vpop.permute.xlu0 %4020
      %4022 = vrot.lane.b32.xlu0 %v3639, 120
      %v4023 = vpop.permute.xlu0 %4022
      %4024 = vrot.lane.b32.xlu0 %v3641, 120
      %v4025 = vpop.permute.xlu0 %4024
      %4026 = vrot.lane.b32.xlu0 %v3643, 120
      %v4027 = vpop.permute.xlu0 %4026
      %4028 = vrot.lane.b32.xlu0 %v3645, 120
      %v4029 = vpop.permute.xlu0 %4028
      %4030 = vrot.lane.b32.xlu0 %v3647, 120
      %v4031 = vpop.permute.xlu0 %4030
      %4032 = vrot.lane.b32.xlu0 %v3649, 120
      %v4033 = vpop.permute.xlu0 %4032
      %v4162 = vmul.f32 %v3138, %v3779
      %v4163 = vmul.f32 %v3139, %v3781
      %v4164 = vmul.f32 %v3140, %v3783
      %v4165 = vmul.f32 %v3141, %v3785
      %v4166 = vmul.f32 %v3142, %v3787
      %v4167 = vmul.f32 %v3143, %v3789
      %v4168 = vmul.f32 %v3144, %v3791
      %v4169 = vmul.f32 %v3145, %v3793
      %v4170 = vmul.f32 %v3146, %v3795
      %v4171 = vmul.f32 %v3147, %v3797
      %v4172 = vmul.f32 %v3148, %v3799
      %v4173 = vmul.f32 %v3149, %v3801
      %v4174 = vmul.f32 %v3150, %v3803
      %v4175 = vmul.f32 %v3151, %v3805
      %v4176 = vmul.f32 %v3152, %v3807
      %v4177 = vmul.f32 %v3153, %v3809
      %v4178 = vmul.f32 %v3154, %v3811
      %v4179 = vmul.f32 %v3155, %v3813
      %v4180 = vmul.f32 %v3156, %v3815
      %v4181 = vmul.f32 %v3157, %v3817
      %v4182 = vmul.f32 %v3158, %v3819
      %v4183 = vmul.f32 %v3159, %v3821
      %v4184 = vmul.f32 %v3160, %v3823
      %v4185 = vmul.f32 %v3161, %v3825
      %v4186 = vmul.f32 %v3162, %v3827
      %v4187 = vmul.f32 %v3163, %v3829
      %v4188 = vmul.f32 %v3164, %v3831
      %v4189 = vmul.f32 %v3165, %v3833
      %v4190 = vmul.f32 %v3166, %v3835
      %v4191 = vmul.f32 %v3167, %v3837
      %v4192 = vmul.f32 %v3168, %v3839
      %v4193 = vmul.f32 %v3169, %v3841
      %v4194 = vmul.f32 %v3170, %v3843
      %v4195 = vmul.f32 %v3171, %v3845
      %v4196 = vmul.f32 %v3172, %v3847
      %v4197 = vmul.f32 %v3173, %v3849
      %v4198 = vmul.f32 %v3174, %v3851
      %v4199 = vmul.f32 %v3175, %v3853
      %v4200 = vmul.f32 %v3176, %v3855
      %v4201 = vmul.f32 %v3177, %v3857
      %v4202 = vmul.f32 %v3178, %v3859
      %v4203 = vmul.f32 %v3179, %v3861
      %v4204 = vmul.f32 %v3180, %v3863
      %v4205 = vmul.f32 %v3181, %v3865
      %v4206 = vmul.f32 %v3182, %v3867
      %v4207 = vmul.f32 %v3183, %v3869
      %v4208 = vmul.f32 %v3184, %v3871
      %v4209 = vmul.f32 %v3185, %v3873
      %v4210 = vmul.f32 %v3186, %v3875
      %v4211 = vmul.f32 %v3187, %v3877
      %v4212 = vmul.f32 %v3188, %v3879
      %v4213 = vmul.f32 %v3189, %v3881
      %v4214 = vmul.f32 %v3190, %v3883
      %v4215 = vmul.f32 %v3191, %v3885
      %v4216 = vmul.f32 %v3192, %v3887
      %v4217 = vmul.f32 %v3193, %v3889
      %v4218 = vmul.f32 %v3194, %v3891
      %v4219 = vmul.f32 %v3195, %v3893
      %v4220 = vmul.f32 %v3196, %v3895
      %v4221 = vmul.f32 %v3197, %v3897
      %v4222 = vmul.f32 %v3198, %v3899
      %v4223 = vmul.f32 %v3199, %v3901
      %v4224 = vmul.f32 %v3200, %v3903
      %v4225 = vmul.f32 %v3201, %v3905
      %v4226 = vmul.f32 %v3202, %v3907
      %v4227 = vmul.f32 %v3203, %v3909
      %v4228 = vmul.f32 %v3204, %v3911
      %v4229 = vmul.f32 %v3205, %v3913
      %v4230 = vmul.f32 %v3206, %v3915
      %v4231 = vmul.f32 %v3207, %v3917
      %v4232 = vmul.f32 %v3208, %v3919
      %v4233 = vmul.f32 %v3209, %v3921
      %v4234 = vmul.f32 %v3210, %v3923
      %v4235 = vmul.f32 %v3211, %v3925
      %v4236 = vmul.f32 %v3212, %v3927
      %v4237 = vmul.f32 %v3213, %v3929
      %v4238 = vmul.f32 %v3214, %v3931
      %v4239 = vmul.f32 %v3215, %v3933
      %v4240 = vmul.f32 %v3216, %v3935
      %v4241 = vmul.f32 %v3217, %v3937
      %v4242 = vmul.f32 %v3218, %v3939
      %v4243 = vmul.f32 %v3219, %v3941
      %v4244 = vmul.f32 %v3220, %v3943
      %v4245 = vmul.f32 %v3221, %v3945
      %v4246 = vmul.f32 %v3222, %v3947
      %v4247 = vmul.f32 %v3223, %v3949
      %v4248 = vmul.f32 %v3224, %v3951
      %v4249 = vmul.f32 %v3225, %v3953
      %v4250 = vmul.f32 %v3226, %v3955
      %v4251 = vmul.f32 %v3227, %v3957
      %v4252 = vmul.f32 %v3228, %v3959
      %v4253 = vmul.f32 %v3229, %v3961
      %v4254 = vmul.f32 %v3230, %v3963
      %v4255 = vmul.f32 %v3231, %v3965
      %v4256 = vmul.f32 %v3232, %v3967
      %v4257 = vmul.f32 %v3233, %v3969
      %v4258 = vmul.f32 %v3234, %v3971
      %v4259 = vmul.f32 %v3235, %v3973
      %v4260 = vmul.f32 %v3236, %v3975
      %v4261 = vmul.f32 %v3237, %v3977
      %v4262 = vmul.f32 %v3238, %v3979
      %v4263 = vmul.f32 %v3239, %v3981
      %v4264 = vmul.f32 %v3240, %v3983
      %v4265 = vmul.f32 %v3241, %v3985
      %v4266 = vmul.f32 %v3242, %v3987
      %v4267 = vmul.f32 %v3243, %v3989
      %v4268 = vmul.f32 %v3244, %v3991
      %v4269 = vmul.f32 %v3245, %v3993
      %v4270 = vmul.f32 %v3246, %v3995
      %v4271 = vmul.f32 %v3247, %v3997
      %v4272 = vmul.f32 %v3248, %v3999
      %v4273 = vmul.f32 %v3249, %v4001
      %v4274 = vmul.f32 %v3250, %v4003
      %v4275 = vmul.f32 %v3251, %v4005
      %v4276 = vmul.f32 %v3252, %v4007
      %v4277 = vmul.f32 %v3253, %v4009
      %v4278 = vmul.f32 %v3254, %v4011
      %v4279 = vmul.f32 %v3255, %v4013
      %v4280 = vmul.f32 %v3256, %v4015
      %v4281 = vmul.f32 %v3257, %v4017
      %v4282 = vmul.f32 %v3258, %v4019
      %v4283 = vmul.f32 %v3259, %v4021
      %v4284 = vmul.f32 %v3260, %v4023
      %v4285 = vmul.f32 %v3261, %v4025
      %v4286 = vmul.f32 %v3262, %v4027
      %v4287 = vmul.f32 %v3263, %v4029
      %v4288 = vmul.f32 %v3264, %v4031
      %v4289 = vmul.f32 %v3265, %v4033
      %v4290 = vadd.f32 %v4162, %v2500
      %v4291 = vadd.f32 %v4163, %v2505
      %v4292 = vadd.f32 %v4164, %v2510
      %v4293 = vadd.f32 %v4165, %v2515
      %v4294 = vadd.f32 %v4166, %v2520
      %v4295 = vadd.f32 %v4167, %v2525
      %v4296 = vadd.f32 %v4168, %v2530
      %v4297 = vadd.f32 %v4169, %v2535
      %v4298 = vadd.f32 %v4170, %v2540
      %v4299 = vadd.f32 %v4171, %v2545
      %v4300 = vadd.f32 %v4172, %v2550
      %v4301 = vadd.f32 %v4173, %v2555
      %v4302 = vadd.f32 %v4174, %v2560
      %v4303 = vadd.f32 %v4175, %v2565
      %v4304 = vadd.f32 %v4176, %v2570
      %v4305 = vadd.f32 %v4177, %v2575
      %v4306 = vadd.f32 %v4178, %v2580
      %v4307 = vadd.f32 %v4179, %v2585
      %v4308 = vadd.f32 %v4180, %v2590
      %v4309 = vadd.f32 %v4181, %v2595
      %v4310 = vadd.f32 %v4182, %v2600
      %v4311 = vadd.f32 %v4183, %v2605
      %v4312 = vadd.f32 %v4184, %v2610
      %v4313 = vadd.f32 %v4185, %v2615
      %v4314 = vadd.f32 %v4186, %v2620
      %v4315 = vadd.f32 %v4187, %v2625
      %v4316 = vadd.f32 %v4188, %v2630
      %v4317 = vadd.f32 %v4189, %v2635
      %v4318 = vadd.f32 %v4190, %v2640
      %v4319 = vadd.f32 %v4191, %v2645
      %v4320 = vadd.f32 %v4192, %v2650
      %v4321 = vadd.f32 %v4193, %v2655
      %v4322 = vadd.f32 %v4194, %v2660
      %v4323 = vadd.f32 %v4195, %v2665
      %v4324 = vadd.f32 %v4196, %v2670
      %v4325 = vadd.f32 %v4197, %v2675
      %v4326 = vadd.f32 %v4198, %v2680
      %v4327 = vadd.f32 %v4199, %v2685
      %v4328 = vadd.f32 %v4200, %v2690
      %v4329 = vadd.f32 %v4201, %v2695
      %v4330 = vadd.f32 %v4202, %v2700
      %v4331 = vadd.f32 %v4203, %v2705
      %v4332 = vadd.f32 %v4204, %v2710
      %v4333 = vadd.f32 %v4205, %v2715
      %v4334 = vadd.f32 %v4206, %v2720
      %v4335 = vadd.f32 %v4207, %v2725
      %v4336 = vadd.f32 %v4208, %v2730
      %v4337 = vadd.f32 %v4209, %v2735
      %v4338 = vadd.f32 %v4210, %v2740
      %v4339 = vadd.f32 %v4211, %v2745
      %v4340 = vadd.f32 %v4212, %v2750
      %v4341 = vadd.f32 %v4213, %v2755
      %v4342 = vadd.f32 %v4214, %v2760
      %v4343 = vadd.f32 %v4215, %v2765
      %v4344 = vadd.f32 %v4216, %v2770
      %v4345 = vadd.f32 %v4217, %v2775
      %v4346 = vadd.f32 %v4218, %v2780
      %v4347 = vadd.f32 %v4219, %v2785
      %v4348 = vadd.f32 %v4220, %v2790
      %v4349 = vadd.f32 %v4221, %v2795
      %v4350 = vadd.f32 %v4222, %v2800
      %v4351 = vadd.f32 %v4223, %v2805
      %v4352 = vadd.f32 %v4224, %v2810
      %v4353 = vadd.f32 %v4225, %v2815
      %v4354 = vadd.f32 %v4226, %v2820
      %v4355 = vadd.f32 %v4227, %v2825
      %v4356 = vadd.f32 %v4228, %v2830
      %v4357 = vadd.f32 %v4229, %v2835
      %v4358 = vadd.f32 %v4230, %v2840
      %v4359 = vadd.f32 %v4231, %v2845
      %v4360 = vadd.f32 %v4232, %v2850
      %v4361 = vadd.f32 %v4233, %v2855
      %v4362 = vadd.f32 %v4234, %v2860
      %v4363 = vadd.f32 %v4235, %v2865
      %v4364 = vadd.f32 %v4236, %v2870
      %v4365 = vadd.f32 %v4237, %v2875
      %v4366 = vadd.f32 %v4238, %v2880
      %v4367 = vadd.f32 %v4239, %v2885
      %v4368 = vadd.f32 %v4240, %v2890
      %v4369 = vadd.f32 %v4241, %v2895
      %v4370 = vadd.f32 %v4242, %v2900
      %v4371 = vadd.f32 %v4243, %v2905
      %v4372 = vadd.f32 %v4244, %v2910
      %v4373 = vadd.f32 %v4245, %v2915
      %v4374 = vadd.f32 %v4246, %v2920
      %v4375 = vadd.f32 %v4247, %v2925
      %v4376 = vadd.f32 %v4248, %v2930
      %v4377 = vadd.f32 %v4249, %v2935
      %v4378 = vadd.f32 %v4250, %v2940
      %v4379 = vadd.f32 %v4251, %v2945
      %v4380 = vadd.f32 %v4252, %v2950
      %v4381 = vadd.f32 %v4253, %v2955
      %v4382 = vadd.f32 %v4254, %v2960
      %v4383 = vadd.f32 %v4255, %v2965
      %v4384 = vadd.f32 %v4256, %v2970
      %v4385 = vadd.f32 %v4257, %v2975
      %v4386 = vadd.f32 %v4258, %v2980
      %v4387 = vadd.f32 %v4259, %v2985
      %v4388 = vadd.f32 %v4260, %v2990
      %v4389 = vadd.f32 %v4261, %v2995
      %v4390 = vadd.f32 %v4262, %v3000
      %v4391 = vadd.f32 %v4263, %v3005
      %v4392 = vadd.f32 %v4264, %v3010
      %v4393 = vadd.f32 %v4265, %v3015
      %v4394 = vadd.f32 %v4266, %v3020
      %v4395 = vadd.f32 %v4267, %v3025
      %v4396 = vadd.f32 %v4268, %v3030
      %v4397 = vadd.f32 %v4269, %v3035
      %v4398 = vadd.f32 %v4270, %v3040
      %v4399 = vadd.f32 %v4271, %v3045
      %v4400 = vadd.f32 %v4272, %v3050
      %v4401 = vadd.f32 %v4273, %v3055
      %v4402 = vadd.f32 %v4274, %v3060
      %v4403 = vadd.f32 %v4275, %v3065
      %v4404 = vadd.f32 %v4276, %v3070
      %v4405 = vadd.f32 %v4277, %v3075
      %v4406 = vadd.f32 %v4278, %v3080
      %v4407 = vadd.f32 %v4279, %v3085
      %v4408 = vadd.f32 %v4280, %v3090
      %v4409 = vadd.f32 %v4281, %v3095
      %v4410 = vadd.f32 %v4282, %v3100
      %v4411 = vadd.f32 %v4283, %v3105
      %v4412 = vadd.f32 %v4284, %v3110
      %v4413 = vadd.f32 %v4285, %v3115
      %v4414 = vadd.f32 %v4286, %v3120
      %v4415 = vadd.f32 %v4287, %v3125
      %v4416 = vadd.f32 %v4288, %v3130
      %v4417 = vadd.f32 %v4289, %v3135
      %v4418 = vld [vmem:[%s6] sm:$0xff]
      %v4419 = vld [vmem:[%s7] sm:$0x1]
      %v4421 = vlaneseq
      %v4422 = vshrl.u32 %v4421, 7
      %v4423 = vsub.s32 0, %v4422
      %v4424 = vrot.slane %v4419, %v4423
      %vm4426 = vcmask 64512
      %v4428 = vsel %vm4426, %v4290, 0
      %v4431 = vsel %vm4426, %v4291, 0
      %v4434 = vsel %vm4426, %v4292, 0
      %v4437 = vsel %vm4426, %v4293, 0
      %v4440 = vsel %vm4426, %v4294, 0
      %v4443 = vsel %vm4426, %v4295, 0
      %v4446 = vsel %vm4426, %v4296, 0
      %v4449 = vsel %vm4426, %v4297, 0
      %v4452 = vsel %vm4426, %v4298, 0
      %v4455 = vsel %vm4426, %v4299, 0
      %v4458 = vsel %vm4426, %v4300, 0
      %v4461 = vsel %vm4426, %v4301, 0
      %v4464 = vsel %vm4426, %v4302, 0
      %v4467 = vsel %vm4426, %v4303, 0
      %v4470 = vsel %vm4426, %v4304, 0
      %v4473 = vsel %vm4426, %v4305, 0
      %v4476 = vsel %vm4426, %v4306, 0
      %v4479 = vsel %vm4426, %v4307, 0
      %v4482 = vsel %vm4426, %v4308, 0
      %v4485 = vsel %vm4426, %v4309, 0
      %v4488 = vsel %vm4426, %v4310, 0
      %v4491 = vsel %vm4426, %v4311, 0
      %v4494 = vsel %vm4426, %v4312, 0
      %v4497 = vsel %vm4426, %v4313, 0
      %v4500 = vsel %vm4426, %v4314, 0
      %v4503 = vsel %vm4426, %v4315, 0
      %v4506 = vsel %vm4426, %v4316, 0
      %v4509 = vsel %vm4426, %v4317, 0
      %v4512 = vsel %vm4426, %v4318, 0
      %v4515 = vsel %vm4426, %v4319, 0
      %v4518 = vsel %vm4426, %v4320, 0
      %v4521 = vsel %vm4426, %v4321, 0
      %v4524 = vsel %vm4426, %v4322, 0
      %v4527 = vsel %vm4426, %v4323, 0
      %v4530 = vsel %vm4426, %v4324, 0
      %v4533 = vsel %vm4426, %v4325, 0
      %v4536 = vsel %vm4426, %v4326, 0
      %v4539 = vsel %vm4426, %v4327, 0
      %v4542 = vsel %vm4426, %v4328, 0
      %v4545 = vsel %vm4426, %v4329, 0
      %v4548 = vsel %vm4426, %v4330, 0
      %v4551 = vsel %vm4426, %v4331, 0
      %v4554 = vsel %vm4426, %v4332, 0
      %v4557 = vsel %vm4426, %v4333, 0
      %v4560 = vsel %vm4426, %v4334, 0
      %v4563 = vsel %vm4426, %v4335, 0
      %v4566 = vsel %vm4426, %v4336, 0
      %v4569 = vsel %vm4426, %v4337, 0
      %v4572 = vsel %vm4426, %v4338, 0
      %v4575 = vsel %vm4426, %v4339, 0
      %v4578 = vsel %vm4426, %v4340, 0
      %v4581 = vsel %vm4426, %v4341, 0
      %v4584 = vsel %vm4426, %v4342, 0
      %v4587 = vsel %vm4426, %v4343, 0
      %v4590 = vsel %vm4426, %v4344, 0
      %v4593 = vsel %vm4426, %v4345, 0
      %v4596 = vsel %vm4426, %v4346, 0
      %v4599 = vsel %vm4426, %v4347, 0
      %v4602 = vsel %vm4426, %v4348, 0
      %v4605 = vsel %vm4426, %v4349, 0
      %v4608 = vsel %vm4426, %v4350, 0
      %v4611 = vsel %vm4426, %v4351, 0
      %v4614 = vsel %vm4426, %v4352, 0
      %v4617 = vsel %vm4426, %v4353, 0
      %v4620 = vsel %vm4426, %v4354, 0
      %v4623 = vsel %vm4426, %v4355, 0
      %v4626 = vsel %vm4426, %v4356, 0
      %v4629 = vsel %vm4426, %v4357, 0
      %v4632 = vsel %vm4426, %v4358, 0
      %v4635 = vsel %vm4426, %v4359, 0
      %v4638 = vsel %vm4426, %v4360, 0
      %v4641 = vsel %vm4426, %v4361, 0
      %v4644 = vsel %vm4426, %v4362, 0
      %v4647 = vsel %vm4426, %v4363, 0
      %v4650 = vsel %vm4426, %v4364, 0
      %v4653 = vsel %vm4426, %v4365, 0
      %v4656 = vsel %vm4426, %v4366, 0
      %v4659 = vsel %vm4426, %v4367, 0
      %v4662 = vsel %vm4426, %v4368, 0
      %v4665 = vsel %vm4426, %v4369, 0
      %v4668 = vsel %vm4426, %v4370, 0
      %v4671 = vsel %vm4426, %v4371, 0
      %v4674 = vsel %vm4426, %v4372, 0
      %v4677 = vsel %vm4426, %v4373, 0
      %v4680 = vsel %vm4426, %v4374, 0
      %v4683 = vsel %vm4426, %v4375, 0
      %v4686 = vsel %vm4426, %v4376, 0
      %v4689 = vsel %vm4426, %v4377, 0
      %v4692 = vsel %vm4426, %v4378, 0
      %v4695 = vsel %vm4426, %v4379, 0
      %v4698 = vsel %vm4426, %v4380, 0
      %v4701 = vsel %vm4426, %v4381, 0
      %v4704 = vsel %vm4426, %v4382, 0
      %v4707 = vsel %vm4426, %v4383, 0
      %v4710 = vsel %vm4426, %v4384, 0
      %v4713 = vsel %vm4426, %v4385, 0
      %v4716 = vsel %vm4426, %v4386, 0
      %v4719 = vsel %vm4426, %v4387, 0
      %v4722 = vsel %vm4426, %v4388, 0
      %v4725 = vsel %vm4426, %v4389, 0
      %v4728 = vsel %vm4426, %v4390, 0
      %v4731 = vsel %vm4426, %v4391, 0
      %v4734 = vsel %vm4426, %v4392, 0
      %v4737 = vsel %vm4426, %v4393, 0
      %v4740 = vsel %vm4426, %v4394, 0
      %v4743 = vsel %vm4426, %v4395, 0
      %v4746 = vsel %vm4426, %v4396, 0
      %v4749 = vsel %vm4426, %v4397, 0
      %v4752 = vsel %vm4426, %v4398, 0
      %v4755 = vsel %vm4426, %v4399, 0
      %v4758 = vsel %vm4426, %v4400, 0
      %v4761 = vsel %vm4426, %v4401, 0
      %v4764 = vsel %vm4426, %v4402, 0
      %v4767 = vsel %vm4426, %v4403, 0
      %v4770 = vsel %vm4426, %v4404, 0
      %v4773 = vsel %vm4426, %v4405, 0
      %v4776 = vsel %vm4426, %v4406, 0
      %v4779 = vsel %vm4426, %v4407, 0
      %v4782 = vsel %vm4426, %v4408, 0
      %v4785 = vsel %vm4426, %v4409, 0
      %v4788 = vsel %vm4426, %v4410, 0
      %v4791 = vsel %vm4426, %v4411, 0
      %v4794 = vsel %vm4426, %v4412, 0
      %v4797 = vsel %vm4426, %v4413, 0
      %v4800 = vsel %vm4426, %v4414, 0
      %v4803 = vsel %vm4426, %v4415, 0
      %v4806 = vsel %vm4426, %v4416, 0
      %v4809 = vsel %vm4426, %v4417, 0
      %4811 = vmatprep.subr.mxu0 0.0
      %4812 = vmatpush1.msra.mxu0 %v4418
      %4813 = vmatprep.subr.mxu0 0.0
      %4814 = vmatpush1.msra.mxu0 0.0
      %4815 = vmatprep.subr.mxu0 0.0
      %4816 = vmatpush1.msra.mxu0 0.0
      %4817 = vmatprep.subr.mxu0 0.0
      %4818 = vmatpush1.msra.mxu0 0.0
      %4819 = vmatprep.subr.mxu0 0.0
      %4820 = vmatpush1.msra.mxu0 0.0
      %4821 = vmatprep.subr.mxu0 0.0
      %4822 = vmatpush1.msra.mxu0 0.0
      %4823 = vmatprep.subr.mxu0 0.0
      %4824 = vmatpush1.msra.mxu0 0.0
      %4825 = vmatprep.subr.mxu0 0.0
      %4826 = vmatpush1.msra.mxu0 0.0
      %4827 = vmatprep.subr.mxu0 0.0
      %4828 = vmatpush1.msra.mxu0 0.0
      %4829 = vmatprep.subr.mxu0 0.0
      %4830 = vmatpush1.msra.mxu0 0.0
      %4831 = vmatprep.subr.mxu0 0.0
      %4832 = vmatpush1.msra.mxu0 0.0
      %4833 = vmatprep.subr.mxu0 0.0
      %4834 = vmatpush1.msra.mxu0 0.0
      %4835 = vmatprep.subr.mxu0 0.0
      %4836 = vmatpush1.msra.mxu0 0.0
      %4837 = vmatprep.subr.mxu0 0.0
      %4838 = vmatpush1.msra.mxu0 0.0
      %4839 = vmatprep.subr.mxu0 0.0
      %4840 = vmatpush1.msra.mxu0 0.0
      %4841 = vmatprep.subr.mxu0 0.0
      %4842 = vmatpush1.msra.mxu0 0.0
      %4843 = vmatprep.subr.mxu0 0.0
      %4844 = vmatpush1.msra.mxu0 0.0
      %4845 = vmatprep.subr.mxu0 0.0
      %4846 = vmatpush1.msra.mxu0 0.0
      %4847 = vmatprep.subr.mxu0 0.0
      %4848 = vmatpush1.msra.mxu0 0.0
      %4849 = vmatprep.subr.mxu0 0.0
      %4850 = vmatpush1.msra.mxu0 0.0
      %4851 = vmatprep.subr.mxu0 0.0
      %4852 = vmatpush1.msra.mxu0 0.0
      %4853 = vmatprep.subr.mxu0 0.0
      %4854 = vmatpush1.msra.mxu0 0.0
      %4855 = vmatprep.subr.mxu0 0.0
      %4856 = vmatpush1.msra.mxu0 0.0
      %4857 = vmatprep.subr.mxu0 0.0
      %4858 = vmatpush1.msra.mxu0 0.0
      %4859 = vmatprep.subr.mxu0 0.0
      %4860 = vmatpush1.msra.mxu0 0.0
      %4861 = vmatprep.subr.mxu0 0.0
      %4862 = vmatpush1.msra.mxu0 0.0
      %4863 = vmatprep.subr.mxu0 0.0
      %4864 = vmatpush1.msra.mxu0 0.0
      %4865 = vmatprep.subr.mxu0 0.0
      %4866 = vmatpush1.msra.mxu0 0.0
      %4867 = vmatprep.subr.mxu0 0.0
      %4868 = vmatpush1.msra.mxu0 0.0
      %4869 = vmatprep.subr.mxu0 0.0
      %4870 = vmatpush1.msra.mxu0 0.0
      %4871 = vmatprep.subr.mxu0 0.0
      %4872 = vmatpush1.msra.mxu0 0.0
      %4873 = vmatprep.subr.mxu0 0.0
      %4874 = vmatpush1.msra.mxu0 0.0
      %4875 = vmatprep.mubr.f32.mxu0 0.0
      %4876 = vmatmul.mubr.f32.gmra.mrb[0].mxu0 %v4428
      %v4877 = vpop.f32.mrb[0].mxu0
      %v4878 = vadd.f32 %v4424, %v4877
      %v4879 = vpop.f32.mrb[0].mxu0
      %4880 = vmatprep.mubr.f32.mxu0 0.0
      %4881 = vmatmul.mubr.f32.gmra.mrb[0].mxu0 %v4431
      %v4882 = vpop.f32.mrb[0].mxu0
      %v4883 = vadd.f32 %v4424, %v4882
      %v4884 = vpop.f32.mrb[0].mxu0
      %4885 = vmatprep.mubr.f32.mxu0 0.0
      %4886 = vmatmul.mubr.f32.gmra.mrb[0].mxu0 %v4434
      %v4887 = vpop.f32.mrb[0].mxu0
      %v4888 = vadd.f32 %v4424, %v4887
      %v4889 = vpop.f32.mrb[0].mxu0
      %4890 = vmatprep.mubr.f32.mxu0 0.0
      %4891 = vmatmul.mubr.f32.gmra.mrb[0].mxu0 %v4437
      %v4892 = vpop.f32.mrb[0].mxu0
      %v4893 = vadd.f32 %v4424, %v4892
      %v4894 = vpop.f32.mrb[0].mxu0
      %4895 = vmatprep.mubr.f32.mxu0 0.0
      %4896 = vmatmul.mubr.f32.gmra.mrb[0].mxu0 %v4440
      %v4897 = vpop.f32.mrb[0].mxu0
      %v4898 = vadd.f32 %v4424, %v4897
      %v4899 = vpop.f32.mrb[0].mxu0
      %4900 = vmatprep.mubr.f32.mxu0 0.0
      %4901 = vmatmul.mubr.f32.gmra.mrb[0].mxu0 %v4443
      %v4902 = vpop.f32.mrb[0].mxu0
      %v4903 = vadd.f32 %v4424, %v4902
      %v4904 = vpop.f32.mrb[0].mxu0
      %4905 = vmatprep.mubr.f32.mxu0 0.0
      %4906 = vmatmul.mubr.f32.gmra.mrb[0].mxu0 %v4446
      %v4907 = vpop.f32.mrb[0].mxu0
      %v4908 = vadd.f32 %v4424, %v4907
      %v4909 = vpop.f32.mrb[0].mxu0
      %4910 = vmatprep.mubr.f32.mxu0 0.0
      %4911 = vmatmul.mubr.f32.gmra.mrb[0].mxu0 %v4449
      %v4912 = vpop.f32.mrb[0].mxu0
      %v4913 = vadd.f32 %v4424, %v4912
      %v4914 = vpop.f32.mrb[0].mxu0
      %4915 = vmatprep.mubr.f32.mxu0 0.0
      %4916 = vmatmul.mubr.f32.gmra.mrb[0].mxu0 %v4452
      %v4917 = vpop.f32.mrb[0].mxu0
      %v4918 = vadd.f32 %v4424, %v4917
      %v4919 = vpop.f32.mrb[0].mxu0
      %4920 = vmatprep.mubr.f32.mxu0 0.0
      %4921 = vmatmul.mubr.f32.gmra.mrb[0].mxu0 %v4455
      %v4922 = vpop.f32.mrb[0].mxu0
      %v4923 = vadd.f32 %v4424, %v4922
      %v4924 = vpop.f32.mrb[0].mxu0
      %4925 = vmatprep.mubr.f32.mxu0 0.0
      %4926 = vmatmul.mubr.f32.gmra.mrb[0].mxu0 %v4458
      %v4927 = vpop.f32.mrb[0].mxu0
      %v4928 = vadd.f32 %v4424, %v4927
      %v4929 = vpop.f32.mrb[0].mxu0
      %4930 = vmatprep.mubr.f32.mxu0 0.0
      %4931 = vmatmul.mubr.f32.gmra.mrb[0].mxu0 %v4461
      %v4932 = vpop.f32.mrb[0].mxu0
      %v4933 = vadd.f32 %v4424, %v4932
      %v4934 = vpop.f32.mrb[0].mxu0
      %4935 = vmatprep.mubr.f32.mxu0 0.0
      %4936 = vmatmul.mubr.f32.gmra.mrb[0].mxu0 %v4464
      %v4937 = vpop.f32.mrb[0].mxu0
      %v4938 = vadd.f32 %v4424, %v4937
      %v4939 = vpop.f32.mrb[0].mxu0
      %4940 = vmatprep.mubr.f32.mxu0 0.0
      %4941 = vmatmul.mubr.f32.gmra.mrb[0].mxu0 %v4467
      %v4942 = vpop.f32.mrb[0].mxu0
      %v4943 = vadd.f32 %v4424, %v4942
      %v4944 = vpop.f32.mrb[0].mxu0
      %4945 = vmatprep.mubr.f32.mxu0 0.0
      %4946 = vmatmul.mubr.f32.gmra.mrb[0].mxu0 %v4470
      %v4947 = vpop.f32.mrb[0].mxu0
      %v4948 = vadd.f32 %v4424, %v4947
      %v4949 = vpop.f32.mrb[0].mxu0
      %4950 = vmatprep.mubr.f32.mxu0 0.0
      %4951 = vmatmul.mubr.f32.gmra.mrb[0].mxu0 %v4473
      %v4952 = vpop.f32.mrb[0].mxu0
      %v4953 = vadd.f32 %v4424, %v4952
      %v4954 = vpop.f32.mrb[0].mxu0
      %4955 = vmatprep.mubr.f32.mxu0 0.0
      %4956 = vmatmul.mubr.f32.gmra.mrb[0].mxu0 %v4476
      %v4957 = vpop.f32.mrb[0].mxu0
      %v4958 = vadd.f32 %v4424, %v4957
      %v4959 = vpop.f32.mrb[0].mxu0
      %4960 = vmatprep.mubr.f32.mxu0 0.0
      %4961 = vmatmul.mubr.f32.gmra.mrb[0].mxu0 %v4479
      %v4962 = vpop.f32.mrb[0].mxu0
      %v4963 = vadd.f32 %v4424, %v4962
      %v4964 = vpop.f32.mrb[0].mxu0
      %4965 = vmatprep.mubr.f32.mxu0 0.0
      %4966 = vmatmul.mubr.f32.gmra.mrb[0].mxu0 %v4482
      %v4967 = vpop.f32.mrb[0].mxu0
      %v4968 = vadd.f32 %v4424, %v4967
      %v4969 = vpop.f32.mrb[0].mxu0
      %4970 = vmatprep.mubr.f32.mxu0 0.0
      %4971 = vmatmul.mubr.f32.gmra.mrb[0].mxu0 %v4485
      %v4972 = vpop.f32.mrb[0].mxu0
      %v4973 = vadd.f32 %v4424, %v4972
      %v4974 = vpop.f32.mrb[0].mxu0
      %4975 = vmatprep.mubr.f32.mxu0 0.0
      %4976 = vmatmul.mubr.f32.gmra.mrb[0].mxu0 %v4488
      %v4977 = vpop.f32.mrb[0].mxu0
      %v4978 = vadd.f32 %v4424, %v4977
      %v4979 = vpop.f32.mrb[0].mxu0
      %4980 = vmatprep.mubr.f32.mxu0 0.0
      %4981 = vmatmul.mubr.f32.gmra.mrb[0].mxu0 %v4491
      %v4982 = vpop.f32.mrb[0].mxu0
      %v4983 = vadd.f32 %v4424, %v4982
      %v4984 = vpop.f32.mrb[0].mxu0
      %4985 = vmatprep.mubr.f32.mxu0 0.0
      %4986 = vmatmul.mubr.f32.gmra.mrb[0].mxu0 %v4494
      %v4987 = vpop.f32.mrb[0].mxu0
      %v4988 = vadd.f32 %v4424, %v4987
      %v4989 = vpop.f32.mrb[0].mxu0
      %4990 = vmatprep.mubr.f32.mxu0 0.0
      %4991 = vmatmul.mubr.f32.gmra.mrb[0].mxu0 %v4497
      %v4992 = vpop.f32.mrb[0].mxu0
      %v4993 = vadd.f32 %v4424, %v4992
      %v4994 = vpop.f32.mrb[0].mxu0
      %4995 = vmatprep.mubr.f32.mxu0 0.0
      %4996 = vmatmul.mubr.f32.gmra.mrb[0].mxu0 %v4500
      %v4997 = vpop.f32.mrb[0].mxu0
      %v4998 = vadd.f32 %v4424, %v4997
      %v4999 = vpop.f32.mrb[0].mxu0
      %5000 = vmatprep.mubr.f32.mxu0 0.0
      %5001 = vmatmul.mubr.f32.gmra.mrb[0].mxu0 %v4503
      %v5002 = vpop.f32.mrb[0].mxu0
      %v5003 = vadd.f32 %v4424, %v5002
      %v5004 = vpop.f32.mrb[0].mxu0
      %5005 = vmatprep.mubr.f32.mxu0 0.0
      %5006 = vmatmul.mubr.f32.gmra.mrb[0].mxu0 %v4506
      %v5007 = vpop.f32.mrb[0].mxu0
      %v5008 = vadd.f32 %v4424, %v5007
      %v5009 = vpop.f32.mrb[0].mxu0
      %5010 = vmatprep.mubr.f32.mxu0 0.0
      %5011 = vmatmul.mubr.f32.gmra.mrb[0].mxu0 %v4509
      %v5012 = vpop.f32.mrb[0].mxu0
      %v5013 = vadd.f32 %v4424, %v5012
      %v5014 = vpop.f32.mrb[0].mxu0
      %5015 = vmatprep.mubr.f32.mxu0 0.0
      %5016 = vmatmul.mubr.f32.gmra.mrb[0].mxu0 %v4512
      %v5017 = vpop.f32.mrb[0].mxu0
      %v5018 = vadd.f32 %v4424, %v5017
      %v5019 = vpop.f32.mrb[0].mxu0
      %5020 = vmatprep.mubr.f32.mxu0 0.0
      %5021 = vmatmul.mubr.f32.gmra.mrb[0].mxu0 %v4515
      %v5022 = vpop.f32.mrb[0].mxu0
      %v5023 = vadd.f32 %v4424, %v5022
      %v5024 = vpop.f32.mrb[0].mxu0
      %5025 = vmatprep.mubr.f32.mxu0 0.0
      %5026 = vmatmul.mubr.f32.gmra.mrb[0].mxu0 %v4518
      %v5027 = vpop.f32.mrb[0].mxu0
      %v5028 = vadd.f32 %v4424, %v5027
      %v5029 = vpop.f32.mrb[0].mxu0
      %5030 = vmatprep.mubr.f32.mxu0 0.0
      %5031 = vmatmul.mubr.f32.gmra.mrb[0].mxu0 %v4521
      %v5032 = vpop.f32.mrb[0].mxu0
      %v5033 = vadd.f32 %v4424, %v5032
      %v5034 = vpop.f32.mrb[0].mxu0
      %5035 = vmatprep.mubr.f32.mxu0 0.0
      %5036 = vmatmul.mubr.f32.gmra.mrb[0].mxu0 %v4524
      %v5037 = vpop.f32.mrb[0].mxu0
      %v5038 = vadd.f32 %v4424, %v5037
      %v5039 = vpop.f32.mrb[0].mxu0
      %5040 = vmatprep.mubr.f32.mxu0 0.0
      %5041 = vmatmul.mubr.f32.gmra.mrb[0].mxu0 %v4527
      %v5042 = vpop.f32.mrb[0].mxu0
      %v5043 = vadd.f32 %v4424, %v5042
      %v5044 = vpop.f32.mrb[0].mxu0
      %5045 = vmatprep.mubr.f32.mxu0 0.0
      %5046 = vmatmul.mubr.f32.gmra.mrb[0].mxu0 %v4530
      %v5047 = vpop.f32.mrb[0].mxu0
      %v5048 = vadd.f32 %v4424, %v5047
      %v5049 = vpop.f32.mrb[0].mxu0
      %5050 = vmatprep.mubr.f32.mxu0 0.0
      %5051 = vmatmul.mubr.f32.gmra.mrb[0].mxu0 %v4533
      %v5052 = vpop.f32.mrb[0].mxu0
      %v5053 = vadd.f32 %v4424, %v5052
      %v5054 = vpop.f32.mrb[0].mxu0
      %5055 = vmatprep.mubr.f32.mxu0 0.0
      %5056 = vmatmul.mubr.f32.gmra.mrb[0].mxu0 %v4536
      %v5057 = vpop.f32.mrb[0].mxu0
      %v5058 = vadd.f32 %v4424, %v5057
      %v5059 = vpop.f32.mrb[0].mxu0
      %5060 = vmatprep.mubr.f32.mxu0 0.0
      %5061 = vmatmul.mubr.f32.gmra.mrb[0].mxu0 %v4539
      %v5062 = vpop.f32.mrb[0].mxu0
      %v5063 = vadd.f32 %v4424, %v5062
      %v5064 = vpop.f32.mrb[0].mxu0
      %5065 = vmatprep.mubr.f32.mxu0 0.0
      %5066 = vmatmul.mubr.f32.gmra.mrb[0].mxu0 %v4542
      %v5067 = vpop.f32.mrb[0].mxu0
      %v5068 = vadd.f32 %v4424, %v5067
      %v5069 = vpop.f32.mrb[0].mxu0
      %5070 = vmatprep.mubr.f32.mxu0 0.0
      %5071 = vmatmul.mubr.f32.gmra.mrb[0].mxu0 %v4545
      %v5072 = vpop.f32.mrb[0].mxu0
      %v5073 = vadd.f32 %v4424, %v5072
      %v5074 = vpop.f32.mrb[0].mxu0
      %5075 = vmatprep.mubr.f32.mxu0 0.0
      %5076 = vmatmul.mubr.f32.gmra.mrb[0].mxu0 %v4548
      %v5077 = vpop.f32.mrb[0].mxu0
      %v5078 = vadd.f32 %v4424, %v5077
      %v5079 = vpop.f32.mrb[0].mxu0
      %5080 = vmatprep.mubr.f32.mxu0 0.0
      %5081 = vmatmul.mubr.f32.gmra.mrb[0].mxu0 %v4551
      %v5082 = vpop.f32.mrb[0].mxu0
      %v5083 = vadd.f32 %v4424, %v5082
      %v5084 = vpop.f32.mrb[0].mxu0
      %5085 = vmatprep.mubr.f32.mxu0 0.0
      %5086 = vmatmul.mubr.f32.gmra.mrb[0].mxu0 %v4554
      %v5087 = vpop.f32.mrb[0].mxu0
      %v5088 = vadd.f32 %v4424, %v5087
      %v5089 = vpop.f32.mrb[0].mxu0
      %5090 = vmatprep.mubr.f32.mxu0 0.0
      %5091 = vmatmul.mubr.f32.gmra.mrb[0].mxu0 %v4557
      %v5092 = vpop.f32.mrb[0].mxu0
      %v5093 = vadd.f32 %v4424, %v5092
      %v5094 = vpop.f32.mrb[0].mxu0
      %5095 = vmatprep.mubr.f32.mxu0 0.0
      %5096 = vmatmul.mubr.f32.gmra.mrb[0].mxu0 %v4560
      %v5097 = vpop.f32.mrb[0].mxu0
      %v5098 = vadd.f32 %v4424, %v5097
      %v5099 = vpop.f32.mrb[0].mxu0
      %5100 = vmatprep.mubr.f32.mxu0 0.0
      %5101 = vmatmul.mubr.f32.gmra.mrb[0].mxu0 %v4563
      %v5102 = vpop.f32.mrb[0].mxu0
      %v5103 = vadd.f32 %v4424, %v5102
      %v5104 = vpop.f32.mrb[0].mxu0
      %5105 = vmatprep.mubr.f32.mxu0 0.0
      %5106 = vmatmul.mubr.f32.gmra.mrb[0].mxu0 %v4566
      %v5107 = vpop.f32.mrb[0].mxu0
      %v5108 = vadd.f32 %v4424, %v5107
      %v5109 = vpop.f32.mrb[0].mxu0
      %5110 = vmatprep.mubr.f32.mxu0 0.0
      %5111 = vmatmul.mubr.f32.gmra.mrb[0].mxu0 %v4569
      %v5112 = vpop.f32.mrb[0].mxu0
      %v5113 = vadd.f32 %v4424, %v5112
      %v5114 = vpop.f32.mrb[0].mxu0
      %5115 = vmatprep.mubr.f32.mxu0 0.0
      %5116 = vmatmul.mubr.f32.gmra.mrb[0].mxu0 %v4572
      %v5117 = vpop.f32.mrb[0].mxu0
      %v5118 = vadd.f32 %v4424, %v5117
      %v5119 = vpop.f32.mrb[0].mxu0
      %5120 = vmatprep.mubr.f32.mxu0 0.0
      %5121 = vmatmul.mubr.f32.gmra.mrb[0].mxu0 %v4575
      %v5122 = vpop.f32.mrb[0].mxu0
      %v5123 = vadd.f32 %v4424, %v5122
      %v5124 = vpop.f32.mrb[0].mxu0
      %5125 = vmatprep.mubr.f32.mxu0 0.0
      %5126 = vmatmul.mubr.f32.gmra.mrb[0].mxu0 %v4578
      %v5127 = vpop.f32.mrb[0].mxu0
      %v5128 = vadd.f32 %v4424, %v5127
      %v5129 = vpop.f32.mrb[0].mxu0
      %5130 = vmatprep.mubr.f32.mxu0 0.0
      %5131 = vmatmul.mubr.f32.gmra.mrb[0].mxu0 %v4581
      %v5132 = vpop.f32.mrb[0].mxu0
      %v5133 = vadd.f32 %v4424, %v5132
      %v5134 = vpop.f32.mrb[0].mxu0
      %5135 = vmatprep.mubr.f32.mxu0 0.0
      %5136 = vmatmul.mubr.f32.gmra.mrb[0].mxu0 %v4584
      %v5137 = vpop.f32.mrb[0].mxu0
      %v5138 = vadd.f32 %v4424, %v5137
      %v5139 = vpop.f32.mrb[0].mxu0
      %5140 = vmatprep.mubr.f32.mxu0 0.0
      %5141 = vmatmul.mubr.f32.gmra.mrb[0].mxu0 %v4587
      %v5142 = vpop.f32.mrb[0].mxu0
      %v5143 = vadd.f32 %v4424, %v5142
      %v5144 = vpop.f32.mrb[0].mxu0
      %5145 = vmatprep.mubr.f32.mxu0 0.0
      %5146 = vmatmul.mubr.f32.gmra.mrb[0].mxu0 %v4590
      %v5147 = vpop.f32.mrb[0].mxu0
      %v5148 = vadd.f32 %v4424, %v5147
      %v5149 = vpop.f32.mrb[0].mxu0
      %5150 = vmatprep.mubr.f32.mxu0 0.0
      %5151 = vmatmul.mubr.f32.gmra.mrb[0].mxu0 %v4593
      %v5152 = vpop.f32.mrb[0].mxu0
      %v5153 = vadd.f32 %v4424, %v5152
      %v5154 = vpop.f32.mrb[0].mxu0
      %5155 = vmatprep.mubr.f32.mxu0 0.0
      %5156 = vmatmul.mubr.f32.gmra.mrb[0].mxu0 %v4596
      %v5157 = vpop.f32.mrb[0].mxu0
      %v5158 = vadd.f32 %v4424, %v5157
      %v5159 = vpop.f32.mrb[0].mxu0
      %5160 = vmatprep.mubr.f32.mxu0 0.0
      %5161 = vmatmul.mubr.f32.gmra.mrb[0].mxu0 %v4599
      %v5162 = vpop.f32.mrb[0].mxu0
      %v5163 = vadd.f32 %v4424, %v5162
      %v5164 = vpop.f32.mrb[0].mxu0
      %5165 = vmatprep.mubr.f32.mxu0 0.0
      %5166 = vmatmul.mubr.f32.gmra.mrb[0].mxu0 %v4602
      %v5167 = vpop.f32.mrb[0].mxu0
      %v5168 = vadd.f32 %v4424, %v5167
      %v5169 = vpop.f32.mrb[0].mxu0
      %5170 = vmatprep.mubr.f32.mxu0 0.0
      %5171 = vmatmul.mubr.f32.gmra.mrb[0].mxu0 %v4605
      %v5172 = vpop.f32.mrb[0].mxu0
      %v5173 = vadd.f32 %v4424, %v5172
      %v5174 = vpop.f32.mrb[0].mxu0
      %5175 = vmatprep.mubr.f32.mxu0 0.0
      %5176 = vmatmul.mubr.f32.gmra.mrb[0].mxu0 %v4608
      %v5177 = vpop.f32.mrb[0].mxu0
      %v5178 = vadd.f32 %v4424, %v5177
      %v5179 = vpop.f32.mrb[0].mxu0
      %5180 = vmatprep.mubr.f32.mxu0 0.0
      %5181 = vmatmul.mubr.f32.gmra.mrb[0].mxu0 %v4611
      %v5182 = vpop.f32.mrb[0].mxu0
      %v5183 = vadd.f32 %v4424, %v5182
      %v5184 = vpop.f32.mrb[0].mxu0
      %5185 = vmatprep.mubr.f32.mxu0 0.0
      %5186 = vmatmul.mubr.f32.gmra.mrb[0].mxu0 %v4614
      %v5187 = vpop.f32.mrb[0].mxu0
      %v5188 = vadd.f32 %v4424, %v5187
      %v5189 = vpop.f32.mrb[0].mxu0
      %5190 = vmatprep.mubr.f32.mxu0 0.0
      %5191 = vmatmul.mubr.f32.gmra.mrb[0].mxu0 %v4617
      %v5192 = vpop.f32.mrb[0].mxu0
      %v5193 = vadd.f32 %v4424, %v5192
      %v5194 = vpop.f32.mrb[0].mxu0
      %5195 = vmatprep.mubr.f32.mxu0 0.0
      %5196 = vmatmul.mubr.f32.gmra.mrb[0].mxu0 %v4620
      %v5197 = vpop.f32.mrb[0].mxu0
      %v5198 = vadd.f32 %v4424, %v5197
      %v5199 = vpop.f32.mrb[0].mxu0
      %5200 = vmatprep.mubr.f32.mxu0 0.0
      %5201 = vmatmul.mubr.f32.gmra.mrb[0].mxu0 %v4623
      %v5202 = vpop.f32.mrb[0].mxu0
      %v5203 = vadd.f32 %v4424, %v5202
      %v5204 = vpop.f32.mrb[0].mxu0
      %5205 = vmatprep.mubr.f32.mxu0 0.0
      %5206 = vmatmul.mubr.f32.gmra.mrb[0].mxu0 %v4626
      %v5207 = vpop.f32.mrb[0].mxu0
      %v5208 = vadd.f32 %v4424, %v5207
      %v5209 = vpop.f32.mrb[0].mxu0
      %5210 = vmatprep.mubr.f32.mxu0 0.0
      %5211 = vmatmul.mubr.f32.gmra.mrb[0].mxu0 %v4629
      %v5212 = vpop.f32.mrb[0].mxu0
      %v5213 = vadd.f32 %v4424, %v5212
      %v5214 = vpop.f32.mrb[0].mxu0
      %5215 = vmatprep.mubr.f32.mxu0 0.0
      %5216 = vmatmul.mubr.f32.gmra.mrb[0].mxu0 %v4632
      %v5217 = vpop.f32.mrb[0].mxu0
      %v5218 = vadd.f32 %v4424, %v5217
      %v5219 = vpop.f32.mrb[0].mxu0
      %5220 = vmatprep.mubr.f32.mxu0 0.0
      %5221 = vmatmul.mubr.f32.gmra.mrb[0].mxu0 %v4635
      %v5222 = vpop.f32.mrb[0].mxu0
      %v5223 = vadd.f32 %v4424, %v5222
      %v5224 = vpop.f32.mrb[0].mxu0
      %5225 = vmatprep.mubr.f32.mxu0 0.0
      %5226 = vmatmul.mubr.f32.gmra.mrb[0].mxu0 %v4638
      %v5227 = vpop.f32.mrb[0].mxu0
      %v5228 = vadd.f32 %v4424, %v5227
      %v5229 = vpop.f32.mrb[0].mxu0
      %5230 = vmatprep.mubr.f32.mxu0 0.0
      %5231 = vmatmul.mubr.f32.gmra.mrb[0].mxu0 %v4641
      %v5232 = vpop.f32.mrb[0].mxu0
      %v5233 = vadd.f32 %v4424, %v5232
      %v5234 = vpop.f32.mrb[0].mxu0
      %5235 = vmatprep.mubr.f32.mxu0 0.0
      %5236 = vmatmul.mubr.f32.gmra.mrb[0].mxu0 %v4644
      %v5237 = vpop.f32.mrb[0].mxu0
      %v5238 = vadd.f32 %v4424, %v5237
      %v5239 = vpop.f32.mrb[0].mxu0
      %5240 = vmatprep.mubr.f32.mxu0 0.0
      %5241 = vmatmul.mubr.f32.gmra.mrb[0].mxu0 %v4647
      %v5242 = vpop.f32.mrb[0].mxu0
      %v5243 = vadd.f32 %v4424, %v5242
      %v5244 = vpop.f32.mrb[0].mxu0
      %5245 = vmatprep.mubr.f32.mxu0 0.0
      %5246 = vmatmul.mubr.f32.gmra.mrb[0].mxu0 %v4650
      %v5247 = vpop.f32.mrb[0].mxu0
      %v5248 = vadd.f32 %v4424, %v5247
      %v5249 = vpop.f32.mrb[0].mxu0
      %5250 = vmatprep.mubr.f32.mxu0 0.0
      %5251 = vmatmul.mubr.f32.gmra.mrb[0].mxu0 %v4653
      %v5252 = vpop.f32.mrb[0].mxu0
      %v5253 = vadd.f32 %v4424, %v5252
      %v5254 = vpop.f32.mrb[0].mxu0
      %5255 = vmatprep.mubr.f32.mxu0 0.0
      %5256 = vmatmul.mubr.f32.gmra.mrb[0].mxu0 %v4656
      %v5257 = vpop.f32.mrb[0].mxu0
      %v5258 = vadd.f32 %v4424, %v5257
      %v5259 = vpop.f32.mrb[0].mxu0
      %5260 = vmatprep.mubr.f32.mxu0 0.0
      %5261 = vmatmul.mubr.f32.gmra.mrb[0].mxu0 %v4659
      %v5262 = vpop.f32.mrb[0].mxu0
      %v5263 = vadd.f32 %v4424, %v5262
      %v5264 = vpop.f32.mrb[0].mxu0
      %5265 = vmatprep.mubr.f32.mxu0 0.0
      %5266 = vmatmul.mubr.f32.gmra.mrb[0].mxu0 %v4662
      %v5267 = vpop.f32.mrb[0].mxu0
      %v5268 = vadd.f32 %v4424, %v5267
      %v5269 = vpop.f32.mrb[0].mxu0
      %5270 = vmatprep.mubr.f32.mxu0 0.0
      %5271 = vmatmul.mubr.f32.gmra.mrb[0].mxu0 %v4665
      %v5272 = vpop.f32.mrb[0].mxu0
      %v5273 = vadd.f32 %v4424, %v5272
      %v5274 = vpop.f32.mrb[0].mxu0
      %5275 = vmatprep.mubr.f32.mxu0 0.0
      %5276 = vmatmul.mubr.f32.gmra.mrb[0].mxu0 %v4668
      %v5277 = vpop.f32.mrb[0].mxu0
      %v5278 = vadd.f32 %v4424, %v5277
      %v5279 = vpop.f32.mrb[0].mxu0
      %5280 = vmatprep.mubr.f32.mxu0 0.0
      %5281 = vmatmul.mubr.f32.gmra.mrb[0].mxu0 %v4671
      %v5282 = vpop.f32.mrb[0].mxu0
      %v5283 = vadd.f32 %v4424, %v5282
      %v5284 = vpop.f32.mrb[0].mxu0
      %5285 = vmatprep.mubr.f32.mxu0 0.0
      %5286 = vmatmul.mubr.f32.gmra.mrb[0].mxu0 %v4674
      %v5287 = vpop.f32.mrb[0].mxu0
      %v5288 = vadd.f32 %v4424, %v5287
      %v5289 = vpop.f32.mrb[0].mxu0
      %5290 = vmatprep.mubr.f32.mxu0 0.0
      %5291 = vmatmul.mubr.f32.gmra.mrb[0].mxu0 %v4677
      %v5292 = vpop.f32.mrb[0].mxu0
      %v5293 = vadd.f32 %v4424, %v5292
      %v5294 = vpop.f32.mrb[0].mxu0
      %5295 = vmatprep.mubr.f32.mxu0 0.0
      %5296 = vmatmul.mubr.f32.gmra.mrb[0].mxu0 %v4680
      %v5297 = vpop.f32.mrb[0].mxu0
      %v5298 = vadd.f32 %v4424, %v5297
      %v5299 = vpop.f32.mrb[0].mxu0
      %5300 = vmatprep.mubr.f32.mxu0 0.0
      %5301 = vmatmul.mubr.f32.gmra.mrb[0].mxu0 %v4683
      %v5302 = vpop.f32.mrb[0].mxu0
      %v5303 = vadd.f32 %v4424, %v5302
      %v5304 = vpop.f32.mrb[0].mxu0
      %5305 = vmatprep.mubr.f32.mxu0 0.0
      %5306 = vmatmul.mubr.f32.gmra.mrb[0].mxu0 %v4686
      %v5307 = vpop.f32.mrb[0].mxu0
      %v5308 = vadd.f32 %v4424, %v5307
      %v5309 = vpop.f32.mrb[0].mxu0
      %5310 = vmatprep.mubr.f32.mxu0 0.0
      %5311 = vmatmul.mubr.f32.gmra.mrb[0].mxu0 %v4689
      %v5312 = vpop.f32.mrb[0].mxu0
      %v5313 = vadd.f32 %v4424, %v5312
      %v5314 = vpop.f32.mrb[0].mxu0
      %5315 = vmatprep.mubr.f32.mxu0 0.0
      %5316 = vmatmul.mubr.f32.gmra.mrb[0].mxu0 %v4692
      %v5317 = vpop.f32.mrb[0].mxu0
      %v5318 = vadd.f32 %v4424, %v5317
      %v5319 = vpop.f32.mrb[0].mxu0
      %5320 = vmatprep.mubr.f32.mxu0 0.0
      %5321 = vmatmul.mubr.f32.gmra.mrb[0].mxu0 %v4695
      %v5322 = vpop.f32.mrb[0].mxu0
      %v5323 = vadd.f32 %v4424, %v5322
      %v5324 = vpop.f32.mrb[0].mxu0
      %5325 = vmatprep.mubr.f32.mxu0 0.0
      %5326 = vmatmul.mubr.f32.gmra.mrb[0].mxu0 %v4698
      %v5327 = vpop.f32.mrb[0].mxu0
      %v5328 = vadd.f32 %v4424, %v5327
      %v5329 = vpop.f32.mrb[0].mxu0
      %5330 = vmatprep.mubr.f32.mxu0 0.0
      %5331 = vmatmul.mubr.f32.gmra.mrb[0].mxu0 %v4701
      %v5332 = vpop.f32.mrb[0].mxu0
      %v5333 = vadd.f32 %v4424, %v5332
      %v5334 = vpop.f32.mrb[0].mxu0
      %5335 = vmatprep.mubr.f32.mxu0 0.0
      %5336 = vmatmul.mubr.f32.gmra.mrb[0].mxu0 %v4704
      %v5337 = vpop.f32.mrb[0].mxu0
      %v5338 = vadd.f32 %v4424, %v5337
      %v5339 = vpop.f32.mrb[0].mxu0
      %5340 = vmatprep.mubr.f32.mxu0 0.0
      %5341 = vmatmul.mubr.f32.gmra.mrb[0].mxu0 %v4707
      %v5342 = vpop.f32.mrb[0].mxu0
      %v5343 = vadd.f32 %v4424, %v5342
      %v5344 = vpop.f32.mrb[0].mxu0
      %5345 = vmatprep.mubr.f32.mxu0 0.0
      %5346 = vmatmul.mubr.f32.gmra.mrb[0].mxu0 %v4710
      %v5347 = vpop.f32.mrb[0].mxu0
      %v5348 = vadd.f32 %v4424, %v5347
      %v5349 = vpop.f32.mrb[0].mxu0
      %5350 = vmatprep.mubr.f32.mxu0 0.0
      %5351 = vmatmul.mubr.f32.gmra.mrb[0].mxu0 %v4713
      %v5352 = vpop.f32.mrb[0].mxu0
      %v5353 = vadd.f32 %v4424, %v5352
      %v5354 = vpop.f32.mrb[0].mxu0
      %5355 = vmatprep.mubr.f32.mxu0 0.0
      %5356 = vmatmul.mubr.f32.gmra.mrb[0].mxu0 %v4716
      %v5357 = vpop.f32.mrb[0].mxu0
      %v5358 = vadd.f32 %v4424, %v5357
      %v5359 = vpop.f32.mrb[0].mxu0
      %5360 = vmatprep.mubr.f32.mxu0 0.0
      %5361 = vmatmul.mubr.f32.gmra.mrb[0].mxu0 %v4719
      %v5362 = vpop.f32.mrb[0].mxu0
      %v5363 = vadd.f32 %v4424, %v5362
      %v5364 = vpop.f32.mrb[0].mxu0
      %5365 = vmatprep.mubr.f32.mxu0 0.0
      %5366 = vmatmul.mubr.f32.gmra.mrb[0].mxu0 %v4722
      %v5367 = vpop.f32.mrb[0].mxu0
      %v5368 = vadd.f32 %v4424, %v5367
      %v5369 = vpop.f32.mrb[0].mxu0
      %5370 = vmatprep.mubr.f32.mxu0 0.0
      %5371 = vmatmul.mubr.f32.gmra.mrb[0].mxu0 %v4725
      %v5372 = vpop.f32.mrb[0].mxu0
      %v5373 = vadd.f32 %v4424, %v5372
      %v5374 = vpop.f32.mrb[0].mxu0
      %5375 = vmatprep.mubr.f32.mxu0 0.0
      %5376 = vmatmul.mubr.f32.gmra.mrb[0].mxu0 %v4728
      %v5377 = vpop.f32.mrb[0].mxu0
      %v5378 = vadd.f32 %v4424, %v5377
      %v5379 = vpop.f32.mrb[0].mxu0
      %5380 = vmatprep.mubr.f32.mxu0 0.0
      %5381 = vmatmul.mubr.f32.gmra.mrb[0].mxu0 %v4731
      %v5382 = vpop.f32.mrb[0].mxu0
      %v5383 = vadd.f32 %v4424, %v5382
      %v5384 = vpop.f32.mrb[0].mxu0
      %5385 = vmatprep.mubr.f32.mxu0 0.0
      %5386 = vmatmul.mubr.f32.gmra.mrb[0].mxu0 %v4734
      %v5387 = vpop.f32.mrb[0].mxu0
      %v5388 = vadd.f32 %v4424, %v5387
      %v5389 = vpop.f32.mrb[0].mxu0
      %5390 = vmatprep.mubr.f32.mxu0 0.0
      %5391 = vmatmul.mubr.f32.gmra.mrb[0].mxu0 %v4737
      %v5392 = vpop.f32.mrb[0].mxu0
      %v5393 = vadd.f32 %v4424, %v5392
      %v5394 = vpop.f32.mrb[0].mxu0
      %5395 = vmatprep.mubr.f32.mxu0 0.0
      %5396 = vmatmul.mubr.f32.gmra.mrb[0].mxu0 %v4740
      %v5397 = vpop.f32.mrb[0].mxu0
      %v5398 = vadd.f32 %v4424, %v5397
      %v5399 = vpop.f32.mrb[0].mxu0
      %5400 = vmatprep.mubr.f32.mxu0 0.0
      %5401 = vmatmul.mubr.f32.gmra.mrb[0].mxu0 %v4743
      %v5402 = vpop.f32.mrb[0].mxu0
      %v5403 = vadd.f32 %v4424, %v5402
      %v5404 = vpop.f32.mrb[0].mxu0
      %5405 = vmatprep.mubr.f32.mxu0 0.0
      %5406 = vmatmul.mubr.f32.gmra.mrb[0].mxu0 %v4746
      %v5407 = vpop.f32.mrb[0].mxu0
      %v5408 = vadd.f32 %v4424, %v5407
      %v5409 = vpop.f32.mrb[0].mxu0
      %5410 = vmatprep.mubr.f32.mxu0 0.0
      %5411 = vmatmul.mubr.f32.gmra.mrb[0].mxu0 %v4749
      %v5412 = vpop.f32.mrb[0].mxu0
      %v5413 = vadd.f32 %v4424, %v5412
      %v5414 = vpop.f32.mrb[0].mxu0
      %5415 = vmatprep.mubr.f32.mxu0 0.0
      %5416 = vmatmul.mubr.f32.gmra.mrb[0].mxu0 %v4752
      %v5417 = vpop.f32.mrb[0].mxu0
      %v5418 = vadd.f32 %v4424, %v5417
      %v5419 = vpop.f32.mrb[0].mxu0
      %5420 = vmatprep.mubr.f32.mxu0 0.0
      %5421 = vmatmul.mubr.f32.gmra.mrb[0].mxu0 %v4755
      %v5422 = vpop.f32.mrb[0].mxu0
      %v5423 = vadd.f32 %v4424, %v5422
      %v5424 = vpop.f32.mrb[0].mxu0
      %5425 = vmatprep.mubr.f32.mxu0 0.0
      %5426 = vmatmul.mubr.f32.gmra.mrb[0].mxu0 %v4758
      %v5427 = vpop.f32.mrb[0].mxu0
      %v5428 = vadd.f32 %v4424, %v5427
      %v5429 = vpop.f32.mrb[0].mxu0
      %5430 = vmatprep.mubr.f32.mxu0 0.0
      %5431 = vmatmul.mubr.f32.gmra.mrb[0].mxu0 %v4761
      %v5432 = vpop.f32.mrb[0].mxu0
      %v5433 = vadd.f32 %v4424, %v5432
      %v5434 = vpop.f32.mrb[0].mxu0
      %5435 = vmatprep.mubr.f32.mxu0 0.0
      %5436 = vmatmul.mubr.f32.gmra.mrb[0].mxu0 %v4764
      %v5437 = vpop.f32.mrb[0].mxu0
      %v5438 = vadd.f32 %v4424, %v5437
      %v5439 = vpop.f32.mrb[0].mxu0
      %5440 = vmatprep.mubr.f32.mxu0 0.0
      %5441 = vmatmul.mubr.f32.gmra.mrb[0].mxu0 %v4767
      %v5442 = vpop.f32.mrb[0].mxu0
      %v5443 = vadd.f32 %v4424, %v5442
      %v5444 = vpop.f32.mrb[0].mxu0
      %5445 = vmatprep.mubr.f32.mxu0 0.0
      %5446 = vmatmul.mubr.f32.gmra.mrb[0].mxu0 %v4770
      %v5447 = vpop.f32.mrb[0].mxu0
      %v5448 = vadd.f32 %v4424, %v5447
      %v5449 = vpop.f32.mrb[0].mxu0
      %5450 = vmatprep.mubr.f32.mxu0 0.0
      %5451 = vmatmul.mubr.f32.gmra.mrb[0].mxu0 %v4773
      %v5452 = vpop.f32.mrb[0].mxu0
      %v5453 = vadd.f32 %v4424, %v5452
      %v5454 = vpop.f32.mrb[0].mxu0
      %5455 = vmatprep.mubr.f32.mxu0 0.0
      %5456 = vmatmul.mubr.f32.gmra.mrb[0].mxu0 %v4776
      %v5457 = vpop.f32.mrb[0].mxu0
      %v5458 = vadd.f32 %v4424, %v5457
      %v5459 = vpop.f32.mrb[0].mxu0
      %5460 = vmatprep.mubr.f32.mxu0 0.0
      %5461 = vmatmul.mubr.f32.gmra.mrb[0].mxu0 %v4779
      %v5462 = vpop.f32.mrb[0].mxu0
      %v5463 = vadd.f32 %v4424, %v5462
      %v5464 = vpop.f32.mrb[0].mxu0
      %5465 = vmatprep.mubr.f32.mxu0 0.0
      %5466 = vmatmul.mubr.f32.gmra.mrb[0].mxu0 %v4782
      %v5467 = vpop.f32.mrb[0].mxu0
      %v5468 = vadd.f32 %v4424, %v5467
      %v5469 = vpop.f32.mrb[0].mxu0
      %5470 = vmatprep.mubr.f32.mxu0 0.0
      %5471 = vmatmul.mubr.f32.gmra.mrb[0].mxu0 %v4785
      %v5472 = vpop.f32.mrb[0].mxu0
      %v5473 = vadd.f32 %v4424, %v5472
      %v5474 = vpop.f32.mrb[0].mxu0
      %5475 = vmatprep.mubr.f32.mxu0 0.0
      %5476 = vmatmul.mubr.f32.gmra.mrb[0].mxu0 %v4788
      %v5477 = vpop.f32.mrb[0].mxu0
      %v5478 = vadd.f32 %v4424, %v5477
      %v5479 = vpop.f32.mrb[0].mxu0
      %5480 = vmatprep.mubr.f32.mxu0 0.0
      %5481 = vmatmul.mubr.f32.gmra.mrb[0].mxu0 %v4791
      %v5482 = vpop.f32.mrb[0].mxu0
      %v5483 = vadd.f32 %v4424, %v5482
      %v5484 = vpop.f32.mrb[0].mxu0
      %5485 = vmatprep.mubr.f32.mxu0 0.0
      %5486 = vmatmul.mubr.f32.gmra.mrb[0].mxu0 %v4794
      %v5487 = vpop.f32.mrb[0].mxu0
      %v5488 = vadd.f32 %v4424, %v5487
      %v5489 = vpop.f32.mrb[0].mxu0
      %5490 = vmatprep.mubr.f32.mxu0 0.0
      %5491 = vmatmul.mubr.f32.gmra.mrb[0].mxu0 %v4797
      %v5492 = vpop.f32.mrb[0].mxu0
      %v5493 = vadd.f32 %v4424, %v5492
      %v5494 = vpop.f32.mrb[0].mxu0
      %5495 = vmatprep.mubr.f32.mxu0 0.0
      %5496 = vmatmul.mubr.f32.gmra.mrb[0].mxu0 %v4800
      %v5497 = vpop.f32.mrb[0].mxu0
      %v5498 = vadd.f32 %v4424, %v5497
      %v5499 = vpop.f32.mrb[0].mxu0
      %5500 = vmatprep.mubr.f32.mxu0 0.0
      %5501 = vmatmul.mubr.f32.gmra.mrb[0].mxu0 %v4803
      %v5502 = vpop.f32.mrb[0].mxu0
      %v5503 = vadd.f32 %v4424, %v5502
      %v5504 = vpop.f32.mrb[0].mxu0
      %5505 = vmatprep.mubr.f32.mxu0 0.0
      %5506 = vmatmul.mubr.f32.gmra.mrb[0].mxu0 %v4806
      %v5507 = vpop.f32.mrb[0].mxu0
      %v5508 = vadd.f32 %v4424, %v5507
      %v5509 = vpop.f32.mrb[0].mxu0
      %5510 = vmatprep.mubr.f32.mxu0 0.0
      %5511 = vmatmul.mubr.f32.gmra.mrb[0].mxu0 %v4809
      %v5512 = vpop.f32.mrb[0].mxu0
      %v5513 = vadd.f32 %v4424, %v5512
      %v5514 = vpop.f32.mrb[0].mxu0
      %5515 = vdwg.mxu0
      %vm5516 = vcmp.gt.f32.partialorder %v4878, 0.0
      %vm5517 = vcmp.gt.f32.partialorder %v4883, 0.0
      %vm5518 = vcmp.gt.f32.partialorder %v4888, 0.0
      %vm5519 = vcmp.gt.f32.partialorder %v4893, 0.0
      %vm5520 = vcmp.gt.f32.partialorder %v4898, 0.0
      %vm5521 = vcmp.gt.f32.partialorder %v4903, 0.0
      %vm5522 = vcmp.gt.f32.partialorder %v4908, 0.0
      %vm5523 = vcmp.gt.f32.partialorder %v4913, 0.0
      %vm5524 = vcmp.gt.f32.partialorder %v4918, 0.0
      %vm5525 = vcmp.gt.f32.partialorder %v4923, 0.0
      %vm5526 = vcmp.gt.f32.partialorder %v4928, 0.0
      %vm5527 = vcmp.gt.f32.partialorder %v4933, 0.0
      %vm5528 = vcmp.gt.f32.partialorder %v4938, 0.0
      %vm5529 = vcmp.gt.f32.partialorder %v4943, 0.0
      %vm5530 = vcmp.gt.f32.partialorder %v4948, 0.0
      %vm5531 = vcmp.gt.f32.partialorder %v4953, 0.0
      %vm5532 = vcmp.gt.f32.partialorder %v4958, 0.0
      %vm5533 = vcmp.gt.f32.partialorder %v4963, 0.0
      %vm5534 = vcmp.gt.f32.partialorder %v4968, 0.0
      %vm5535 = vcmp.gt.f32.partialorder %v4973, 0.0
      %vm5536 = vcmp.gt.f32.partialorder %v4978, 0.0
      %vm5537 = vcmp.gt.f32.partialorder %v4983, 0.0
      %vm5538 = vcmp.gt.f32.partialorder %v4988, 0.0
      %vm5539 = vcmp.gt.f32.partialorder %v4993, 0.0
      %vm5540 = vcmp.gt.f32.partialorder %v4998, 0.0
      %vm5541 = vcmp.gt.f32.partialorder %v5003, 0.0
      %vm5542 = vcmp.gt.f32.partialorder %v5008, 0.0
      %vm5543 = vcmp.gt.f32.partialorder %v5013, 0.0
      %vm5544 = vcmp.gt.f32.partialorder %v5018, 0.0
      %vm5545 = vcmp.gt.f32.partialorder %v5023, 0.0
      %vm5546 = vcmp.gt.f32.partialorder %v5028, 0.0
      %vm5547 = vcmp.gt.f32.partialorder %v5033, 0.0
      %vm5548 = vcmp.gt.f32.partialorder %v5038, 0.0
      %vm5549 = vcmp.gt.f32.partialorder %v5043, 0.0
      %vm5550 = vcmp.gt.f32.partialorder %v5048, 0.0
      %vm5551 = vcmp.gt.f32.partialorder %v5053, 0.0
      %vm5552 = vcmp.gt.f32.partialorder %v5058, 0.0
      %vm5553 = vcmp.gt.f32.partialorder %v5063, 0.0
      %vm5554 = vcmp.gt.f32.partialorder %v5068, 0.0
      %vm5555 = vcmp.gt.f32.partialorder %v5073, 0.0
      %vm5556 = vcmp.gt.f32.partialorder %v5078, 0.0
      %vm5557 = vcmp.gt.f32.partialorder %v5083, 0.0
      %vm5558 = vcmp.gt.f32.partialorder %v5088, 0.0
      %vm5559 = vcmp.gt.f32.partialorder %v5093, 0.0
      %vm5560 = vcmp.gt.f32.partialorder %v5098, 0.0
      %vm5561 = vcmp.gt.f32.partialorder %v5103, 0.0
      %vm5562 = vcmp.gt.f32.partialorder %v5108, 0.0
      %vm5563 = vcmp.gt.f32.partialorder %v5113, 0.0
      %vm5564 = vcmp.gt.f32.partialorder %v5118, 0.0
      %vm5565 = vcmp.gt.f32.partialorder %v5123, 0.0
      %vm5566 = vcmp.gt.f32.partialorder %v5128, 0.0
      %vm5567 = vcmp.gt.f32.partialorder %v5133, 0.0
      %vm5568 = vcmp.gt.f32.partialorder %v5138, 0.0
      %vm5569 = vcmp.gt.f32.partialorder %v5143, 0.0
      %vm5570 = vcmp.gt.f32.partialorder %v5148, 0.0
      %vm5571 = vcmp.gt.f32.partialorder %v5153, 0.0
      %vm5572 = vcmp.gt.f32.partialorder %v5158, 0.0
      %vm5573 = vcmp.gt.f32.partialorder %v5163, 0.0
      %vm5574 = vcmp.gt.f32.partialorder %v5168, 0.0
      %vm5575 = vcmp.gt.f32.partialorder %v5173, 0.0
      %vm5576 = vcmp.gt.f32.partialorder %v5178, 0.0
      %vm5577 = vcmp.gt.f32.partialorder %v5183, 0.0
      %vm5578 = vcmp.gt.f32.partialorder %v5188, 0.0
      %vm5579 = vcmp.gt.f32.partialorder %v5193, 0.0
      %vm5580 = vcmp.gt.f32.partialorder %v5198, 0.0
      %vm5581 = vcmp.gt.f32.partialorder %v5203, 0.0
      %vm5582 = vcmp.gt.f32.partialorder %v5208, 0.0
      %vm5583 = vcmp.gt.f32.partialorder %v5213, 0.0
      %vm5584 = vcmp.gt.f32.partialorder %v5218, 0.0
      %vm5585 = vcmp.gt.f32.partialorder %v5223, 0.0
      %vm5586 = vcmp.gt.f32.partialorder %v5228, 0.0
      %vm5587 = vcmp.gt.f32.partialorder %v5233, 0.0
      %vm5588 = vcmp.gt.f32.partialorder %v5238, 0.0
      %vm5589 = vcmp.gt.f32.partialorder %v5243, 0.0
      %vm5590 = vcmp.gt.f32.partialorder %v5248, 0.0
      %vm5591 = vcmp.gt.f32.partialorder %v5253, 0.0
      %vm5592 = vcmp.gt.f32.partialorder %v5258, 0.0
      %vm5593 = vcmp.gt.f32.partialorder %v5263, 0.0
      %vm5594 = vcmp.gt.f32.partialorder %v5268, 0.0
      %vm5595 = vcmp.gt.f32.partialorder %v5273, 0.0
      %vm5596 = vcmp.gt.f32.partialorder %v5278, 0.0
      %vm5597 = vcmp.gt.f32.partialorder %v5283, 0.0
      %vm5598 = vcmp.gt.f32.partialorder %v5288, 0.0
      %vm5599 = vcmp.gt.f32.partialorder %v5293, 0.0
      %vm5600 = vcmp.gt.f32.partialorder %v5298, 0.0
      %vm5601 = vcmp.gt.f32.partialorder %v5303, 0.0
      %vm5602 = vcmp.gt.f32.partialorder %v5308, 0.0
      %vm5603 = vcmp.gt.f32.partialorder %v5313, 0.0
      %vm5604 = vcmp.gt.f32.partialorder %v5318, 0.0
      %vm5605 = vcmp.gt.f32.partialorder %v5323, 0.0
      %vm5606 = vcmp.gt.f32.partialorder %v5328, 0.0
      %vm5607 = vcmp.gt.f32.partialorder %v5333, 0.0
      %vm5608 = vcmp.gt.f32.partialorder %v5338, 0.0
      %vm5609 = vcmp.gt.f32.partialorder %v5343, 0.0
      %vm5610 = vcmp.gt.f32.partialorder %v5348, 0.0
      %vm5611 = vcmp.gt.f32.partialorder %v5353, 0.0
      %vm5612 = vcmp.gt.f32.partialorder %v5358, 0.0
      %vm5613 = vcmp.gt.f32.partialorder %v5363, 0.0
      %vm5614 = vcmp.gt.f32.partialorder %v5368, 0.0
      %vm5615 = vcmp.gt.f32.partialorder %v5373, 0.0
      %vm5616 = vcmp.gt.f32.partialorder %v5378, 0.0
      %vm5617 = vcmp.gt.f32.partialorder %v5383, 0.0
      %vm5618 = vcmp.gt.f32.partialorder %v5388, 0.0
      %vm5619 = vcmp.gt.f32.partialorder %v5393, 0.0
      %vm5620 = vcmp.gt.f32.partialorder %v5398, 0.0
      %vm5621 = vcmp.gt.f32.partialorder %v5403, 0.0
      %vm5622 = vcmp.gt.f32.partialorder %v5408, 0.0
      %vm5623 = vcmp.gt.f32.partialorder %v5413, 0.0
      %vm5624 = vcmp.gt.f32.partialorder %v5418, 0.0
      %vm5625 = vcmp.gt.f32.partialorder %v5423, 0.0
      %vm5626 = vcmp.gt.f32.partialorder %v5428, 0.0
      %vm5627 = vcmp.gt.f32.partialorder %v5433, 0.0
      %vm5628 = vcmp.gt.f32.partialorder %v5438, 0.0
      %vm5629 = vcmp.gt.f32.partialorder %v5443, 0.0
      %vm5630 = vcmp.gt.f32.partialorder %v5448, 0.0
      %vm5631 = vcmp.gt.f32.partialorder %v5453, 0.0
      %vm5632 = vcmp.gt.f32.partialorder %v5458, 0.0
      %vm5633 = vcmp.gt.f32.partialorder %v5463, 0.0
      %vm5634 = vcmp.gt.f32.partialorder %v5468, 0.0
      %vm5635 = vcmp.gt.f32.partialorder %v5473, 0.0
      %vm5636 = vcmp.gt.f32.partialorder %v5478, 0.0
      %vm5637 = vcmp.gt.f32.partialorder %v5483, 0.0
      %vm5638 = vcmp.gt.f32.partialorder %v5488, 0.0
      %vm5639 = vcmp.gt.f32.partialorder %v5493, 0.0
      %vm5640 = vcmp.gt.f32.partialorder %v5498, 0.0
      %vm5641 = vcmp.gt.f32.partialorder %v5503, 0.0
      %vm5642 = vcmp.gt.f32.partialorder %v5508, 0.0
      %vm5643 = vcmp.gt.f32.partialorder %v5513, 0.0
      %v5644 = vmul.f32 %v4878, 0.01
      %v5645 = vmul.f32 %v4883, 0.01
      %v5646 = vmul.f32 %v4888, 0.01
      %v5647 = vmul.f32 %v4893, 0.01
      %v5648 = vmul.f32 %v4898, 0.01
      %v5649 = vmul.f32 %v4903, 0.01
      %v5650 = vmul.f32 %v4908, 0.01
      %v5651 = vmul.f32 %v4913, 0.01
      %v5652 = vmul.f32 %v4918, 0.01
      %v5653 = vmul.f32 %v4923, 0.01
      %v5654 = vmul.f32 %v4928, 0.01
      %v5655 = vmul.f32 %v4933, 0.01
      %v5656 = vmul.f32 %v4938, 0.01
      %v5657 = vmul.f32 %v4943, 0.01
      %v5658 = vmul.f32 %v4948, 0.01
      %v5659 = vmul.f32 %v4953, 0.01
      %v5660 = vmul.f32 %v4958, 0.01
      %v5661 = vmul.f32 %v4963, 0.01
      %v5662 = vmul.f32 %v4968, 0.01
      %v5663 = vmul.f32 %v4973, 0.01
      %v5664 = vmul.f32 %v4978, 0.01
      %v5665 = vmul.f32 %v4983, 0.01
      %v5666 = vmul.f32 %v4988, 0.01
      %v5667 = vmul.f32 %v4993, 0.01
      %v5668 = vmul.f32 %v4998, 0.01
      %v5669 = vmul.f32 %v5003, 0.01
      %v5670 = vmul.f32 %v5008, 0.01
      %v5671 = vmul.f32 %v5013, 0.01
      %v5672 = vmul.f32 %v5018, 0.01
      %v5673 = vmul.f32 %v5023, 0.01
      %v5674 = vmul.f32 %v5028, 0.01
      %v5675 = vmul.f32 %v5033, 0.01
      %v5676 = vmul.f32 %v5038, 0.01
      %v5677 = vmul.f32 %v5043, 0.01
      %v5678 = vmul.f32 %v5048, 0.01
      %v5679 = vmul.f32 %v5053, 0.01
      %v5680 = vmul.f32 %v5058, 0.01
      %v5681 = vmul.f32 %v5063, 0.01
      %v5682 = vmul.f32 %v5068, 0.01
      %v5683 = vmul.f32 %v5073, 0.01
      %v5684 = vmul.f32 %v5078, 0.01
      %v5685 = vmul.f32 %v5083, 0.01
      %v5686 = vmul.f32 %v5088, 0.01
      %v5687 = vmul.f32 %v5093, 0.01
      %v5688 = vmul.f32 %v5098, 0.01
      %v5689 = vmul.f32 %v5103, 0.01
      %v5690 = vmul.f32 %v5108, 0.01
      %v5691 = vmul.f32 %v5113, 0.01
      %v5692 = vmul.f32 %v5118, 0.01
      %v5693 = vmul.f32 %v5123, 0.01
      %v5694 = vmul.f32 %v5128, 0.01
      %v5695 = vmul.f32 %v5133, 0.01
      %v5696 = vmul.f32 %v5138, 0.01
      %v5697 = vmul.f32 %v5143, 0.01
      %v5698 = vmul.f32 %v5148, 0.01
      %v5699 = vmul.f32 %v5153, 0.01
      %v5700 = vmul.f32 %v5158, 0.01
      %v5701 = vmul.f32 %v5163, 0.01
      %v5702 = vmul.f32 %v5168, 0.01
      %v5703 = vmul.f32 %v5173, 0.01
      %v5704 = vmul.f32 %v5178, 0.01
      %v5705 = vmul.f32 %v5183, 0.01
      %v5706 = vmul.f32 %v5188, 0.01
      %v5707 = vmul.f32 %v5193, 0.01
      %v5708 = vmul.f32 %v5198, 0.01
      %v5709 = vmul.f32 %v5203, 0.01
      %v5710 = vmul.f32 %v5208, 0.01
      %v5711 = vmul.f32 %v5213, 0.01
      %v5712 = vmul.f32 %v5218, 0.01
      %v5713 = vmul.f32 %v5223, 0.01
      %v5714 = vmul.f32 %v5228, 0.01
      %v5715 = vmul.f32 %v5233, 0.01
      %v5716 = vmul.f32 %v5238, 0.01
      %v5717 = vmul.f32 %v5243, 0.01
      %v5718 = vmul.f32 %v5248, 0.01
      %v5719 = vmul.f32 %v5253, 0.01
      %v5720 = vmul.f32 %v5258, 0.01
      %v5721 = vmul.f32 %v5263, 0.01
      %v5722 = vmul.f32 %v5268, 0.01
      %v5723 = vmul.f32 %v5273, 0.01
      %v5724 = vmul.f32 %v5278, 0.01
      %v5725 = vmul.f32 %v5283, 0.01
      %v5726 = vmul.f32 %v5288, 0.01
      %v5727 = vmul.f32 %v5293, 0.01
      %v5728 = vmul.f32 %v5298, 0.01
      %v5729 = vmul.f32 %v5303, 0.01
      %v5730 = vmul.f32 %v5308, 0.01
      %v5731 = vmul.f32 %v5313, 0.01
      %v5732 = vmul.f32 %v5318, 0.01
      %v5733 = vmul.f32 %v5323, 0.01
      %v5734 = vmul.f32 %v5328, 0.01
      %v5735 = vmul.f32 %v5333, 0.01
      %v5736 = vmul.f32 %v5338, 0.01
      %v5737 = vmul.f32 %v5343, 0.01
      %v5738 = vmul.f32 %v5348, 0.01
      %v5739 = vmul.f32 %v5353, 0.01
      %v5740 = vmul.f32 %v5358, 0.01
      %v5741 = vmul.f32 %v5363, 0.01
      %v5742 = vmul.f32 %v5368, 0.01
      %v5743 = vmul.f32 %v5373, 0.01
      %v5744 = vmul.f32 %v5378, 0.01
      %v5745 = vmul.f32 %v5383, 0.01
      %v5746 = vmul.f32 %v5388, 0.01
      %v5747 = vmul.f32 %v5393, 0.01
      %v5748 = vmul.f32 %v5398, 0.01
      %v5749 = vmul.f32 %v5403, 0.01
      %v5750 = vmul.f32 %v5408, 0.01
      %v5751 = vmul.f32 %v5413, 0.01
      %v5752 = vmul.f32 %v5418, 0.01
      %v5753 = vmul.f32 %v5423, 0.01
      %v5754 = vmul.f32 %v5428, 0.01
      %v5755 = vmul.f32 %v5433, 0.01
      %v5756 = vmul.f32 %v5438, 0.01
      %v5757 = vmul.f32 %v5443, 0.01
      %v5758 = vmul.f32 %v5448, 0.01
      %v5759 = vmul.f32 %v5453, 0.01
      %v5760 = vmul.f32 %v5458, 0.01
      %v5761 = vmul.f32 %v5463, 0.01
      %v5762 = vmul.f32 %v5468, 0.01
      %v5763 = vmul.f32 %v5473, 0.01
      %v5764 = vmul.f32 %v5478, 0.01
      %v5765 = vmul.f32 %v5483, 0.01
      %v5766 = vmul.f32 %v5488, 0.01
      %v5767 = vmul.f32 %v5493, 0.01
      %v5768 = vmul.f32 %v5498, 0.01
      %v5769 = vmul.f32 %v5503, 0.01
      %v5770 = vmul.f32 %v5508, 0.01
      %v5771 = vmul.f32 %v5513, 0.01
      %v5772 = vsel %vm5516, %v4878, %v5644
      %v5773 = vsel %vm5517, %v4883, %v5645
      %v5774 = vsel %vm5518, %v4888, %v5646
      %v5775 = vsel %vm5519, %v4893, %v5647
      %v5776 = vsel %vm5520, %v4898, %v5648
      %v5777 = vsel %vm5521, %v4903, %v5649
      %v5778 = vsel %vm5522, %v4908, %v5650
      %v5779 = vsel %vm5523, %v4913, %v5651
      %v5780 = vsel %vm5524, %v4918, %v5652
      %v5781 = vsel %vm5525, %v4923, %v5653
      %v5782 = vsel %vm5526, %v4928, %v5654
      %v5783 = vsel %vm5527, %v4933, %v5655
      %v5784 = vsel %vm5528, %v4938, %v5656
      %v5785 = vsel %vm5529, %v4943, %v5657
      %v5786 = vsel %vm5530, %v4948, %v5658
      %v5787 = vsel %vm5531, %v4953, %v5659
      %v5788 = vsel %vm5532, %v4958, %v5660
      %v5789 = vsel %vm5533, %v4963, %v5661
      %v5790 = vsel %vm5534, %v4968, %v5662
      %v5791 = vsel %vm5535, %v4973, %v5663
      %v5792 = vsel %vm5536, %v4978, %v5664
      %v5793 = vsel %vm5537, %v4983, %v5665
      %v5794 = vsel %vm5538, %v4988, %v5666
      %v5795 = vsel %vm5539, %v4993, %v5667
      %v5796 = vsel %vm5540, %v4998, %v5668
      %v5797 = vsel %vm5541, %v5003, %v5669
      %v5798 = vsel %vm5542, %v5008, %v5670
      %v5799 = vsel %vm5543, %v5013, %v5671
      %v5800 = vsel %vm5544, %v5018, %v5672
      %v5801 = vsel %vm5545, %v5023, %v5673
      %v5802 = vsel %vm5546, %v5028, %v5674
      %v5803 = vsel %vm5547, %v5033, %v5675
      %v5804 = vsel %vm5548, %v5038, %v5676
      %v5805 = vsel %vm5549, %v5043, %v5677
      %v5806 = vsel %vm5550, %v5048, %v5678
      %v5807 = vsel %vm5551, %v5053, %v5679
      %v5808 = vsel %vm5552, %v5058, %v5680
      %v5809 = vsel %vm5553, %v5063, %v5681
      %v5810 = vsel %vm5554, %v5068, %v5682
      %v5811 = vsel %vm5555, %v5073, %v5683
      %v5812 = vsel %vm5556, %v5078, %v5684
      %v5813 = vsel %vm5557, %v5083, %v5685
      %v5814 = vsel %vm5558, %v5088, %v5686
      %v5815 = vsel %vm5559, %v5093, %v5687
      %v5816 = vsel %vm5560, %v5098, %v5688
      %v5817 = vsel %vm5561, %v5103, %v5689
      %v5818 = vsel %vm5562, %v5108, %v5690
      %v5819 = vsel %vm5563, %v5113, %v5691
      %v5820 = vsel %vm5564, %v5118, %v5692
      %v5821 = vsel %vm5565, %v5123, %v5693
      %v5822 = vsel %vm5566, %v5128, %v5694
      %v5823 = vsel %vm5567, %v5133, %v5695
      %v5824 = vsel %vm5568, %v5138, %v5696
      %v5825 = vsel %vm5569, %v5143, %v5697
      %v5826 = vsel %vm5570, %v5148, %v5698
      %v5827 = vsel %vm5571, %v5153, %v5699
      %v5828 = vsel %vm5572, %v5158, %v5700
      %v5829 = vsel %vm5573, %v5163, %v5701
      %v5830 = vsel %vm5574, %v5168, %v5702
      %v5831 = vsel %vm5575, %v5173, %v5703
      %v5832 = vsel %vm5576, %v5178, %v5704
      %v5833 = vsel %vm5577, %v5183, %v5705
      %v5834 = vsel %vm5578, %v5188, %v5706
      %v5835 = vsel %vm5579, %v5193, %v5707
      %v5836 = vsel %vm5580, %v5198, %v5708
      %v5837 = vsel %vm5581, %v5203, %v5709
      %v5838 = vsel %vm5582, %v5208, %v5710
      %v5839 = vsel %vm5583, %v5213, %v5711
      %v5840 = vsel %vm5584, %v5218, %v5712
      %v5841 = vsel %vm5585, %v5223, %v5713
      %v5842 = vsel %vm5586, %v5228, %v5714
      %v5843 = vsel %vm5587, %v5233, %v5715
      %v5844 = vsel %vm5588, %v5238, %v5716
      %v5845 = vsel %vm5589, %v5243, %v5717
      %v5846 = vsel %vm5590, %v5248, %v5718
      %v5847 = vsel %vm5591, %v5253, %v5719
      %v5848 = vsel %vm5592, %v5258, %v5720
      %v5849 = vsel %vm5593, %v5263, %v5721
      %v5850 = vsel %vm5594, %v5268, %v5722
      %v5851 = vsel %vm5595, %v5273, %v5723
      %v5852 = vsel %vm5596, %v5278, %v5724
      %v5853 = vsel %vm5597, %v5283, %v5725
      %v5854 = vsel %vm5598, %v5288, %v5726
      %v5855 = vsel %vm5599, %v5293, %v5727
      %v5856 = vsel %vm5600, %v5298, %v5728
      %v5857 = vsel %vm5601, %v5303, %v5729
      %v5858 = vsel %vm5602, %v5308, %v5730
      %v5859 = vsel %vm5603, %v5313, %v5731
      %v5860 = vsel %vm5604, %v5318, %v5732
      %v5861 = vsel %vm5605, %v5323, %v5733
      %v5862 = vsel %vm5606, %v5328, %v5734
      %v5863 = vsel %vm5607, %v5333, %v5735
      %v5864 = vsel %vm5608, %v5338, %v5736
      %v5865 = vsel %vm5609, %v5343, %v5737
      %v5866 = vsel %vm5610, %v5348, %v5738
      %v5867 = vsel %vm5611, %v5353, %v5739
      %v5868 = vsel %vm5612, %v5358, %v5740
      %v5869 = vsel %vm5613, %v5363, %v5741
      %v5870 = vsel %vm5614, %v5368, %v5742
      %v5871 = vsel %vm5615, %v5373, %v5743
      %v5872 = vsel %vm5616, %v5378, %v5744
      %v5873 = vsel %vm5617, %v5383, %v5745
      %v5874 = vsel %vm5618, %v5388, %v5746
      %v5875 = vsel %vm5619, %v5393, %v5747
      %v5876 = vsel %vm5620, %v5398, %v5748
      %v5877 = vsel %vm5621, %v5403, %v5749
      %v5878 = vsel %vm5622, %v5408, %v5750
      %v5879 = vsel %vm5623, %v5413, %v5751
      %v5880 = vsel %vm5624, %v5418, %v5752
      %v5881 = vsel %vm5625, %v5423, %v5753
      %v5882 = vsel %vm5626, %v5428, %v5754
      %v5883 = vsel %vm5627, %v5433, %v5755
      %v5884 = vsel %vm5628, %v5438, %v5756
      %v5885 = vsel %vm5629, %v5443, %v5757
      %v5886 = vsel %vm5630, %v5448, %v5758
      %v5887 = vsel %vm5631, %v5453, %v5759
      %v5888 = vsel %vm5632, %v5458, %v5760
      %v5889 = vsel %vm5633, %v5463, %v5761
      %v5890 = vsel %vm5634, %v5468, %v5762
      %v5891 = vsel %vm5635, %v5473, %v5763
      %v5892 = vsel %vm5636, %v5478, %v5764
      %v5893 = vsel %vm5637, %v5483, %v5765
      %v5894 = vsel %vm5638, %v5488, %v5766
      %v5895 = vsel %vm5639, %v5493, %v5767
      %v5896 = vsel %vm5640, %v5498, %v5768
      %v5897 = vsel %vm5641, %v5503, %v5769
      %v5898 = vsel %vm5642, %v5508, %v5770
      %v5899 = vsel %vm5643, %v5513, %v5771
      %v5900 = vld [vmem:[%s8] sm:$0xff]
      %v5901 = vld [vmem:[%s9] sm:$0x1]
      %v5903 = vlaneseq
      %v5904 = vshrl.u32 %v5903, 7
      %v5905 = vsub.s32 0, %v5904
      %v5906 = vrot.slane %v5901, %v5905
      %v5909 = vsel %vm4426, %v5772, 0
      %v5912 = vsel %vm4426, %v5773, 0
      %v5915 = vsel %vm4426, %v5774, 0
      %v5918 = vsel %vm4426, %v5775, 0
      %v5921 = vsel %vm4426, %v5776, 0
      %v5924 = vsel %vm4426, %v5777, 0
      %v5927 = vsel %vm4426, %v5778, 0
      %v5930 = vsel %vm4426, %v5779, 0
      %v5933 = vsel %vm4426, %v5780, 0
      %v5936 = vsel %vm4426, %v5781, 0
      %v5939 = vsel %vm4426, %v5782, 0
      %v5942 = vsel %vm4426, %v5783, 0
      %v5945 = vsel %vm4426, %v5784, 0
      %v5948 = vsel %vm4426, %v5785, 0
      %v5951 = vsel %vm4426, %v5786, 0
      %v5954 = vsel %vm4426, %v5787, 0
      %v5957 = vsel %vm4426, %v5788, 0
      %v5960 = vsel %vm4426, %v5789, 0
      %v5963 = vsel %vm4426, %v5790, 0
      %v5966 = vsel %vm4426, %v5791, 0
      %v5969 = vsel %vm4426, %v5792, 0
      %v5972 = vsel %vm4426, %v5793, 0
      %v5975 = vsel %vm4426, %v5794, 0
      %v5978 = vsel %vm4426, %v5795, 0
      %v5981 = vsel %vm4426, %v5796, 0
      %v5984 = vsel %vm4426, %v5797, 0
      %v5987 = vsel %vm4426, %v5798, 0
      %v5990 = vsel %vm4426, %v5799, 0
      %v5993 = vsel %vm4426, %v5800, 0
      %v5996 = vsel %vm4426, %v5801, 0
      %v5999 = vsel %vm4426, %v5802, 0
      %v6002 = vsel %vm4426, %v5803, 0
      %v6005 = vsel %vm4426, %v5804, 0
      %v6008 = vsel %vm4426, %v5805, 0
      %v6011 = vsel %vm4426, %v5806, 0
      %v6014 = vsel %vm4426, %v5807, 0
      %v6017 = vsel %vm4426, %v5808, 0
      %v6020 = vsel %vm4426, %v5809, 0
      %v6023 = vsel %vm4426, %v5810, 0
      %v6026 = vsel %vm4426, %v5811, 0
      %v6029 = vsel %vm4426, %v5812, 0
      %v6032 = vsel %vm4426, %v5813, 0
      %v6035 = vsel %vm4426, %v5814, 0
      %v6038 = vsel %vm4426, %v5815, 0
      %v6041 = vsel %vm4426, %v5816, 0
      %v6044 = vsel %vm4426, %v5817, 0
      %v6047 = vsel %vm4426, %v5818, 0
      %v6050 = vsel %vm4426, %v5819, 0
      %v6053 = vsel %vm4426, %v5820, 0
      %v6056 = vsel %vm4426, %v5821, 0
      %v6059 = vsel %vm4426, %v5822, 0
      %v6062 = vsel %vm4426, %v5823, 0
      %v6065 = vsel %vm4426, %v5824, 0
      %v6068 = vsel %vm4426, %v5825, 0
      %v6071 = vsel %vm4426, %v5826, 0
      %v6074 = vsel %vm4426, %v5827, 0
      %v6077 = vsel %vm4426, %v5828, 0
      %v6080 = vsel %vm4426, %v5829, 0
      %v6083 = vsel %vm4426, %v5830, 0
      %v6086 = vsel %vm4426, %v5831, 0
      %v6089 = vsel %vm4426, %v5832, 0
      %v6092 = vsel %vm4426, %v5833, 0
      %v6095 = vsel %vm4426, %v5834, 0
      %v6098 = vsel %vm4426, %v5835, 0
      %v6101 = vsel %vm4426, %v5836, 0
      %v6104 = vsel %vm4426, %v5837, 0
      %v6107 = vsel %vm4426, %v5838, 0
      %v6110 = vsel %vm4426, %v5839, 0
      %v6113 = vsel %vm4426, %v5840, 0
      %v6116 = vsel %vm4426, %v5841, 0
      %v6119 = vsel %vm4426, %v5842, 0
      %v6122 = vsel %vm4426, %v5843, 0
      %v6125 = vsel %vm4426, %v5844, 0
      %v6128 = vsel %vm4426, %v5845, 0
      %v6131 = vsel %vm4426, %v5846, 0
      %v6134 = vsel %vm4426, %v5847, 0
      %v6137 = vsel %vm4426, %v5848, 0
      %v6140 = vsel %vm4426, %v5849, 0
      %v6143 = vsel %vm4426, %v5850, 0
      %v6146 = vsel %vm4426, %v5851, 0
      %v6149 = vsel %vm4426, %v5852, 0
      %v6152 = vsel %vm4426, %v5853, 0
      %v6155 = vsel %vm4426, %v5854, 0
      %v6158 = vsel %vm4426, %v5855, 0
      %v6161 = vsel %vm4426, %v5856, 0
      %v6164 = vsel %vm4426, %v5857, 0
      %v6167 = vsel %vm4426, %v5858, 0
      %v6170 = vsel %vm4426, %v5859, 0
      %v6173 = vsel %vm4426, %v5860, 0
      %v6176 = vsel %vm4426, %v5861, 0
      %v6179 = vsel %vm4426, %v5862, 0
      %v6182 = vsel %vm4426, %v5863, 0
      %v6185 = vsel %vm4426, %v5864, 0
      %v6188 = vsel %vm4426, %v5865, 0
      %v6191 = vsel %vm4426, %v5866, 0
      %v6194 = vsel %vm4426, %v5867, 0
      %v6197 = vsel %vm4426, %v5868, 0
      %v6200 = vsel %vm4426, %v5869, 0
      %v6203 = vsel %vm4426, %v5870, 0
      %v6206 = vsel %vm4426, %v5871, 0
      %v6209 = vsel %vm4426, %v5872, 0
      %v6212 = vsel %vm4426, %v5873, 0
      %v6215 = vsel %vm4426, %v5874, 0
      %v6218 = vsel %vm4426, %v5875, 0
      %v6221 = vsel %vm4426, %v5876, 0
      %v6224 = vsel %vm4426, %v5877, 0
      %v6227 = vsel %vm4426, %v5878, 0
      %v6230 = vsel %vm4426, %v5879, 0
      %v6233 = vsel %vm4426, %v5880, 0
      %v6236 = vsel %vm4426, %v5881, 0
      %v6239 = vsel %vm4426, %v5882, 0
      %v6242 = vsel %vm4426, %v5883, 0
      %v6245 = vsel %vm4426, %v5884, 0
      %v6248 = vsel %vm4426, %v5885, 0
      %v6251 = vsel %vm4426, %v5886, 0
      %v6254 = vsel %vm4426, %v5887, 0
      %v6257 = vsel %vm4426, %v5888, 0
      %v6260 = vsel %vm4426, %v5889, 0
      %v6263 = vsel %vm4426, %v5890, 0
      %v6266 = vsel %vm4426, %v5891, 0
      %v6269 = vsel %vm4426, %v5892, 0
      %v6272 = vsel %vm4426, %v5893, 0
      %v6275 = vsel %vm4426, %v5894, 0
      %v6278 = vsel %vm4426, %v5895, 0
      %v6281 = vsel %vm4426, %v5896, 0
      %v6284 = vsel %vm4426, %v5897, 0
      %v6287 = vsel %vm4426, %v5898, 0
      %v6290 = vsel %vm4426, %v5899, 0
      %6292 = vmatprep.subr.mxu0 0.0
      %6293 = vmatpush1.msra.mxu0 %v5900
      %6294 = vmatprep.subr.mxu0 0.0
      %6295 = vmatpush1.msra.mxu0 0.0
      %6296 = vmatprep.subr.mxu0 0.0
      %6297 = vmatpush1.msra.mxu0 0.0
      %6298 = vmatprep.subr.mxu0 0.0
      %6299 = vmatpush1.msra.mxu0 0.0
      %6300 = vmatprep.subr.mxu0 0.0
      %6301 = vmatpush1.msra.mxu0 0.0
      %6302 = vmatprep.subr.mxu0 0.0
      %6303 = vmatpush1.msra.mxu0 0.0
      %6304 = vmatprep.subr.mxu0 0.0
      %6305 = vmatpush1.msra.mxu0 0.0
      %6306 = vmatprep.subr.mxu0 0.0
      %6307 = vmatpush1.msra.mxu0 0.0
      %6308 = vmatprep.subr.mxu0 0.0
      %6309 = vmatpush1.msra.mxu0 0.0
      %6310 = vmatprep.subr.mxu0 0.0
      %6311 = vmatpush1.msra.mxu0 0.0
      %6312 = vmatprep.subr.mxu0 0.0
      %6313 = vmatpush1.msra.mxu0 0.0
      %6314 = vmatprep.subr.mxu0 0.0
      %6315 = vmatpush1.msra.mxu0 0.0
      %6316 = vmatprep.subr.mxu0 0.0
      %6317 = vmatpush1.msra.mxu0 0.0
      %6318 = vmatprep.subr.mxu0 0.0
      %6319 = vmatpush1.msra.mxu0 0.0
      %6320 = vmatprep.subr.mxu0 0.0
      %6321 = vmatpush1.msra.mxu0 0.0
      %6322 = vmatprep.subr.mxu0 0.0
      %6323 = vmatpush1.msra.mxu0 0.0
      %6324 = vmatprep.subr.mxu0 0.0
      %6325 = vmatpush1.msra.mxu0 0.0
      %6326 = vmatprep.subr.mxu0 0.0
      %6327 = vmatpush1.msra.mxu0 0.0
      %6328 = vmatprep.subr.mxu0 0.0
      %6329 = vmatpush1.msra.mxu0 0.0
      %6330 = vmatprep.subr.mxu0 0.0
      %6331 = vmatpush1.msra.mxu0 0.0
      %6332 = vmatprep.subr.mxu0 0.0
      %6333 = vmatpush1.msra.mxu0 0.0
      %6334 = vmatprep.subr.mxu0 0.0
      %6335 = vmatpush1.msra.mxu0 0.0
      %6336 = vmatprep.subr.mxu0 0.0
      %6337 = vmatpush1.msra.mxu0 0.0
      %6338 = vmatprep.subr.mxu0 0.0
      %6339 = vmatpush1.msra.mxu0 0.0
      %6340 = vmatprep.subr.mxu0 0.0
      %6341 = vmatpush1.msra.mxu0 0.0
      %6342 = vmatprep.subr.mxu0 0.0
      %6343 = vmatpush1.msra.mxu0 0.0
      %6344 = vmatprep.subr.mxu0 0.0
      %6345 = vmatpush1.msra.mxu0 0.0
      %6346 = vmatprep.subr.mxu0 0.0
      %6347 = vmatpush1.msra.mxu0 0.0
      %6348 = vmatprep.subr.mxu0 0.0
      %6349 = vmatpush1.msra.mxu0 0.0
      %6350 = vmatprep.subr.mxu0 0.0
      %6351 = vmatpush1.msra.mxu0 0.0
      %6352 = vmatprep.subr.mxu0 0.0
      %6353 = vmatpush1.msra.mxu0 0.0
      %6354 = vmatprep.subr.mxu0 0.0
      %6355 = vmatpush1.msra.mxu0 0.0
      %6356 = vmatprep.mubr.f32.mxu0 0.0
      %6357 = vmatmul.mubr.f32.gmra.mrb[0].mxu0 %v5909
      %v6358 = vpop.f32.mrb[0].mxu0
      %v6359 = vadd.f32 %v5906, %v6358
      %v6360 = vpop.f32.mrb[0].mxu0
      %6361 = vmatprep.mubr.f32.mxu0 0.0
      %6362 = vmatmul.mubr.f32.gmra.mrb[0].mxu0 %v5912
      %v6363 = vpop.f32.mrb[0].mxu0
      %v6364 = vadd.f32 %v5906, %v6363
      %v6365 = vpop.f32.mrb[0].mxu0
      %6366 = vmatprep.mubr.f32.mxu0 0.0
      %6367 = vmatmul.mubr.f32.gmra.mrb[0].mxu0 %v5915
      %v6368 = vpop.f32.mrb[0].mxu0
      %v6369 = vadd.f32 %v5906, %v6368
      %v6370 = vpop.f32.mrb[0].mxu0
      %6371 = vmatprep.mubr.f32.mxu0 0.0
      %6372 = vmatmul.mubr.f32.gmra.mrb[0].mxu0 %v5918
      %v6373 = vpop.f32.mrb[0].mxu0
      %v6374 = vadd.f32 %v5906, %v6373
      %v6375 = vpop.f32.mrb[0].mxu0
      %6376 = vmatprep.mubr.f32.mxu0 0.0
      %6377 = vmatmul.mubr.f32.gmra.mrb[0].mxu0 %v5921
      %v6378 = vpop.f32.mrb[0].mxu0
      %v6379 = vadd.f32 %v5906, %v6378
      %v6380 = vpop.f32.mrb[0].mxu0
      %6381 = vmatprep.mubr.f32.mxu0 0.0
      %6382 = vmatmul.mubr.f32.gmra.mrb[0].mxu0 %v5924
      %v6383 = vpop.f32.mrb[0].mxu0
      %v6384 = vadd.f32 %v5906, %v6383
      %v6385 = vpop.f32.mrb[0].mxu0
      %6386 = vmatprep.mubr.f32.mxu0 0.0
      %6387 = vmatmul.mubr.f32.gmra.mrb[0].mxu0 %v5927
      %v6388 = vpop.f32.mrb[0].mxu0
      %v6389 = vadd.f32 %v5906, %v6388
      %v6390 = vpop.f32.mrb[0].mxu0
      %6391 = vmatprep.mubr.f32.mxu0 0.0
      %6392 = vmatmul.mubr.f32.gmra.mrb[0].mxu0 %v5930
      %v6393 = vpop.f32.mrb[0].mxu0
      %v6394 = vadd.f32 %v5906, %v6393
      %v6395 = vpop.f32.mrb[0].mxu0
      %6396 = vmatprep.mubr.f32.mxu0 0.0
      %6397 = vmatmul.mubr.f32.gmra.mrb[0].mxu0 %v5933
      %v6398 = vpop.f32.mrb[0].mxu0
      %v6399 = vadd.f32 %v5906, %v6398
      %v6400 = vpop.f32.mrb[0].mxu0
      %6401 = vmatprep.mubr.f32.mxu0 0.0
      %6402 = vmatmul.mubr.f32.gmra.mrb[0].mxu0 %v5936
      %v6403 = vpop.f32.mrb[0].mxu0
      %v6404 = vadd.f32 %v5906, %v6403
      %v6405 = vpop.f32.mrb[0].mxu0
      %6406 = vmatprep.mubr.f32.mxu0 0.0
      %6407 = vmatmul.mubr.f32.gmra.mrb[0].mxu0 %v5939
      %v6408 = vpop.f32.mrb[0].mxu0
      %v6409 = vadd.f32 %v5906, %v6408
      %v6410 = vpop.f32.mrb[0].mxu0
      %6411 = vmatprep.mubr.f32.mxu0 0.0
      %6412 = vmatmul.mubr.f32.gmra.mrb[0].mxu0 %v5942
      %v6413 = vpop.f32.mrb[0].mxu0
      %v6414 = vadd.f32 %v5906, %v6413
      %v6415 = vpop.f32.mrb[0].mxu0
      %6416 = vmatprep.mubr.f32.mxu0 0.0
      %6417 = vmatmul.mubr.f32.gmra.mrb[0].mxu0 %v5945
      %v6418 = vpop.f32.mrb[0].mxu0
      %v6419 = vadd.f32 %v5906, %v6418
      %v6420 = vpop.f32.mrb[0].mxu0
      %6421 = vmatprep.mubr.f32.mxu0 0.0
      %6422 = vmatmul.mubr.f32.gmra.mrb[0].mxu0 %v5948
      %v6423 = vpop.f32.mrb[0].mxu0
      %v6424 = vadd.f32 %v5906, %v6423
      %v6425 = vpop.f32.mrb[0].mxu0
      %6426 = vmatprep.mubr.f32.mxu0 0.0
      %6427 = vmatmul.mubr.f32.gmra.mrb[0].mxu0 %v5951
      %v6428 = vpop.f32.mrb[0].mxu0
      %v6429 = vadd.f32 %v5906, %v6428
      %v6430 = vpop.f32.mrb[0].mxu0
      %6431 = vmatprep.mubr.f32.mxu0 0.0
      %6432 = vmatmul.mubr.f32.gmra.mrb[0].mxu0 %v5954
      %v6433 = vpop.f32.mrb[0].mxu0
      %v6434 = vadd.f32 %v5906, %v6433
      %v6435 = vpop.f32.mrb[0].mxu0
      %6436 = vmatprep.mubr.f32.mxu0 0.0
      %6437 = vmatmul.mubr.f32.gmra.mrb[0].mxu0 %v5957
      %v6438 = vpop.f32.mrb[0].mxu0
      %v6439 = vadd.f32 %v5906, %v6438
      %v6440 = vpop.f32.mrb[0].mxu0
      %6441 = vmatprep.mubr.f32.mxu0 0.0
      %6442 = vmatmul.mubr.f32.gmra.mrb[0].mxu0 %v5960
      %v6443 = vpop.f32.mrb[0].mxu0
      %v6444 = vadd.f32 %v5906, %v6443
      %v6445 = vpop.f32.mrb[0].mxu0
      %6446 = vmatprep.mubr.f32.mxu0 0.0
      %6447 = vmatmul.mubr.f32.gmra.mrb[0].mxu0 %v5963
      %v6448 = vpop.f32.mrb[0].mxu0
      %v6449 = vadd.f32 %v5906, %v6448
      %v6450 = vpop.f32.mrb[0].mxu0
      %6451 = vmatprep.mubr.f32.mxu0 0.0
      %6452 = vmatmul.mubr.f32.gmra.mrb[0].mxu0 %v5966
      %v6453 = vpop.f32.mrb[0].mxu0
      %v6454 = vadd.f32 %v5906, %v6453
      %v6455 = vpop.f32.mrb[0].mxu0
      %6456 = vmatprep.mubr.f32.mxu0 0.0
      %6457 = vmatmul.mubr.f32.gmra.mrb[0].mxu0 %v5969
      %v6458 = vpop.f32.mrb[0].mxu0
      %v6459 = vadd.f32 %v5906, %v6458
      %v6460 = vpop.f32.mrb[0].mxu0
      %6461 = vmatprep.mubr.f32.mxu0 0.0
      %6462 = vmatmul.mubr.f32.gmra.mrb[0].mxu0 %v5972
      %v6463 = vpop.f32.mrb[0].mxu0
      %v6464 = vadd.f32 %v5906, %v6463
      %v6465 = vpop.f32.mrb[0].mxu0
      %6466 = vmatprep.mubr.f32.mxu0 0.0
      %6467 = vmatmul.mubr.f32.gmra.mrb[0].mxu0 %v5975
      %v6468 = vpop.f32.mrb[0].mxu0
      %v6469 = vadd.f32 %v5906, %v6468
      %v6470 = vpop.f32.mrb[0].mxu0
      %6471 = vmatprep.mubr.f32.mxu0 0.0
      %6472 = vmatmul.mubr.f32.gmra.mrb[0].mxu0 %v5978
      %v6473 = vpop.f32.mrb[0].mxu0
      %v6474 = vadd.f32 %v5906, %v6473
      %v6475 = vpop.f32.mrb[0].mxu0
      %6476 = vmatprep.mubr.f32.mxu0 0.0
      %6477 = vmatmul.mubr.f32.gmra.mrb[0].mxu0 %v5981
      %v6478 = vpop.f32.mrb[0].mxu0
      %v6479 = vadd.f32 %v5906, %v6478
      %v6480 = vpop.f32.mrb[0].mxu0
      %6481 = vmatprep.mubr.f32.mxu0 0.0
      %6482 = vmatmul.mubr.f32.gmra.mrb[0].mxu0 %v5984
      %v6483 = vpop.f32.mrb[0].mxu0
      %v6484 = vadd.f32 %v5906, %v6483
      %v6485 = vpop.f32.mrb[0].mxu0
      %6486 = vmatprep.mubr.f32.mxu0 0.0
      %6487 = vmatmul.mubr.f32.gmra.mrb[0].mxu0 %v5987
      %v6488 = vpop.f32.mrb[0].mxu0
      %v6489 = vadd.f32 %v5906, %v6488
      %v6490 = vpop.f32.mrb[0].mxu0
      %6491 = vmatprep.mubr.f32.mxu0 0.0
      %6492 = vmatmul.mubr.f32.gmra.mrb[0].mxu0 %v5990
      %v6493 = vpop.f32.mrb[0].mxu0
      %v6494 = vadd.f32 %v5906, %v6493
      %v6495 = vpop.f32.mrb[0].mxu0
      %6496 = vmatprep.mubr.f32.mxu0 0.0
      %6497 = vmatmul.mubr.f32.gmra.mrb[0].mxu0 %v5993
      %v6498 = vpop.f32.mrb[0].mxu0
      %v6499 = vadd.f32 %v5906, %v6498
      %v6500 = vpop.f32.mrb[0].mxu0
      %6501 = vmatprep.mubr.f32.mxu0 0.0
      %6502 = vmatmul.mubr.f32.gmra.mrb[0].mxu0 %v5996
      %v6503 = vpop.f32.mrb[0].mxu0
      %v6504 = vadd.f32 %v5906, %v6503
      %v6505 = vpop.f32.mrb[0].mxu0
      %6506 = vmatprep.mubr.f32.mxu0 0.0
      %6507 = vmatmul.mubr.f32.gmra.mrb[0].mxu0 %v5999
      %v6508 = vpop.f32.mrb[0].mxu0
      %v6509 = vadd.f32 %v5906, %v6508
      %v6510 = vpop.f32.mrb[0].mxu0
      %6511 = vmatprep.mubr.f32.mxu0 0.0
      %6512 = vmatmul.mubr.f32.gmra.mrb[0].mxu0 %v6002
      %v6513 = vpop.f32.mrb[0].mxu0
      %v6514 = vadd.f32 %v5906, %v6513
      %v6515 = vpop.f32.mrb[0].mxu0
      %6516 = vmatprep.mubr.f32.mxu0 0.0
      %6517 = vmatmul.mubr.f32.gmra.mrb[0].mxu0 %v6005
      %v6518 = vpop.f32.mrb[0].mxu0
      %v6519 = vadd.f32 %v5906, %v6518
      %v6520 = vpop.f32.mrb[0].mxu0
      %6521 = vmatprep.mubr.f32.mxu0 0.0
      %6522 = vmatmul.mubr.f32.gmra.mrb[0].mxu0 %v6008
      %v6523 = vpop.f32.mrb[0].mxu0
      %v6524 = vadd.f32 %v5906, %v6523
      %v6525 = vpop.f32.mrb[0].mxu0
      %6526 = vmatprep.mubr.f32.mxu0 0.0
      %6527 = vmatmul.mubr.f32.gmra.mrb[0].mxu0 %v6011
      %v6528 = vpop.f32.mrb[0].mxu0
      %v6529 = vadd.f32 %v5906, %v6528
      %v6530 = vpop.f32.mrb[0].mxu0
      %6531 = vmatprep.mubr.f32.mxu0 0.0
      %6532 = vmatmul.mubr.f32.gmra.mrb[0].mxu0 %v6014
      %v6533 = vpop.f32.mrb[0].mxu0
      %v6534 = vadd.f32 %v5906, %v6533
      %v6535 = vpop.f32.mrb[0].mxu0
      %6536 = vmatprep.mubr.f32.mxu0 0.0
      %6537 = vmatmul.mubr.f32.gmra.mrb[0].mxu0 %v6017
      %v6538 = vpop.f32.mrb[0].mxu0
      %v6539 = vadd.f32 %v5906, %v6538
      %v6540 = vpop.f32.mrb[0].mxu0
      %6541 = vmatprep.mubr.f32.mxu0 0.0
      %6542 = vmatmul.mubr.f32.gmra.mrb[0].mxu0 %v6020
      %v6543 = vpop.f32.mrb[0].mxu0
      %v6544 = vadd.f32 %v5906, %v6543
      %v6545 = vpop.f32.mrb[0].mxu0
      %6546 = vmatprep.mubr.f32.mxu0 0.0
      %6547 = vmatmul.mubr.f32.gmra.mrb[0].mxu0 %v6023
      %v6548 = vpop.f32.mrb[0].mxu0
      %v6549 = vadd.f32 %v5906, %v6548
      %v6550 = vpop.f32.mrb[0].mxu0
      %6551 = vmatprep.mubr.f32.mxu0 0.0
      %6552 = vmatmul.mubr.f32.gmra.mrb[0].mxu0 %v6026
      %v6553 = vpop.f32.mrb[0].mxu0
      %v6554 = vadd.f32 %v5906, %v6553
      %v6555 = vpop.f32.mrb[0].mxu0
      %6556 = vmatprep.mubr.f32.mxu0 0.0
      %6557 = vmatmul.mubr.f32.gmra.mrb[0].mxu0 %v6029
      %v6558 = vpop.f32.mrb[0].mxu0
      %v6559 = vadd.f32 %v5906, %v6558
      %v6560 = vpop.f32.mrb[0].mxu0
      %6561 = vmatprep.mubr.f32.mxu0 0.0
      %6562 = vmatmul.mubr.f32.gmra.mrb[0].mxu0 %v6032
      %v6563 = vpop.f32.mrb[0].mxu0
      %v6564 = vadd.f32 %v5906, %v6563
      %v6565 = vpop.f32.mrb[0].mxu0
      %6566 = vmatprep.mubr.f32.mxu0 0.0
      %6567 = vmatmul.mubr.f32.gmra.mrb[0].mxu0 %v6035
      %v6568 = vpop.f32.mrb[0].mxu0
      %v6569 = vadd.f32 %v5906, %v6568
      %v6570 = vpop.f32.mrb[0].mxu0
      %6571 = vmatprep.mubr.f32.mxu0 0.0
      %6572 = vmatmul.mubr.f32.gmra.mrb[0].mxu0 %v6038
      %v6573 = vpop.f32.mrb[0].mxu0
      %v6574 = vadd.f32 %v5906, %v6573
      %v6575 = vpop.f32.mrb[0].mxu0
      %6576 = vmatprep.mubr.f32.mxu0 0.0
      %6577 = vmatmul.mubr.f32.gmra.mrb[0].mxu0 %v6041
      %v6578 = vpop.f32.mrb[0].mxu0
      %v6579 = vadd.f32 %v5906, %v6578
      %v6580 = vpop.f32.mrb[0].mxu0
      %6581 = vmatprep.mubr.f32.mxu0 0.0
      %6582 = vmatmul.mubr.f32.gmra.mrb[0].mxu0 %v6044
      %v6583 = vpop.f32.mrb[0].mxu0
      %v6584 = vadd.f32 %v5906, %v6583
      %v6585 = vpop.f32.mrb[0].mxu0
      %6586 = vmatprep.mubr.f32.mxu0 0.0
      %6587 = vmatmul.mubr.f32.gmra.mrb[0].mxu0 %v6047
      %v6588 = vpop.f32.mrb[0].mxu0
      %v6589 = vadd.f32 %v5906, %v6588
      %v6590 = vpop.f32.mrb[0].mxu0
      %6591 = vmatprep.mubr.f32.mxu0 0.0
      %6592 = vmatmul.mubr.f32.gmra.mrb[0].mxu0 %v6050
      %v6593 = vpop.f32.mrb[0].mxu0
      %v6594 = vadd.f32 %v5906, %v6593
      %v6595 = vpop.f32.mrb[0].mxu0
      %6596 = vmatprep.mubr.f32.mxu0 0.0
      %6597 = vmatmul.mubr.f32.gmra.mrb[0].mxu0 %v6053
      %v6598 = vpop.f32.mrb[0].mxu0
      %v6599 = vadd.f32 %v5906, %v6598
      %v6600 = vpop.f32.mrb[0].mxu0
      %6601 = vmatprep.mubr.f32.mxu0 0.0
      %6602 = vmatmul.mubr.f32.gmra.mrb[0].mxu0 %v6056
      %v6603 = vpop.f32.mrb[0].mxu0
      %v6604 = vadd.f32 %v5906, %v6603
      %v6605 = vpop.f32.mrb[0].mxu0
      %6606 = vmatprep.mubr.f32.mxu0 0.0
      %6607 = vmatmul.mubr.f32.gmra.mrb[0].mxu0 %v6059
      %v6608 = vpop.f32.mrb[0].mxu0
      %v6609 = vadd.f32 %v5906, %v6608
      %v6610 = vpop.f32.mrb[0].mxu0
      %6611 = vmatprep.mubr.f32.mxu0 0.0
      %6612 = vmatmul.mubr.f32.gmra.mrb[0].mxu0 %v6062
      %v6613 = vpop.f32.mrb[0].mxu0
      %v6614 = vadd.f32 %v5906, %v6613
      %v6615 = vpop.f32.mrb[0].mxu0
      %6616 = vmatprep.mubr.f32.mxu0 0.0
      %6617 = vmatmul.mubr.f32.gmra.mrb[0].mxu0 %v6065
      %v6618 = vpop.f32.mrb[0].mxu0
      %v6619 = vadd.f32 %v5906, %v6618
      %v6620 = vpop.f32.mrb[0].mxu0
      %6621 = vmatprep.mubr.f32.mxu0 0.0
      %6622 = vmatmul.mubr.f32.gmra.mrb[0].mxu0 %v6068
      %v6623 = vpop.f32.mrb[0].mxu0
      %v6624 = vadd.f32 %v5906, %v6623
      %v6625 = vpop.f32.mrb[0].mxu0
      %6626 = vmatprep.mubr.f32.mxu0 0.0
      %6627 = vmatmul.mubr.f32.gmra.mrb[0].mxu0 %v6071
      %v6628 = vpop.f32.mrb[0].mxu0
      %v6629 = vadd.f32 %v5906, %v6628
      %v6630 = vpop.f32.mrb[0].mxu0
      %6631 = vmatprep.mubr.f32.mxu0 0.0
      %6632 = vmatmul.mubr.f32.gmra.mrb[0].mxu0 %v6074
      %v6633 = vpop.f32.mrb[0].mxu0
      %v6634 = vadd.f32 %v5906, %v6633
      %v6635 = vpop.f32.mrb[0].mxu0
      %6636 = vmatprep.mubr.f32.mxu0 0.0
      %6637 = vmatmul.mubr.f32.gmra.mrb[0].mxu0 %v6077
      %v6638 = vpop.f32.mrb[0].mxu0
      %v6639 = vadd.f32 %v5906, %v6638
      %v6640 = vpop.f32.mrb[0].mxu0
      %6641 = vmatprep.mubr.f32.mxu0 0.0
      %6642 = vmatmul.mubr.f32.gmra.mrb[0].mxu0 %v6080
      %v6643 = vpop.f32.mrb[0].mxu0
      %v6644 = vadd.f32 %v5906, %v6643
      %v6645 = vpop.f32.mrb[0].mxu0
      %6646 = vmatprep.mubr.f32.mxu0 0.0
      %6647 = vmatmul.mubr.f32.gmra.mrb[0].mxu0 %v6083
      %v6648 = vpop.f32.mrb[0].mxu0
      %v6649 = vadd.f32 %v5906, %v6648
      %v6650 = vpop.f32.mrb[0].mxu0
      %6651 = vmatprep.mubr.f32.mxu0 0.0
      %6652 = vmatmul.mubr.f32.gmra.mrb[0].mxu0 %v6086
      %v6653 = vpop.f32.mrb[0].mxu0
      %v6654 = vadd.f32 %v5906, %v6653
      %v6655 = vpop.f32.mrb[0].mxu0
      %6656 = vmatprep.mubr.f32.mxu0 0.0
      %6657 = vmatmul.mubr.f32.gmra.mrb[0].mxu0 %v6089
      %v6658 = vpop.f32.mrb[0].mxu0
      %v6659 = vadd.f32 %v5906, %v6658
      %v6660 = vpop.f32.mrb[0].mxu0
      %6661 = vmatprep.mubr.f32.mxu0 0.0
      %6662 = vmatmul.mubr.f32.gmra.mrb[0].mxu0 %v6092
      %v6663 = vpop.f32.mrb[0].mxu0
      %v6664 = vadd.f32 %v5906, %v6663
      %v6665 = vpop.f32.mrb[0].mxu0
      %6666 = vmatprep.mubr.f32.mxu0 0.0
      %6667 = vmatmul.mubr.f32.gmra.mrb[0].mxu0 %v6095
      %v6668 = vpop.f32.mrb[0].mxu0
      %v6669 = vadd.f32 %v5906, %v6668
      %v6670 = vpop.f32.mrb[0].mxu0
      %6671 = vmatprep.mubr.f32.mxu0 0.0
      %6672 = vmatmul.mubr.f32.gmra.mrb[0].mxu0 %v6098
      %v6673 = vpop.f32.mrb[0].mxu0
      %v6674 = vadd.f32 %v5906, %v6673
      %v6675 = vpop.f32.mrb[0].mxu0
      %6676 = vmatprep.mubr.f32.mxu0 0.0
      %6677 = vmatmul.mubr.f32.gmra.mrb[0].mxu0 %v6101
      %v6678 = vpop.f32.mrb[0].mxu0
      %v6679 = vadd.f32 %v5906, %v6678
      %v6680 = vpop.f32.mrb[0].mxu0
      %6681 = vmatprep.mubr.f32.mxu0 0.0
      %6682 = vmatmul.mubr.f32.gmra.mrb[0].mxu0 %v6104
      %v6683 = vpop.f32.mrb[0].mxu0
      %v6684 = vadd.f32 %v5906, %v6683
      %v6685 = vpop.f32.mrb[0].mxu0
      %6686 = vmatprep.mubr.f32.mxu0 0.0
      %6687 = vmatmul.mubr.f32.gmra.mrb[0].mxu0 %v6107
      %v6688 = vpop.f32.mrb[0].mxu0
      %v6689 = vadd.f32 %v5906, %v6688
      %v6690 = vpop.f32.mrb[0].mxu0
      %6691 = vmatprep.mubr.f32.mxu0 0.0
      %6692 = vmatmul.mubr.f32.gmra.mrb[0].mxu0 %v6110
      %v6693 = vpop.f32.mrb[0].mxu0
      %v6694 = vadd.f32 %v5906, %v6693
      %v6695 = vpop.f32.mrb[0].mxu0
      %6696 = vmatprep.mubr.f32.mxu0 0.0
      %6697 = vmatmul.mubr.f32.gmra.mrb[0].mxu0 %v6113
      %v6698 = vpop.f32.mrb[0].mxu0
      %v6699 = vadd.f32 %v5906, %v6698
      %v6700 = vpop.f32.mrb[0].mxu0
      %6701 = vmatprep.mubr.f32.mxu0 0.0
      %6702 = vmatmul.mubr.f32.gmra.mrb[0].mxu0 %v6116
      %v6703 = vpop.f32.mrb[0].mxu0
      %v6704 = vadd.f32 %v5906, %v6703
      %v6705 = vpop.f32.mrb[0].mxu0
      %6706 = vmatprep.mubr.f32.mxu0 0.0
      %6707 = vmatmul.mubr.f32.gmra.mrb[0].mxu0 %v6119
      %v6708 = vpop.f32.mrb[0].mxu0
      %v6709 = vadd.f32 %v5906, %v6708
      %v6710 = vpop.f32.mrb[0].mxu0
      %6711 = vmatprep.mubr.f32.mxu0 0.0
      %6712 = vmatmul.mubr.f32.gmra.mrb[0].mxu0 %v6122
      %v6713 = vpop.f32.mrb[0].mxu0
      %v6714 = vadd.f32 %v5906, %v6713
      %v6715 = vpop.f32.mrb[0].mxu0
      %6716 = vmatprep.mubr.f32.mxu0 0.0
      %6717 = vmatmul.mubr.f32.gmra.mrb[0].mxu0 %v6125
      %v6718 = vpop.f32.mrb[0].mxu0
      %v6719 = vadd.f32 %v5906, %v6718
      %v6720 = vpop.f32.mrb[0].mxu0
      %6721 = vmatprep.mubr.f32.mxu0 0.0
      %6722 = vmatmul.mubr.f32.gmra.mrb[0].mxu0 %v6128
      %v6723 = vpop.f32.mrb[0].mxu0
      %v6724 = vadd.f32 %v5906, %v6723
      %v6725 = vpop.f32.mrb[0].mxu0
      %6726 = vmatprep.mubr.f32.mxu0 0.0
      %6727 = vmatmul.mubr.f32.gmra.mrb[0].mxu0 %v6131
      %v6728 = vpop.f32.mrb[0].mxu0
      %v6729 = vadd.f32 %v5906, %v6728
      %v6730 = vpop.f32.mrb[0].mxu0
      %6731 = vmatprep.mubr.f32.mxu0 0.0
      %6732 = vmatmul.mubr.f32.gmra.mrb[0].mxu0 %v6134
      %v6733 = vpop.f32.mrb[0].mxu0
      %v6734 = vadd.f32 %v5906, %v6733
      %v6735 = vpop.f32.mrb[0].mxu0
      %6736 = vmatprep.mubr.f32.mxu0 0.0
      %6737 = vmatmul.mubr.f32.gmra.mrb[0].mxu0 %v6137
      %v6738 = vpop.f32.mrb[0].mxu0
      %v6739 = vadd.f32 %v5906, %v6738
      %v6740 = vpop.f32.mrb[0].mxu0
      %6741 = vmatprep.mubr.f32.mxu0 0.0
      %6742 = vmatmul.mubr.f32.gmra.mrb[0].mxu0 %v6140
      %v6743 = vpop.f32.mrb[0].mxu0
      %v6744 = vadd.f32 %v5906, %v6743
      %v6745 = vpop.f32.mrb[0].mxu0
      %6746 = vmatprep.mubr.f32.mxu0 0.0
      %6747 = vmatmul.mubr.f32.gmra.mrb[0].mxu0 %v6143
      %v6748 = vpop.f32.mrb[0].mxu0
      %v6749 = vadd.f32 %v5906, %v6748
      %v6750 = vpop.f32.mrb[0].mxu0
      %6751 = vmatprep.mubr.f32.mxu0 0.0
      %6752 = vmatmul.mubr.f32.gmra.mrb[0].mxu0 %v6146
      %v6753 = vpop.f32.mrb[0].mxu0
      %v6754 = vadd.f32 %v5906, %v6753
      %v6755 = vpop.f32.mrb[0].mxu0
      %6756 = vmatprep.mubr.f32.mxu0 0.0
      %6757 = vmatmul.mubr.f32.gmra.mrb[0].mxu0 %v6149
      %v6758 = vpop.f32.mrb[0].mxu0
      %v6759 = vadd.f32 %v5906, %v6758
      %v6760 = vpop.f32.mrb[0].mxu0
      %6761 = vmatprep.mubr.f32.mxu0 0.0
      %6762 = vmatmul.mubr.f32.gmra.mrb[0].mxu0 %v6152
      %v6763 = vpop.f32.mrb[0].mxu0
      %v6764 = vadd.f32 %v5906, %v6763
      %v6765 = vpop.f32.mrb[0].mxu0
      %6766 = vmatprep.mubr.f32.mxu0 0.0
      %6767 = vmatmul.mubr.f32.gmra.mrb[0].mxu0 %v6155
      %v6768 = vpop.f32.mrb[0].mxu0
      %v6769 = vadd.f32 %v5906, %v6768
      %v6770 = vpop.f32.mrb[0].mxu0
      %6771 = vmatprep.mubr.f32.mxu0 0.0
      %6772 = vmatmul.mubr.f32.gmra.mrb[0].mxu0 %v6158
      %v6773 = vpop.f32.mrb[0].mxu0
      %v6774 = vadd.f32 %v5906, %v6773
      %v6775 = vpop.f32.mrb[0].mxu0
      %6776 = vmatprep.mubr.f32.mxu0 0.0
      %6777 = vmatmul.mubr.f32.gmra.mrb[0].mxu0 %v6161
      %v6778 = vpop.f32.mrb[0].mxu0
      %v6779 = vadd.f32 %v5906, %v6778
      %v6780 = vpop.f32.mrb[0].mxu0
      %6781 = vmatprep.mubr.f32.mxu0 0.0
      %6782 = vmatmul.mubr.f32.gmra.mrb[0].mxu0 %v6164
      %v6783 = vpop.f32.mrb[0].mxu0
      %v6784 = vadd.f32 %v5906, %v6783
      %v6785 = vpop.f32.mrb[0].mxu0
      %6786 = vmatprep.mubr.f32.mxu0 0.0
      %6787 = vmatmul.mubr.f32.gmra.mrb[0].mxu0 %v6167
      %v6788 = vpop.f32.mrb[0].mxu0
      %v6789 = vadd.f32 %v5906, %v6788
      %v6790 = vpop.f32.mrb[0].mxu0
      %6791 = vmatprep.mubr.f32.mxu0 0.0
      %6792 = vmatmul.mubr.f32.gmra.mrb[0].mxu0 %v6170
      %v6793 = vpop.f32.mrb[0].mxu0
      %v6794 = vadd.f32 %v5906, %v6793
      %v6795 = vpop.f32.mrb[0].mxu0
      %6796 = vmatprep.mubr.f32.mxu0 0.0
      %6797 = vmatmul.mubr.f32.gmra.mrb[0].mxu0 %v6173
      %v6798 = vpop.f32.mrb[0].mxu0
      %v6799 = vadd.f32 %v5906, %v6798
      %v6800 = vpop.f32.mrb[0].mxu0
      %6801 = vmatprep.mubr.f32.mxu0 0.0
      %6802 = vmatmul.mubr.f32.gmra.mrb[0].mxu0 %v6176
      %v6803 = vpop.f32.mrb[0].mxu0
      %v6804 = vadd.f32 %v5906, %v6803
      %v6805 = vpop.f32.mrb[0].mxu0
      %6806 = vmatprep.mubr.f32.mxu0 0.0
      %6807 = vmatmul.mubr.f32.gmra.mrb[0].mxu0 %v6179
      %v6808 = vpop.f32.mrb[0].mxu0
      %v6809 = vadd.f32 %v5906, %v6808
      %v6810 = vpop.f32.mrb[0].mxu0
      %6811 = vmatprep.mubr.f32.mxu0 0.0
      %6812 = vmatmul.mubr.f32.gmra.mrb[0].mxu0 %v6182
      %v6813 = vpop.f32.mrb[0].mxu0
      %v6814 = vadd.f32 %v5906, %v6813
      %v6815 = vpop.f32.mrb[0].mxu0
      %6816 = vmatprep.mubr.f32.mxu0 0.0
      %6817 = vmatmul.mubr.f32.gmra.mrb[0].mxu0 %v6185
      %v6818 = vpop.f32.mrb[0].mxu0
      %v6819 = vadd.f32 %v5906, %v6818
      %v6820 = vpop.f32.mrb[0].mxu0
      %6821 = vmatprep.mubr.f32.mxu0 0.0
      %6822 = vmatmul.mubr.f32.gmra.mrb[0].mxu0 %v6188
      %v6823 = vpop.f32.mrb[0].mxu0
      %v6824 = vadd.f32 %v5906, %v6823
      %v6825 = vpop.f32.mrb[0].mxu0
      %6826 = vmatprep.mubr.f32.mxu0 0.0
      %6827 = vmatmul.mubr.f32.gmra.mrb[0].mxu0 %v6191
      %v6828 = vpop.f32.mrb[0].mxu0
      %v6829 = vadd.f32 %v5906, %v6828
      %v6830 = vpop.f32.mrb[0].mxu0
      %6831 = vmatprep.mubr.f32.mxu0 0.0
      %6832 = vmatmul.mubr.f32.gmra.mrb[0].mxu0 %v6194
      %v6833 = vpop.f32.mrb[0].mxu0
      %v6834 = vadd.f32 %v5906, %v6833
      %v6835 = vpop.f32.mrb[0].mxu0
      %6836 = vmatprep.mubr.f32.mxu0 0.0
      %6837 = vmatmul.mubr.f32.gmra.mrb[0].mxu0 %v6197
      %v6838 = vpop.f32.mrb[0].mxu0
      %v6839 = vadd.f32 %v5906, %v6838
      %v6840 = vpop.f32.mrb[0].mxu0
      %6841 = vmatprep.mubr.f32.mxu0 0.0
      %6842 = vmatmul.mubr.f32.gmra.mrb[0].mxu0 %v6200
      %v6843 = vpop.f32.mrb[0].mxu0
      %v6844 = vadd.f32 %v5906, %v6843
      %v6845 = vpop.f32.mrb[0].mxu0
      %6846 = vmatprep.mubr.f32.mxu0 0.0
      %6847 = vmatmul.mubr.f32.gmra.mrb[0].mxu0 %v6203
      %v6848 = vpop.f32.mrb[0].mxu0
      %v6849 = vadd.f32 %v5906, %v6848
      %v6850 = vpop.f32.mrb[0].mxu0
      %6851 = vmatprep.mubr.f32.mxu0 0.0
      %6852 = vmatmul.mubr.f32.gmra.mrb[0].mxu0 %v6206
      %v6853 = vpop.f32.mrb[0].mxu0
      %v6854 = vadd.f32 %v5906, %v6853
      %v6855 = vpop.f32.mrb[0].mxu0
      %6856 = vmatprep.mubr.f32.mxu0 0.0
      %6857 = vmatmul.mubr.f32.gmra.mrb[0].mxu0 %v6209
      %v6858 = vpop.f32.mrb[0].mxu0
      %v6859 = vadd.f32 %v5906, %v6858
      %v6860 = vpop.f32.mrb[0].mxu0
      %6861 = vmatprep.mubr.f32.mxu0 0.0
      %6862 = vmatmul.mubr.f32.gmra.mrb[0].mxu0 %v6212
      %v6863 = vpop.f32.mrb[0].mxu0
      %v6864 = vadd.f32 %v5906, %v6863
      %v6865 = vpop.f32.mrb[0].mxu0
      %6866 = vmatprep.mubr.f32.mxu0 0.0
      %6867 = vmatmul.mubr.f32.gmra.mrb[0].mxu0 %v6215
      %v6868 = vpop.f32.mrb[0].mxu0
      %v6869 = vadd.f32 %v5906, %v6868
      %v6870 = vpop.f32.mrb[0].mxu0
      %6871 = vmatprep.mubr.f32.mxu0 0.0
      %6872 = vmatmul.mubr.f32.gmra.mrb[0].mxu0 %v6218
      %v6873 = vpop.f32.mrb[0].mxu0
      %v6874 = vadd.f32 %v5906, %v6873
      %v6875 = vpop.f32.mrb[0].mxu0
      %6876 = vmatprep.mubr.f32.mxu0 0.0
      %6877 = vmatmul.mubr.f32.gmra.mrb[0].mxu0 %v6221
      %v6878 = vpop.f32.mrb[0].mxu0
      %v6879 = vadd.f32 %v5906, %v6878
      %v6880 = vpop.f32.mrb[0].mxu0
      %6881 = vmatprep.mubr.f32.mxu0 0.0
      %6882 = vmatmul.mubr.f32.gmra.mrb[0].mxu0 %v6224
      %v6883 = vpop.f32.mrb[0].mxu0
      %v6884 = vadd.f32 %v5906, %v6883
      %v6885 = vpop.f32.mrb[0].mxu0
      %6886 = vmatprep.mubr.f32.mxu0 0.0
      %6887 = vmatmul.mubr.f32.gmra.mrb[0].mxu0 %v6227
      %v6888 = vpop.f32.mrb[0].mxu0
      %v6889 = vadd.f32 %v5906, %v6888
      %v6890 = vpop.f32.mrb[0].mxu0
      %6891 = vmatprep.mubr.f32.mxu0 0.0
      %6892 = vmatmul.mubr.f32.gmra.mrb[0].mxu0 %v6230
      %v6893 = vpop.f32.mrb[0].mxu0
      %v6894 = vadd.f32 %v5906, %v6893
      %v6895 = vpop.f32.mrb[0].mxu0
      %6896 = vmatprep.mubr.f32.mxu0 0.0
      %6897 = vmatmul.mubr.f32.gmra.mrb[0].mxu0 %v6233
      %v6898 = vpop.f32.mrb[0].mxu0
      %v6899 = vadd.f32 %v5906, %v6898
      %v6900 = vpop.f32.mrb[0].mxu0
      %6901 = vmatprep.mubr.f32.mxu0 0.0
      %6902 = vmatmul.mubr.f32.gmra.mrb[0].mxu0 %v6236
      %v6903 = vpop.f32.mrb[0].mxu0
      %v6904 = vadd.f32 %v5906, %v6903
      %v6905 = vpop.f32.mrb[0].mxu0
      %6906 = vmatprep.mubr.f32.mxu0 0.0
      %6907 = vmatmul.mubr.f32.gmra.mrb[0].mxu0 %v6239
      %v6908 = vpop.f32.mrb[0].mxu0
      %v6909 = vadd.f32 %v5906, %v6908
      %v6910 = vpop.f32.mrb[0].mxu0
      %6911 = vmatprep.mubr.f32.mxu0 0.0
      %6912 = vmatmul.mubr.f32.gmra.mrb[0].mxu0 %v6242
      %v6913 = vpop.f32.mrb[0].mxu0
      %v6914 = vadd.f32 %v5906, %v6913
      %v6915 = vpop.f32.mrb[0].mxu0
      %6916 = vmatprep.mubr.f32.mxu0 0.0
      %6917 = vmatmul.mubr.f32.gmra.mrb[0].mxu0 %v6245
      %v6918 = vpop.f32.mrb[0].mxu0
      %v6919 = vadd.f32 %v5906, %v6918
      %v6920 = vpop.f32.mrb[0].mxu0
      %6921 = vmatprep.mubr.f32.mxu0 0.0
      %6922 = vmatmul.mubr.f32.gmra.mrb[0].mxu0 %v6248
      %v6923 = vpop.f32.mrb[0].mxu0
      %v6924 = vadd.f32 %v5906, %v6923
      %v6925 = vpop.f32.mrb[0].mxu0
      %6926 = vmatprep.mubr.f32.mxu0 0.0
      %6927 = vmatmul.mubr.f32.gmra.mrb[0].mxu0 %v6251
      %v6928 = vpop.f32.mrb[0].mxu0
      %v6929 = vadd.f32 %v5906, %v6928
      %v6930 = vpop.f32.mrb[0].mxu0
      %6931 = vmatprep.mubr.f32.mxu0 0.0
      %6932 = vmatmul.mubr.f32.gmra.mrb[0].mxu0 %v6254
      %v6933 = vpop.f32.mrb[0].mxu0
      %v6934 = vadd.f32 %v5906, %v6933
      %v6935 = vpop.f32.mrb[0].mxu0
      %6936 = vmatprep.mubr.f32.mxu0 0.0
      %6937 = vmatmul.mubr.f32.gmra.mrb[0].mxu0 %v6257
      %v6938 = vpop.f32.mrb[0].mxu0
      %v6939 = vadd.f32 %v5906, %v6938
      %v6940 = vpop.f32.mrb[0].mxu0
      %6941 = vmatprep.mubr.f32.mxu0 0.0
      %6942 = vmatmul.mubr.f32.gmra.mrb[0].mxu0 %v6260
      %v6943 = vpop.f32.mrb[0].mxu0
      %v6944 = vadd.f32 %v5906, %v6943
      %v6945 = vpop.f32.mrb[0].mxu0
      %6946 = vmatprep.mubr.f32.mxu0 0.0
      %6947 = vmatmul.mubr.f32.gmra.mrb[0].mxu0 %v6263
      %v6948 = vpop.f32.mrb[0].mxu0
      %v6949 = vadd.f32 %v5906, %v6948
      %v6950 = vpop.f32.mrb[0].mxu0
      %6951 = vmatprep.mubr.f32.mxu0 0.0
      %6952 = vmatmul.mubr.f32.gmra.mrb[0].mxu0 %v6266
      %v6953 = vpop.f32.mrb[0].mxu0
      %v6954 = vadd.f32 %v5906, %v6953
      %v6955 = vpop.f32.mrb[0].mxu0
      %6956 = vmatprep.mubr.f32.mxu0 0.0
      %6957 = vmatmul.mubr.f32.gmra.mrb[0].mxu0 %v6269
      %v6958 = vpop.f32.mrb[0].mxu0
      %v6959 = vadd.f32 %v5906, %v6958
      %v6960 = vpop.f32.mrb[0].mxu0
      %6961 = vmatprep.mubr.f32.mxu0 0.0
      %6962 = vmatmul.mubr.f32.gmra.mrb[0].mxu0 %v6272
      %v6963 = vpop.f32.mrb[0].mxu0
      %v6964 = vadd.f32 %v5906, %v6963
      %v6965 = vpop.f32.mrb[0].mxu0
      %6966 = vmatprep.mubr.f32.mxu0 0.0
      %6967 = vmatmul.mubr.f32.gmra.mrb[0].mxu0 %v6275
      %v6968 = vpop.f32.mrb[0].mxu0
      %v6969 = vadd.f32 %v5906, %v6968
      %v6970 = vpop.f32.mrb[0].mxu0
      %6971 = vmatprep.mubr.f32.mxu0 0.0
      %6972 = vmatmul.mubr.f32.gmra.mrb[0].mxu0 %v6278
      %v6973 = vpop.f32.mrb[0].mxu0
      %v6974 = vadd.f32 %v5906, %v6973
      %v6975 = vpop.f32.mrb[0].mxu0
      %6976 = vmatprep.mubr.f32.mxu0 0.0
      %6977 = vmatmul.mubr.f32.gmra.mrb[0].mxu0 %v6281
      %v6978 = vpop.f32.mrb[0].mxu0
      %v6979 = vadd.f32 %v5906, %v6978
      %v6980 = vpop.f32.mrb[0].mxu0
      %6981 = vmatprep.mubr.f32.mxu0 0.0
      %6982 = vmatmul.mubr.f32.gmra.mrb[0].mxu0 %v6284
      %v6983 = vpop.f32.mrb[0].mxu0
      %v6984 = vadd.f32 %v5906, %v6983
      %v6985 = vpop.f32.mrb[0].mxu0
      %6986 = vmatprep.mubr.f32.mxu0 0.0
      %6987 = vmatmul.mubr.f32.gmra.mrb[0].mxu0 %v6287
      %v6988 = vpop.f32.mrb[0].mxu0
      %v6989 = vadd.f32 %v5906, %v6988
      %v6990 = vpop.f32.mrb[0].mxu0
      %6991 = vmatprep.mubr.f32.mxu0 0.0
      %6992 = vmatmul.mubr.f32.gmra.mrb[0].mxu0 %v6290
      %v6993 = vpop.f32.mrb[0].mxu0
      %v6994 = vadd.f32 %v5906, %v6993
      %v6995 = vpop.f32.mrb[0].mxu0
      %6996 = vdwg.mxu0
      %6997 = vst.msk [vmem:[%s418] sm:$0xff] %vm563, %v6359
      %6998 = vst.msk [vmem:[%s418 + $0x8] sm:$0xff] %vm563, %v6364
      %6999 = vst.msk [vmem:[%s418 + $0x10] sm:$0xff] %vm563, %v6369
      %7000 = vst.msk [vmem:[%s418 + $0x18] sm:$0xff] %vm563, %v6374
      %7001 = vst.msk [vmem:[%s418 + $0x20] sm:$0xff] %vm563, %v6379
      %7002 = vst.msk [vmem:[%s418 + $0x28] sm:$0xff] %vm563, %v6384
      %7003 = vst.msk [vmem:[%s418 + $0x30] sm:$0xff] %vm563, %v6389
      %7004 = vst.msk [vmem:[%s418 + $0x38] sm:$0xff] %vm563, %v6394
      %7005 = vst.msk [vmem:[%s418 + $0x40] sm:$0xff] %vm563, %v6399
      %7006 = vst.msk [vmem:[%s418 + $0x48] sm:$0xff] %vm563, %v6404
      %7007 = vst.msk [vmem:[%s418 + $0x50] sm:$0xff] %vm563, %v6409
      %7008 = vst.msk [vmem:[%s418 + $0x58] sm:$0xff] %vm563, %v6414
      %7009 = vst.msk [vmem:[%s418 + $0x60] sm:$0xff] %vm563, %v6419
      %7010 = vst.msk [vmem:[%s418 + $0x68] sm:$0xff] %vm563, %v6424
      %7011 = vst.msk [vmem:[%s418 + $0x70] sm:$0xff] %vm563, %v6429
      %7012 = vst.msk [vmem:[%s418 + $0x78] sm:$0xff] %vm563, %v6434
      %7013 = vst.msk [vmem:[%s418 + $0x80] sm:$0xff] %vm563, %v6439
      %7014 = vst.msk [vmem:[%s418 + $0x88] sm:$0xff] %vm563, %v6444
      %7015 = vst.msk [vmem:[%s418 + $0x90] sm:$0xff] %vm563, %v6449
      %7016 = vst.msk [vmem:[%s418 + $0x98] sm:$0xff] %vm563, %v6454
      %7017 = vst.msk [vmem:[%s418 + $0xa0] sm:$0xff] %vm563, %v6459
      %7018 = vst.msk [vmem:[%s418 + $0xa8] sm:$0xff] %vm563, %v6464
      %7019 = vst.msk [vmem:[%s418 + $0xb0] sm:$0xff] %vm563, %v6469
      %7020 = vst.msk [vmem:[%s418 + $0xb8] sm:$0xff] %vm563, %v6474
      %7021 = vst.msk [vmem:[%s418 + $0xc0] sm:$0xff] %vm563, %v6479
      %7022 = vst.msk [vmem:[%s418 + $0xc8] sm:$0xff] %vm563, %v6484
      %7023 = vst.msk [vmem:[%s418 + $0xd0] sm:$0xff] %vm563, %v6489
      %7024 = vst.msk [vmem:[%s418 + $0xd8] sm:$0xff] %vm563, %v6494
      %7025 = vst.msk [vmem:[%s418 + $0xe0] sm:$0xff] %vm563, %v6499
      %7026 = vst.msk [vmem:[%s418 + $0xe8] sm:$0xff] %vm563, %v6504
      %7027 = vst.msk [vmem:[%s418 + $0xf0] sm:$0xff] %vm563, %v6509
      %7028 = vst.msk [vmem:[%s418 + $0xf8] sm:$0xff] %vm563, %v6514
      %7029 = vst.msk [vmem:[%s418 + $0x100] sm:$0xff] %vm563, %v6519
      %7030 = vst.msk [vmem:[%s418 + $0x108] sm:$0xff] %vm563, %v6524
      %7031 = vst.msk [vmem:[%s418 + $0x110] sm:$0xff] %vm563, %v6529
      %7032 = vst.msk [vmem:[%s418 + $0x118] sm:$0xff] %vm563, %v6534
      %7033 = vst.msk [vmem:[%s418 + $0x120] sm:$0xff] %vm563, %v6539
      %7034 = vst.msk [vmem:[%s418 + $0x128] sm:$0xff] %vm563, %v6544
      %7035 = vst.msk [vmem:[%s418 + $0x130] sm:$0xff] %vm563, %v6549
      %7036 = vst.msk [vmem:[%s418 + $0x138] sm:$0xff] %vm563, %v6554
      %7037 = vst.msk [vmem:[%s418 + $0x140] sm:$0xff] %vm563, %v6559
      %7038 = vst.msk [vmem:[%s418 + $0x148] sm:$0xff] %vm563, %v6564
      %7039 = vst.msk [vmem:[%s418 + $0x150] sm:$0xff] %vm563, %v6569
      %7040 = vst.msk [vmem:[%s418 + $0x158] sm:$0xff] %vm563, %v6574
      %7041 = vst.msk [vmem:[%s418 + $0x160] sm:$0xff] %vm563, %v6579
      %7042 = vst.msk [vmem:[%s418 + $0x168] sm:$0xff] %vm563, %v6584
      %7043 = vst.msk [vmem:[%s418 + $0x170] sm:$0xff] %vm563, %v6589
      %7044 = vst.msk [vmem:[%s418 + $0x178] sm:$0xff] %vm563, %v6594
      %7045 = vst.msk [vmem:[%s418 + $0x180] sm:$0xff] %vm563, %v6599
      %7046 = vst.msk [vmem:[%s418 + $0x188] sm:$0xff] %vm563, %v6604
      %7047 = vst.msk [vmem:[%s418 + $0x190] sm:$0xff] %vm563, %v6609
      %7048 = vst.msk [vmem:[%s418 + $0x198] sm:$0xff] %vm563, %v6614
      %7049 = vst.msk [vmem:[%s418 + $0x1a0] sm:$0xff] %vm563, %v6619
      %7050 = vst.msk [vmem:[%s418 + $0x1a8] sm:$0xff] %vm563, %v6624
      %7051 = vst.msk [vmem:[%s418 + $0x1b0] sm:$0xff] %vm563, %v6629
      %7052 = vst.msk [vmem:[%s418 + $0x1b8] sm:$0xff] %vm563, %v6634
      %7053 = vst.msk [vmem:[%s418 + $0x1c0] sm:$0xff] %vm563, %v6639
      %7054 = vst.msk [vmem:[%s418 + $0x1c8] sm:$0xff] %vm563, %v6644
      %7055 = vst.msk [vmem:[%s418 + $0x1d0] sm:$0xff] %vm563, %v6649
      %7056 = vst.msk [vmem:[%s418 + $0x1d8] sm:$0xff] %vm563, %v6654
      %7057 = vst.msk [vmem:[%s418 + $0x1e0] sm:$0xff] %vm563, %v6659
      %7058 = vst.msk [vmem:[%s418 + $0x1e8] sm:$0xff] %vm563, %v6664
      %7059 = vst.msk [vmem:[%s418 + $0x1f0] sm:$0xff] %vm563, %v6669
      %7060 = vst.msk [vmem:[%s418 + $0x1f8] sm:$0xff] %vm563, %v6674
      %7061 = vst.msk [vmem:[%s418 + $0x200] sm:$0xff] %vm563, %v6679
      %7062 = vst.msk [vmem:[%s418 + $0x208] sm:$0xff] %vm563, %v6684
      %7063 = vst.msk [vmem:[%s418 + $0x210] sm:$0xff] %vm563, %v6689
      %7064 = vst.msk [vmem:[%s418 + $0x218] sm:$0xff] %vm563, %v6694
      %7065 = vst.msk [vmem:[%s418 + $0x220] sm:$0xff] %vm563, %v6699
      %7066 = vst.msk [vmem:[%s418 + $0x228] sm:$0xff] %vm563, %v6704
      %7067 = vst.msk [vmem:[%s418 + $0x230] sm:$0xff] %vm563, %v6709
      %7068 = vst.msk [vmem:[%s418 + $0x238] sm:$0xff] %vm563, %v6714
      %7069 = vst.msk [vmem:[%s418 + $0x240] sm:$0xff] %vm563, %v6719
      %7070 = vst.msk [vmem:[%s418 + $0x248] sm:$0xff] %vm563, %v6724
      %7071 = vst.msk [vmem:[%s418 + $0x250] sm:$0xff] %vm563, %v6729
      %7072 = vst.msk [vmem:[%s418 + $0x258] sm:$0xff] %vm563, %v6734
      %7073 = vst.msk [vmem:[%s418 + $0x260] sm:$0xff] %vm563, %v6739
      %7074 = vst.msk [vmem:[%s418 + $0x268] sm:$0xff] %vm563, %v6744
      %7075 = vst.msk [vmem:[%s418 + $0x270] sm:$0xff] %vm563, %v6749
      %7076 = vst.msk [vmem:[%s418 + $0x278] sm:$0xff] %vm563, %v6754
      %7077 = vst.msk [vmem:[%s418 + $0x280] sm:$0xff] %vm563, %v6759
      %7078 = vst.msk [vmem:[%s418 + $0x288] sm:$0xff] %vm563, %v6764
      %7079 = vst.msk [vmem:[%s418 + $0x290] sm:$0xff] %vm563, %v6769
      %7080 = vst.msk [vmem:[%s418 + $0x298] sm:$0xff] %vm563, %v6774
      %7081 = vst.msk [vmem:[%s418 + $0x2a0] sm:$0xff] %vm563, %v6779
      %7082 = vst.msk [vmem:[%s418 + $0x2a8] sm:$0xff] %vm563, %v6784
      %7083 = vst.msk [vmem:[%s418 + $0x2b0] sm:$0xff] %vm563, %v6789
      %7084 = vst.msk [vmem:[%s418 + $0x2b8] sm:$0xff] %vm563, %v6794
      %7085 = vst.msk [vmem:[%s418 + $0x2c0] sm:$0xff] %vm563, %v6799
      %7086 = vst.msk [vmem:[%s418 + $0x2c8] sm:$0xff] %vm563, %v6804
      %7087 = vst.msk [vmem:[%s418 + $0x2d0] sm:$0xff] %vm563, %v6809
      %7088 = vst.msk [vmem:[%s418 + $0x2d8] sm:$0xff] %vm563, %v6814
      %7089 = vst.msk [vmem:[%s418 + $0x2e0] sm:$0xff] %vm563, %v6819
      %7090 = vst.msk [vmem:[%s418 + $0x2e8] sm:$0xff] %vm563, %v6824
      %7091 = vst.msk [vmem:[%s418 + $0x2f0] sm:$0xff] %vm563, %v6829
      %7092 = vst.msk [vmem:[%s418 + $0x2f8] sm:$0xff] %vm563, %v6834
      %7093 = vst.msk [vmem:[%s418 + $0x300] sm:$0xff] %vm563, %v6839
      %7094 = vst.msk [vmem:[%s418 + $0x308] sm:$0xff] %vm563, %v6844
      %7095 = vst.msk [vmem:[%s418 + $0x310] sm:$0xff] %vm563, %v6849
      %7096 = vst.msk [vmem:[%s418 + $0x318] sm:$0xff] %vm563, %v6854
      %7097 = vst.msk [vmem:[%s418 + $0x320] sm:$0xff] %vm563, %v6859
      %7098 = vst.msk [vmem:[%s418 + $0x328] sm:$0xff] %vm563, %v6864
      %7099 = vst.msk [vmem:[%s418 + $0x330] sm:$0xff] %vm563, %v6869
      %7100 = vst.msk [vmem:[%s418 + $0x338] sm:$0xff] %vm563, %v6874
      %7101 = vst.msk [vmem:[%s418 + $0x340] sm:$0xff] %vm563, %v6879
      %7102 = vst.msk [vmem:[%s418 + $0x348] sm:$0xff] %vm563, %v6884
      %7103 = vst.msk [vmem:[%s418 + $0x350] sm:$0xff] %vm563, %v6889
      %7104 = vst.msk [vmem:[%s418 + $0x358] sm:$0xff] %vm563, %v6894
      %7105 = vst.msk [vmem:[%s418 + $0x360] sm:$0xff] %vm563, %v6899
      %7106 = vst.msk [vmem:[%s418 + $0x368] sm:$0xff] %vm563, %v6904
      %7107 = vst.msk [vmem:[%s418 + $0x370] sm:$0xff] %vm563, %v6909
      %7108 = vst.msk [vmem:[%s418 + $0x378] sm:$0xff] %vm563, %v6914
      %7109 = vst.msk [vmem:[%s418 + $0x380] sm:$0xff] %vm563, %v6919
      %7110 = vst.msk [vmem:[%s418 + $0x388] sm:$0xff] %vm563, %v6924
      %7111 = vst.msk [vmem:[%s418 + $0x390] sm:$0xff] %vm563, %v6929
      %7112 = vst.msk [vmem:[%s418 + $0x398] sm:$0xff] %vm563, %v6934
      %7113 = vst.msk [vmem:[%s418 + $0x3a0] sm:$0xff] %vm563, %v6939
      %7114 = vst.msk [vmem:[%s418 + $0x3a8] sm:$0xff] %vm563, %v6944
      %7115 = vst.msk [vmem:[%s418 + $0x3b0] sm:$0xff] %vm563, %v6949
      %7116 = vst.msk [vmem:[%s418 + $0x3b8] sm:$0xff] %vm563, %v6954
      %7117 = vst.msk [vmem:[%s418 + $0x3c0] sm:$0xff] %vm563, %v6959
      %7118 = vst.msk [vmem:[%s418 + $0x3c8] sm:$0xff] %vm563, %v6964
      %7119 = vst.msk [vmem:[%s418 + $0x3d0] sm:$0xff] %vm563, %v6969
      %7120 = vst.msk [vmem:[%s418 + $0x3d8] sm:$0xff] %vm563, %v6974
      %7121 = vst.msk [vmem:[%s418 + $0x3e0] sm:$0xff] %vm563, %v6979
      %7122 = vst.msk [vmem:[%s418 + $0x3e8] sm:$0xff] %vm563, %v6984
      %7123 = vst.msk [vmem:[%s418 + $0x3f0] sm:$0xff] %vm563, %v6989
      %7124 = vst.msk [vmem:[%s418 + $0x3f8] sm:$0xff] %vm563, %v6994
      %7125 = vst.msk [vmem:[%s424] sm:$0xff] %vm563, %v2500
      %7126 = vst.msk [vmem:[%s424 + $0x8] sm:$0xff] %vm563, %v2505
      %7127 = vst.msk [vmem:[%s424 + $0x10] sm:$0xff] %vm563, %v2510
      %7128 = vst.msk [vmem:[%s424 + $0x18] sm:$0xff] %vm563, %v2515
      %7129 = vst.msk [vmem:[%s424 + $0x20] sm:$0xff] %vm563, %v2520
      %7130 = vst.msk [vmem:[%s424 + $0x28] sm:$0xff] %vm563, %v2525
      %7131 = vst.msk [vmem:[%s424 + $0x30] sm:$0xff] %vm563, %v2530
      %7132 = vst.msk [vmem:[%s424 + $0x38] sm:$0xff] %vm563, %v2535
      %7133 = vst.msk [vmem:[%s424 + $0x40] sm:$0xff] %vm563, %v2540
      %7134 = vst.msk [vmem:[%s424 + $0x48] sm:$0xff] %vm563, %v2545
      %7135 = vst.msk [vmem:[%s424 + $0x50] sm:$0xff] %vm563, %v2550
      %7136 = vst.msk [vmem:[%s424 + $0x58] sm:$0xff] %vm563, %v2555
      %7137 = vst.msk [vmem:[%s424 + $0x60] sm:$0xff] %vm563, %v2560
      %7138 = vst.msk [vmem:[%s424 + $0x68] sm:$0xff] %vm563, %v2565
      %7139 = vst.msk [vmem:[%s424 + $0x70] sm:$0xff] %vm563, %v2570
      %7140 = vst.msk [vmem:[%s424 + $0x78] sm:$0xff] %vm563, %v2575
      %7141 = vst.msk [vmem:[%s424 + $0x80] sm:$0xff] %vm563, %v2580
      %7142 = vst.msk [vmem:[%s424 + $0x88] sm:$0xff] %vm563, %v2585
      %7143 = vst.msk [vmem:[%s424 + $0x90] sm:$0xff] %vm563, %v2590
      %7144 = vst.msk [vmem:[%s424 + $0x98] sm:$0xff] %vm563, %v2595
      %7145 = vst.msk [vmem:[%s424 + $0xa0] sm:$0xff] %vm563, %v2600
      %7146 = vst.msk [vmem:[%s424 + $0xa8] sm:$0xff] %vm563, %v2605
      %7147 = vst.msk [vmem:[%s424 + $0xb0] sm:$0xff] %vm563, %v2610
      %7148 = vst.msk [vmem:[%s424 + $0xb8] sm:$0xff] %vm563, %v2615
      %7149 = vst.msk [vmem:[%s424 + $0xc0] sm:$0xff] %vm563, %v2620
      %7150 = vst.msk [vmem:[%s424 + $0xc8] sm:$0xff] %vm563, %v2625
      %7151 = vst.msk [vmem:[%s424 + $0xd0] sm:$0xff] %vm563, %v2630
      %7152 = vst.msk [vmem:[%s424 + $0xd8] sm:$0xff] %vm563, %v2635
      %7153 = vst.msk [vmem:[%s424 + $0xe0] sm:$0xff] %vm563, %v2640
      %7154 = vst.msk [vmem:[%s424 + $0xe8] sm:$0xff] %vm563, %v2645
      %7155 = vst.msk [vmem:[%s424 + $0xf0] sm:$0xff] %vm563, %v2650
      %7156 = vst.msk [vmem:[%s424 + $0xf8] sm:$0xff] %vm563, %v2655
      %7157 = vst.msk [vmem:[%s424 + $0x100] sm:$0xff] %vm563, %v2660
      %7158 = vst.msk [vmem:[%s424 + $0x108] sm:$0xff] %vm563, %v2665
      %7159 = vst.msk [vmem:[%s424 + $0x110] sm:$0xff] %vm563, %v2670
      %7160 = vst.msk [vmem:[%s424 + $0x118] sm:$0xff] %vm563, %v2675
      %7161 = vst.msk [vmem:[%s424 + $0x120] sm:$0xff] %vm563, %v2680
      %7162 = vst.msk [vmem:[%s424 + $0x128] sm:$0xff] %vm563, %v2685
      %7163 = vst.msk [vmem:[%s424 + $0x130] sm:$0xff] %vm563, %v2690
      %7164 = vst.msk [vmem:[%s424 + $0x138] sm:$0xff] %vm563, %v2695
      %7165 = vst.msk [vmem:[%s424 + $0x140] sm:$0xff] %vm563, %v2700
      %7166 = vst.msk [vmem:[%s424 + $0x148] sm:$0xff] %vm563, %v2705
      %7167 = vst.msk [vmem:[%s424 + $0x150] sm:$0xff] %vm563, %v2710
      %7168 = vst.msk [vmem:[%s424 + $0x158] sm:$0xff] %vm563, %v2715
      %7169 = vst.msk [vmem:[%s424 + $0x160] sm:$0xff] %vm563, %v2720
      %7170 = vst.msk [vmem:[%s424 + $0x168] sm:$0xff] %vm563, %v2725
      %7171 = vst.msk [vmem:[%s424 + $0x170] sm:$0xff] %vm563, %v2730
      %7172 = vst.msk [vmem:[%s424 + $0x178] sm:$0xff] %vm563, %v2735
      %7173 = vst.msk [vmem:[%s424 + $0x180] sm:$0xff] %vm563, %v2740
      %7174 = vst.msk [vmem:[%s424 + $0x188] sm:$0xff] %vm563, %v2745
      %7175 = vst.msk [vmem:[%s424 + $0x190] sm:$0xff] %vm563, %v2750
      %7176 = vst.msk [vmem:[%s424 + $0x198] sm:$0xff] %vm563, %v2755
      %7177 = vst.msk [vmem:[%s424 + $0x1a0] sm:$0xff] %vm563, %v2760
      %7178 = vst.msk [vmem:[%s424 + $0x1a8] sm:$0xff] %vm563, %v2765
      %7179 = vst.msk [vmem:[%s424 + $0x1b0] sm:$0xff] %vm563, %v2770
      %7180 = vst.msk [vmem:[%s424 + $0x1b8] sm:$0xff] %vm563, %v2775
      %7181 = vst.msk [vmem:[%s424 + $0x1c0] sm:$0xff] %vm563, %v2780
      %7182 = vst.msk [vmem:[%s424 + $0x1c8] sm:$0xff] %vm563, %v2785
      %7183 = vst.msk [vmem:[%s424 + $0x1d0] sm:$0xff] %vm563, %v2790
      %7184 = vst.msk [vmem:[%s424 + $0x1d8] sm:$0xff] %vm563, %v2795
      %7185 = vst.msk [vmem:[%s424 + $0x1e0] sm:$0xff] %vm563, %v2800
      %7186 = vst.msk [vmem:[%s424 + $0x1e8] sm:$0xff] %vm563, %v2805
      %7187 = vst.msk [vmem:[%s424 + $0x1f0] sm:$0xff] %vm563, %v2810
      %7188 = vst.msk [vmem:[%s424 + $0x1f8] sm:$0xff] %vm563, %v2815
      %7189 = vst.msk [vmem:[%s424 + $0x200] sm:$0xff] %vm563, %v2820
      %7190 = vst.msk [vmem:[%s424 + $0x208] sm:$0xff] %vm563, %v2825
      %7191 = vst.msk [vmem:[%s424 + $0x210] sm:$0xff] %vm563, %v2830
      %7192 = vst.msk [vmem:[%s424 + $0x218] sm:$0xff] %vm563, %v2835
      %7193 = vst.msk [vmem:[%s424 + $0x220] sm:$0xff] %vm563, %v2840
      %7194 = vst.msk [vmem:[%s424 + $0x228] sm:$0xff] %vm563, %v2845
      %7195 = vst.msk [vmem:[%s424 + $0x230] sm:$0xff] %vm563, %v2850
      %7196 = vst.msk [vmem:[%s424 + $0x238] sm:$0xff] %vm563, %v2855
      %7197 = vst.msk [vmem:[%s424 + $0x240] sm:$0xff] %vm563, %v2860
      %7198 = vst.msk [vmem:[%s424 + $0x248] sm:$0xff] %vm563, %v2865
      %7199 = vst.msk [vmem:[%s424 + $0x250] sm:$0xff] %vm563, %v2870
      %7200 = vst.msk [vmem:[%s424 + $0x258] sm:$0xff] %vm563, %v2875
      %7201 = vst.msk [vmem:[%s424 + $0x260] sm:$0xff] %vm563, %v2880
      %7202 = vst.msk [vmem:[%s424 + $0x268] sm:$0xff] %vm563, %v2885
      %7203 = vst.msk [vmem:[%s424 + $0x270] sm:$0xff] %vm563, %v2890
      %7204 = vst.msk [vmem:[%s424 + $0x278] sm:$0xff] %vm563, %v2895
      %7205 = vst.msk [vmem:[%s424 + $0x280] sm:$0xff] %vm563, %v2900
      %7206 = vst.msk [vmem:[%s424 + $0x288] sm:$0xff] %vm563, %v2905
      %7207 = vst.msk [vmem:[%s424 + $0x290] sm:$0xff] %vm563, %v2910
      %7208 = vst.msk [vmem:[%s424 + $0x298] sm:$0xff] %vm563, %v2915
      %7209 = vst.msk [vmem:[%s424 + $0x2a0] sm:$0xff] %vm563, %v2920
      %7210 = vst.msk [vmem:[%s424 + $0x2a8] sm:$0xff] %vm563, %v2925
      %7211 = vst.msk [vmem:[%s424 + $0x2b0] sm:$0xff] %vm563, %v2930
      %7212 = vst.msk [vmem:[%s424 + $0x2b8] sm:$0xff] %vm563, %v2935
      %7213 = vst.msk [vmem:[%s424 + $0x2c0] sm:$0xff] %vm563, %v2940
      %7214 = vst.msk [vmem:[%s424 + $0x2c8] sm:$0xff] %vm563, %v2945
      %7215 = vst.msk [vmem:[%s424 + $0x2d0] sm:$0xff] %vm563, %v2950
      %7216 = vst.msk [vmem:[%s424 + $0x2d8] sm:$0xff] %vm563, %v2955
      %7217 = vst.msk [vmem:[%s424 + $0x2e0] sm:$0xff] %vm563, %v2960
      %7218 = vst.msk [vmem:[%s424 + $0x2e8] sm:$0xff] %vm563, %v2965
      %7219 = vst.msk [vmem:[%s424 + $0x2f0] sm:$0xff] %vm563, %v2970
      %7220 = vst.msk [vmem:[%s424 + $0x2f8] sm:$0xff] %vm563, %v2975
      %7221 = vst.msk [vmem:[%s424 + $0x300] sm:$0xff] %vm563, %v2980
      %7222 = vst.msk [vmem:[%s424 + $0x308] sm:$0xff] %vm563, %v2985
      %7223 = vst.msk [vmem:[%s424 + $0x310] sm:$0xff] %vm563, %v2990
      %7224 = vst.msk [vmem:[%s424 + $0x318] sm:$0xff] %vm563, %v2995
      %7225 = vst.msk [vmem:[%s424 + $0x320] sm:$0xff] %vm563, %v3000
      %7226 = vst.msk [vmem:[%s424 + $0x328] sm:$0xff] %vm563, %v3005
      %7227 = vst.msk [vmem:[%s424 + $0x330] sm:$0xff] %vm563, %v3010
      %7228 = vst.msk [vmem:[%s424 + $0x338] sm:$0xff] %vm563, %v3015
      %7229 = vst.msk [vmem:[%s424 + $0x340] sm:$0xff] %vm563, %v3020
      %7230 = vst.msk [vmem:[%s424 + $0x348] sm:$0xff] %vm563, %v3025
      %7231 = vst.msk [vmem:[%s424 + $0x350] sm:$0xff] %vm563, %v3030
      %7232 = vst.msk [vmem:[%s424 + $0x358] sm:$0xff] %vm563, %v3035
      %7233 = vst.msk [vmem:[%s424 + $0x360] sm:$0xff] %vm563, %v3040
      %7234 = vst.msk [vmem:[%s424 + $0x368] sm:$0xff] %vm563, %v3045
      %7235 = vst.msk [vmem:[%s424 + $0x370] sm:$0xff] %vm563, %v3050
      %7236 = vst.msk [vmem:[%s424 + $0x378] sm:$0xff] %vm563, %v3055
      %7237 = vst.msk [vmem:[%s424 + $0x380] sm:$0xff] %vm563, %v3060
      %7238 = vst.msk [vmem:[%s424 + $0x388] sm:$0xff] %vm563, %v3065
      %7239 = vst.msk [vmem:[%s424 + $0x390] sm:$0xff] %vm563, %v3070
      %7240 = vst.msk [vmem:[%s424 + $0x398] sm:$0xff] %vm563, %v3075
      %7241 = vst.msk [vmem:[%s424 + $0x3a0] sm:$0xff] %vm563, %v3080
      %7242 = vst.msk [vmem:[%s424 + $0x3a8] sm:$0xff] %vm563, %v3085
      %7243 = vst.msk [vmem:[%s424 + $0x3b0] sm:$0xff] %vm563, %v3090
      %7244 = vst.msk [vmem:[%s424 + $0x3b8] sm:$0xff] %vm563, %v3095
      %7245 = vst.msk [vmem:[%s424 + $0x3c0] sm:$0xff] %vm563, %v3100
      %7246 = vst.msk [vmem:[%s424 + $0x3c8] sm:$0xff] %vm563, %v3105
      %7247 = vst.msk [vmem:[%s424 + $0x3d0] sm:$0xff] %vm563, %v3110
      %7248 = vst.msk [vmem:[%s424 + $0x3d8] sm:$0xff] %vm563, %v3115
      %7249 = vst.msk [vmem:[%s424 + $0x3e0] sm:$0xff] %vm563, %v3120
      %7250 = vst.msk [vmem:[%s424 + $0x3e8] sm:$0xff] %vm563, %v3125
      %7251 = vst.msk [vmem:[%s424 + $0x3f0] sm:$0xff] %vm563, %v3130
      %7252 = vst.msk [vmem:[%s424 + $0x3f8] sm:$0xff] %vm563, %v3135
      %s7253 = smul.u32 128, %s23
      %p7254 = scmp.lt.s32.totalorder %s7253, 255
      %s7255 = scalar_select %p7254, %s7253, 255
      %s7256 = smul.addr %s7255, 8
      %s7257 = scalar_lea.vmem %s10, %s7256
      %s7258 = smul.u32 128, %s23
      %p7259 = scmp.lt.s32.totalorder %s7258, 255
      %s7260 = scalar_select %p7259, %s7258, 255
      %s7261 = smul.addr %s7260, 8
      %s7262 = scalar_lea.vmem %s11, %s7261
      // Predicated region
      $region61: #{vae_forward.1} parent=59 // pred_check
        %p7263 = pneg %p261
      $region62: #{vae_forward.1} parent=59 // pred_check_branch
        %7265 = sbr.rel (%p7263) target = $region64
      $region63: #{vae_forward.1} parent=59 // pred_region
        %s7266 = smul.u32 128, %s23
      $region64: #{vae_forward.1} parent=59 // pred_fallthru
        _
      // Predicated region
      $region65: #{vae_forward.1} parent=59 // pred_check
        %p7267 = pneg %p287
      $region66: #{vae_forward.1} parent=59 // pred_check_branch
        %7269 = sbr.rel (%p7267) target = $region68
      $region67: #{vae_forward.1} parent=59 // pred_region
        %s7270 = smul.u32 128, %s23
      $region68: #{vae_forward.1} parent=59 // pred_fallthru
        _
    $region60: #{vae_forward.1} parent=5 // pred_fallthru
      _
    %p7271 = scmp.le.s32.totalorder 2, %s18
    // Predicated region
    $region69: #{vae_forward.1} parent=5 // pred_check
      %p7272 = pneg %p7271
    $region70: #{vae_forward.1} parent=5 // pred_check_branch
      %7274 = sbr.rel (%p7272) target = $region72
    $region71: #{vae_forward.1} parent=5 // pred_region
      %s7275 = ssub.s32 %s18, 2
      // Predicated region
      $region73: #{vae_forward.1} parent=71 // pred_check
        %p7276 = pneg %p267
      $region74: #{vae_forward.1} parent=71 // pred_check_branch
        %7278 = sbr.rel (%p7276) target = $region76
      $region75: #{vae_forward.1} parent=71 // pred_region
        %s7279 = smul.u32 128, %s24
        %p7280 = scmp.lt.s32.totalorder %s7279, 255
        %s7281 = scalar_select %p7280, %s7279, 255
        %s7282 = smul.addr %s7281, 8
        %s7283 = scalar_lea.vmem %s10, %s7282
      $region76: #{vae_forward.1} parent=71 // pred_fallthru
        _
      // Predicated region
      $region77: #{vae_forward.1} parent=71 // pred_check
        %p7284 = pneg %p293
      $region78: #{vae_forward.1} parent=71 // pred_check_branch
        %7286 = sbr.rel (%p7284) target = $region80
      $region79: #{vae_forward.1} parent=71 // pred_region
        %s7287 = smul.u32 128, %s24
        %p7288 = scmp.lt.s32.totalorder %s7287, 255
        %s7289 = scalar_select %p7288, %s7287, 255
        %s7290 = smul.addr %s7289, 8
        %s7291 = scalar_lea.vmem %s11, %s7290
      $region80: #{vae_forward.1} parent=71 // pred_fallthru
        _
    $region72: #{vae_forward.1} parent=5 // pred_fallthru
      _
  $region6: #{vae_forward.1} parent=0 // loop_footer
    %s22 = sadd.s32 1, %s18
  $region7: #{vae_forward.1} parent=0 // loop_footer_branch
    %17 = sbr.rel target = $region3
  $region8: #{vae_forward.1} parent=0 // loop_exit
    _

</llo_original>
